<compile_context>
chip_gen: v7x
topology: tpu7x:2x2x1
jax: 0.10.0
libtpu: 0.0.40
codegen_flags: <defaults>
</compile_context>

<pallas_src>
import jax
import jax.numpy as jnp
import numpy as np
from jax.experimental import pallas as pl
from jax.experimental.pallas import tpu as pltpu


def _sam_kernel(x_ref, ip_ref, w1_ref, b1_ref, w2_ref, b2_ref, w3_ref, b3_ref,
                x1_ref, rest_ref, xp_ref, rp_ref):
    # x_ref : (1, C, H, W)   ip_ref : (1, 3, H, W)
    # w*_ref / b*_ref : flattened f32 weights / biases in SMEM
    # x1_ref: (1, C, H, W)   rest_ref: (1, 3, H, W)
    # xp_ref: (C, H+2, W+2)  VMEM scratch (zero-padded x)
    # rp_ref: (3, H+2, W+2)  VMEM scratch (zero-padded restored image)
    _, C, H, W = x_ref.shape

    # Zero-padded copy of x (padding=1 halo shared by conv1 and conv2).
    xp_ref[...] = jnp.zeros_like(xp_ref)
    xp_ref[:, 1:H + 1, 1:W + 1] = x_ref[0].astype(jnp.float32)

    def conv3x3_chan(src_ref, w_ref, b_ref, cin, co):
        """One output channel of a 3x3 'same' conv: 9*cin scalar-bcast VPU MACs."""
        acc = jnp.zeros((H, W), jnp.float32) + b_ref[co]
        for ci in range(cin):
            for dy in range(3):
                for dx in range(3):
                    wv = w_ref[((co * cin + ci) * 3 + dy) * 3 + dx]
                    acc = acc + wv * src_ref[ci, dy:dy + H, dx:dx + W]
        return acc

    # restored_img = conv2(x) + ip_img   (also build its zero-padded copy).
    rp_ref[...] = jnp.zeros_like(rp_ref)
    for co in range(3):
        r = conv3x3_chan(xp_ref, w2_ref, b2_ref, C, co)
        r = r + ip_ref[0, co].astype(jnp.float32)
        rest_ref[0, co] = r.astype(rest_ref.dtype)
        rp_ref[co, 1:H + 1, 1:W + 1] = r

    # out = conv1(x) * sigmoid(conv3(restored_img)) + x
    for co in range(C):
        y1 = conv3x3_chan(xp_ref, w1_ref, b1_ref, C, co)
        y3 = conv3x3_chan(rp_ref, w3_ref, b3_ref, 3, co)
        attn = jax.nn.sigmoid(y3)                       # EUP
        x1_ref[0, co] = (y1 * attn +
                         x_ref[0, co].astype(jnp.float32)).astype(x1_ref.dtype)


def sam_forward(x, ip_img, w1, w2, w3, b1=None, b2=None, b3=None):
    """Fused SAM forward.  Arrays use PyTorch NCHW / OIHW conventions.

    x: (N, C, H, W); ip_img: (N, 3, H, W)
    w1: (C, C, 3, 3); w2: (3, C, 3, 3); w3: (C, 3, 3, 3)
    b1: (C,)|None;   b2: (3,)|None;    b3: (C,)|None
    Returns (x1, restored_img) with shapes (N, C, H, W), (N, 3, H, W).
    """
    N, C, H, W = x.shape
    assert ip_img.shape == (N, 3, H, W)
    f32 = jnp.float32

    w1f = w1.reshape(-1).astype(f32)
    w2f = w2.reshape(-1).astype(f32)
    w3f = w3.reshape(-1).astype(f32)
    b1f = jnp.zeros((C,), f32) if b1 is None else b1.astype(f32)
    b2f = jnp.zeros((3,), f32) if b2 is None else b2.astype(f32)
    b3f = jnp.zeros((C,), f32) if b3 is None else b3.astype(f32)

    def smem_spec():
        return pl.BlockSpec(memory_space=pltpu.MemorySpace.SMEM)

    grid_spec = pltpu.PrefetchScalarGridSpec(
        num_scalar_prefetch=0,
        grid=(N,),
        in_specs=[
            pl.BlockSpec((1, C, H, W), lambda n: (n, 0, 0, 0)),
            pl.BlockSpec((1, 3, H, W), lambda n: (n, 0, 0, 0)),
            smem_spec(), smem_spec(),   # w1, b1
            smem_spec(), smem_spec(),   # w2, b2
            smem_spec(), smem_spec(),   # w3, b3
        ],
        out_specs=[
            pl.BlockSpec((1, C, H, W), lambda n: (n, 0, 0, 0)),
            pl.BlockSpec((1, 3, H, W), lambda n: (n, 0, 0, 0)),
        ],
        scratch_shapes=[
            pltpu.VMEM((C, H + 2, W + 2), f32),
            pltpu.VMEM((3, H + 2, W + 2), f32),
        ],
    )

    x1, restored = pl.pallas_call(
        _sam_kernel,
        out_shape=(jax.ShapeDtypeStruct((N, C, H, W), x.dtype),
                   jax.ShapeDtypeStruct((N, 3, H, W), x.dtype)),
        grid_spec=grid_spec,
        compiler_params=pltpu.CompilerParams(
            dimension_semantics=("parallel",)),
    )(x, ip_img, w1f, b1f, w2f, b2f, w3f, b3f)
    return x1, restored


# ----------------------------- pure-JAX reference ---------------------------

def _conv3x3_ref(x, w, b):
    y = jax.lax.conv_general_dilated(
        x, w, window_strides=(1, 1), padding=((1, 1), (1, 1)),
        dimension_numbers=("NCHW", "OIHW", "NCHW"))
    if b is not None:
        y = y + b[None, :, None, None]
    return y


def _sam_reference(x, ip_img, w1, w2, w3, b1, b2, b3):
    x1 = _conv3x3_ref(x, w1, b1)
    restored = _conv3x3_ref(x, w2, b2) + ip_img
    attn = jax.nn.sigmoid(_conv3x3_ref(restored, w3, b3))
    return x1 * attn + x, restored


if __name__ == "__main__":
    key = jax.random.PRNGKey(0)
    ks = jax.random.split(key, 8)

    in_c = 4
    N, H, W = 2, 16, 16

    x = jax.random.normal(ks[0], (N, in_c, H, W), dtype=jnp.float32)
    ip_img = jax.random.normal(ks[1], (N, 3, H, W), dtype=jnp.float32)
    # PyTorch-layout conv weights (O, I, 3, 3) and biases (bias=True).
    w1 = jax.random.normal(ks[2], (in_c, in_c, 3, 3), dtype=jnp.float32) * 0.1
    w2 = jax.random.normal(ks[3], (3, in_c, 3, 3), dtype=jnp.float32) * 0.1
    w3 = jax.random.normal(ks[4], (in_c, 3, 3, 3), dtype=jnp.float32) * 0.1
    b1 = jax.random.normal(ks[5], (in_c,), dtype=jnp.float32) * 0.1
    b2 = jax.random.normal(ks[6], (3,), dtype=jnp.float32) * 0.1
    b3 = jax.random.normal(ks[7], (in_c,), dtype=jnp.float32) * 0.1

    x1, restored = sam_forward(x, ip_img, w1, w2, w3, b1, b2, b3)
    (x1, restored) = jax.block_until_ready((x1, restored))

    x1_ref, rest_ref = _sam_reference(x, ip_img, w1, w2, w3, b1, b2, b3)
    np.testing.assert_allclose(np.asarray(restored), np.asarray(rest_ref),
                               rtol=1e-4, atol=1e-4)
    np.testing.assert_allclose(np.asarray(x1), np.asarray(x1_ref),
                               rtol=1e-4, atol=1e-4)
    assert x1.shape == (N, in_c, H, W)
    assert restored.shape == (N, 3, H, W)

    print("KERNEL_OK")
</pallas_src>

<mosaic_0001>
module attributes {stable_mosaic.version = 11 : i64} {
  func.func @_sam_kernel(%arg0: i32, %arg1: memref<1x4x16x16xf32, #tpu.memory_space<vmem>>, %arg2: memref<1x3x16x16xf32, #tpu.memory_space<vmem>>, %arg3: memref<144xf32, #tpu.memory_space<smem>>, %arg4: memref<4xf32, #tpu.memory_space<smem>>, %arg5: memref<108xf32, #tpu.memory_space<smem>>, %arg6: memref<3xf32, #tpu.memory_space<smem>>, %arg7: memref<108xf32, #tpu.memory_space<smem>>, %arg8: memref<4xf32, #tpu.memory_space<smem>>, %arg9: memref<1x4x16x16xf32, #tpu.memory_space<vmem>>, %arg10: memref<1x3x16x16xf32, #tpu.memory_space<vmem>>, %arg11: memref<4x18x18xf32, #tpu.memory_space<vmem>>, %arg12: memref<3x18x18xf32, #tpu.memory_space<vmem>>) attributes {dimension_semantics = [#tpu.dimension_semantics<parallel>], iteration_bounds = array<i64: 2>, scalar_prefetch = 0 : i64, scratch_operands = 2 : i64, tpu.core_type = #tpu.core_type<tc>, window_params = [{transform_indices = @transform_0, window_bounds = array<i64: 1, 4, 16, 16>}, {transform_indices = @transform_1, window_bounds = array<i64: 1, 3, 16, 16>}, {transform_indices = @transform_2, window_bounds = array<i64: 144>}, {transform_indices = @transform_3, window_bounds = array<i64: 4>}, {transform_indices = @transform_4, window_bounds = array<i64: 108>}, {transform_indices = @transform_5, window_bounds = array<i64: 3>}, {transform_indices = @transform_6, window_bounds = array<i64: 108>}, {transform_indices = @transform_7, window_bounds = array<i64: 4>}, {transform_indices = @transform_8, window_bounds = array<i64: 1, 4, 16, 16>}, {transform_indices = @transform_9, window_bounds = array<i64: 1, 3, 16, 16>}]} {
    %cst = arith.constant 0.000000e+00 : f32
    %0 = vector.broadcast %cst : f32 to vector<4x18x18xf32>
    %c0 = arith.constant 0 : index
    %c0_0 = arith.constant 0 : index
    %c0_1 = arith.constant 0 : index
    %1 = vector.load %arg11[%c0, %c0_0, %c0_1] : memref<4x18x18xf32, #tpu.memory_space<vmem>>, vector<4x18x18xf32>
    tpu.vector_store %arg11[%c0, %c0_0, %c0_1], %0 {strides = array<i32>} : memref<4x18x18xf32, #tpu.memory_space<vmem>>, vector<4x18x18xf32>,
    %c0_2 = arith.constant 0 : index
    %c0_3 = arith.constant 0 : index
    %c0_4 = arith.constant 0 : index
    %c0_5 = arith.constant 0 : index
    %2 = vector.load %arg1[%c0_2, %c0_3, %c0_4, %c0_5] : memref<1x4x16x16xf32, #tpu.memory_space<vmem>>, vector<1x4x16x16xf32>
    %3 = vector.shape_cast %2 : vector<1x4x16x16xf32> to vector<4x16x16xf32>
    %c0_6 = arith.constant 0 : index
    %c1 = arith.constant 1 : index
    %c1_7 = arith.constant 1 : index
    %4 = vector.load %arg11[%c0_6, %c1, %c1_7] : memref<4x18x18xf32, #tpu.memory_space<vmem>>, vector<4x16x16xf32>
    tpu.vector_store %arg11[%c0_6, %c1, %c1_7], %3 {strides = array<i32>} : memref<4x18x18xf32, #tpu.memory_space<vmem>>, vector<4x16x16xf32>,
    %cst_8 = arith.constant 0.000000e+00 : f32
    %5 = vector.broadcast %cst_8 : f32 to vector<3x18x18xf32>
    %c0_9 = arith.constant 0 : index
    %c0_10 = arith.constant 0 : index
    %c0_11 = arith.constant 0 : index
    %6 = vector.load %arg12[%c0_9, %c0_10, %c0_11] : memref<3x18x18xf32, #tpu.memory_space<vmem>>, vector<3x18x18xf32>
    tpu.vector_store %arg12[%c0_9, %c0_10, %c0_11], %5 {strides = array<i32>} : memref<3x18x18xf32, #tpu.memory_space<vmem>>, vector<3x18x18xf32>,
    %cst_12 = arith.constant 0.000000e+00 : f32
    %7 = vector.broadcast %cst_12 : f32 to vector<16x16xf32>
    %c0_13 = arith.constant 0 : index
    %8 = memref.load %arg6[%c0_13] : memref<3xf32, #tpu.memory_space<smem>>
    %9 = vector.broadcast %8 : f32 to vector<16x16xf32>
    %10 = arith.addf %7, %9 : vector<16x16xf32>
    %c0_14 = arith.constant 0 : index
    %11 = memref.load %arg5[%c0_14] : memref<108xf32, #tpu.memory_space<smem>>
    %c0_15 = arith.constant 0 : index
    %c0_16 = arith.constant 0 : index
    %c0_17 = arith.constant 0 : index
    %12 = vector.load %arg11[%c0_15, %c0_16, %c0_17] : memref<4x18x18xf32, #tpu.memory_space<vmem>>, vector<1x16x16xf32>
    %13 = vector.shape_cast %12 : vector<1x16x16xf32> to vector<16x16xf32>
    %14 = vector.broadcast %11 : f32 to vector<16x16xf32>
    %15 = arith.mulf %14, %13 : vector<16x16xf32>
    %16 = arith.addf %10, %15 : vector<16x16xf32>
    %c1_18 = arith.constant 1 : index
    %17 = memref.load %arg5[%c1_18] : memref<108xf32, #tpu.memory_space<smem>>
    %c0_19 = arith.constant 0 : index
    %c0_20 = arith.constant 0 : index
    %c1_21 = arith.constant 1 : index
    %18 = vector.load %arg11[%c0_19, %c0_20, %c1_21] : memref<4x18x18xf32, #tpu.memory_space<vmem>>, vector<1x16x16xf32>
    %19 = vector.shape_cast %18 : vector<1x16x16xf32> to vector<16x16xf32>
    %20 = vector.broadcast %17 : f32 to vector<16x16xf32>
    %21 = arith.mulf %20, %19 : vector<16x16xf32>
    %22 = arith.addf %16, %21 : vector<16x16xf32>
    %c2 = arith.constant 2 : index
    %23 = memref.load %arg5[%c2] : memref<108xf32, #tpu.memory_space<smem>>
    %c0_22 = arith.constant 0 : index
    %c0_23 = arith.constant 0 : index
    %c2_24 = arith.constant 2 : index
    %24 = vector.load %arg11[%c0_22, %c0_23, %c2_24] : memref<4x18x18xf32, #tpu.memory_space<vmem>>, vector<1x16x16xf32>
    %25 = vector.shape_cast %24 : vector<1x16x16xf32> to vector<16x16xf32>
    %26 = vector.broadcast %23 : f32 to vector<16x16xf32>
    %27 = arith.mulf %26, %25 : vector<16x16xf32>
    %28 = arith.addf %22, %27 : vector<16x16xf32>
    %c3 = arith.constant 3 : index
    %29 = memref.load %arg5[%c3] : memref<108xf32, #tpu.memory_space<smem>>
    %c0_25 = arith.constant 0 : index
    %c1_26 = arith.constant 1 : index
    %c0_27 = arith.constant 0 : index
    %30 = vector.load %arg11[%c0_25, %c1_26, %c0_27] : memref<4x18x18xf32, #tpu.memory_space<vmem>>, vector<1x16x16xf32>
    %31 = vector.shape_cast %30 : vector<1x16x16xf32> to vector<16x16xf32>
    %32 = vector.broadcast %29 : f32 to vector<16x16xf32>
    %33 = arith.mulf %32, %31 : vector<16x16xf32>
    %34 = arith.addf %28, %33 : vector<16x16xf32>
    %c4 = arith.constant 4 : index
    %35 = memref.load %arg5[%c4] : memref<108xf32, #tpu.memory_space<smem>>
    %c0_28 = arith.constant 0 : index
    %c1_29 = arith.constant 1 : index
    %c1_30 = arith.constant 1 : index
    %36 = vector.load %arg11[%c0_28, %c1_29, %c1_30] : memref<4x18x18xf32, #tpu.memory_space<vmem>>, vector<1x16x16xf32>
    %37 = vector.shape_cast %36 : vector<1x16x16xf32> to vector<16x16xf32>
    %38 = vector.broadcast %35 : f32 to vector<16x16xf32>
    %39 = arith.mulf %38, %37 : vector<16x16xf32>
    %40 = arith.addf %34, %39 : vector<16x16xf32>
    %c5 = arith.constant 5 : index
    %41 = memref.load %arg5[%c5] : memref<108xf32, #tpu.memory_space<smem>>
    %c0_31 = arith.constant 0 : index
    %c1_32 = arith.constant 1 : index
    %c2_33 = arith.constant 2 : index
    %42 = vector.load %arg11[%c0_31, %c1_32, %c2_33] : memref<4x18x18xf32, #tpu.memory_space<vmem>>, vector<1x16x16xf32>
    %43 = vector.shape_cast %42 : vector<1x16x16xf32> to vector<16x16xf32>
    %44 = vector.broadcast %41 : f32 to vector<16x16xf32>
    %45 = arith.mulf %44, %43 : vector<16x16xf32>
    %46 = arith.addf %40, %45 : vector<16x16xf32>
    %c6 = arith.constant 6 : index
    %47 = memref.load %arg5[%c6] : memref<108xf32, #tpu.memory_space<smem>>
    %c0_34 = arith.constant 0 : index
    %c2_35 = arith.constant 2 : index
    %c0_36 = arith.constant 0 : index
    %48 = vector.load %arg11[%c0_34, %c2_35, %c0_36] : memref<4x18x18xf32, #tpu.memory_space<vmem>>, vector<1x16x16xf32>
    %49 = vector.shape_cast %48 : vector<1x16x16xf32> to vector<16x16xf32>
    %50 = vector.broadcast %47 : f32 to vector<16x16xf32>
    %51 = arith.mulf %50, %49 : vector<16x16xf32>
    %52 = arith.addf %46, %51 : vector<16x16xf32>
    %c7 = arith.constant 7 : index
    %53 = memref.load %arg5[%c7] : memref<108xf32, #tpu.memory_space<smem>>
    %c0_37 = arith.constant 0 : index
    %c2_38 = arith.constant 2 : index
    %c1_39 = arith.constant 1 : index
    %54 = vector.load %arg11[%c0_37, %c2_38, %c1_39] : memref<4x18x18xf32, #tpu.memory_space<vmem>>, vector<1x16x16xf32>
    %55 = vector.shape_cast %54 : vector<1x16x16xf32> to vector<16x16xf32>
    %56 = vector.broadcast %53 : f32 to vector<16x16xf32>
    %57 = arith.mulf %56, %55 : vector<16x16xf32>
    %58 = arith.addf %52, %57 : vector<16x16xf32>
    %c8 = arith.constant 8 : index
    %59 = memref.load %arg5[%c8] : memref<108xf32, #tpu.memory_space<smem>>
    %c0_40 = arith.constant 0 : index
    %c2_41 = arith.constant 2 : index
    %c2_42 = arith.constant 2 : index
    %60 = vector.load %arg11[%c0_40, %c2_41, %c2_42] : memref<4x18x18xf32, #tpu.memory_space<vmem>>, vector<1x16x16xf32>
    %61 = vector.shape_cast %60 : vector<1x16x16xf32> to vector<16x16xf32>
    %62 = vector.broadcast %59 : f32 to vector<16x16xf32>
    %63 = arith.mulf %62, %61 : vector<16x16xf32>
    %64 = arith.addf %58, %63 : vector<16x16xf32>
    %c9 = arith.constant 9 : index
    %65 = memref.load %arg5[%c9] : memref<108xf32, #tpu.memory_space<smem>>
    %c1_43 = arith.constant 1 : index
    %c0_44 = arith.constant 0 : index
    %c0_45 = arith.constant 0 : index
    %66 = vector.load %arg11[%c1_43, %c0_44, %c0_45] : memref<4x18x18xf32, #tpu.memory_space<vmem>>, vector<1x16x16xf32>
    %67 = vector.shape_cast %66 : vector<1x16x16xf32> to vector<16x16xf32>
    %68 = vector.broadcast %65 : f32 to vector<16x16xf32>
    %69 = arith.mulf %68, %67 : vector<16x16xf32>
    %70 = arith.addf %64, %69 : vector<16x16xf32>
    %c10 = arith.constant 10 : index
    %71 = memref.load %arg5[%c10] : memref<108xf32, #tpu.memory_space<smem>>
    %c1_46 = arith.constant 1 : index
    %c0_47 = arith.constant 0 : index
    %c1_48 = arith.constant 1 : index
    %72 = vector.load %arg11[%c1_46, %c0_47, %c1_48] : memref<4x18x18xf32, #tpu.memory_space<vmem>>, vector<1x16x16xf32>
    %73 = vector.shape_cast %72 : vector<1x16x16xf32> to vector<16x16xf32>
    %74 = vector.broadcast %71 : f32 to vector<16x16xf32>
    %75 = arith.mulf %74, %73 : vector<16x16xf32>
    %76 = arith.addf %70, %75 : vector<16x16xf32>
    %c11 = arith.constant 11 : index
    %77 = memref.load %arg5[%c11] : memref<108xf32, #tpu.memory_space<smem>>
    %c1_49 = arith.constant 1 : index
    %c0_50 = arith.constant 0 : index
    %c2_51 = arith.constant 2 : index
    %78 = vector.load %arg11[%c1_49, %c0_50, %c2_51] : memref<4x18x18xf32, #tpu.memory_space<vmem>>, vector<1x16x16xf32>
    %79 = vector.shape_cast %78 : vector<1x16x16xf32> to vector<16x16xf32>
    %80 = vector.broadcast %77 : f32 to vector<16x16xf32>
    %81 = arith.mulf %80, %79 : vector<16x16xf32>
    %82 = arith.addf %76, %81 : vector<16x16xf32>
    %c12 = arith.constant 12 : index
    %83 = memref.load %arg5[%c12] : memref<108xf32, #tpu.memory_space<smem>>
    %c1_52 = arith.constant 1 : index
    %c1_53 = arith.constant 1 : index
    %c0_54 = arith.constant 0 : index
    %84 = vector.load %arg11[%c1_52, %c1_53, %c0_54] : memref<4x18x18xf32, #tpu.memory_space<vmem>>, vector<1x16x16xf32>
    %85 = vector.shape_cast %84 : vector<1x16x16xf32> to vector<16x16xf32>
    %86 = vector.broadcast %83 : f32 to vector<16x16xf32>
    %87 = arith.mulf %86, %85 : vector<16x16xf32>
    %88 = arith.addf %82, %87 : vector<16x16xf32>
    %c13 = arith.constant 13 : index
    %89 = memref.load %arg5[%c13] : memref<108xf32, #tpu.memory_space<smem>>
    %c1_55 = arith.constant 1 : index
    %c1_56 = arith.constant 1 : index
    %c1_57 = arith.constant 1 : index
    %90 = vector.load %arg11[%c1_55, %c1_56, %c1_57] : memref<4x18x18xf32, #tpu.memory_space<vmem>>, vector<1x16x16xf32>
    %91 = vector.shape_cast %90 : vector<1x16x16xf32> to vector<16x16xf32>
    %92 = vector.broadcast %89 : f32 to vector<16x16xf32>
    %93 = arith.mulf %92, %91 : vector<16x16xf32>
    %94 = arith.addf %88, %93 : vector<16x16xf32>
    %c14 = arith.constant 14 : index
    %95 = memref.load %arg5[%c14] : memref<108xf32, #tpu.memory_space<smem>>
    %c1_58 = arith.constant 1 : index
    %c1_59 = arith.constant 1 : index
    %c2_60 = arith.constant 2 : index
    %96 = vector.load %arg11[%c1_58, %c1_59, %c2_60] : memref<4x18x18xf32, #tpu.memory_space<vmem>>, vector<1x16x16xf32>
    %97 = vector.shape_cast %96 : vector<1x16x16xf32> to vector<16x16xf32>
    %98 = vector.broadcast %95 : f32 to vector<16x16xf32>
    %99 = arith.mulf %98, %97 : vector<16x16xf32>
    %100 = arith.addf %94, %99 : vector<16x16xf32>
    %c15 = arith.constant 15 : index
    %101 = memref.load %arg5[%c15] : memref<108xf32, #tpu.memory_space<smem>>
    %c1_61 = arith.constant 1 : index
    %c2_62 = arith.constant 2 : index
    %c0_63 = arith.constant 0 : index
    %102 = vector.load %arg11[%c1_61, %c2_62, %c0_63] : memref<4x18x18xf32, #tpu.memory_space<vmem>>, vector<1x16x16xf32>
    %103 = vector.shape_cast %102 : vector<1x16x16xf32> to vector<16x16xf32>
    %104 = vector.broadcast %101 : f32 to vector<16x16xf32>
    %105 = arith.mulf %104, %103 : vector<16x16xf32>
    %106 = arith.addf %100, %105 : vector<16x16xf32>
    %c16 = arith.constant 16 : index
    %107 = memref.load %arg5[%c16] : memref<108xf32, #tpu.memory_space<smem>>
    %c1_64 = arith.constant 1 : index
    %c2_65 = arith.constant 2 : index
    %c1_66 = arith.constant 1 : index
    %108 = vector.load %arg11[%c1_64, %c2_65, %c1_66] : memref<4x18x18xf32, #tpu.memory_space<vmem>>, vector<1x16x16xf32>
    %109 = vector.shape_cast %108 : vector<1x16x16xf32> to vector<16x16xf32>
    %110 = vector.broadcast %107 : f32 to vector<16x16xf32>
    %111 = arith.mulf %110, %109 : vector<16x16xf32>
    %112 = arith.addf %106, %111 : vector<16x16xf32>
    %c17 = arith.constant 17 : index
    %113 = memref.load %arg5[%c17] : memref<108xf32, #tpu.memory_space<smem>>
    %c1_67 = arith.constant 1 : index
    %c2_68 = arith.constant 2 : index
    %c2_69 = arith.constant 2 : index
    %114 = vector.load %arg11[%c1_67, %c2_68, %c2_69] : memref<4x18x18xf32, #tpu.memory_space<vmem>>, vector<1x16x16xf32>
    %115 = vector.shape_cast %114 : vector<1x16x16xf32> to vector<16x16xf32>
    %116 = vector.broadcast %113 : f32 to vector<16x16xf32>
    %117 = arith.mulf %116, %115 : vector<16x16xf32>
    %118 = arith.addf %112, %117 : vector<16x16xf32>
    %c18 = arith.constant 18 : index
    %119 = memref.load %arg5[%c18] : memref<108xf32, #tpu.memory_space<smem>>
    %c2_70 = arith.constant 2 : index
    %c0_71 = arith.constant 0 : index
    %c0_72 = arith.constant 0 : index
    %120 = vector.load %arg11[%c2_70, %c0_71, %c0_72] : memref<4x18x18xf32, #tpu.memory_space<vmem>>, vector<1x16x16xf32>
    %121 = vector.shape_cast %120 : vector<1x16x16xf32> to vector<16x16xf32>
    %122 = vector.broadcast %119 : f32 to vector<16x16xf32>
    %123 = arith.mulf %122, %121 : vector<16x16xf32>
    %124 = arith.addf %118, %123 : vector<16x16xf32>
    %c19 = arith.constant 19 : index
    %125 = memref.load %arg5[%c19] : memref<108xf32, #tpu.memory_space<smem>>
    %c2_73 = arith.constant 2 : index
    %c0_74 = arith.constant 0 : index
    %c1_75 = arith.constant 1 : index
    %126 = vector.load %arg11[%c2_73, %c0_74, %c1_75] : memref<4x18x18xf32, #tpu.memory_space<vmem>>, vector<1x16x16xf32>
    %127 = vector.shape_cast %126 : vector<1x16x16xf32> to vector<16x16xf32>
    %128 = vector.broadcast %125 : f32 to vector<16x16xf32>
    %129 = arith.mulf %128, %127 : vector<16x16xf32>
    %130 = arith.addf %124, %129 : vector<16x16xf32>
    %c20 = arith.constant 20 : index
    %131 = memref.load %arg5[%c20] : memref<108xf32, #tpu.memory_space<smem>>
    %c2_76 = arith.constant 2 : index
    %c0_77 = arith.constant 0 : index
    %c2_78 = arith.constant 2 : index
    %132 = vector.load %arg11[%c2_76, %c0_77, %c2_78] : memref<4x18x18xf32, #tpu.memory_space<vmem>>, vector<1x16x16xf32>
    %133 = vector.shape_cast %132 : vector<1x16x16xf32> to vector<16x16xf32>
    %134 = vector.broadcast %131 : f32 to vector<16x16xf32>
    %135 = arith.mulf %134, %133 : vector<16x16xf32>
    %136 = arith.addf %130, %135 : vector<16x16xf32>
    %c21 = arith.constant 21 : index
    %137 = memref.load %arg5[%c21] : memref<108xf32, #tpu.memory_space<smem>>
    %c2_79 = arith.constant 2 : index
    %c1_80 = arith.constant 1 : index
    %c0_81 = arith.constant 0 : index
    %138 = vector.load %arg11[%c2_79, %c1_80, %c0_81] : memref<4x18x18xf32, #tpu.memory_space<vmem>>, vector<1x16x16xf32>
    %139 = vector.shape_cast %138 : vector<1x16x16xf32> to vector<16x16xf32>
    %140 = vector.broadcast %137 : f32 to vector<16x16xf32>
    %141 = arith.mulf %140, %139 : vector<16x16xf32>
    %142 = arith.addf %136, %141 : vector<16x16xf32>
    %c22 = arith.constant 22 : index
    %143 = memref.load %arg5[%c22] : memref<108xf32, #tpu.memory_space<smem>>
    %c2_82 = arith.constant 2 : index
    %c1_83 = arith.constant 1 : index
    %c1_84 = arith.constant 1 : index
    %144 = vector.load %arg11[%c2_82, %c1_83, %c1_84] : memref<4x18x18xf32, #tpu.memory_space<vmem>>, vector<1x16x16xf32>
    %145 = vector.shape_cast %144 : vector<1x16x16xf32> to vector<16x16xf32>
    %146 = vector.broadcast %143 : f32 to vector<16x16xf32>
    %147 = arith.mulf %146, %145 : vector<16x16xf32>
    %148 = arith.addf %142, %147 : vector<16x16xf32>
    %c23 = arith.constant 23 : index
    %149 = memref.load %arg5[%c23] : memref<108xf32, #tpu.memory_space<smem>>
    %c2_85 = arith.constant 2 : index
    %c1_86 = arith.constant 1 : index
    %c2_87 = arith.constant 2 : index
    %150 = vector.load %arg11[%c2_85, %c1_86, %c2_87] : memref<4x18x18xf32, #tpu.memory_space<vmem>>, vector<1x16x16xf32>
    %151 = vector.shape_cast %150 : vector<1x16x16xf32> to vector<16x16xf32>
    %152 = vector.broadcast %149 : f32 to vector<16x16xf32>
    %153 = arith.mulf %152, %151 : vector<16x16xf32>
    %154 = arith.addf %148, %153 : vector<16x16xf32>
    %c24 = arith.constant 24 : index
    %155 = memref.load %arg5[%c24] : memref<108xf32, #tpu.memory_space<smem>>
    %c2_88 = arith.constant 2 : index
    %c2_89 = arith.constant 2 : index
    %c0_90 = arith.constant 0 : index
    %156 = vector.load %arg11[%c2_88, %c2_89, %c0_90] : memref<4x18x18xf32, #tpu.memory_space<vmem>>, vector<1x16x16xf32>
    %157 = vector.shape_cast %156 : vector<1x16x16xf32> to vector<16x16xf32>
    %158 = vector.broadcast %155 : f32 to vector<16x16xf32>
    %159 = arith.mulf %158, %157 : vector<16x16xf32>
    %160 = arith.addf %154, %159 : vector<16x16xf32>
    %c25 = arith.constant 25 : index
    %161 = memref.load %arg5[%c25] : memref<108xf32, #tpu.memory_space<smem>>
    %c2_91 = arith.constant 2 : index
    %c2_92 = arith.constant 2 : index
    %c1_93 = arith.constant 1 : index
    %162 = vector.load %arg11[%c2_91, %c2_92, %c1_93] : memref<4x18x18xf32, #tpu.memory_space<vmem>>, vector<1x16x16xf32>
    %163 = vector.shape_cast %162 : vector<1x16x16xf32> to vector<16x16xf32>
    %164 = vector.broadcast %161 : f32 to vector<16x16xf32>
    %165 = arith.mulf %164, %163 : vector<16x16xf32>
    %166 = arith.addf %160, %165 : vector<16x16xf32>
    %c26 = arith.constant 26 : index
    %167 = memref.load %arg5[%c26] : memref<108xf32, #tpu.memory_space<smem>>
    %c2_94 = arith.constant 2 : index
    %c2_95 = arith.constant 2 : index
    %c2_96 = arith.constant 2 : index
    %168 = vector.load %arg11[%c2_94, %c2_95, %c2_96] : memref<4x18x18xf32, #tpu.memory_space<vmem>>, vector<1x16x16xf32>
    %169 = vector.shape_cast %168 : vector<1x16x16xf32> to vector<16x16xf32>
    %170 = vector.broadcast %167 : f32 to vector<16x16xf32>
    %171 = arith.mulf %170, %169 : vector<16x16xf32>
    %172 = arith.addf %166, %171 : vector<16x16xf32>
    %c27 = arith.constant 27 : index
    %173 = memref.load %arg5[%c27] : memref<108xf32, #tpu.memory_space<smem>>
    %c3_97 = arith.constant 3 : index
    %c0_98 = arith.constant 0 : index
    %c0_99 = arith.constant 0 : index
    %174 = vector.load %arg11[%c3_97, %c0_98, %c0_99] : memref<4x18x18xf32, #tpu.memory_space<vmem>>, vector<1x16x16xf32>
    %175 = vector.shape_cast %174 : vector<1x16x16xf32> to vector<16x16xf32>
    %176 = vector.broadcast %173 : f32 to vector<16x16xf32>
    %177 = arith.mulf %176, %175 : vector<16x16xf32>
    %178 = arith.addf %172, %177 : vector<16x16xf32>
    %c28 = arith.constant 28 : index
    %179 = memref.load %arg5[%c28] : memref<108xf32, #tpu.memory_space<smem>>
    %c3_100 = arith.constant 3 : index
    %c0_101 = arith.constant 0 : index
    %c1_102 = arith.constant 1 : index
    %180 = vector.load %arg11[%c3_100, %c0_101, %c1_102] : memref<4x18x18xf32, #tpu.memory_space<vmem>>, vector<1x16x16xf32>
    %181 = vector.shape_cast %180 : vector<1x16x16xf32> to vector<16x16xf32>
    %182 = vector.broadcast %179 : f32 to vector<16x16xf32>
    %183 = arith.mulf %182, %181 : vector<16x16xf32>
    %184 = arith.addf %178, %183 : vector<16x16xf32>
    %c29 = arith.constant 29 : index
    %185 = memref.load %arg5[%c29] : memref<108xf32, #tpu.memory_space<smem>>
    %c3_103 = arith.constant 3 : index
    %c0_104 = arith.constant 0 : index
    %c2_105 = arith.constant 2 : index
    %186 = vector.load %arg11[%c3_103, %c0_104, %c2_105] : memref<4x18x18xf32, #tpu.memory_space<vmem>>, vector<1x16x16xf32>
    %187 = vector.shape_cast %186 : vector<1x16x16xf32> to vector<16x16xf32>
    %188 = vector.broadcast %185 : f32 to vector<16x16xf32>
    %189 = arith.mulf %188, %187 : vector<16x16xf32>
    %190 = arith.addf %184, %189 : vector<16x16xf32>
    %c30 = arith.constant 30 : index
    %191 = memref.load %arg5[%c30] : memref<108xf32, #tpu.memory_space<smem>>
    %c3_106 = arith.constant 3 : index
    %c1_107 = arith.constant 1 : index
    %c0_108 = arith.constant 0 : index
    %192 = vector.load %arg11[%c3_106, %c1_107, %c0_108] : memref<4x18x18xf32, #tpu.memory_space<vmem>>, vector<1x16x16xf32>
    %193 = vector.shape_cast %192 : vector<1x16x16xf32> to vector<16x16xf32>
    %194 = vector.broadcast %191 : f32 to vector<16x16xf32>
    %195 = arith.mulf %194, %193 : vector<16x16xf32>
    %196 = arith.addf %190, %195 : vector<16x16xf32>
    %c31 = arith.constant 31 : index
    %197 = memref.load %arg5[%c31] : memref<108xf32, #tpu.memory_space<smem>>
    %c3_109 = arith.constant 3 : index
    %c1_110 = arith.constant 1 : index
    %c1_111 = arith.constant 1 : index
    %198 = vector.load %arg11[%c3_109, %c1_110, %c1_111] : memref<4x18x18xf32, #tpu.memory_space<vmem>>, vector<1x16x16xf32>
    %199 = vector.shape_cast %198 : vector<1x16x16xf32> to vector<16x16xf32>
    %200 = vector.broadcast %197 : f32 to vector<16x16xf32>
    %201 = arith.mulf %200, %199 : vector<16x16xf32>
    %202 = arith.addf %196, %201 : vector<16x16xf32>
    %c32 = arith.constant 32 : index
    %203 = memref.load %arg5[%c32] : memref<108xf32, #tpu.memory_space<smem>>
    %c3_112 = arith.constant 3 : index
    %c1_113 = arith.constant 1 : index
    %c2_114 = arith.constant 2 : index
    %204 = vector.load %arg11[%c3_112, %c1_113, %c2_114] : memref<4x18x18xf32, #tpu.memory_space<vmem>>, vector<1x16x16xf32>
    %205 = vector.shape_cast %204 : vector<1x16x16xf32> to vector<16x16xf32>
    %206 = vector.broadcast %203 : f32 to vector<16x16xf32>
    %207 = arith.mulf %206, %205 : vector<16x16xf32>
    %208 = arith.addf %202, %207 : vector<16x16xf32>
    %c33 = arith.constant 33 : index
    %209 = memref.load %arg5[%c33] : memref<108xf32, #tpu.memory_space<smem>>
    %c3_115 = arith.constant 3 : index
    %c2_116 = arith.constant 2 : index
    %c0_117 = arith.constant 0 : index
    %210 = vector.load %arg11[%c3_115, %c2_116, %c0_117] : memref<4x18x18xf32, #tpu.memory_space<vmem>>, vector<1x16x16xf32>
    %211 = vector.shape_cast %210 : vector<1x16x16xf32> to vector<16x16xf32>
    %212 = vector.broadcast %209 : f32 to vector<16x16xf32>
    %213 = arith.mulf %212, %211 : vector<16x16xf32>
    %214 = arith.addf %208, %213 : vector<16x16xf32>
    %c34 = arith.constant 34 : index
    %215 = memref.load %arg5[%c34] : memref<108xf32, #tpu.memory_space<smem>>
    %c3_118 = arith.constant 3 : index
    %c2_119 = arith.constant 2 : index
    %c1_120 = arith.constant 1 : index
    %216 = vector.load %arg11[%c3_118, %c2_119, %c1_120] : memref<4x18x18xf32, #tpu.memory_space<vmem>>, vector<1x16x16xf32>
    %217 = vector.shape_cast %216 : vector<1x16x16xf32> to vector<16x16xf32>
    %218 = vector.broadcast %215 : f32 to vector<16x16xf32>
    %219 = arith.mulf %218, %217 : vector<16x16xf32>
    %220 = arith.addf %214, %219 : vector<16x16xf32>
    %c35 = arith.constant 35 : index
    %221 = memref.load %arg5[%c35] : memref<108xf32, #tpu.memory_space<smem>>
    %c3_121 = arith.constant 3 : index
    %c2_122 = arith.constant 2 : index
    %c2_123 = arith.constant 2 : index
    %222 = vector.load %arg11[%c3_121, %c2_122, %c2_123] : memref<4x18x18xf32, #tpu.memory_space<vmem>>, vector<1x16x16xf32>
    %223 = vector.shape_cast %222 : vector<1x16x16xf32> to vector<16x16xf32>
    %224 = vector.broadcast %221 : f32 to vector<16x16xf32>
    %225 = arith.mulf %224, %223 : vector<16x16xf32>
    %226 = arith.addf %220, %225 : vector<16x16xf32>
    %c0_124 = arith.constant 0 : index
    %c0_125 = arith.constant 0 : index
    %c0_126 = arith.constant 0 : index
    %c0_127 = arith.constant 0 : index
    %227 = vector.load %arg2[%c0_124, %c0_125, %c0_126, %c0_127] : memref<1x3x16x16xf32, #tpu.memory_space<vmem>>, vector<1x1x16x16xf32>
    %228 = vector.shape_cast %227 : vector<1x1x16x16xf32> to vector<16x16xf32>
    %229 = arith.addf %226, %228 : vector<16x16xf32>
    %c0_128 = arith.constant 0 : index
    %c0_129 = arith.constant 0 : index
    %c0_130 = arith.constant 0 : index
    %c0_131 = arith.constant 0 : index
    %230 = vector.load %arg10[%c0_128, %c0_129, %c0_130, %c0_131] : memref<1x3x16x16xf32, #tpu.memory_space<vmem>>, vector<1x1x16x16xf32>
    %231 = vector.shape_cast %230 : vector<1x1x16x16xf32> to vector<16x16xf32>
    %232 = vector.shape_cast %229 : vector<16x16xf32> to vector<1x1x16x16xf32>
    tpu.vector_store %arg10[%c0_128, %c0_129, %c0_130, %c0_131], %232 {strides = array<i32>} : memref<1x3x16x16xf32, #tpu.memory_space<vmem>>, vector<1x1x16x16xf32>,
    %c0_132 = arith.constant 0 : index
    %c1_133 = arith.constant 1 : index
    %c1_134 = arith.constant 1 : index
    %233 = vector.load %arg12[%c0_132, %c1_133, %c1_134] : memref<3x18x18xf32, #tpu.memory_space<vmem>>, vector<1x16x16xf32>
    %234 = vector.shape_cast %233 : vector<1x16x16xf32> to vector<16x16xf32>
    %235 = vector.shape_cast %229 : vector<16x16xf32> to vector<1x16x16xf32>
    tpu.vector_store %arg12[%c0_132, %c1_133, %c1_134], %235 {strides = array<i32>} : memref<3x18x18xf32, #tpu.memory_space<vmem>>, vector<1x16x16xf32>,
    %cst_135 = arith.constant 0.000000e+00 : f32
    %236 = vector.broadcast %cst_135 : f32 to vector<16x16xf32>
    %c1_136 = arith.constant 1 : index
    %237 = memref.load %arg6[%c1_136] : memref<3xf32, #tpu.memory_space<smem>>
    %238 = vector.broadcast %237 : f32 to vector<16x16xf32>
    %239 = arith.addf %236, %238 : vector<16x16xf32>
    %c36 = arith.constant 36 : index
    %240 = memref.load %arg5[%c36] : memref<108xf32, #tpu.memory_space<smem>>
    %c0_137 = arith.constant 0 : index
    %c0_138 = arith.constant 0 : index
    %c0_139 = arith.constant 0 : index
    %241 = vector.load %arg11[%c0_137, %c0_138, %c0_139] : memref<4x18x18xf32, #tpu.memory_space<vmem>>, vector<1x16x16xf32>
    %242 = vector.shape_cast %241 : vector<1x16x16xf32> to vector<16x16xf32>
    %243 = vector.broadcast %240 : f32 to vector<16x16xf32>
    %244 = arith.mulf %243, %242 : vector<16x16xf32>
    %245 = arith.addf %239, %244 : vector<16x16xf32>
    %c37 = arith.constant 37 : index
    %246 = memref.load %arg5[%c37] : memref<108xf32, #tpu.memory_space<smem>>
    %c0_140 = arith.constant 0 : index
    %c0_141 = arith.constant 0 : index
    %c1_142 = arith.constant 1 : index
    %247 = vector.load %arg11[%c0_140, %c0_141, %c1_142] : memref<4x18x18xf32, #tpu.memory_space<vmem>>, vector<1x16x16xf32>
    %248 = vector.shape_cast %247 : vector<1x16x16xf32> to vector<16x16xf32>
    %249 = vector.broadcast %246 : f32 to vector<16x16xf32>
    %250 = arith.mulf %249, %248 : vector<16x16xf32>
    %251 = arith.addf %245, %250 : vector<16x16xf32>
    %c38 = arith.constant 38 : index
    %252 = memref.load %arg5[%c38] : memref<108xf32, #tpu.memory_space<smem>>
    %c0_143 = arith.constant 0 : index
    %c0_144 = arith.constant 0 : index
    %c2_145 = arith.constant 2 : index
    %253 = vector.load %arg11[%c0_143, %c0_144, %c2_145] : memref<4x18x18xf32, #tpu.memory_space<vmem>>, vector<1x16x16xf32>
    %254 = vector.shape_cast %253 : vector<1x16x16xf32> to vector<16x16xf32>
    %255 = vector.broadcast %252 : f32 to vector<16x16xf32>
    %256 = arith.mulf %255, %254 : vector<16x16xf32>
    %257 = arith.addf %251, %256 : vector<16x16xf32>
    %c39 = arith.constant 39 : index
    %258 = memref.load %arg5[%c39] : memref<108xf32, #tpu.memory_space<smem>>
    %c0_146 = arith.constant 0 : index
    %c1_147 = arith.constant 1 : index
    %c0_148 = arith.constant 0 : index
    %259 = vector.load %arg11[%c0_146, %c1_147, %c0_148] : memref<4x18x18xf32, #tpu.memory_space<vmem>>, vector<1x16x16xf32>
    %260 = vector.shape_cast %259 : vector<1x16x16xf32> to vector<16x16xf32>
    %261 = vector.broadcast %258 : f32 to vector<16x16xf32>
    %262 = arith.mulf %261, %260 : vector<16x16xf32>
    %263 = arith.addf %257, %262 : vector<16x16xf32>
    %c40 = arith.constant 40 : index
    %264 = memref.load %arg5[%c40] : memref<108xf32, #tpu.memory_space<smem>>
    %c0_149 = arith.constant 0 : index
    %c1_150 = arith.constant 1 : index
    %c1_151 = arith.constant 1 : index
    %265 = vector.load %arg11[%c0_149, %c1_150, %c1_151] : memref<4x18x18xf32, #tpu.memory_space<vmem>>, vector<1x16x16xf32>
    %266 = vector.shape_cast %265 : vector<1x16x16xf32> to vector<16x16xf32>
    %267 = vector.broadcast %264 : f32 to vector<16x16xf32>
    %268 = arith.mulf %267, %266 : vector<16x16xf32>
    %269 = arith.addf %263, %268 : vector<16x16xf32>
    %c41 = arith.constant 41 : index
    %270 = memref.load %arg5[%c41] : memref<108xf32, #tpu.memory_space<smem>>
    %c0_152 = arith.constant 0 : index
    %c1_153 = arith.constant 1 : index
    %c2_154 = arith.constant 2 : index
    %271 = vector.load %arg11[%c0_152, %c1_153, %c2_154] : memref<4x18x18xf32, #tpu.memory_space<vmem>>, vector<1x16x16xf32>
    %272 = vector.shape_cast %271 : vector<1x16x16xf32> to vector<16x16xf32>
    %273 = vector.broadcast %270 : f32 to vector<16x16xf32>
    %274 = arith.mulf %273, %272 : vector<16x16xf32>
    %275 = arith.addf %269, %274 : vector<16x16xf32>
    %c42 = arith.constant 42 : index
    %276 = memref.load %arg5[%c42] : memref<108xf32, #tpu.memory_space<smem>>
    %c0_155 = arith.constant 0 : index
    %c2_156 = arith.constant 2 : index
    %c0_157 = arith.constant 0 : index
    %277 = vector.load %arg11[%c0_155, %c2_156, %c0_157] : memref<4x18x18xf32, #tpu.memory_space<vmem>>, vector<1x16x16xf32>
    %278 = vector.shape_cast %277 : vector<1x16x16xf32> to vector<16x16xf32>
    %279 = vector.broadcast %276 : f32 to vector<16x16xf32>
    %280 = arith.mulf %279, %278 : vector<16x16xf32>
    %281 = arith.addf %275, %280 : vector<16x16xf32>
    %c43 = arith.constant 43 : index
    %282 = memref.load %arg5[%c43] : memref<108xf32, #tpu.memory_space<smem>>
    %c0_158 = arith.constant 0 : index
    %c2_159 = arith.constant 2 : index
    %c1_160 = arith.constant 1 : index
    %283 = vector.load %arg11[%c0_158, %c2_159, %c1_160] : memref<4x18x18xf32, #tpu.memory_space<vmem>>, vector<1x16x16xf32>
    %284 = vector.shape_cast %283 : vector<1x16x16xf32> to vector<16x16xf32>
    %285 = vector.broadcast %282 : f32 to vector<16x16xf32>
    %286 = arith.mulf %285, %284 : vector<16x16xf32>
    %287 = arith.addf %281, %286 : vector<16x16xf32>
    %c44 = arith.constant 44 : index
    %288 = memref.load %arg5[%c44] : memref<108xf32, #tpu.memory_space<smem>>
    %c0_161 = arith.constant 0 : index
    %c2_162 = arith.constant 2 : index
    %c2_163 = arith.constant 2 : index
    %289 = vector.load %arg11[%c0_161, %c2_162, %c2_163] : memref<4x18x18xf32, #tpu.memory_space<vmem>>, vector<1x16x16xf32>
    %290 = vector.shape_cast %289 : vector<1x16x16xf32> to vector<16x16xf32>
    %291 = vector.broadcast %288 : f32 to vector<16x16xf32>
    %292 = arith.mulf %291, %290 : vector<16x16xf32>
    %293 = arith.addf %287, %292 : vector<16x16xf32>
    %c45 = arith.constant 45 : index
    %294 = memref.load %arg5[%c45] : memref<108xf32, #tpu.memory_space<smem>>
    %c1_164 = arith.constant 1 : index
    %c0_165 = arith.constant 0 : index
    %c0_166 = arith.constant 0 : index
    %295 = vector.load %arg11[%c1_164, %c0_165, %c0_166] : memref<4x18x18xf32, #tpu.memory_space<vmem>>, vector<1x16x16xf32>
    %296 = vector.shape_cast %295 : vector<1x16x16xf32> to vector<16x16xf32>
    %297 = vector.broadcast %294 : f32 to vector<16x16xf32>
    %298 = arith.mulf %297, %296 : vector<16x16xf32>
    %299 = arith.addf %293, %298 : vector<16x16xf32>
    %c46 = arith.constant 46 : index
    %300 = memref.load %arg5[%c46] : memref<108xf32, #tpu.memory_space<smem>>
    %c1_167 = arith.constant 1 : index
    %c0_168 = arith.constant 0 : index
    %c1_169 = arith.constant 1 : index
    %301 = vector.load %arg11[%c1_167, %c0_168, %c1_169] : memref<4x18x18xf32, #tpu.memory_space<vmem>>, vector<1x16x16xf32>
    %302 = vector.shape_cast %301 : vector<1x16x16xf32> to vector<16x16xf32>
    %303 = vector.broadcast %300 : f32 to vector<16x16xf32>
    %304 = arith.mulf %303, %302 : vector<16x16xf32>
    %305 = arith.addf %299, %304 : vector<16x16xf32>
    %c47 = arith.constant 47 : index
    %306 = memref.load %arg5[%c47] : memref<108xf32, #tpu.memory_space<smem>>
    %c1_170 = arith.constant 1 : index
    %c0_171 = arith.constant 0 : index
    %c2_172 = arith.constant 2 : index
    %307 = vector.load %arg11[%c1_170, %c0_171, %c2_172] : memref<4x18x18xf32, #tpu.memory_space<vmem>>, vector<1x16x16xf32>
    %308 = vector.shape_cast %307 : vector<1x16x16xf32> to vector<16x16xf32>
    %309 = vector.broadcast %306 : f32 to vector<16x16xf32>
    %310 = arith.mulf %309, %308 : vector<16x16xf32>
    %311 = arith.addf %305, %310 : vector<16x16xf32>
    %c48 = arith.constant 48 : index
    %312 = memref.load %arg5[%c48] : memref<108xf32, #tpu.memory_space<smem>>
    %c1_173 = arith.constant 1 : index
    %c1_174 = arith.constant 1 : index
    %c0_175 = arith.constant 0 : index
    %313 = vector.load %arg11[%c1_173, %c1_174, %c0_175] : memref<4x18x18xf32, #tpu.memory_space<vmem>>, vector<1x16x16xf32>
    %314 = vector.shape_cast %313 : vector<1x16x16xf32> to vector<16x16xf32>
    %315 = vector.broadcast %312 : f32 to vector<16x16xf32>
    %316 = arith.mulf %315, %314 : vector<16x16xf32>
    %317 = arith.addf %311, %316 : vector<16x16xf32>
    %c49 = arith.constant 49 : index
    %318 = memref.load %arg5[%c49] : memref<108xf32, #tpu.memory_space<smem>>
    %c1_176 = arith.constant 1 : index
    %c1_177 = arith.constant 1 : index
    %c1_178 = arith.constant 1 : index
    %319 = vector.load %arg11[%c1_176, %c1_177, %c1_178] : memref<4x18x18xf32, #tpu.memory_space<vmem>>, vector<1x16x16xf32>
    %320 = vector.shape_cast %319 : vector<1x16x16xf32> to vector<16x16xf32>
    %321 = vector.broadcast %318 : f32 to vector<16x16xf32>
    %322 = arith.mulf %321, %320 : vector<16x16xf32>
    %323 = arith.addf %317, %322 : vector<16x16xf32>
    %c50 = arith.constant 50 : index
    %324 = memref.load %arg5[%c50] : memref<108xf32, #tpu.memory_space<smem>>
    %c1_179 = arith.constant 1 : index
    %c1_180 = arith.constant 1 : index
    %c2_181 = arith.constant 2 : index
    %325 = vector.load %arg11[%c1_179, %c1_180, %c2_181] : memref<4x18x18xf32, #tpu.memory_space<vmem>>, vector<1x16x16xf32>
    %326 = vector.shape_cast %325 : vector<1x16x16xf32> to vector<16x16xf32>
    %327 = vector.broadcast %324 : f32 to vector<16x16xf32>
    %328 = arith.mulf %327, %326 : vector<16x16xf32>
    %329 = arith.addf %323, %328 : vector<16x16xf32>
    %c51 = arith.constant 51 : index
    %330 = memref.load %arg5[%c51] : memref<108xf32, #tpu.memory_space<smem>>
    %c1_182 = arith.constant 1 : index
    %c2_183 = arith.constant 2 : index
    %c0_184 = arith.constant 0 : index
    %331 = vector.load %arg11[%c1_182, %c2_183, %c0_184] : memref<4x18x18xf32, #tpu.memory_space<vmem>>, vector<1x16x16xf32>
    %332 = vector.shape_cast %331 : vector<1x16x16xf32> to vector<16x16xf32>
    %333 = vector.broadcast %330 : f32 to vector<16x16xf32>
    %334 = arith.mulf %333, %332 : vector<16x16xf32>
    %335 = arith.addf %329, %334 : vector<16x16xf32>
    %c52 = arith.constant 52 : index
    %336 = memref.load %arg5[%c52] : memref<108xf32, #tpu.memory_space<smem>>
    %c1_185 = arith.constant 1 : index
    %c2_186 = arith.constant 2 : index
    %c1_187 = arith.constant 1 : index
    %337 = vector.load %arg11[%c1_185, %c2_186, %c1_187] : memref<4x18x18xf32, #tpu.memory_space<vmem>>, vector<1x16x16xf32>
    %338 = vector.shape_cast %337 : vector<1x16x16xf32> to vector<16x16xf32>
    %339 = vector.broadcast %336 : f32 to vector<16x16xf32>
    %340 = arith.mulf %339, %338 : vector<16x16xf32>
    %341 = arith.addf %335, %340 : vector<16x16xf32>
    %c53 = arith.constant 53 : index
    %342 = memref.load %arg5[%c53] : memref<108xf32, #tpu.memory_space<smem>>
    %c1_188 = arith.constant 1 : index
    %c2_189 = arith.constant 2 : index
    %c2_190 = arith.constant 2 : index
    %343 = vector.load %arg11[%c1_188, %c2_189, %c2_190] : memref<4x18x18xf32, #tpu.memory_space<vmem>>, vector<1x16x16xf32>
    %344 = vector.shape_cast %343 : vector<1x16x16xf32> to vector<16x16xf32>
    %345 = vector.broadcast %342 : f32 to vector<16x16xf32>
    %346 = arith.mulf %345, %344 : vector<16x16xf32>
    %347 = arith.addf %341, %346 : vector<16x16xf32>
    %c54 = arith.constant 54 : index
    %348 = memref.load %arg5[%c54] : memref<108xf32, #tpu.memory_space<smem>>
    %c2_191 = arith.constant 2 : index
    %c0_192 = arith.constant 0 : index
    %c0_193 = arith.constant 0 : index
    %349 = vector.load %arg11[%c2_191, %c0_192, %c0_193] : memref<4x18x18xf32, #tpu.memory_space<vmem>>, vector<1x16x16xf32>
    %350 = vector.shape_cast %349 : vector<1x16x16xf32> to vector<16x16xf32>
    %351 = vector.broadcast %348 : f32 to vector<16x16xf32>
    %352 = arith.mulf %351, %350 : vector<16x16xf32>
    %353 = arith.addf %347, %352 : vector<16x16xf32>
    %c55 = arith.constant 55 : index
    %354 = memref.load %arg5[%c55] : memref<108xf32, #tpu.memory_space<smem>>
    %c2_194 = arith.constant 2 : index
    %c0_195 = arith.constant 0 : index
    %c1_196 = arith.constant 1 : index
    %355 = vector.load %arg11[%c2_194, %c0_195, %c1_196] : memref<4x18x18xf32, #tpu.memory_space<vmem>>, vector<1x16x16xf32>
    %356 = vector.shape_cast %355 : vector<1x16x16xf32> to vector<16x16xf32>
    %357 = vector.broadcast %354 : f32 to vector<16x16xf32>
    %358 = arith.mulf %357, %356 : vector<16x16xf32>
    %359 = arith.addf %353, %358 : vector<16x16xf32>
    %c56 = arith.constant 56 : index
    %360 = memref.load %arg5[%c56] : memref<108xf32, #tpu.memory_space<smem>>
    %c2_197 = arith.constant 2 : index
    %c0_198 = arith.constant 0 : index
    %c2_199 = arith.constant 2 : index
    %361 = vector.load %arg11[%c2_197, %c0_198, %c2_199] : memref<4x18x18xf32, #tpu.memory_space<vmem>>, vector<1x16x16xf32>
    %362 = vector.shape_cast %361 : vector<1x16x16xf32> to vector<16x16xf32>
    %363 = vector.broadcast %360 : f32 to vector<16x16xf32>
    %364 = arith.mulf %363, %362 : vector<16x16xf32>
    %365 = arith.addf %359, %364 : vector<16x16xf32>
    %c57 = arith.constant 57 : index
    %366 = memref.load %arg5[%c57] : memref<108xf32, #tpu.memory_space<smem>>
    %c2_200 = arith.constant 2 : index
    %c1_201 = arith.constant 1 : index
    %c0_202 = arith.constant 0 : index
    %367 = vector.load %arg11[%c2_200, %c1_201, %c0_202] : memref<4x18x18xf32, #tpu.memory_space<vmem>>, vector<1x16x16xf32>
    %368 = vector.shape_cast %367 : vector<1x16x16xf32> to vector<16x16xf32>
    %369 = vector.broadcast %366 : f32 to vector<16x16xf32>
    %370 = arith.mulf %369, %368 : vector<16x16xf32>
    %371 = arith.addf %365, %370 : vector<16x16xf32>
    %c58 = arith.constant 58 : index
    %372 = memref.load %arg5[%c58] : memref<108xf32, #tpu.memory_space<smem>>
    %c2_203 = arith.constant 2 : index
    %c1_204 = arith.constant 1 : index
    %c1_205 = arith.constant 1 : index
    %373 = vector.load %arg11[%c2_203, %c1_204, %c1_205] : memref<4x18x18xf32, #tpu.memory_space<vmem>>, vector<1x16x16xf32>
    %374 = vector.shape_cast %373 : vector<1x16x16xf32> to vector<16x16xf32>
    %375 = vector.broadcast %372 : f32 to vector<16x16xf32>
    %376 = arith.mulf %375, %374 : vector<16x16xf32>
    %377 = arith.addf %371, %376 : vector<16x16xf32>
    %c59 = arith.constant 59 : index
    %378 = memref.load %arg5[%c59] : memref<108xf32, #tpu.memory_space<smem>>
    %c2_206 = arith.constant 2 : index
    %c1_207 = arith.constant 1 : index
    %c2_208 = arith.constant 2 : index
    %379 = vector.load %arg11[%c2_206, %c1_207, %c2_208] : memref<4x18x18xf32, #tpu.memory_space<vmem>>, vector<1x16x16xf32>
    %380 = vector.shape_cast %379 : vector<1x16x16xf32> to vector<16x16xf32>
    %381 = vector.broadcast %378 : f32 to vector<16x16xf32>
    %382 = arith.mulf %381, %380 : vector<16x16xf32>
    %383 = arith.addf %377, %382 : vector<16x16xf32>
    %c60 = arith.constant 60 : index
    %384 = memref.load %arg5[%c60] : memref<108xf32, #tpu.memory_space<smem>>
    %c2_209 = arith.constant 2 : index
    %c2_210 = arith.constant 2 : index
    %c0_211 = arith.constant 0 : index
    %385 = vector.load %arg11[%c2_209, %c2_210, %c0_211] : memref<4x18x18xf32, #tpu.memory_space<vmem>>, vector<1x16x16xf32>
    %386 = vector.shape_cast %385 : vector<1x16x16xf32> to vector<16x16xf32>
    %387 = vector.broadcast %384 : f32 to vector<16x16xf32>
    %388 = arith.mulf %387, %386 : vector<16x16xf32>
    %389 = arith.addf %383, %388 : vector<16x16xf32>
    %c61 = arith.constant 61 : index
    %390 = memref.load %arg5[%c61] : memref<108xf32, #tpu.memory_space<smem>>
    %c2_212 = arith.constant 2 : index
    %c2_213 = arith.constant 2 : index
    %c1_214 = arith.constant 1 : index
    %391 = vector.load %arg11[%c2_212, %c2_213, %c1_214] : memref<4x18x18xf32, #tpu.memory_space<vmem>>, vector<1x16x16xf32>
    %392 = vector.shape_cast %391 : vector<1x16x16xf32> to vector<16x16xf32>
    %393 = vector.broadcast %390 : f32 to vector<16x16xf32>
    %394 = arith.mulf %393, %392 : vector<16x16xf32>
    %395 = arith.addf %389, %394 : vector<16x16xf32>
    %c62 = arith.constant 62 : index
    %396 = memref.load %arg5[%c62] : memref<108xf32, #tpu.memory_space<smem>>
    %c2_215 = arith.constant 2 : index
    %c2_216 = arith.constant 2 : index
    %c2_217 = arith.constant 2 : index
    %397 = vector.load %arg11[%c2_215, %c2_216, %c2_217] : memref<4x18x18xf32, #tpu.memory_space<vmem>>, vector<1x16x16xf32>
    %398 = vector.shape_cast %397 : vector<1x16x16xf32> to vector<16x16xf32>
    %399 = vector.broadcast %396 : f32 to vector<16x16xf32>
    %400 = arith.mulf %399, %398 : vector<16x16xf32>
    %401 = arith.addf %395, %400 : vector<16x16xf32>
    %c63 = arith.constant 63 : index
    %402 = memref.load %arg5[%c63] : memref<108xf32, #tpu.memory_space<smem>>
    %c3_218 = arith.constant 3 : index
    %c0_219 = arith.constant 0 : index
    %c0_220 = arith.constant 0 : index
    %403 = vector.load %arg11[%c3_218, %c0_219, %c0_220] : memref<4x18x18xf32, #tpu.memory_space<vmem>>, vector<1x16x16xf32>
    %404 = vector.shape_cast %403 : vector<1x16x16xf32> to vector<16x16xf32>
    %405 = vector.broadcast %402 : f32 to vector<16x16xf32>
    %406 = arith.mulf %405, %404 : vector<16x16xf32>
    %407 = arith.addf %401, %406 : vector<16x16xf32>
    %c64 = arith.constant 64 : index
    %408 = memref.load %arg5[%c64] : memref<108xf32, #tpu.memory_space<smem>>
    %c3_221 = arith.constant 3 : index
    %c0_222 = arith.constant 0 : index
    %c1_223 = arith.constant 1 : index
    %409 = vector.load %arg11[%c3_221, %c0_222, %c1_223] : memref<4x18x18xf32, #tpu.memory_space<vmem>>, vector<1x16x16xf32>
    %410 = vector.shape_cast %409 : vector<1x16x16xf32> to vector<16x16xf32>
    %411 = vector.broadcast %408 : f32 to vector<16x16xf32>
    %412 = arith.mulf %411, %410 : vector<16x16xf32>
    %413 = arith.addf %407, %412 : vector<16x16xf32>
    %c65 = arith.constant 65 : index
    %414 = memref.load %arg5[%c65] : memref<108xf32, #tpu.memory_space<smem>>
    %c3_224 = arith.constant 3 : index
    %c0_225 = arith.constant 0 : index
    %c2_226 = arith.constant 2 : index
    %415 = vector.load %arg11[%c3_224, %c0_225, %c2_226] : memref<4x18x18xf32, #tpu.memory_space<vmem>>, vector<1x16x16xf32>
    %416 = vector.shape_cast %415 : vector<1x16x16xf32> to vector<16x16xf32>
    %417 = vector.broadcast %414 : f32 to vector<16x16xf32>
    %418 = arith.mulf %417, %416 : vector<16x16xf32>
    %419 = arith.addf %413, %418 : vector<16x16xf32>
    %c66 = arith.constant 66 : index
    %420 = memref.load %arg5[%c66] : memref<108xf32, #tpu.memory_space<smem>>
    %c3_227 = arith.constant 3 : index
    %c1_228 = arith.constant 1 : index
    %c0_229 = arith.constant 0 : index
    %421 = vector.load %arg11[%c3_227, %c1_228, %c0_229] : memref<4x18x18xf32, #tpu.memory_space<vmem>>, vector<1x16x16xf32>
    %422 = vector.shape_cast %421 : vector<1x16x16xf32> to vector<16x16xf32>
    %423 = vector.broadcast %420 : f32 to vector<16x16xf32>
    %424 = arith.mulf %423, %422 : vector<16x16xf32>
    %425 = arith.addf %419, %424 : vector<16x16xf32>
    %c67 = arith.constant 67 : index
    %426 = memref.load %arg5[%c67] : memref<108xf32, #tpu.memory_space<smem>>
    %c3_230 = arith.constant 3 : index
    %c1_231 = arith.constant 1 : index
    %c1_232 = arith.constant 1 : index
    %427 = vector.load %arg11[%c3_230, %c1_231, %c1_232] : memref<4x18x18xf32, #tpu.memory_space<vmem>>, vector<1x16x16xf32>
    %428 = vector.shape_cast %427 : vector<1x16x16xf32> to vector<16x16xf32>
    %429 = vector.broadcast %426 : f32 to vector<16x16xf32>
    %430 = arith.mulf %429, %428 : vector<16x16xf32>
    %431 = arith.addf %425, %430 : vector<16x16xf32>
    %c68 = arith.constant 68 : index
    %432 = memref.load %arg5[%c68] : memref<108xf32, #tpu.memory_space<smem>>
    %c3_233 = arith.constant 3 : index
    %c1_234 = arith.constant 1 : index
    %c2_235 = arith.constant 2 : index
    %433 = vector.load %arg11[%c3_233, %c1_234, %c2_235] : memref<4x18x18xf32, #tpu.memory_space<vmem>>, vector<1x16x16xf32>
    %434 = vector.shape_cast %433 : vector<1x16x16xf32> to vector<16x16xf32>
    %435 = vector.broadcast %432 : f32 to vector<16x16xf32>
    %436 = arith.mulf %435, %434 : vector<16x16xf32>
    %437 = arith.addf %431, %436 : vector<16x16xf32>
    %c69 = arith.constant 69 : index
    %438 = memref.load %arg5[%c69] : memref<108xf32, #tpu.memory_space<smem>>
    %c3_236 = arith.constant 3 : index
    %c2_237 = arith.constant 2 : index
    %c0_238 = arith.constant 0 : index
    %439 = vector.load %arg11[%c3_236, %c2_237, %c0_238] : memref<4x18x18xf32, #tpu.memory_space<vmem>>, vector<1x16x16xf32>
    %440 = vector.shape_cast %439 : vector<1x16x16xf32> to vector<16x16xf32>
    %441 = vector.broadcast %438 : f32 to vector<16x16xf32>
    %442 = arith.mulf %441, %440 : vector<16x16xf32>
    %443 = arith.addf %437, %442 : vector<16x16xf32>
    %c70 = arith.constant 70 : index
    %444 = memref.load %arg5[%c70] : memref<108xf32, #tpu.memory_space<smem>>
    %c3_239 = arith.constant 3 : index
    %c2_240 = arith.constant 2 : index
    %c1_241 = arith.constant 1 : index
    %445 = vector.load %arg11[%c3_239, %c2_240, %c1_241] : memref<4x18x18xf32, #tpu.memory_space<vmem>>, vector<1x16x16xf32>
    %446 = vector.shape_cast %445 : vector<1x16x16xf32> to vector<16x16xf32>
    %447 = vector.broadcast %444 : f32 to vector<16x16xf32>
    %448 = arith.mulf %447, %446 : vector<16x16xf32>
    %449 = arith.addf %443, %448 : vector<16x16xf32>
    %c71 = arith.constant 71 : index
    %450 = memref.load %arg5[%c71] : memref<108xf32, #tpu.memory_space<smem>>
    %c3_242 = arith.constant 3 : index
    %c2_243 = arith.constant 2 : index
    %c2_244 = arith.constant 2 : index
    %451 = vector.load %arg11[%c3_242, %c2_243, %c2_244] : memref<4x18x18xf32, #tpu.memory_space<vmem>>, vector<1x16x16xf32>
    %452 = vector.shape_cast %451 : vector<1x16x16xf32> to vector<16x16xf32>
    %453 = vector.broadcast %450 : f32 to vector<16x16xf32>
    %454 = arith.mulf %453, %452 : vector<16x16xf32>
    %455 = arith.addf %449, %454 : vector<16x16xf32>
    %c0_245 = arith.constant 0 : index
    %c1_246 = arith.constant 1 : index
    %c0_247 = arith.constant 0 : index
    %c0_248 = arith.constant 0 : index
    %456 = vector.load %arg2[%c0_245, %c1_246, %c0_247, %c0_248] : memref<1x3x16x16xf32, #tpu.memory_space<vmem>>, vector<1x1x16x16xf32>
    %457 = vector.shape_cast %456 : vector<1x1x16x16xf32> to vector<16x16xf32>
    %458 = arith.addf %455, %457 : vector<16x16xf32>
    %c0_249 = arith.constant 0 : index
    %c1_250 = arith.constant 1 : index
    %c0_251 = arith.constant 0 : index
    %c0_252 = arith.constant 0 : index
    %459 = vector.load %arg10[%c0_249, %c1_250, %c0_251, %c0_252] : memref<1x3x16x16xf32, #tpu.memory_space<vmem>>, vector<1x1x16x16xf32>
    %460 = vector.shape_cast %459 : vector<1x1x16x16xf32> to vector<16x16xf32>
    %461 = vector.shape_cast %458 : vector<16x16xf32> to vector<1x1x16x16xf32>
    tpu.vector_store %arg10[%c0_249, %c1_250, %c0_251, %c0_252], %461 {strides = array<i32>} : memref<1x3x16x16xf32, #tpu.memory_space<vmem>>, vector<1x1x16x16xf32>,
    %c1_253 = arith.constant 1 : index
    %c1_254 = arith.constant 1 : index
    %c1_255 = arith.constant 1 : index
    %462 = vector.load %arg12[%c1_253, %c1_254, %c1_255] : memref<3x18x18xf32, #tpu.memory_space<vmem>>, vector<1x16x16xf32>
    %463 = vector.shape_cast %462 : vector<1x16x16xf32> to vector<16x16xf32>
    %464 = vector.shape_cast %458 : vector<16x16xf32> to vector<1x16x16xf32>
    tpu.vector_store %arg12[%c1_253, %c1_254, %c1_255], %464 {strides = array<i32>} : memref<3x18x18xf32, #tpu.memory_space<vmem>>, vector<1x16x16xf32>,
    %cst_256 = arith.constant 0.000000e+00 : f32
    %465 = vector.broadcast %cst_256 : f32 to vector<16x16xf32>
    %c2_257 = arith.constant 2 : index
    %466 = memref.load %arg6[%c2_257] : memref<3xf32, #tpu.memory_space<smem>>
    %467 = vector.broadcast %466 : f32 to vector<16x16xf32>
    %468 = arith.addf %465, %467 : vector<16x16xf32>
    %c72 = arith.constant 72 : index
    %469 = memref.load %arg5[%c72] : memref<108xf32, #tpu.memory_space<smem>>
    %c0_258 = arith.constant 0 : index
    %c0_259 = arith.constant 0 : index
    %c0_260 = arith.constant 0 : index
    %470 = vector.load %arg11[%c0_258, %c0_259, %c0_260] : memref<4x18x18xf32, #tpu.memory_space<vmem>>, vector<1x16x16xf32>
    %471 = vector.shape_cast %470 : vector<1x16x16xf32> to vector<16x16xf32>
    %472 = vector.broadcast %469 : f32 to vector<16x16xf32>
    %473 = arith.mulf %472, %471 : vector<16x16xf32>
    %474 = arith.addf %468, %473 : vector<16x16xf32>
    %c73 = arith.constant 73 : index
    %475 = memref.load %arg5[%c73] : memref<108xf32, #tpu.memory_space<smem>>
    %c0_261 = arith.constant 0 : index
    %c0_262 = arith.constant 0 : index
    %c1_263 = arith.constant 1 : index
    %476 = vector.load %arg11[%c0_261, %c0_262, %c1_263] : memref<4x18x18xf32, #tpu.memory_space<vmem>>, vector<1x16x16xf32>
    %477 = vector.shape_cast %476 : vector<1x16x16xf32> to vector<16x16xf32>
    %478 = vector.broadcast %475 : f32 to vector<16x16xf32>
    %479 = arith.mulf %478, %477 : vector<16x16xf32>
    %480 = arith.addf %474, %479 : vector<16x16xf32>
    %c74 = arith.constant 74 : index
    %481 = memref.load %arg5[%c74] : memref<108xf32, #tpu.memory_space<smem>>
    %c0_264 = arith.constant 0 : index
    %c0_265 = arith.constant 0 : index
    %c2_266 = arith.constant 2 : index
    %482 = vector.load %arg11[%c0_264, %c0_265, %c2_266] : memref<4x18x18xf32, #tpu.memory_space<vmem>>, vector<1x16x16xf32>
    %483 = vector.shape_cast %482 : vector<1x16x16xf32> to vector<16x16xf32>
    %484 = vector.broadcast %481 : f32 to vector<16x16xf32>
    %485 = arith.mulf %484, %483 : vector<16x16xf32>
    %486 = arith.addf %480, %485 : vector<16x16xf32>
    %c75 = arith.constant 75 : index
    %487 = memref.load %arg5[%c75] : memref<108xf32, #tpu.memory_space<smem>>
    %c0_267 = arith.constant 0 : index
    %c1_268 = arith.constant 1 : index
    %c0_269 = arith.constant 0 : index
    %488 = vector.load %arg11[%c0_267, %c1_268, %c0_269] : memref<4x18x18xf32, #tpu.memory_space<vmem>>, vector<1x16x16xf32>
    %489 = vector.shape_cast %488 : vector<1x16x16xf32> to vector<16x16xf32>
    %490 = vector.broadcast %487 : f32 to vector<16x16xf32>
    %491 = arith.mulf %490, %489 : vector<16x16xf32>
    %492 = arith.addf %486, %491 : vector<16x16xf32>
    %c76 = arith.constant 76 : index
    %493 = memref.load %arg5[%c76] : memref<108xf32, #tpu.memory_space<smem>>
    %c0_270 = arith.constant 0 : index
    %c1_271 = arith.constant 1 : index
    %c1_272 = arith.constant 1 : index
    %494 = vector.load %arg11[%c0_270, %c1_271, %c1_272] : memref<4x18x18xf32, #tpu.memory_space<vmem>>, vector<1x16x16xf32>
    %495 = vector.shape_cast %494 : vector<1x16x16xf32> to vector<16x16xf32>
    %496 = vector.broadcast %493 : f32 to vector<16x16xf32>
    %497 = arith.mulf %496, %495 : vector<16x16xf32>
    %498 = arith.addf %492, %497 : vector<16x16xf32>
    %c77 = arith.constant 77 : index
    %499 = memref.load %arg5[%c77] : memref<108xf32, #tpu.memory_space<smem>>
    %c0_273 = arith.constant 0 : index
    %c1_274 = arith.constant 1 : index
    %c2_275 = arith.constant 2 : index
    %500 = vector.load %arg11[%c0_273, %c1_274, %c2_275] : memref<4x18x18xf32, #tpu.memory_space<vmem>>, vector<1x16x16xf32>
    %501 = vector.shape_cast %500 : vector<1x16x16xf32> to vector<16x16xf32>
    %502 = vector.broadcast %499 : f32 to vector<16x16xf32>
    %503 = arith.mulf %502, %501 : vector<16x16xf32>
    %504 = arith.addf %498, %503 : vector<16x16xf32>
    %c78 = arith.constant 78 : index
    %505 = memref.load %arg5[%c78] : memref<108xf32, #tpu.memory_space<smem>>
    %c0_276 = arith.constant 0 : index
    %c2_277 = arith.constant 2 : index
    %c0_278 = arith.constant 0 : index
    %506 = vector.load %arg11[%c0_276, %c2_277, %c0_278] : memref<4x18x18xf32, #tpu.memory_space<vmem>>, vector<1x16x16xf32>
    %507 = vector.shape_cast %506 : vector<1x16x16xf32> to vector<16x16xf32>
    %508 = vector.broadcast %505 : f32 to vector<16x16xf32>
    %509 = arith.mulf %508, %507 : vector<16x16xf32>
    %510 = arith.addf %504, %509 : vector<16x16xf32>
    %c79 = arith.constant 79 : index
    %511 = memref.load %arg5[%c79] : memref<108xf32, #tpu.memory_space<smem>>
    %c0_279 = arith.constant 0 : index
    %c2_280 = arith.constant 2 : index
    %c1_281 = arith.constant 1 : index
    %512 = vector.load %arg11[%c0_279, %c2_280, %c1_281] : memref<4x18x18xf32, #tpu.memory_space<vmem>>, vector<1x16x16xf32>
    %513 = vector.shape_cast %512 : vector<1x16x16xf32> to vector<16x16xf32>
    %514 = vector.broadcast %511 : f32 to vector<16x16xf32>
    %515 = arith.mulf %514, %513 : vector<16x16xf32>
    %516 = arith.addf %510, %515 : vector<16x16xf32>
    %c80 = arith.constant 80 : index
    %517 = memref.load %arg5[%c80] : memref<108xf32, #tpu.memory_space<smem>>
    %c0_282 = arith.constant 0 : index
    %c2_283 = arith.constant 2 : index
    %c2_284 = arith.constant 2 : index
    %518 = vector.load %arg11[%c0_282, %c2_283, %c2_284] : memref<4x18x18xf32, #tpu.memory_space<vmem>>, vector<1x16x16xf32>
    %519 = vector.shape_cast %518 : vector<1x16x16xf32> to vector<16x16xf32>
    %520 = vector.broadcast %517 : f32 to vector<16x16xf32>
    %521 = arith.mulf %520, %519 : vector<16x16xf32>
    %522 = arith.addf %516, %521 : vector<16x16xf32>
    %c81 = arith.constant 81 : index
    %523 = memref.load %arg5[%c81] : memref<108xf32, #tpu.memory_space<smem>>
    %c1_285 = arith.constant 1 : index
    %c0_286 = arith.constant 0 : index
    %c0_287 = arith.constant 0 : index
    %524 = vector.load %arg11[%c1_285, %c0_286, %c0_287] : memref<4x18x18xf32, #tpu.memory_space<vmem>>, vector<1x16x16xf32>
    %525 = vector.shape_cast %524 : vector<1x16x16xf32> to vector<16x16xf32>
    %526 = vector.broadcast %523 : f32 to vector<16x16xf32>
    %527 = arith.mulf %526, %525 : vector<16x16xf32>
    %528 = arith.addf %522, %527 : vector<16x16xf32>
    %c82 = arith.constant 82 : index
    %529 = memref.load %arg5[%c82] : memref<108xf32, #tpu.memory_space<smem>>
    %c1_288 = arith.constant 1 : index
    %c0_289 = arith.constant 0 : index
    %c1_290 = arith.constant 1 : index
    %530 = vector.load %arg11[%c1_288, %c0_289, %c1_290] : memref<4x18x18xf32, #tpu.memory_space<vmem>>, vector<1x16x16xf32>
    %531 = vector.shape_cast %530 : vector<1x16x16xf32> to vector<16x16xf32>
    %532 = vector.broadcast %529 : f32 to vector<16x16xf32>
    %533 = arith.mulf %532, %531 : vector<16x16xf32>
    %534 = arith.addf %528, %533 : vector<16x16xf32>
    %c83 = arith.constant 83 : index
    %535 = memref.load %arg5[%c83] : memref<108xf32, #tpu.memory_space<smem>>
    %c1_291 = arith.constant 1 : index
    %c0_292 = arith.constant 0 : index
    %c2_293 = arith.constant 2 : index
    %536 = vector.load %arg11[%c1_291, %c0_292, %c2_293] : memref<4x18x18xf32, #tpu.memory_space<vmem>>, vector<1x16x16xf32>
    %537 = vector.shape_cast %536 : vector<1x16x16xf32> to vector<16x16xf32>
    %538 = vector.broadcast %535 : f32 to vector<16x16xf32>
    %539 = arith.mulf %538, %537 : vector<16x16xf32>
    %540 = arith.addf %534, %539 : vector<16x16xf32>
    %c84 = arith.constant 84 : index
    %541 = memref.load %arg5[%c84] : memref<108xf32, #tpu.memory_space<smem>>
    %c1_294 = arith.constant 1 : index
    %c1_295 = arith.constant 1 : index
    %c0_296 = arith.constant 0 : index
    %542 = vector.load %arg11[%c1_294, %c1_295, %c0_296] : memref<4x18x18xf32, #tpu.memory_space<vmem>>, vector<1x16x16xf32>
    %543 = vector.shape_cast %542 : vector<1x16x16xf32> to vector<16x16xf32>
    %544 = vector.broadcast %541 : f32 to vector<16x16xf32>
    %545 = arith.mulf %544, %543 : vector<16x16xf32>
    %546 = arith.addf %540, %545 : vector<16x16xf32>
    %c85 = arith.constant 85 : index
    %547 = memref.load %arg5[%c85] : memref<108xf32, #tpu.memory_space<smem>>
    %c1_297 = arith.constant 1 : index
    %c1_298 = arith.constant 1 : index
    %c1_299 = arith.constant 1 : index
    %548 = vector.load %arg11[%c1_297, %c1_298, %c1_299] : memref<4x18x18xf32, #tpu.memory_space<vmem>>, vector<1x16x16xf32>
    %549 = vector.shape_cast %548 : vector<1x16x16xf32> to vector<16x16xf32>
    %550 = vector.broadcast %547 : f32 to vector<16x16xf32>
    %551 = arith.mulf %550, %549 : vector<16x16xf32>
    %552 = arith.addf %546, %551 : vector<16x16xf32>
    %c86 = arith.constant 86 : index
    %553 = memref.load %arg5[%c86] : memref<108xf32, #tpu.memory_space<smem>>
    %c1_300 = arith.constant 1 : index
    %c1_301 = arith.constant 1 : index
    %c2_302 = arith.constant 2 : index
    %554 = vector.load %arg11[%c1_300, %c1_301, %c2_302] : memref<4x18x18xf32, #tpu.memory_space<vmem>>, vector<1x16x16xf32>
    %555 = vector.shape_cast %554 : vector<1x16x16xf32> to vector<16x16xf32>
    %556 = vector.broadcast %553 : f32 to vector<16x16xf32>
    %557 = arith.mulf %556, %555 : vector<16x16xf32>
    %558 = arith.addf %552, %557 : vector<16x16xf32>
    %c87 = arith.constant 87 : index
    %559 = memref.load %arg5[%c87] : memref<108xf32, #tpu.memory_space<smem>>
    %c1_303 = arith.constant 1 : index
    %c2_304 = arith.constant 2 : index
    %c0_305 = arith.constant 0 : index
    %560 = vector.load %arg11[%c1_303, %c2_304, %c0_305] : memref<4x18x18xf32, #tpu.memory_space<vmem>>, vector<1x16x16xf32>
    %561 = vector.shape_cast %560 : vector<1x16x16xf32> to vector<16x16xf32>
    %562 = vector.broadcast %559 : f32 to vector<16x16xf32>
    %563 = arith.mulf %562, %561 : vector<16x16xf32>
    %564 = arith.addf %558, %563 : vector<16x16xf32>
    %c88 = arith.constant 88 : index
    %565 = memref.load %arg5[%c88] : memref<108xf32, #tpu.memory_space<smem>>
    %c1_306 = arith.constant 1 : index
    %c2_307 = arith.constant 2 : index
    %c1_308 = arith.constant 1 : index
    %566 = vector.load %arg11[%c1_306, %c2_307, %c1_308] : memref<4x18x18xf32, #tpu.memory_space<vmem>>, vector<1x16x16xf32>
    %567 = vector.shape_cast %566 : vector<1x16x16xf32> to vector<16x16xf32>
    %568 = vector.broadcast %565 : f32 to vector<16x16xf32>
    %569 = arith.mulf %568, %567 : vector<16x16xf32>
    %570 = arith.addf %564, %569 : vector<16x16xf32>
    %c89 = arith.constant 89 : index
    %571 = memref.load %arg5[%c89] : memref<108xf32, #tpu.memory_space<smem>>
    %c1_309 = arith.constant 1 : index
    %c2_310 = arith.constant 2 : index
    %c2_311 = arith.constant 2 : index
    %572 = vector.load %arg11[%c1_309, %c2_310, %c2_311] : memref<4x18x18xf32, #tpu.memory_space<vmem>>, vector<1x16x16xf32>
    %573 = vector.shape_cast %572 : vector<1x16x16xf32> to vector<16x16xf32>
    %574 = vector.broadcast %571 : f32 to vector<16x16xf32>
    %575 = arith.mulf %574, %573 : vector<16x16xf32>
    %576 = arith.addf %570, %575 : vector<16x16xf32>
    %c90 = arith.constant 90 : index
    %577 = memref.load %arg5[%c90] : memref<108xf32, #tpu.memory_space<smem>>
    %c2_312 = arith.constant 2 : index
    %c0_313 = arith.constant 0 : index
    %c0_314 = arith.constant 0 : index
    %578 = vector.load %arg11[%c2_312, %c0_313, %c0_314] : memref<4x18x18xf32, #tpu.memory_space<vmem>>, vector<1x16x16xf32>
    %579 = vector.shape_cast %578 : vector<1x16x16xf32> to vector<16x16xf32>
    %580 = vector.broadcast %577 : f32 to vector<16x16xf32>
    %581 = arith.mulf %580, %579 : vector<16x16xf32>
    %582 = arith.addf %576, %581 : vector<16x16xf32>
    %c91 = arith.constant 91 : index
    %583 = memref.load %arg5[%c91] : memref<108xf32, #tpu.memory_space<smem>>
    %c2_315 = arith.constant 2 : index
    %c0_316 = arith.constant 0 : index
    %c1_317 = arith.constant 1 : index
    %584 = vector.load %arg11[%c2_315, %c0_316, %c1_317] : memref<4x18x18xf32, #tpu.memory_space<vmem>>, vector<1x16x16xf32>
    %585 = vector.shape_cast %584 : vector<1x16x16xf32> to vector<16x16xf32>
    %586 = vector.broadcast %583 : f32 to vector<16x16xf32>
    %587 = arith.mulf %586, %585 : vector<16x16xf32>
    %588 = arith.addf %582, %587 : vector<16x16xf32>
    %c92 = arith.constant 92 : index
    %589 = memref.load %arg5[%c92] : memref<108xf32, #tpu.memory_space<smem>>
    %c2_318 = arith.constant 2 : index
    %c0_319 = arith.constant 0 : index
    %c2_320 = arith.constant 2 : index
    %590 = vector.load %arg11[%c2_318, %c0_319, %c2_320] : memref<4x18x18xf32, #tpu.memory_space<vmem>>, vector<1x16x16xf32>
    %591 = vector.shape_cast %590 : vector<1x16x16xf32> to vector<16x16xf32>
    %592 = vector.broadcast %589 : f32 to vector<16x16xf32>
    %593 = arith.mulf %592, %591 : vector<16x16xf32>
    %594 = arith.addf %588, %593 : vector<16x16xf32>
    %c93 = arith.constant 93 : index
    %595 = memref.load %arg5[%c93] : memref<108xf32, #tpu.memory_space<smem>>
    %c2_321 = arith.constant 2 : index
    %c1_322 = arith.constant 1 : index
    %c0_323 = arith.constant 0 : index
    %596 = vector.load %arg11[%c2_321, %c1_322, %c0_323] : memref<4x18x18xf32, #tpu.memory_space<vmem>>, vector<1x16x16xf32>
    %597 = vector.shape_cast %596 : vector<1x16x16xf32> to vector<16x16xf32>
    %598 = vector.broadcast %595 : f32 to vector<16x16xf32>
    %599 = arith.mulf %598, %597 : vector<16x16xf32>
    %600 = arith.addf %594, %599 : vector<16x16xf32>
    %c94 = arith.constant 94 : index
    %601 = memref.load %arg5[%c94] : memref<108xf32, #tpu.memory_space<smem>>
    %c2_324 = arith.constant 2 : index
    %c1_325 = arith.constant 1 : index
    %c1_326 = arith.constant 1 : index
    %602 = vector.load %arg11[%c2_324, %c1_325, %c1_326] : memref<4x18x18xf32, #tpu.memory_space<vmem>>, vector<1x16x16xf32>
    %603 = vector.shape_cast %602 : vector<1x16x16xf32> to vector<16x16xf32>
    %604 = vector.broadcast %601 : f32 to vector<16x16xf32>
    %605 = arith.mulf %604, %603 : vector<16x16xf32>
    %606 = arith.addf %600, %605 : vector<16x16xf32>
    %c95 = arith.constant 95 : index
    %607 = memref.load %arg5[%c95] : memref<108xf32, #tpu.memory_space<smem>>
    %c2_327 = arith.constant 2 : index
    %c1_328 = arith.constant 1 : index
    %c2_329 = arith.constant 2 : index
    %608 = vector.load %arg11[%c2_327, %c1_328, %c2_329] : memref<4x18x18xf32, #tpu.memory_space<vmem>>, vector<1x16x16xf32>
    %609 = vector.shape_cast %608 : vector<1x16x16xf32> to vector<16x16xf32>
    %610 = vector.broadcast %607 : f32 to vector<16x16xf32>
    %611 = arith.mulf %610, %609 : vector<16x16xf32>
    %612 = arith.addf %606, %611 : vector<16x16xf32>
    %c96 = arith.constant 96 : index
    %613 = memref.load %arg5[%c96] : memref<108xf32, #tpu.memory_space<smem>>
    %c2_330 = arith.constant 2 : index
    %c2_331 = arith.constant 2 : index
    %c0_332 = arith.constant 0 : index
    %614 = vector.load %arg11[%c2_330, %c2_331, %c0_332] : memref<4x18x18xf32, #tpu.memory_space<vmem>>, vector<1x16x16xf32>
    %615 = vector.shape_cast %614 : vector<1x16x16xf32> to vector<16x16xf32>
    %616 = vector.broadcast %613 : f32 to vector<16x16xf32>
    %617 = arith.mulf %616, %615 : vector<16x16xf32>
    %618 = arith.addf %612, %617 : vector<16x16xf32>
    %c97 = arith.constant 97 : index
    %619 = memref.load %arg5[%c97] : memref<108xf32, #tpu.memory_space<smem>>
    %c2_333 = arith.constant 2 : index
    %c2_334 = arith.constant 2 : index
    %c1_335 = arith.constant 1 : index
    %620 = vector.load %arg11[%c2_333, %c2_334, %c1_335] : memref<4x18x18xf32, #tpu.memory_space<vmem>>, vector<1x16x16xf32>
    %621 = vector.shape_cast %620 : vector<1x16x16xf32> to vector<16x16xf32>
    %622 = vector.broadcast %619 : f32 to vector<16x16xf32>
    %623 = arith.mulf %622, %621 : vector<16x16xf32>
    %624 = arith.addf %618, %623 : vector<16x16xf32>
    %c98 = arith.constant 98 : index
    %625 = memref.load %arg5[%c98] : memref<108xf32, #tpu.memory_space<smem>>
    %c2_336 = arith.constant 2 : index
    %c2_337 = arith.constant 2 : index
    %c2_338 = arith.constant 2 : index
    %626 = vector.load %arg11[%c2_336, %c2_337, %c2_338] : memref<4x18x18xf32, #tpu.memory_space<vmem>>, vector<1x16x16xf32>
    %627 = vector.shape_cast %626 : vector<1x16x16xf32> to vector<16x16xf32>
    %628 = vector.broadcast %625 : f32 to vector<16x16xf32>
    %629 = arith.mulf %628, %627 : vector<16x16xf32>
    %630 = arith.addf %624, %629 : vector<16x16xf32>
    %c99 = arith.constant 99 : index
    %631 = memref.load %arg5[%c99] : memref<108xf32, #tpu.memory_space<smem>>
    %c3_339 = arith.constant 3 : index
    %c0_340 = arith.constant 0 : index
    %c0_341 = arith.constant 0 : index
    %632 = vector.load %arg11[%c3_339, %c0_340, %c0_341] : memref<4x18x18xf32, #tpu.memory_space<vmem>>, vector<1x16x16xf32>
    %633 = vector.shape_cast %632 : vector<1x16x16xf32> to vector<16x16xf32>
    %634 = vector.broadcast %631 : f32 to vector<16x16xf32>
    %635 = arith.mulf %634, %633 : vector<16x16xf32>
    %636 = arith.addf %630, %635 : vector<16x16xf32>
    %c100 = arith.constant 100 : index
    %637 = memref.load %arg5[%c100] : memref<108xf32, #tpu.memory_space<smem>>
    %c3_342 = arith.constant 3 : index
    %c0_343 = arith.constant 0 : index
    %c1_344 = arith.constant 1 : index
    %638 = vector.load %arg11[%c3_342, %c0_343, %c1_344] : memref<4x18x18xf32, #tpu.memory_space<vmem>>, vector<1x16x16xf32>
    %639 = vector.shape_cast %638 : vector<1x16x16xf32> to vector<16x16xf32>
    %640 = vector.broadcast %637 : f32 to vector<16x16xf32>
    %641 = arith.mulf %640, %639 : vector<16x16xf32>
    %642 = arith.addf %636, %641 : vector<16x16xf32>
    %c101 = arith.constant 101 : index
    %643 = memref.load %arg5[%c101] : memref<108xf32, #tpu.memory_space<smem>>
    %c3_345 = arith.constant 3 : index
    %c0_346 = arith.constant 0 : index
    %c2_347 = arith.constant 2 : index
    %644 = vector.load %arg11[%c3_345, %c0_346, %c2_347] : memref<4x18x18xf32, #tpu.memory_space<vmem>>, vector<1x16x16xf32>
    %645 = vector.shape_cast %644 : vector<1x16x16xf32> to vector<16x16xf32>
    %646 = vector.broadcast %643 : f32 to vector<16x16xf32>
    %647 = arith.mulf %646, %645 : vector<16x16xf32>
    %648 = arith.addf %642, %647 : vector<16x16xf32>
    %c102 = arith.constant 102 : index
    %649 = memref.load %arg5[%c102] : memref<108xf32, #tpu.memory_space<smem>>
    %c3_348 = arith.constant 3 : index
    %c1_349 = arith.constant 1 : index
    %c0_350 = arith.constant 0 : index
    %650 = vector.load %arg11[%c3_348, %c1_349, %c0_350] : memref<4x18x18xf32, #tpu.memory_space<vmem>>, vector<1x16x16xf32>
    %651 = vector.shape_cast %650 : vector<1x16x16xf32> to vector<16x16xf32>
    %652 = vector.broadcast %649 : f32 to vector<16x16xf32>
    %653 = arith.mulf %652, %651 : vector<16x16xf32>
    %654 = arith.addf %648, %653 : vector<16x16xf32>
    %c103 = arith.constant 103 : index
    %655 = memref.load %arg5[%c103] : memref<108xf32, #tpu.memory_space<smem>>
    %c3_351 = arith.constant 3 : index
    %c1_352 = arith.constant 1 : index
    %c1_353 = arith.constant 1 : index
    %656 = vector.load %arg11[%c3_351, %c1_352, %c1_353] : memref<4x18x18xf32, #tpu.memory_space<vmem>>, vector<1x16x16xf32>
    %657 = vector.shape_cast %656 : vector<1x16x16xf32> to vector<16x16xf32>
    %658 = vector.broadcast %655 : f32 to vector<16x16xf32>
    %659 = arith.mulf %658, %657 : vector<16x16xf32>
    %660 = arith.addf %654, %659 : vector<16x16xf32>
    %c104 = arith.constant 104 : index
    %661 = memref.load %arg5[%c104] : memref<108xf32, #tpu.memory_space<smem>>
    %c3_354 = arith.constant 3 : index
    %c1_355 = arith.constant 1 : index
    %c2_356 = arith.constant 2 : index
    %662 = vector.load %arg11[%c3_354, %c1_355, %c2_356] : memref<4x18x18xf32, #tpu.memory_space<vmem>>, vector<1x16x16xf32>
    %663 = vector.shape_cast %662 : vector<1x16x16xf32> to vector<16x16xf32>
    %664 = vector.broadcast %661 : f32 to vector<16x16xf32>
    %665 = arith.mulf %664, %663 : vector<16x16xf32>
    %666 = arith.addf %660, %665 : vector<16x16xf32>
    %c105 = arith.constant 105 : index
    %667 = memref.load %arg5[%c105] : memref<108xf32, #tpu.memory_space<smem>>
    %c3_357 = arith.constant 3 : index
    %c2_358 = arith.constant 2 : index
    %c0_359 = arith.constant 0 : index
    %668 = vector.load %arg11[%c3_357, %c2_358, %c0_359] : memref<4x18x18xf32, #tpu.memory_space<vmem>>, vector<1x16x16xf32>
    %669 = vector.shape_cast %668 : vector<1x16x16xf32> to vector<16x16xf32>
    %670 = vector.broadcast %667 : f32 to vector<16x16xf32>
    %671 = arith.mulf %670, %669 : vector<16x16xf32>
    %672 = arith.addf %666, %671 : vector<16x16xf32>
    %c106 = arith.constant 106 : index
    %673 = memref.load %arg5[%c106] : memref<108xf32, #tpu.memory_space<smem>>
    %c3_360 = arith.constant 3 : index
    %c2_361 = arith.constant 2 : index
    %c1_362 = arith.constant 1 : index
    %674 = vector.load %arg11[%c3_360, %c2_361, %c1_362] : memref<4x18x18xf32, #tpu.memory_space<vmem>>, vector<1x16x16xf32>
    %675 = vector.shape_cast %674 : vector<1x16x16xf32> to vector<16x16xf32>
    %676 = vector.broadcast %673 : f32 to vector<16x16xf32>
    %677 = arith.mulf %676, %675 : vector<16x16xf32>
    %678 = arith.addf %672, %677 : vector<16x16xf32>
    %c107 = arith.constant 107 : index
    %679 = memref.load %arg5[%c107] : memref<108xf32, #tpu.memory_space<smem>>
    %c3_363 = arith.constant 3 : index
    %c2_364 = arith.constant 2 : index
    %c2_365 = arith.constant 2 : index
    %680 = vector.load %arg11[%c3_363, %c2_364, %c2_365] : memref<4x18x18xf32, #tpu.memory_space<vmem>>, vector<1x16x16xf32>
    %681 = vector.shape_cast %680 : vector<1x16x16xf32> to vector<16x16xf32>
    %682 = vector.broadcast %679 : f32 to vector<16x16xf32>
    %683 = arith.mulf %682, %681 : vector<16x16xf32>
    %684 = arith.addf %678, %683 : vector<16x16xf32>
    %c0_366 = arith.constant 0 : index
    %c2_367 = arith.constant 2 : index
    %c0_368 = arith.constant 0 : index
    %c0_369 = arith.constant 0 : index
    %685 = vector.load %arg2[%c0_366, %c2_367, %c0_368, %c0_369] : memref<1x3x16x16xf32, #tpu.memory_space<vmem>>, vector<1x1x16x16xf32>
    %686 = vector.shape_cast %685 : vector<1x1x16x16xf32> to vector<16x16xf32>
    %687 = arith.addf %684, %686 : vector<16x16xf32>
    %c0_370 = arith.constant 0 : index
    %c2_371 = arith.constant 2 : index
    %c0_372 = arith.constant 0 : index
    %c0_373 = arith.constant 0 : index
    %688 = vector.load %arg10[%c0_370, %c2_371, %c0_372, %c0_373] : memref<1x3x16x16xf32, #tpu.memory_space<vmem>>, vector<1x1x16x16xf32>
    %689 = vector.shape_cast %688 : vector<1x1x16x16xf32> to vector<16x16xf32>
    %690 = vector.shape_cast %687 : vector<16x16xf32> to vector<1x1x16x16xf32>
    tpu.vector_store %arg10[%c0_370, %c2_371, %c0_372, %c0_373], %690 {strides = array<i32>} : memref<1x3x16x16xf32, #tpu.memory_space<vmem>>, vector<1x1x16x16xf32>,
    %c2_374 = arith.constant 2 : index
    %c1_375 = arith.constant 1 : index
    %c1_376 = arith.constant 1 : index
    %691 = vector.load %arg12[%c2_374, %c1_375, %c1_376] : memref<3x18x18xf32, #tpu.memory_space<vmem>>, vector<1x16x16xf32>
    %692 = vector.shape_cast %691 : vector<1x16x16xf32> to vector<16x16xf32>
    %693 = vector.shape_cast %687 : vector<16x16xf32> to vector<1x16x16xf32>
    tpu.vector_store %arg12[%c2_374, %c1_375, %c1_376], %693 {strides = array<i32>} : memref<3x18x18xf32, #tpu.memory_space<vmem>>, vector<1x16x16xf32>,
    %cst_377 = arith.constant 0.000000e+00 : f32
    %694 = vector.broadcast %cst_377 : f32 to vector<16x16xf32>
    %c0_378 = arith.constant 0 : index
    %695 = memref.load %arg4[%c0_378] : memref<4xf32, #tpu.memory_space<smem>>
    %696 = vector.broadcast %695 : f32 to vector<16x16xf32>
    %697 = arith.addf %694, %696 : vector<16x16xf32>
    %c0_379 = arith.constant 0 : index
    %698 = memref.load %arg3[%c0_379] : memref<144xf32, #tpu.memory_space<smem>>
    %c0_380 = arith.constant 0 : index
    %c0_381 = arith.constant 0 : index
    %c0_382 = arith.constant 0 : index
    %699 = vector.load %arg11[%c0_380, %c0_381, %c0_382] : memref<4x18x18xf32, #tpu.memory_space<vmem>>, vector<1x16x16xf32>
    %700 = vector.shape_cast %699 : vector<1x16x16xf32> to vector<16x16xf32>
    %701 = vector.broadcast %698 : f32 to vector<16x16xf32>
    %702 = arith.mulf %701, %700 : vector<16x16xf32>
    %703 = arith.addf %697, %702 : vector<16x16xf32>
    %c1_383 = arith.constant 1 : index
    %704 = memref.load %arg3[%c1_383] : memref<144xf32, #tpu.memory_space<smem>>
    %c0_384 = arith.constant 0 : index
    %c0_385 = arith.constant 0 : index
    %c1_386 = arith.constant 1 : index
    %705 = vector.load %arg11[%c0_384, %c0_385, %c1_386] : memref<4x18x18xf32, #tpu.memory_space<vmem>>, vector<1x16x16xf32>
    %706 = vector.shape_cast %705 : vector<1x16x16xf32> to vector<16x16xf32>
    %707 = vector.broadcast %704 : f32 to vector<16x16xf32>
    %708 = arith.mulf %707, %706 : vector<16x16xf32>
    %709 = arith.addf %703, %708 : vector<16x16xf32>
    %c2_387 = arith.constant 2 : index
    %710 = memref.load %arg3[%c2_387] : memref<144xf32, #tpu.memory_space<smem>>
    %c0_388 = arith.constant 0 : index
    %c0_389 = arith.constant 0 : index
    %c2_390 = arith.constant 2 : index
    %711 = vector.load %arg11[%c0_388, %c0_389, %c2_390] : memref<4x18x18xf32, #tpu.memory_space<vmem>>, vector<1x16x16xf32>
    %712 = vector.shape_cast %711 : vector<1x16x16xf32> to vector<16x16xf32>
    %713 = vector.broadcast %710 : f32 to vector<16x16xf32>
    %714 = arith.mulf %713, %712 : vector<16x16xf32>
    %715 = arith.addf %709, %714 : vector<16x16xf32>
    %c3_391 = arith.constant 3 : index
    %716 = memref.load %arg3[%c3_391] : memref<144xf32, #tpu.memory_space<smem>>
    %c0_392 = arith.constant 0 : index
    %c1_393 = arith.constant 1 : index
    %c0_394 = arith.constant 0 : index
    %717 = vector.load %arg11[%c0_392, %c1_393, %c0_394] : memref<4x18x18xf32, #tpu.memory_space<vmem>>, vector<1x16x16xf32>
    %718 = vector.shape_cast %717 : vector<1x16x16xf32> to vector<16x16xf32>
    %719 = vector.broadcast %716 : f32 to vector<16x16xf32>
    %720 = arith.mulf %719, %718 : vector<16x16xf32>
    %721 = arith.addf %715, %720 : vector<16x16xf32>
    %c4_395 = arith.constant 4 : index
    %722 = memref.load %arg3[%c4_395] : memref<144xf32, #tpu.memory_space<smem>>
    %c0_396 = arith.constant 0 : index
    %c1_397 = arith.constant 1 : index
    %c1_398 = arith.constant 1 : index
    %723 = vector.load %arg11[%c0_396, %c1_397, %c1_398] : memref<4x18x18xf32, #tpu.memory_space<vmem>>, vector<1x16x16xf32>
    %724 = vector.shape_cast %723 : vector<1x16x16xf32> to vector<16x16xf32>
    %725 = vector.broadcast %722 : f32 to vector<16x16xf32>
    %726 = arith.mulf %725, %724 : vector<16x16xf32>
    %727 = arith.addf %721, %726 : vector<16x16xf32>
    %c5_399 = arith.constant 5 : index
    %728 = memref.load %arg3[%c5_399] : memref<144xf32, #tpu.memory_space<smem>>
    %c0_400 = arith.constant 0 : index
    %c1_401 = arith.constant 1 : index
    %c2_402 = arith.constant 2 : index
    %729 = vector.load %arg11[%c0_400, %c1_401, %c2_402] : memref<4x18x18xf32, #tpu.memory_space<vmem>>, vector<1x16x16xf32>
    %730 = vector.shape_cast %729 : vector<1x16x16xf32> to vector<16x16xf32>
    %731 = vector.broadcast %728 : f32 to vector<16x16xf32>
    %732 = arith.mulf %731, %730 : vector<16x16xf32>
    %733 = arith.addf %727, %732 : vector<16x16xf32>
    %c6_403 = arith.constant 6 : index
    %734 = memref.load %arg3[%c6_403] : memref<144xf32, #tpu.memory_space<smem>>
    %c0_404 = arith.constant 0 : index
    %c2_405 = arith.constant 2 : index
    %c0_406 = arith.constant 0 : index
    %735 = vector.load %arg11[%c0_404, %c2_405, %c0_406] : memref<4x18x18xf32, #tpu.memory_space<vmem>>, vector<1x16x16xf32>
    %736 = vector.shape_cast %735 : vector<1x16x16xf32> to vector<16x16xf32>
    %737 = vector.broadcast %734 : f32 to vector<16x16xf32>
    %738 = arith.mulf %737, %736 : vector<16x16xf32>
    %739 = arith.addf %733, %738 : vector<16x16xf32>
    %c7_407 = arith.constant 7 : index
    %740 = memref.load %arg3[%c7_407] : memref<144xf32, #tpu.memory_space<smem>>
    %c0_408 = arith.constant 0 : index
    %c2_409 = arith.constant 2 : index
    %c1_410 = arith.constant 1 : index
    %741 = vector.load %arg11[%c0_408, %c2_409, %c1_410] : memref<4x18x18xf32, #tpu.memory_space<vmem>>, vector<1x16x16xf32>
    %742 = vector.shape_cast %741 : vector<1x16x16xf32> to vector<16x16xf32>
    %743 = vector.broadcast %740 : f32 to vector<16x16xf32>
    %744 = arith.mulf %743, %742 : vector<16x16xf32>
    %745 = arith.addf %739, %744 : vector<16x16xf32>
    %c8_411 = arith.constant 8 : index
    %746 = memref.load %arg3[%c8_411] : memref<144xf32, #tpu.memory_space<smem>>
    %c0_412 = arith.constant 0 : index
    %c2_413 = arith.constant 2 : index
    %c2_414 = arith.constant 2 : index
    %747 = vector.load %arg11[%c0_412, %c2_413, %c2_414] : memref<4x18x18xf32, #tpu.memory_space<vmem>>, vector<1x16x16xf32>
    %748 = vector.shape_cast %747 : vector<1x16x16xf32> to vector<16x16xf32>
    %749 = vector.broadcast %746 : f32 to vector<16x16xf32>
    %750 = arith.mulf %749, %748 : vector<16x16xf32>
    %751 = arith.addf %745, %750 : vector<16x16xf32>
    %c9_415 = arith.constant 9 : index
    %752 = memref.load %arg3[%c9_415] : memref<144xf32, #tpu.memory_space<smem>>
    %c1_416 = arith.constant 1 : index
    %c0_417 = arith.constant 0 : index
    %c0_418 = arith.constant 0 : index
    %753 = vector.load %arg11[%c1_416, %c0_417, %c0_418] : memref<4x18x18xf32, #tpu.memory_space<vmem>>, vector<1x16x16xf32>
    %754 = vector.shape_cast %753 : vector<1x16x16xf32> to vector<16x16xf32>
    %755 = vector.broadcast %752 : f32 to vector<16x16xf32>
    %756 = arith.mulf %755, %754 : vector<16x16xf32>
    %757 = arith.addf %751, %756 : vector<16x16xf32>
    %c10_419 = arith.constant 10 : index
    %758 = memref.load %arg3[%c10_419] : memref<144xf32, #tpu.memory_space<smem>>
    %c1_420 = arith.constant 1 : index
    %c0_421 = arith.constant 0 : index
    %c1_422 = arith.constant 1 : index
    %759 = vector.load %arg11[%c1_420, %c0_421, %c1_422] : memref<4x18x18xf32, #tpu.memory_space<vmem>>, vector<1x16x16xf32>
    %760 = vector.shape_cast %759 : vector<1x16x16xf32> to vector<16x16xf32>
    %761 = vector.broadcast %758 : f32 to vector<16x16xf32>
    %762 = arith.mulf %761, %760 : vector<16x16xf32>
    %763 = arith.addf %757, %762 : vector<16x16xf32>
    %c11_423 = arith.constant 11 : index
    %764 = memref.load %arg3[%c11_423] : memref<144xf32, #tpu.memory_space<smem>>
    %c1_424 = arith.constant 1 : index
    %c0_425 = arith.constant 0 : index
    %c2_426 = arith.constant 2 : index
    %765 = vector.load %arg11[%c1_424, %c0_425, %c2_426] : memref<4x18x18xf32, #tpu.memory_space<vmem>>, vector<1x16x16xf32>
    %766 = vector.shape_cast %765 : vector<1x16x16xf32> to vector<16x16xf32>
    %767 = vector.broadcast %764 : f32 to vector<16x16xf32>
    %768 = arith.mulf %767, %766 : vector<16x16xf32>
    %769 = arith.addf %763, %768 : vector<16x16xf32>
    %c12_427 = arith.constant 12 : index
    %770 = memref.load %arg3[%c12_427] : memref<144xf32, #tpu.memory_space<smem>>
    %c1_428 = arith.constant 1 : index
    %c1_429 = arith.constant 1 : index
    %c0_430 = arith.constant 0 : index
    %771 = vector.load %arg11[%c1_428, %c1_429, %c0_430] : memref<4x18x18xf32, #tpu.memory_space<vmem>>, vector<1x16x16xf32>
    %772 = vector.shape_cast %771 : vector<1x16x16xf32> to vector<16x16xf32>
    %773 = vector.broadcast %770 : f32 to vector<16x16xf32>
    %774 = arith.mulf %773, %772 : vector<16x16xf32>
    %775 = arith.addf %769, %774 : vector<16x16xf32>
    %c13_431 = arith.constant 13 : index
    %776 = memref.load %arg3[%c13_431] : memref<144xf32, #tpu.memory_space<smem>>
    %c1_432 = arith.constant 1 : index
    %c1_433 = arith.constant 1 : index
    %c1_434 = arith.constant 1 : index
    %777 = vector.load %arg11[%c1_432, %c1_433, %c1_434] : memref<4x18x18xf32, #tpu.memory_space<vmem>>, vector<1x16x16xf32>
    %778 = vector.shape_cast %777 : vector<1x16x16xf32> to vector<16x16xf32>
    %779 = vector.broadcast %776 : f32 to vector<16x16xf32>
    %780 = arith.mulf %779, %778 : vector<16x16xf32>
    %781 = arith.addf %775, %780 : vector<16x16xf32>
    %c14_435 = arith.constant 14 : index
    %782 = memref.load %arg3[%c14_435] : memref<144xf32, #tpu.memory_space<smem>>
    %c1_436 = arith.constant 1 : index
    %c1_437 = arith.constant 1 : index
    %c2_438 = arith.constant 2 : index
    %783 = vector.load %arg11[%c1_436, %c1_437, %c2_438] : memref<4x18x18xf32, #tpu.memory_space<vmem>>, vector<1x16x16xf32>
    %784 = vector.shape_cast %783 : vector<1x16x16xf32> to vector<16x16xf32>
    %785 = vector.broadcast %782 : f32 to vector<16x16xf32>
    %786 = arith.mulf %785, %784 : vector<16x16xf32>
    %787 = arith.addf %781, %786 : vector<16x16xf32>
    %c15_439 = arith.constant 15 : index
    %788 = memref.load %arg3[%c15_439] : memref<144xf32, #tpu.memory_space<smem>>
    %c1_440 = arith.constant 1 : index
    %c2_441 = arith.constant 2 : index
    %c0_442 = arith.constant 0 : index
    %789 = vector.load %arg11[%c1_440, %c2_441, %c0_442] : memref<4x18x18xf32, #tpu.memory_space<vmem>>, vector<1x16x16xf32>
    %790 = vector.shape_cast %789 : vector<1x16x16xf32> to vector<16x16xf32>
    %791 = vector.broadcast %788 : f32 to vector<16x16xf32>
    %792 = arith.mulf %791, %790 : vector<16x16xf32>
    %793 = arith.addf %787, %792 : vector<16x16xf32>
    %c16_443 = arith.constant 16 : index
    %794 = memref.load %arg3[%c16_443] : memref<144xf32, #tpu.memory_space<smem>>
    %c1_444 = arith.constant 1 : index
    %c2_445 = arith.constant 2 : index
    %c1_446 = arith.constant 1 : index
    %795 = vector.load %arg11[%c1_444, %c2_445, %c1_446] : memref<4x18x18xf32, #tpu.memory_space<vmem>>, vector<1x16x16xf32>
    %796 = vector.shape_cast %795 : vector<1x16x16xf32> to vector<16x16xf32>
    %797 = vector.broadcast %794 : f32 to vector<16x16xf32>
    %798 = arith.mulf %797, %796 : vector<16x16xf32>
    %799 = arith.addf %793, %798 : vector<16x16xf32>
    %c17_447 = arith.constant 17 : index
    %800 = memref.load %arg3[%c17_447] : memref<144xf32, #tpu.memory_space<smem>>
    %c1_448 = arith.constant 1 : index
    %c2_449 = arith.constant 2 : index
    %c2_450 = arith.constant 2 : index
    %801 = vector.load %arg11[%c1_448, %c2_449, %c2_450] : memref<4x18x18xf32, #tpu.memory_space<vmem>>, vector<1x16x16xf32>
    %802 = vector.shape_cast %801 : vector<1x16x16xf32> to vector<16x16xf32>
    %803 = vector.broadcast %800 : f32 to vector<16x16xf32>
    %804 = arith.mulf %803, %802 : vector<16x16xf32>
    %805 = arith.addf %799, %804 : vector<16x16xf32>
    %c18_451 = arith.constant 18 : index
    %806 = memref.load %arg3[%c18_451] : memref<144xf32, #tpu.memory_space<smem>>
    %c2_452 = arith.constant 2 : index
    %c0_453 = arith.constant 0 : index
    %c0_454 = arith.constant 0 : index
    %807 = vector.load %arg11[%c2_452, %c0_453, %c0_454] : memref<4x18x18xf32, #tpu.memory_space<vmem>>, vector<1x16x16xf32>
    %808 = vector.shape_cast %807 : vector<1x16x16xf32> to vector<16x16xf32>
    %809 = vector.broadcast %806 : f32 to vector<16x16xf32>
    %810 = arith.mulf %809, %808 : vector<16x16xf32>
    %811 = arith.addf %805, %810 : vector<16x16xf32>
    %c19_455 = arith.constant 19 : index
    %812 = memref.load %arg3[%c19_455] : memref<144xf32, #tpu.memory_space<smem>>
    %c2_456 = arith.constant 2 : index
    %c0_457 = arith.constant 0 : index
    %c1_458 = arith.constant 1 : index
    %813 = vector.load %arg11[%c2_456, %c0_457, %c1_458] : memref<4x18x18xf32, #tpu.memory_space<vmem>>, vector<1x16x16xf32>
    %814 = vector.shape_cast %813 : vector<1x16x16xf32> to vector<16x16xf32>
    %815 = vector.broadcast %812 : f32 to vector<16x16xf32>
    %816 = arith.mulf %815, %814 : vector<16x16xf32>
    %817 = arith.addf %811, %816 : vector<16x16xf32>
    %c20_459 = arith.constant 20 : index
    %818 = memref.load %arg3[%c20_459] : memref<144xf32, #tpu.memory_space<smem>>
    %c2_460 = arith.constant 2 : index
    %c0_461 = arith.constant 0 : index
    %c2_462 = arith.constant 2 : index
    %819 = vector.load %arg11[%c2_460, %c0_461, %c2_462] : memref<4x18x18xf32, #tpu.memory_space<vmem>>, vector<1x16x16xf32>
    %820 = vector.shape_cast %819 : vector<1x16x16xf32> to vector<16x16xf32>
    %821 = vector.broadcast %818 : f32 to vector<16x16xf32>
    %822 = arith.mulf %821, %820 : vector<16x16xf32>
    %823 = arith.addf %817, %822 : vector<16x16xf32>
    %c21_463 = arith.constant 21 : index
    %824 = memref.load %arg3[%c21_463] : memref<144xf32, #tpu.memory_space<smem>>
    %c2_464 = arith.constant 2 : index
    %c1_465 = arith.constant 1 : index
    %c0_466 = arith.constant 0 : index
    %825 = vector.load %arg11[%c2_464, %c1_465, %c0_466] : memref<4x18x18xf32, #tpu.memory_space<vmem>>, vector<1x16x16xf32>
    %826 = vector.shape_cast %825 : vector<1x16x16xf32> to vector<16x16xf32>
    %827 = vector.broadcast %824 : f32 to vector<16x16xf32>
    %828 = arith.mulf %827, %826 : vector<16x16xf32>
    %829 = arith.addf %823, %828 : vector<16x16xf32>
    %c22_467 = arith.constant 22 : index
    %830 = memref.load %arg3[%c22_467] : memref<144xf32, #tpu.memory_space<smem>>
    %c2_468 = arith.constant 2 : index
    %c1_469 = arith.constant 1 : index
    %c1_470 = arith.constant 1 : index
    %831 = vector.load %arg11[%c2_468, %c1_469, %c1_470] : memref<4x18x18xf32, #tpu.memory_space<vmem>>, vector<1x16x16xf32>
    %832 = vector.shape_cast %831 : vector<1x16x16xf32> to vector<16x16xf32>
    %833 = vector.broadcast %830 : f32 to vector<16x16xf32>
    %834 = arith.mulf %833, %832 : vector<16x16xf32>
    %835 = arith.addf %829, %834 : vector<16x16xf32>
    %c23_471 = arith.constant 23 : index
    %836 = memref.load %arg3[%c23_471] : memref<144xf32, #tpu.memory_space<smem>>
    %c2_472 = arith.constant 2 : index
    %c1_473 = arith.constant 1 : index
    %c2_474 = arith.constant 2 : index
    %837 = vector.load %arg11[%c2_472, %c1_473, %c2_474] : memref<4x18x18xf32, #tpu.memory_space<vmem>>, vector<1x16x16xf32>
    %838 = vector.shape_cast %837 : vector<1x16x16xf32> to vector<16x16xf32>
    %839 = vector.broadcast %836 : f32 to vector<16x16xf32>
    %840 = arith.mulf %839, %838 : vector<16x16xf32>
    %841 = arith.addf %835, %840 : vector<16x16xf32>
    %c24_475 = arith.constant 24 : index
    %842 = memref.load %arg3[%c24_475] : memref<144xf32, #tpu.memory_space<smem>>
    %c2_476 = arith.constant 2 : index
    %c2_477 = arith.constant 2 : index
    %c0_478 = arith.constant 0 : index
    %843 = vector.load %arg11[%c2_476, %c2_477, %c0_478] : memref<4x18x18xf32, #tpu.memory_space<vmem>>, vector<1x16x16xf32>
    %844 = vector.shape_cast %843 : vector<1x16x16xf32> to vector<16x16xf32>
    %845 = vector.broadcast %842 : f32 to vector<16x16xf32>
    %846 = arith.mulf %845, %844 : vector<16x16xf32>
    %847 = arith.addf %841, %846 : vector<16x16xf32>
    %c25_479 = arith.constant 25 : index
    %848 = memref.load %arg3[%c25_479] : memref<144xf32, #tpu.memory_space<smem>>
    %c2_480 = arith.constant 2 : index
    %c2_481 = arith.constant 2 : index
    %c1_482 = arith.constant 1 : index
    %849 = vector.load %arg11[%c2_480, %c2_481, %c1_482] : memref<4x18x18xf32, #tpu.memory_space<vmem>>, vector<1x16x16xf32>
    %850 = vector.shape_cast %849 : vector<1x16x16xf32> to vector<16x16xf32>
    %851 = vector.broadcast %848 : f32 to vector<16x16xf32>
    %852 = arith.mulf %851, %850 : vector<16x16xf32>
    %853 = arith.addf %847, %852 : vector<16x16xf32>
    %c26_483 = arith.constant 26 : index
    %854 = memref.load %arg3[%c26_483] : memref<144xf32, #tpu.memory_space<smem>>
    %c2_484 = arith.constant 2 : index
    %c2_485 = arith.constant 2 : index
    %c2_486 = arith.constant 2 : index
    %855 = vector.load %arg11[%c2_484, %c2_485, %c2_486] : memref<4x18x18xf32, #tpu.memory_space<vmem>>, vector<1x16x16xf32>
    %856 = vector.shape_cast %855 : vector<1x16x16xf32> to vector<16x16xf32>
    %857 = vector.broadcast %854 : f32 to vector<16x16xf32>
    %858 = arith.mulf %857, %856 : vector<16x16xf32>
    %859 = arith.addf %853, %858 : vector<16x16xf32>
    %c27_487 = arith.constant 27 : index
    %860 = memref.load %arg3[%c27_487] : memref<144xf32, #tpu.memory_space<smem>>
    %c3_488 = arith.constant 3 : index
    %c0_489 = arith.constant 0 : index
    %c0_490 = arith.constant 0 : index
    %861 = vector.load %arg11[%c3_488, %c0_489, %c0_490] : memref<4x18x18xf32, #tpu.memory_space<vmem>>, vector<1x16x16xf32>
    %862 = vector.shape_cast %861 : vector<1x16x16xf32> to vector<16x16xf32>
    %863 = vector.broadcast %860 : f32 to vector<16x16xf32>
    %864 = arith.mulf %863, %862 : vector<16x16xf32>
    %865 = arith.addf %859, %864 : vector<16x16xf32>
    %c28_491 = arith.constant 28 : index
    %866 = memref.load %arg3[%c28_491] : memref<144xf32, #tpu.memory_space<smem>>
    %c3_492 = arith.constant 3 : index
    %c0_493 = arith.constant 0 : index
    %c1_494 = arith.constant 1 : index
    %867 = vector.load %arg11[%c3_492, %c0_493, %c1_494] : memref<4x18x18xf32, #tpu.memory_space<vmem>>, vector<1x16x16xf32>
    %868 = vector.shape_cast %867 : vector<1x16x16xf32> to vector<16x16xf32>
    %869 = vector.broadcast %866 : f32 to vector<16x16xf32>
    %870 = arith.mulf %869, %868 : vector<16x16xf32>
    %871 = arith.addf %865, %870 : vector<16x16xf32>
    %c29_495 = arith.constant 29 : index
    %872 = memref.load %arg3[%c29_495] : memref<144xf32, #tpu.memory_space<smem>>
    %c3_496 = arith.constant 3 : index
    %c0_497 = arith.constant 0 : index
    %c2_498 = arith.constant 2 : index
    %873 = vector.load %arg11[%c3_496, %c0_497, %c2_498] : memref<4x18x18xf32, #tpu.memory_space<vmem>>, vector<1x16x16xf32>
    %874 = vector.shape_cast %873 : vector<1x16x16xf32> to vector<16x16xf32>
    %875 = vector.broadcast %872 : f32 to vector<16x16xf32>
    %876 = arith.mulf %875, %874 : vector<16x16xf32>
    %877 = arith.addf %871, %876 : vector<16x16xf32>
    %c30_499 = arith.constant 30 : index
    %878 = memref.load %arg3[%c30_499] : memref<144xf32, #tpu.memory_space<smem>>
    %c3_500 = arith.constant 3 : index
    %c1_501 = arith.constant 1 : index
    %c0_502 = arith.constant 0 : index
    %879 = vector.load %arg11[%c3_500, %c1_501, %c0_502] : memref<4x18x18xf32, #tpu.memory_space<vmem>>, vector<1x16x16xf32>
    %880 = vector.shape_cast %879 : vector<1x16x16xf32> to vector<16x16xf32>
    %881 = vector.broadcast %878 : f32 to vector<16x16xf32>
    %882 = arith.mulf %881, %880 : vector<16x16xf32>
    %883 = arith.addf %877, %882 : vector<16x16xf32>
    %c31_503 = arith.constant 31 : index
    %884 = memref.load %arg3[%c31_503] : memref<144xf32, #tpu.memory_space<smem>>
    %c3_504 = arith.constant 3 : index
    %c1_505 = arith.constant 1 : index
    %c1_506 = arith.constant 1 : index
    %885 = vector.load %arg11[%c3_504, %c1_505, %c1_506] : memref<4x18x18xf32, #tpu.memory_space<vmem>>, vector<1x16x16xf32>
    %886 = vector.shape_cast %885 : vector<1x16x16xf32> to vector<16x16xf32>
    %887 = vector.broadcast %884 : f32 to vector<16x16xf32>
    %888 = arith.mulf %887, %886 : vector<16x16xf32>
    %889 = arith.addf %883, %888 : vector<16x16xf32>
    %c32_507 = arith.constant 32 : index
    %890 = memref.load %arg3[%c32_507] : memref<144xf32, #tpu.memory_space<smem>>
    %c3_508 = arith.constant 3 : index
    %c1_509 = arith.constant 1 : index
    %c2_510 = arith.constant 2 : index
    %891 = vector.load %arg11[%c3_508, %c1_509, %c2_510] : memref<4x18x18xf32, #tpu.memory_space<vmem>>, vector<1x16x16xf32>
    %892 = vector.shape_cast %891 : vector<1x16x16xf32> to vector<16x16xf32>
    %893 = vector.broadcast %890 : f32 to vector<16x16xf32>
    %894 = arith.mulf %893, %892 : vector<16x16xf32>
    %895 = arith.addf %889, %894 : vector<16x16xf32>
    %c33_511 = arith.constant 33 : index
    %896 = memref.load %arg3[%c33_511] : memref<144xf32, #tpu.memory_space<smem>>
    %c3_512 = arith.constant 3 : index
    %c2_513 = arith.constant 2 : index
    %c0_514 = arith.constant 0 : index
    %897 = vector.load %arg11[%c3_512, %c2_513, %c0_514] : memref<4x18x18xf32, #tpu.memory_space<vmem>>, vector<1x16x16xf32>
    %898 = vector.shape_cast %897 : vector<1x16x16xf32> to vector<16x16xf32>
    %899 = vector.broadcast %896 : f32 to vector<16x16xf32>
    %900 = arith.mulf %899, %898 : vector<16x16xf32>
    %901 = arith.addf %895, %900 : vector<16x16xf32>
    %c34_515 = arith.constant 34 : index
    %902 = memref.load %arg3[%c34_515] : memref<144xf32, #tpu.memory_space<smem>>
    %c3_516 = arith.constant 3 : index
    %c2_517 = arith.constant 2 : index
    %c1_518 = arith.constant 1 : index
    %903 = vector.load %arg11[%c3_516, %c2_517, %c1_518] : memref<4x18x18xf32, #tpu.memory_space<vmem>>, vector<1x16x16xf32>
    %904 = vector.shape_cast %903 : vector<1x16x16xf32> to vector<16x16xf32>
    %905 = vector.broadcast %902 : f32 to vector<16x16xf32>
    %906 = arith.mulf %905, %904 : vector<16x16xf32>
    %907 = arith.addf %901, %906 : vector<16x16xf32>
    %c35_519 = arith.constant 35 : index
    %908 = memref.load %arg3[%c35_519] : memref<144xf32, #tpu.memory_space<smem>>
    %c3_520 = arith.constant 3 : index
    %c2_521 = arith.constant 2 : index
    %c2_522 = arith.constant 2 : index
    %909 = vector.load %arg11[%c3_520, %c2_521, %c2_522] : memref<4x18x18xf32, #tpu.memory_space<vmem>>, vector<1x16x16xf32>
    %910 = vector.shape_cast %909 : vector<1x16x16xf32> to vector<16x16xf32>
    %911 = vector.broadcast %908 : f32 to vector<16x16xf32>
    %912 = arith.mulf %911, %910 : vector<16x16xf32>
    %913 = arith.addf %907, %912 : vector<16x16xf32>
    %cst_523 = arith.constant 0.000000e+00 : f32
    %914 = vector.broadcast %cst_523 : f32 to vector<16x16xf32>
    %c0_524 = arith.constant 0 : index
    %915 = memref.load %arg8[%c0_524] : memref<4xf32, #tpu.memory_space<smem>>
    %916 = vector.broadcast %915 : f32 to vector<16x16xf32>
    %917 = arith.addf %914, %916 : vector<16x16xf32>
    %c0_525 = arith.constant 0 : index
    %918 = memref.load %arg7[%c0_525] : memref<108xf32, #tpu.memory_space<smem>>
    %c0_526 = arith.constant 0 : index
    %c0_527 = arith.constant 0 : index
    %c0_528 = arith.constant 0 : index
    %919 = vector.load %arg12[%c0_526, %c0_527, %c0_528] : memref<3x18x18xf32, #tpu.memory_space<vmem>>, vector<1x16x16xf32>
    %920 = vector.shape_cast %919 : vector<1x16x16xf32> to vector<16x16xf32>
    %921 = vector.broadcast %918 : f32 to vector<16x16xf32>
    %922 = arith.mulf %921, %920 : vector<16x16xf32>
    %923 = arith.addf %917, %922 : vector<16x16xf32>
    %c1_529 = arith.constant 1 : index
    %924 = memref.load %arg7[%c1_529] : memref<108xf32, #tpu.memory_space<smem>>
    %c0_530 = arith.constant 0 : index
    %c0_531 = arith.constant 0 : index
    %c1_532 = arith.constant 1 : index
    %925 = vector.load %arg12[%c0_530, %c0_531, %c1_532] : memref<3x18x18xf32, #tpu.memory_space<vmem>>, vector<1x16x16xf32>
    %926 = vector.shape_cast %925 : vector<1x16x16xf32> to vector<16x16xf32>
    %927 = vector.broadcast %924 : f32 to vector<16x16xf32>
    %928 = arith.mulf %927, %926 : vector<16x16xf32>
    %929 = arith.addf %923, %928 : vector<16x16xf32>
    %c2_533 = arith.constant 2 : index
    %930 = memref.load %arg7[%c2_533] : memref<108xf32, #tpu.memory_space<smem>>
    %c0_534 = arith.constant 0 : index
    %c0_535 = arith.constant 0 : index
    %c2_536 = arith.constant 2 : index
    %931 = vector.load %arg12[%c0_534, %c0_535, %c2_536] : memref<3x18x18xf32, #tpu.memory_space<vmem>>, vector<1x16x16xf32>
    %932 = vector.shape_cast %931 : vector<1x16x16xf32> to vector<16x16xf32>
    %933 = vector.broadcast %930 : f32 to vector<16x16xf32>
    %934 = arith.mulf %933, %932 : vector<16x16xf32>
    %935 = arith.addf %929, %934 : vector<16x16xf32>
    %c3_537 = arith.constant 3 : index
    %936 = memref.load %arg7[%c3_537] : memref<108xf32, #tpu.memory_space<smem>>
    %c0_538 = arith.constant 0 : index
    %c1_539 = arith.constant 1 : index
    %c0_540 = arith.constant 0 : index
    %937 = vector.load %arg12[%c0_538, %c1_539, %c0_540] : memref<3x18x18xf32, #tpu.memory_space<vmem>>, vector<1x16x16xf32>
    %938 = vector.shape_cast %937 : vector<1x16x16xf32> to vector<16x16xf32>
    %939 = vector.broadcast %936 : f32 to vector<16x16xf32>
    %940 = arith.mulf %939, %938 : vector<16x16xf32>
    %941 = arith.addf %935, %940 : vector<16x16xf32>
    %c4_541 = arith.constant 4 : index
    %942 = memref.load %arg7[%c4_541] : memref<108xf32, #tpu.memory_space<smem>>
    %c0_542 = arith.constant 0 : index
    %c1_543 = arith.constant 1 : index
    %c1_544 = arith.constant 1 : index
    %943 = vector.load %arg12[%c0_542, %c1_543, %c1_544] : memref<3x18x18xf32, #tpu.memory_space<vmem>>, vector<1x16x16xf32>
    %944 = vector.shape_cast %943 : vector<1x16x16xf32> to vector<16x16xf32>
    %945 = vector.broadcast %942 : f32 to vector<16x16xf32>
    %946 = arith.mulf %945, %944 : vector<16x16xf32>
    %947 = arith.addf %941, %946 : vector<16x16xf32>
    %c5_545 = arith.constant 5 : index
    %948 = memref.load %arg7[%c5_545] : memref<108xf32, #tpu.memory_space<smem>>
    %c0_546 = arith.constant 0 : index
    %c1_547 = arith.constant 1 : index
    %c2_548 = arith.constant 2 : index
    %949 = vector.load %arg12[%c0_546, %c1_547, %c2_548] : memref<3x18x18xf32, #tpu.memory_space<vmem>>, vector<1x16x16xf32>
    %950 = vector.shape_cast %949 : vector<1x16x16xf32> to vector<16x16xf32>
    %951 = vector.broadcast %948 : f32 to vector<16x16xf32>
    %952 = arith.mulf %951, %950 : vector<16x16xf32>
    %953 = arith.addf %947, %952 : vector<16x16xf32>
    %c6_549 = arith.constant 6 : index
    %954 = memref.load %arg7[%c6_549] : memref<108xf32, #tpu.memory_space<smem>>
    %c0_550 = arith.constant 0 : index
    %c2_551 = arith.constant 2 : index
    %c0_552 = arith.constant 0 : index
    %955 = vector.load %arg12[%c0_550, %c2_551, %c0_552] : memref<3x18x18xf32, #tpu.memory_space<vmem>>, vector<1x16x16xf32>
    %956 = vector.shape_cast %955 : vector<1x16x16xf32> to vector<16x16xf32>
    %957 = vector.broadcast %954 : f32 to vector<16x16xf32>
    %958 = arith.mulf %957, %956 : vector<16x16xf32>
    %959 = arith.addf %953, %958 : vector<16x16xf32>
    %c7_553 = arith.constant 7 : index
    %960 = memref.load %arg7[%c7_553] : memref<108xf32, #tpu.memory_space<smem>>
    %c0_554 = arith.constant 0 : index
    %c2_555 = arith.constant 2 : index
    %c1_556 = arith.constant 1 : index
    %961 = vector.load %arg12[%c0_554, %c2_555, %c1_556] : memref<3x18x18xf32, #tpu.memory_space<vmem>>, vector<1x16x16xf32>
    %962 = vector.shape_cast %961 : vector<1x16x16xf32> to vector<16x16xf32>
    %963 = vector.broadcast %960 : f32 to vector<16x16xf32>
    %964 = arith.mulf %963, %962 : vector<16x16xf32>
    %965 = arith.addf %959, %964 : vector<16x16xf32>
    %c8_557 = arith.constant 8 : index
    %966 = memref.load %arg7[%c8_557] : memref<108xf32, #tpu.memory_space<smem>>
    %c0_558 = arith.constant 0 : index
    %c2_559 = arith.constant 2 : index
    %c2_560 = arith.constant 2 : index
    %967 = vector.load %arg12[%c0_558, %c2_559, %c2_560] : memref<3x18x18xf32, #tpu.memory_space<vmem>>, vector<1x16x16xf32>
    %968 = vector.shape_cast %967 : vector<1x16x16xf32> to vector<16x16xf32>
    %969 = vector.broadcast %966 : f32 to vector<16x16xf32>
    %970 = arith.mulf %969, %968 : vector<16x16xf32>
    %971 = arith.addf %965, %970 : vector<16x16xf32>
    %c9_561 = arith.constant 9 : index
    %972 = memref.load %arg7[%c9_561] : memref<108xf32, #tpu.memory_space<smem>>
    %c1_562 = arith.constant 1 : index
    %c0_563 = arith.constant 0 : index
    %c0_564 = arith.constant 0 : index
    %973 = vector.load %arg12[%c1_562, %c0_563, %c0_564] : memref<3x18x18xf32, #tpu.memory_space<vmem>>, vector<1x16x16xf32>
    %974 = vector.shape_cast %973 : vector<1x16x16xf32> to vector<16x16xf32>
    %975 = vector.broadcast %972 : f32 to vector<16x16xf32>
    %976 = arith.mulf %975, %974 : vector<16x16xf32>
    %977 = arith.addf %971, %976 : vector<16x16xf32>
    %c10_565 = arith.constant 10 : index
    %978 = memref.load %arg7[%c10_565] : memref<108xf32, #tpu.memory_space<smem>>
    %c1_566 = arith.constant 1 : index
    %c0_567 = arith.constant 0 : index
    %c1_568 = arith.constant 1 : index
    %979 = vector.load %arg12[%c1_566, %c0_567, %c1_568] : memref<3x18x18xf32, #tpu.memory_space<vmem>>, vector<1x16x16xf32>
    %980 = vector.shape_cast %979 : vector<1x16x16xf32> to vector<16x16xf32>
    %981 = vector.broadcast %978 : f32 to vector<16x16xf32>
    %982 = arith.mulf %981, %980 : vector<16x16xf32>
    %983 = arith.addf %977, %982 : vector<16x16xf32>
    %c11_569 = arith.constant 11 : index
    %984 = memref.load %arg7[%c11_569] : memref<108xf32, #tpu.memory_space<smem>>
    %c1_570 = arith.constant 1 : index
    %c0_571 = arith.constant 0 : index
    %c2_572 = arith.constant 2 : index
    %985 = vector.load %arg12[%c1_570, %c0_571, %c2_572] : memref<3x18x18xf32, #tpu.memory_space<vmem>>, vector<1x16x16xf32>
    %986 = vector.shape_cast %985 : vector<1x16x16xf32> to vector<16x16xf32>
    %987 = vector.broadcast %984 : f32 to vector<16x16xf32>
    %988 = arith.mulf %987, %986 : vector<16x16xf32>
    %989 = arith.addf %983, %988 : vector<16x16xf32>
    %c12_573 = arith.constant 12 : index
    %990 = memref.load %arg7[%c12_573] : memref<108xf32, #tpu.memory_space<smem>>
    %c1_574 = arith.constant 1 : index
    %c1_575 = arith.constant 1 : index
    %c0_576 = arith.constant 0 : index
    %991 = vector.load %arg12[%c1_574, %c1_575, %c0_576] : memref<3x18x18xf32, #tpu.memory_space<vmem>>, vector<1x16x16xf32>
    %992 = vector.shape_cast %991 : vector<1x16x16xf32> to vector<16x16xf32>
    %993 = vector.broadcast %990 : f32 to vector<16x16xf32>
    %994 = arith.mulf %993, %992 : vector<16x16xf32>
    %995 = arith.addf %989, %994 : vector<16x16xf32>
    %c13_577 = arith.constant 13 : index
    %996 = memref.load %arg7[%c13_577] : memref<108xf32, #tpu.memory_space<smem>>
    %c1_578 = arith.constant 1 : index
    %c1_579 = arith.constant 1 : index
    %c1_580 = arith.constant 1 : index
    %997 = vector.load %arg12[%c1_578, %c1_579, %c1_580] : memref<3x18x18xf32, #tpu.memory_space<vmem>>, vector<1x16x16xf32>
    %998 = vector.shape_cast %997 : vector<1x16x16xf32> to vector<16x16xf32>
    %999 = vector.broadcast %996 : f32 to vector<16x16xf32>
    %1000 = arith.mulf %999, %998 : vector<16x16xf32>
    %1001 = arith.addf %995, %1000 : vector<16x16xf32>
    %c14_581 = arith.constant 14 : index
    %1002 = memref.load %arg7[%c14_581] : memref<108xf32, #tpu.memory_space<smem>>
    %c1_582 = arith.constant 1 : index
    %c1_583 = arith.constant 1 : index
    %c2_584 = arith.constant 2 : index
    %1003 = vector.load %arg12[%c1_582, %c1_583, %c2_584] : memref<3x18x18xf32, #tpu.memory_space<vmem>>, vector<1x16x16xf32>
    %1004 = vector.shape_cast %1003 : vector<1x16x16xf32> to vector<16x16xf32>
    %1005 = vector.broadcast %1002 : f32 to vector<16x16xf32>
    %1006 = arith.mulf %1005, %1004 : vector<16x16xf32>
    %1007 = arith.addf %1001, %1006 : vector<16x16xf32>
    %c15_585 = arith.constant 15 : index
    %1008 = memref.load %arg7[%c15_585] : memref<108xf32, #tpu.memory_space<smem>>
    %c1_586 = arith.constant 1 : index
    %c2_587 = arith.constant 2 : index
    %c0_588 = arith.constant 0 : index
    %1009 = vector.load %arg12[%c1_586, %c2_587, %c0_588] : memref<3x18x18xf32, #tpu.memory_space<vmem>>, vector<1x16x16xf32>
    %1010 = vector.shape_cast %1009 : vector<1x16x16xf32> to vector<16x16xf32>
    %1011 = vector.broadcast %1008 : f32 to vector<16x16xf32>
    %1012 = arith.mulf %1011, %1010 : vector<16x16xf32>
    %1013 = arith.addf %1007, %1012 : vector<16x16xf32>
    %c16_589 = arith.constant 16 : index
    %1014 = memref.load %arg7[%c16_589] : memref<108xf32, #tpu.memory_space<smem>>
    %c1_590 = arith.constant 1 : index
    %c2_591 = arith.constant 2 : index
    %c1_592 = arith.constant 1 : index
    %1015 = vector.load %arg12[%c1_590, %c2_591, %c1_592] : memref<3x18x18xf32, #tpu.memory_space<vmem>>, vector<1x16x16xf32>
    %1016 = vector.shape_cast %1015 : vector<1x16x16xf32> to vector<16x16xf32>
    %1017 = vector.broadcast %1014 : f32 to vector<16x16xf32>
    %1018 = arith.mulf %1017, %1016 : vector<16x16xf32>
    %1019 = arith.addf %1013, %1018 : vector<16x16xf32>
    %c17_593 = arith.constant 17 : index
    %1020 = memref.load %arg7[%c17_593] : memref<108xf32, #tpu.memory_space<smem>>
    %c1_594 = arith.constant 1 : index
    %c2_595 = arith.constant 2 : index
    %c2_596 = arith.constant 2 : index
    %1021 = vector.load %arg12[%c1_594, %c2_595, %c2_596] : memref<3x18x18xf32, #tpu.memory_space<vmem>>, vector<1x16x16xf32>
    %1022 = vector.shape_cast %1021 : vector<1x16x16xf32> to vector<16x16xf32>
    %1023 = vector.broadcast %1020 : f32 to vector<16x16xf32>
    %1024 = arith.mulf %1023, %1022 : vector<16x16xf32>
    %1025 = arith.addf %1019, %1024 : vector<16x16xf32>
    %c18_597 = arith.constant 18 : index
    %1026 = memref.load %arg7[%c18_597] : memref<108xf32, #tpu.memory_space<smem>>
    %c2_598 = arith.constant 2 : index
    %c0_599 = arith.constant 0 : index
    %c0_600 = arith.constant 0 : index
    %1027 = vector.load %arg12[%c2_598, %c0_599, %c0_600] : memref<3x18x18xf32, #tpu.memory_space<vmem>>, vector<1x16x16xf32>
    %1028 = vector.shape_cast %1027 : vector<1x16x16xf32> to vector<16x16xf32>
    %1029 = vector.broadcast %1026 : f32 to vector<16x16xf32>
    %1030 = arith.mulf %1029, %1028 : vector<16x16xf32>
    %1031 = arith.addf %1025, %1030 : vector<16x16xf32>
    %c19_601 = arith.constant 19 : index
    %1032 = memref.load %arg7[%c19_601] : memref<108xf32, #tpu.memory_space<smem>>
    %c2_602 = arith.constant 2 : index
    %c0_603 = arith.constant 0 : index
    %c1_604 = arith.constant 1 : index
    %1033 = vector.load %arg12[%c2_602, %c0_603, %c1_604] : memref<3x18x18xf32, #tpu.memory_space<vmem>>, vector<1x16x16xf32>
    %1034 = vector.shape_cast %1033 : vector<1x16x16xf32> to vector<16x16xf32>
    %1035 = vector.broadcast %1032 : f32 to vector<16x16xf32>
    %1036 = arith.mulf %1035, %1034 : vector<16x16xf32>
    %1037 = arith.addf %1031, %1036 : vector<16x16xf32>
    %c20_605 = arith.constant 20 : index
    %1038 = memref.load %arg7[%c20_605] : memref<108xf32, #tpu.memory_space<smem>>
    %c2_606 = arith.constant 2 : index
    %c0_607 = arith.constant 0 : index
    %c2_608 = arith.constant 2 : index
    %1039 = vector.load %arg12[%c2_606, %c0_607, %c2_608] : memref<3x18x18xf32, #tpu.memory_space<vmem>>, vector<1x16x16xf32>
    %1040 = vector.shape_cast %1039 : vector<1x16x16xf32> to vector<16x16xf32>
    %1041 = vector.broadcast %1038 : f32 to vector<16x16xf32>
    %1042 = arith.mulf %1041, %1040 : vector<16x16xf32>
    %1043 = arith.addf %1037, %1042 : vector<16x16xf32>
    %c21_609 = arith.constant 21 : index
    %1044 = memref.load %arg7[%c21_609] : memref<108xf32, #tpu.memory_space<smem>>
    %c2_610 = arith.constant 2 : index
    %c1_611 = arith.constant 1 : index
    %c0_612 = arith.constant 0 : index
    %1045 = vector.load %arg12[%c2_610, %c1_611, %c0_612] : memref<3x18x18xf32, #tpu.memory_space<vmem>>, vector<1x16x16xf32>
    %1046 = vector.shape_cast %1045 : vector<1x16x16xf32> to vector<16x16xf32>
    %1047 = vector.broadcast %1044 : f32 to vector<16x16xf32>
    %1048 = arith.mulf %1047, %1046 : vector<16x16xf32>
    %1049 = arith.addf %1043, %1048 : vector<16x16xf32>
    %c22_613 = arith.constant 22 : index
    %1050 = memref.load %arg7[%c22_613] : memref<108xf32, #tpu.memory_space<smem>>
    %c2_614 = arith.constant 2 : index
    %c1_615 = arith.constant 1 : index
    %c1_616 = arith.constant 1 : index
    %1051 = vector.load %arg12[%c2_614, %c1_615, %c1_616] : memref<3x18x18xf32, #tpu.memory_space<vmem>>, vector<1x16x16xf32>
    %1052 = vector.shape_cast %1051 : vector<1x16x16xf32> to vector<16x16xf32>
    %1053 = vector.broadcast %1050 : f32 to vector<16x16xf32>
    %1054 = arith.mulf %1053, %1052 : vector<16x16xf32>
    %1055 = arith.addf %1049, %1054 : vector<16x16xf32>
    %c23_617 = arith.constant 23 : index
    %1056 = memref.load %arg7[%c23_617] : memref<108xf32, #tpu.memory_space<smem>>
    %c2_618 = arith.constant 2 : index
    %c1_619 = arith.constant 1 : index
    %c2_620 = arith.constant 2 : index
    %1057 = vector.load %arg12[%c2_618, %c1_619, %c2_620] : memref<3x18x18xf32, #tpu.memory_space<vmem>>, vector<1x16x16xf32>
    %1058 = vector.shape_cast %1057 : vector<1x16x16xf32> to vector<16x16xf32>
    %1059 = vector.broadcast %1056 : f32 to vector<16x16xf32>
    %1060 = arith.mulf %1059, %1058 : vector<16x16xf32>
    %1061 = arith.addf %1055, %1060 : vector<16x16xf32>
    %c24_621 = arith.constant 24 : index
    %1062 = memref.load %arg7[%c24_621] : memref<108xf32, #tpu.memory_space<smem>>
    %c2_622 = arith.constant 2 : index
    %c2_623 = arith.constant 2 : index
    %c0_624 = arith.constant 0 : index
    %1063 = vector.load %arg12[%c2_622, %c2_623, %c0_624] : memref<3x18x18xf32, #tpu.memory_space<vmem>>, vector<1x16x16xf32>
    %1064 = vector.shape_cast %1063 : vector<1x16x16xf32> to vector<16x16xf32>
    %1065 = vector.broadcast %1062 : f32 to vector<16x16xf32>
    %1066 = arith.mulf %1065, %1064 : vector<16x16xf32>
    %1067 = arith.addf %1061, %1066 : vector<16x16xf32>
    %c25_625 = arith.constant 25 : index
    %1068 = memref.load %arg7[%c25_625] : memref<108xf32, #tpu.memory_space<smem>>
    %c2_626 = arith.constant 2 : index
    %c2_627 = arith.constant 2 : index
    %c1_628 = arith.constant 1 : index
    %1069 = vector.load %arg12[%c2_626, %c2_627, %c1_628] : memref<3x18x18xf32, #tpu.memory_space<vmem>>, vector<1x16x16xf32>
    %1070 = vector.shape_cast %1069 : vector<1x16x16xf32> to vector<16x16xf32>
    %1071 = vector.broadcast %1068 : f32 to vector<16x16xf32>
    %1072 = arith.mulf %1071, %1070 : vector<16x16xf32>
    %1073 = arith.addf %1067, %1072 : vector<16x16xf32>
    %c26_629 = arith.constant 26 : index
    %1074 = memref.load %arg7[%c26_629] : memref<108xf32, #tpu.memory_space<smem>>
    %c2_630 = arith.constant 2 : index
    %c2_631 = arith.constant 2 : index
    %c2_632 = arith.constant 2 : index
    %1075 = vector.load %arg12[%c2_630, %c2_631, %c2_632] : memref<3x18x18xf32, #tpu.memory_space<vmem>>, vector<1x16x16xf32>
    %1076 = vector.shape_cast %1075 : vector<1x16x16xf32> to vector<16x16xf32>
    %1077 = vector.broadcast %1074 : f32 to vector<16x16xf32>
    %1078 = arith.mulf %1077, %1076 : vector<16x16xf32>
    %1079 = arith.addf %1073, %1078 : vector<16x16xf32>
    %1080 = arith.negf %1079 : vector<16x16xf32>
    %1081 = math.exp %1080 : vector<16x16xf32>
    %cst_633 = arith.constant 1.000000e+00 : f32
    %1082 = vector.broadcast %cst_633 : f32 to vector<16x16xf32>
    %1083 = arith.addf %1082, %1081 : vector<16x16xf32>
    %1084 = arith.divf %1082, %1083 : vector<16x16xf32>
    %1085 = arith.mulf %913, %1084 : vector<16x16xf32>
    %c0_634 = arith.constant 0 : index
    %c0_635 = arith.constant 0 : index
    %c0_636 = arith.constant 0 : index
    %c0_637 = arith.constant 0 : index
    %1086 = vector.load %arg1[%c0_634, %c0_635, %c0_636, %c0_637] : memref<1x4x16x16xf32, #tpu.memory_space<vmem>>, vector<1x1x16x16xf32>
    %1087 = vector.shape_cast %1086 : vector<1x1x16x16xf32> to vector<16x16xf32>
    %1088 = arith.addf %1085, %1087 : vector<16x16xf32>
    %c0_638 = arith.constant 0 : index
    %c0_639 = arith.constant 0 : index
    %c0_640 = arith.constant 0 : index
    %c0_641 = arith.constant 0 : index
    %1089 = vector.load %arg9[%c0_638, %c0_639, %c0_640, %c0_641] : memref<1x4x16x16xf32, #tpu.memory_space<vmem>>, vector<1x1x16x16xf32>
    %1090 = vector.shape_cast %1089 : vector<1x1x16x16xf32> to vector<16x16xf32>
    %1091 = vector.shape_cast %1088 : vector<16x16xf32> to vector<1x1x16x16xf32>
    tpu.vector_store %arg9[%c0_638, %c0_639, %c0_640, %c0_641], %1091 {strides = array<i32>} : memref<1x4x16x16xf32, #tpu.memory_space<vmem>>, vector<1x1x16x16xf32>,
    %cst_642 = arith.constant 0.000000e+00 : f32
    %1092 = vector.broadcast %cst_642 : f32 to vector<16x16xf32>
    %c1_643 = arith.constant 1 : index
    %1093 = memref.load %arg4[%c1_643] : memref<4xf32, #tpu.memory_space<smem>>
    %1094 = vector.broadcast %1093 : f32 to vector<16x16xf32>
    %1095 = arith.addf %1092, %1094 : vector<16x16xf32>
    %c36_644 = arith.constant 36 : index
    %1096 = memref.load %arg3[%c36_644] : memref<144xf32, #tpu.memory_space<smem>>
    %c0_645 = arith.constant 0 : index
    %c0_646 = arith.constant 0 : index
    %c0_647 = arith.constant 0 : index
    %1097 = vector.load %arg11[%c0_645, %c0_646, %c0_647] : memref<4x18x18xf32, #tpu.memory_space<vmem>>, vector<1x16x16xf32>
    %1098 = vector.shape_cast %1097 : vector<1x16x16xf32> to vector<16x16xf32>
    %1099 = vector.broadcast %1096 : f32 to vector<16x16xf32>
    %1100 = arith.mulf %1099, %1098 : vector<16x16xf32>
    %1101 = arith.addf %1095, %1100 : vector<16x16xf32>
    %c37_648 = arith.constant 37 : index
    %1102 = memref.load %arg3[%c37_648] : memref<144xf32, #tpu.memory_space<smem>>
    %c0_649 = arith.constant 0 : index
    %c0_650 = arith.constant 0 : index
    %c1_651 = arith.constant 1 : index
    %1103 = vector.load %arg11[%c0_649, %c0_650, %c1_651] : memref<4x18x18xf32, #tpu.memory_space<vmem>>, vector<1x16x16xf32>
    %1104 = vector.shape_cast %1103 : vector<1x16x16xf32> to vector<16x16xf32>
    %1105 = vector.broadcast %1102 : f32 to vector<16x16xf32>
    %1106 = arith.mulf %1105, %1104 : vector<16x16xf32>
    %1107 = arith.addf %1101, %1106 : vector<16x16xf32>
    %c38_652 = arith.constant 38 : index
    %1108 = memref.load %arg3[%c38_652] : memref<144xf32, #tpu.memory_space<smem>>
    %c0_653 = arith.constant 0 : index
    %c0_654 = arith.constant 0 : index
    %c2_655 = arith.constant 2 : index
    %1109 = vector.load %arg11[%c0_653, %c0_654, %c2_655] : memref<4x18x18xf32, #tpu.memory_space<vmem>>, vector<1x16x16xf32>
    %1110 = vector.shape_cast %1109 : vector<1x16x16xf32> to vector<16x16xf32>
    %1111 = vector.broadcast %1108 : f32 to vector<16x16xf32>
    %1112 = arith.mulf %1111, %1110 : vector<16x16xf32>
    %1113 = arith.addf %1107, %1112 : vector<16x16xf32>
    %c39_656 = arith.constant 39 : index
    %1114 = memref.load %arg3[%c39_656] : memref<144xf32, #tpu.memory_space<smem>>
    %c0_657 = arith.constant 0 : index
    %c1_658 = arith.constant 1 : index
    %c0_659 = arith.constant 0 : index
    %1115 = vector.load %arg11[%c0_657, %c1_658, %c0_659] : memref<4x18x18xf32, #tpu.memory_space<vmem>>, vector<1x16x16xf32>
    %1116 = vector.shape_cast %1115 : vector<1x16x16xf32> to vector<16x16xf32>
    %1117 = vector.broadcast %1114 : f32 to vector<16x16xf32>
    %1118 = arith.mulf %1117, %1116 : vector<16x16xf32>
    %1119 = arith.addf %1113, %1118 : vector<16x16xf32>
    %c40_660 = arith.constant 40 : index
    %1120 = memref.load %arg3[%c40_660] : memref<144xf32, #tpu.memory_space<smem>>
    %c0_661 = arith.constant 0 : index
    %c1_662 = arith.constant 1 : index
    %c1_663 = arith.constant 1 : index
    %1121 = vector.load %arg11[%c0_661, %c1_662, %c1_663] : memref<4x18x18xf32, #tpu.memory_space<vmem>>, vector<1x16x16xf32>
    %1122 = vector.shape_cast %1121 : vector<1x16x16xf32> to vector<16x16xf32>
    %1123 = vector.broadcast %1120 : f32 to vector<16x16xf32>
    %1124 = arith.mulf %1123, %1122 : vector<16x16xf32>
    %1125 = arith.addf %1119, %1124 : vector<16x16xf32>
    %c41_664 = arith.constant 41 : index
    %1126 = memref.load %arg3[%c41_664] : memref<144xf32, #tpu.memory_space<smem>>
    %c0_665 = arith.constant 0 : index
    %c1_666 = arith.constant 1 : index
    %c2_667 = arith.constant 2 : index
    %1127 = vector.load %arg11[%c0_665, %c1_666, %c2_667] : memref<4x18x18xf32, #tpu.memory_space<vmem>>, vector<1x16x16xf32>
    %1128 = vector.shape_cast %1127 : vector<1x16x16xf32> to vector<16x16xf32>
    %1129 = vector.broadcast %1126 : f32 to vector<16x16xf32>
    %1130 = arith.mulf %1129, %1128 : vector<16x16xf32>
    %1131 = arith.addf %1125, %1130 : vector<16x16xf32>
    %c42_668 = arith.constant 42 : index
    %1132 = memref.load %arg3[%c42_668] : memref<144xf32, #tpu.memory_space<smem>>
    %c0_669 = arith.constant 0 : index
    %c2_670 = arith.constant 2 : index
    %c0_671 = arith.constant 0 : index
    %1133 = vector.load %arg11[%c0_669, %c2_670, %c0_671] : memref<4x18x18xf32, #tpu.memory_space<vmem>>, vector<1x16x16xf32>
    %1134 = vector.shape_cast %1133 : vector<1x16x16xf32> to vector<16x16xf32>
    %1135 = vector.broadcast %1132 : f32 to vector<16x16xf32>
    %1136 = arith.mulf %1135, %1134 : vector<16x16xf32>
    %1137 = arith.addf %1131, %1136 : vector<16x16xf32>
    %c43_672 = arith.constant 43 : index
    %1138 = memref.load %arg3[%c43_672] : memref<144xf32, #tpu.memory_space<smem>>
    %c0_673 = arith.constant 0 : index
    %c2_674 = arith.constant 2 : index
    %c1_675 = arith.constant 1 : index
    %1139 = vector.load %arg11[%c0_673, %c2_674, %c1_675] : memref<4x18x18xf32, #tpu.memory_space<vmem>>, vector<1x16x16xf32>
    %1140 = vector.shape_cast %1139 : vector<1x16x16xf32> to vector<16x16xf32>
    %1141 = vector.broadcast %1138 : f32 to vector<16x16xf32>
    %1142 = arith.mulf %1141, %1140 : vector<16x16xf32>
    %1143 = arith.addf %1137, %1142 : vector<16x16xf32>
    %c44_676 = arith.constant 44 : index
    %1144 = memref.load %arg3[%c44_676] : memref<144xf32, #tpu.memory_space<smem>>
    %c0_677 = arith.constant 0 : index
    %c2_678 = arith.constant 2 : index
    %c2_679 = arith.constant 2 : index
    %1145 = vector.load %arg11[%c0_677, %c2_678, %c2_679] : memref<4x18x18xf32, #tpu.memory_space<vmem>>, vector<1x16x16xf32>
    %1146 = vector.shape_cast %1145 : vector<1x16x16xf32> to vector<16x16xf32>
    %1147 = vector.broadcast %1144 : f32 to vector<16x16xf32>
    %1148 = arith.mulf %1147, %1146 : vector<16x16xf32>
    %1149 = arith.addf %1143, %1148 : vector<16x16xf32>
    %c45_680 = arith.constant 45 : index
    %1150 = memref.load %arg3[%c45_680] : memref<144xf32, #tpu.memory_space<smem>>
    %c1_681 = arith.constant 1 : index
    %c0_682 = arith.constant 0 : index
    %c0_683 = arith.constant 0 : index
    %1151 = vector.load %arg11[%c1_681, %c0_682, %c0_683] : memref<4x18x18xf32, #tpu.memory_space<vmem>>, vector<1x16x16xf32>
    %1152 = vector.shape_cast %1151 : vector<1x16x16xf32> to vector<16x16xf32>
    %1153 = vector.broadcast %1150 : f32 to vector<16x16xf32>
    %1154 = arith.mulf %1153, %1152 : vector<16x16xf32>
    %1155 = arith.addf %1149, %1154 : vector<16x16xf32>
    %c46_684 = arith.constant 46 : index
    %1156 = memref.load %arg3[%c46_684] : memref<144xf32, #tpu.memory_space<smem>>
    %c1_685 = arith.constant 1 : index
    %c0_686 = arith.constant 0 : index
    %c1_687 = arith.constant 1 : index
    %1157 = vector.load %arg11[%c1_685, %c0_686, %c1_687] : memref<4x18x18xf32, #tpu.memory_space<vmem>>, vector<1x16x16xf32>
    %1158 = vector.shape_cast %1157 : vector<1x16x16xf32> to vector<16x16xf32>
    %1159 = vector.broadcast %1156 : f32 to vector<16x16xf32>
    %1160 = arith.mulf %1159, %1158 : vector<16x16xf32>
    %1161 = arith.addf %1155, %1160 : vector<16x16xf32>
    %c47_688 = arith.constant 47 : index
    %1162 = memref.load %arg3[%c47_688] : memref<144xf32, #tpu.memory_space<smem>>
    %c1_689 = arith.constant 1 : index
    %c0_690 = arith.constant 0 : index
    %c2_691 = arith.constant 2 : index
    %1163 = vector.load %arg11[%c1_689, %c0_690, %c2_691] : memref<4x18x18xf32, #tpu.memory_space<vmem>>, vector<1x16x16xf32>
    %1164 = vector.shape_cast %1163 : vector<1x16x16xf32> to vector<16x16xf32>
    %1165 = vector.broadcast %1162 : f32 to vector<16x16xf32>
    %1166 = arith.mulf %1165, %1164 : vector<16x16xf32>
    %1167 = arith.addf %1161, %1166 : vector<16x16xf32>
    %c48_692 = arith.constant 48 : index
    %1168 = memref.load %arg3[%c48_692] : memref<144xf32, #tpu.memory_space<smem>>
    %c1_693 = arith.constant 1 : index
    %c1_694 = arith.constant 1 : index
    %c0_695 = arith.constant 0 : index
    %1169 = vector.load %arg11[%c1_693, %c1_694, %c0_695] : memref<4x18x18xf32, #tpu.memory_space<vmem>>, vector<1x16x16xf32>
    %1170 = vector.shape_cast %1169 : vector<1x16x16xf32> to vector<16x16xf32>
    %1171 = vector.broadcast %1168 : f32 to vector<16x16xf32>
    %1172 = arith.mulf %1171, %1170 : vector<16x16xf32>
    %1173 = arith.addf %1167, %1172 : vector<16x16xf32>
    %c49_696 = arith.constant 49 : index
    %1174 = memref.load %arg3[%c49_696] : memref<144xf32, #tpu.memory_space<smem>>
    %c1_697 = arith.constant 1 : index
    %c1_698 = arith.constant 1 : index
    %c1_699 = arith.constant 1 : index
    %1175 = vector.load %arg11[%c1_697, %c1_698, %c1_699] : memref<4x18x18xf32, #tpu.memory_space<vmem>>, vector<1x16x16xf32>
    %1176 = vector.shape_cast %1175 : vector<1x16x16xf32> to vector<16x16xf32>
    %1177 = vector.broadcast %1174 : f32 to vector<16x16xf32>
    %1178 = arith.mulf %1177, %1176 : vector<16x16xf32>
    %1179 = arith.addf %1173, %1178 : vector<16x16xf32>
    %c50_700 = arith.constant 50 : index
    %1180 = memref.load %arg3[%c50_700] : memref<144xf32, #tpu.memory_space<smem>>
    %c1_701 = arith.constant 1 : index
    %c1_702 = arith.constant 1 : index
    %c2_703 = arith.constant 2 : index
    %1181 = vector.load %arg11[%c1_701, %c1_702, %c2_703] : memref<4x18x18xf32, #tpu.memory_space<vmem>>, vector<1x16x16xf32>
    %1182 = vector.shape_cast %1181 : vector<1x16x16xf32> to vector<16x16xf32>
    %1183 = vector.broadcast %1180 : f32 to vector<16x16xf32>
    %1184 = arith.mulf %1183, %1182 : vector<16x16xf32>
    %1185 = arith.addf %1179, %1184 : vector<16x16xf32>
    %c51_704 = arith.constant 51 : index
    %1186 = memref.load %arg3[%c51_704] : memref<144xf32, #tpu.memory_space<smem>>
    %c1_705 = arith.constant 1 : index
    %c2_706 = arith.constant 2 : index
    %c0_707 = arith.constant 0 : index
    %1187 = vector.load %arg11[%c1_705, %c2_706, %c0_707] : memref<4x18x18xf32, #tpu.memory_space<vmem>>, vector<1x16x16xf32>
    %1188 = vector.shape_cast %1187 : vector<1x16x16xf32> to vector<16x16xf32>
    %1189 = vector.broadcast %1186 : f32 to vector<16x16xf32>
    %1190 = arith.mulf %1189, %1188 : vector<16x16xf32>
    %1191 = arith.addf %1185, %1190 : vector<16x16xf32>
    %c52_708 = arith.constant 52 : index
    %1192 = memref.load %arg3[%c52_708] : memref<144xf32, #tpu.memory_space<smem>>
    %c1_709 = arith.constant 1 : index
    %c2_710 = arith.constant 2 : index
    %c1_711 = arith.constant 1 : index
    %1193 = vector.load %arg11[%c1_709, %c2_710, %c1_711] : memref<4x18x18xf32, #tpu.memory_space<vmem>>, vector<1x16x16xf32>
    %1194 = vector.shape_cast %1193 : vector<1x16x16xf32> to vector<16x16xf32>
    %1195 = vector.broadcast %1192 : f32 to vector<16x16xf32>
    %1196 = arith.mulf %1195, %1194 : vector<16x16xf32>
    %1197 = arith.addf %1191, %1196 : vector<16x16xf32>
    %c53_712 = arith.constant 53 : index
    %1198 = memref.load %arg3[%c53_712] : memref<144xf32, #tpu.memory_space<smem>>
    %c1_713 = arith.constant 1 : index
    %c2_714 = arith.constant 2 : index
    %c2_715 = arith.constant 2 : index
    %1199 = vector.load %arg11[%c1_713, %c2_714, %c2_715] : memref<4x18x18xf32, #tpu.memory_space<vmem>>, vector<1x16x16xf32>
    %1200 = vector.shape_cast %1199 : vector<1x16x16xf32> to vector<16x16xf32>
    %1201 = vector.broadcast %1198 : f32 to vector<16x16xf32>
    %1202 = arith.mulf %1201, %1200 : vector<16x16xf32>
    %1203 = arith.addf %1197, %1202 : vector<16x16xf32>
    %c54_716 = arith.constant 54 : index
    %1204 = memref.load %arg3[%c54_716] : memref<144xf32, #tpu.memory_space<smem>>
    %c2_717 = arith.constant 2 : index
    %c0_718 = arith.constant 0 : index
    %c0_719 = arith.constant 0 : index
    %1205 = vector.load %arg11[%c2_717, %c0_718, %c0_719] : memref<4x18x18xf32, #tpu.memory_space<vmem>>, vector<1x16x16xf32>
    %1206 = vector.shape_cast %1205 : vector<1x16x16xf32> to vector<16x16xf32>
    %1207 = vector.broadcast %1204 : f32 to vector<16x16xf32>
    %1208 = arith.mulf %1207, %1206 : vector<16x16xf32>
    %1209 = arith.addf %1203, %1208 : vector<16x16xf32>
    %c55_720 = arith.constant 55 : index
    %1210 = memref.load %arg3[%c55_720] : memref<144xf32, #tpu.memory_space<smem>>
    %c2_721 = arith.constant 2 : index
    %c0_722 = arith.constant 0 : index
    %c1_723 = arith.constant 1 : index
    %1211 = vector.load %arg11[%c2_721, %c0_722, %c1_723] : memref<4x18x18xf32, #tpu.memory_space<vmem>>, vector<1x16x16xf32>
    %1212 = vector.shape_cast %1211 : vector<1x16x16xf32> to vector<16x16xf32>
    %1213 = vector.broadcast %1210 : f32 to vector<16x16xf32>
    %1214 = arith.mulf %1213, %1212 : vector<16x16xf32>
    %1215 = arith.addf %1209, %1214 : vector<16x16xf32>
    %c56_724 = arith.constant 56 : index
    %1216 = memref.load %arg3[%c56_724] : memref<144xf32, #tpu.memory_space<smem>>
    %c2_725 = arith.constant 2 : index
    %c0_726 = arith.constant 0 : index
    %c2_727 = arith.constant 2 : index
    %1217 = vector.load %arg11[%c2_725, %c0_726, %c2_727] : memref<4x18x18xf32, #tpu.memory_space<vmem>>, vector<1x16x16xf32>
    %1218 = vector.shape_cast %1217 : vector<1x16x16xf32> to vector<16x16xf32>
    %1219 = vector.broadcast %1216 : f32 to vector<16x16xf32>
    %1220 = arith.mulf %1219, %1218 : vector<16x16xf32>
    %1221 = arith.addf %1215, %1220 : vector<16x16xf32>
    %c57_728 = arith.constant 57 : index
    %1222 = memref.load %arg3[%c57_728] : memref<144xf32, #tpu.memory_space<smem>>
    %c2_729 = arith.constant 2 : index
    %c1_730 = arith.constant 1 : index
    %c0_731 = arith.constant 0 : index
    %1223 = vector.load %arg11[%c2_729, %c1_730, %c0_731] : memref<4x18x18xf32, #tpu.memory_space<vmem>>, vector<1x16x16xf32>
    %1224 = vector.shape_cast %1223 : vector<1x16x16xf32> to vector<16x16xf32>
    %1225 = vector.broadcast %1222 : f32 to vector<16x16xf32>
    %1226 = arith.mulf %1225, %1224 : vector<16x16xf32>
    %1227 = arith.addf %1221, %1226 : vector<16x16xf32>
    %c58_732 = arith.constant 58 : index
    %1228 = memref.load %arg3[%c58_732] : memref<144xf32, #tpu.memory_space<smem>>
    %c2_733 = arith.constant 2 : index
    %c1_734 = arith.constant 1 : index
    %c1_735 = arith.constant 1 : index
    %1229 = vector.load %arg11[%c2_733, %c1_734, %c1_735] : memref<4x18x18xf32, #tpu.memory_space<vmem>>, vector<1x16x16xf32>
    %1230 = vector.shape_cast %1229 : vector<1x16x16xf32> to vector<16x16xf32>
    %1231 = vector.broadcast %1228 : f32 to vector<16x16xf32>
    %1232 = arith.mulf %1231, %1230 : vector<16x16xf32>
    %1233 = arith.addf %1227, %1232 : vector<16x16xf32>
    %c59_736 = arith.constant 59 : index
    %1234 = memref.load %arg3[%c59_736] : memref<144xf32, #tpu.memory_space<smem>>
    %c2_737 = arith.constant 2 : index
    %c1_738 = arith.constant 1 : index
    %c2_739 = arith.constant 2 : index
    %1235 = vector.load %arg11[%c2_737, %c1_738, %c2_739] : memref<4x18x18xf32, #tpu.memory_space<vmem>>, vector<1x16x16xf32>
    %1236 = vector.shape_cast %1235 : vector<1x16x16xf32> to vector<16x16xf32>
    %1237 = vector.broadcast %1234 : f32 to vector<16x16xf32>
    %1238 = arith.mulf %1237, %1236 : vector<16x16xf32>
    %1239 = arith.addf %1233, %1238 : vector<16x16xf32>
    %c60_740 = arith.constant 60 : index
    %1240 = memref.load %arg3[%c60_740] : memref<144xf32, #tpu.memory_space<smem>>
    %c2_741 = arith.constant 2 : index
    %c2_742 = arith.constant 2 : index
    %c0_743 = arith.constant 0 : index
    %1241 = vector.load %arg11[%c2_741, %c2_742, %c0_743] : memref<4x18x18xf32, #tpu.memory_space<vmem>>, vector<1x16x16xf32>
    %1242 = vector.shape_cast %1241 : vector<1x16x16xf32> to vector<16x16xf32>
    %1243 = vector.broadcast %1240 : f32 to vector<16x16xf32>
    %1244 = arith.mulf %1243, %1242 : vector<16x16xf32>
    %1245 = arith.addf %1239, %1244 : vector<16x16xf32>
    %c61_744 = arith.constant 61 : index
    %1246 = memref.load %arg3[%c61_744] : memref<144xf32, #tpu.memory_space<smem>>
    %c2_745 = arith.constant 2 : index
    %c2_746 = arith.constant 2 : index
    %c1_747 = arith.constant 1 : index
    %1247 = vector.load %arg11[%c2_745, %c2_746, %c1_747] : memref<4x18x18xf32, #tpu.memory_space<vmem>>, vector<1x16x16xf32>
    %1248 = vector.shape_cast %1247 : vector<1x16x16xf32> to vector<16x16xf32>
    %1249 = vector.broadcast %1246 : f32 to vector<16x16xf32>
    %1250 = arith.mulf %1249, %1248 : vector<16x16xf32>
    %1251 = arith.addf %1245, %1250 : vector<16x16xf32>
    %c62_748 = arith.constant 62 : index
    %1252 = memref.load %arg3[%c62_748] : memref<144xf32, #tpu.memory_space<smem>>
    %c2_749 = arith.constant 2 : index
    %c2_750 = arith.constant 2 : index
    %c2_751 = arith.constant 2 : index
    %1253 = vector.load %arg11[%c2_749, %c2_750, %c2_751] : memref<4x18x18xf32, #tpu.memory_space<vmem>>, vector<1x16x16xf32>
    %1254 = vector.shape_cast %1253 : vector<1x16x16xf32> to vector<16x16xf32>
    %1255 = vector.broadcast %1252 : f32 to vector<16x16xf32>
    %1256 = arith.mulf %1255, %1254 : vector<16x16xf32>
    %1257 = arith.addf %1251, %1256 : vector<16x16xf32>
    %c63_752 = arith.constant 63 : index
    %1258 = memref.load %arg3[%c63_752] : memref<144xf32, #tpu.memory_space<smem>>
    %c3_753 = arith.constant 3 : index
    %c0_754 = arith.constant 0 : index
    %c0_755 = arith.constant 0 : index
    %1259 = vector.load %arg11[%c3_753, %c0_754, %c0_755] : memref<4x18x18xf32, #tpu.memory_space<vmem>>, vector<1x16x16xf32>
    %1260 = vector.shape_cast %1259 : vector<1x16x16xf32> to vector<16x16xf32>
    %1261 = vector.broadcast %1258 : f32 to vector<16x16xf32>
    %1262 = arith.mulf %1261, %1260 : vector<16x16xf32>
    %1263 = arith.addf %1257, %1262 : vector<16x16xf32>
    %c64_756 = arith.constant 64 : index
    %1264 = memref.load %arg3[%c64_756] : memref<144xf32, #tpu.memory_space<smem>>
    %c3_757 = arith.constant 3 : index
    %c0_758 = arith.constant 0 : index
    %c1_759 = arith.constant 1 : index
    %1265 = vector.load %arg11[%c3_757, %c0_758, %c1_759] : memref<4x18x18xf32, #tpu.memory_space<vmem>>, vector<1x16x16xf32>
    %1266 = vector.shape_cast %1265 : vector<1x16x16xf32> to vector<16x16xf32>
    %1267 = vector.broadcast %1264 : f32 to vector<16x16xf32>
    %1268 = arith.mulf %1267, %1266 : vector<16x16xf32>
    %1269 = arith.addf %1263, %1268 : vector<16x16xf32>
    %c65_760 = arith.constant 65 : index
    %1270 = memref.load %arg3[%c65_760] : memref<144xf32, #tpu.memory_space<smem>>
    %c3_761 = arith.constant 3 : index
    %c0_762 = arith.constant 0 : index
    %c2_763 = arith.constant 2 : index
    %1271 = vector.load %arg11[%c3_761, %c0_762, %c2_763] : memref<4x18x18xf32, #tpu.memory_space<vmem>>, vector<1x16x16xf32>
    %1272 = vector.shape_cast %1271 : vector<1x16x16xf32> to vector<16x16xf32>
    %1273 = vector.broadcast %1270 : f32 to vector<16x16xf32>
    %1274 = arith.mulf %1273, %1272 : vector<16x16xf32>
    %1275 = arith.addf %1269, %1274 : vector<16x16xf32>
    %c66_764 = arith.constant 66 : index
    %1276 = memref.load %arg3[%c66_764] : memref<144xf32, #tpu.memory_space<smem>>
    %c3_765 = arith.constant 3 : index
    %c1_766 = arith.constant 1 : index
    %c0_767 = arith.constant 0 : index
    %1277 = vector.load %arg11[%c3_765, %c1_766, %c0_767] : memref<4x18x18xf32, #tpu.memory_space<vmem>>, vector<1x16x16xf32>
    %1278 = vector.shape_cast %1277 : vector<1x16x16xf32> to vector<16x16xf32>
    %1279 = vector.broadcast %1276 : f32 to vector<16x16xf32>
    %1280 = arith.mulf %1279, %1278 : vector<16x16xf32>
    %1281 = arith.addf %1275, %1280 : vector<16x16xf32>
    %c67_768 = arith.constant 67 : index
    %1282 = memref.load %arg3[%c67_768] : memref<144xf32, #tpu.memory_space<smem>>
    %c3_769 = arith.constant 3 : index
    %c1_770 = arith.constant 1 : index
    %c1_771 = arith.constant 1 : index
    %1283 = vector.load %arg11[%c3_769, %c1_770, %c1_771] : memref<4x18x18xf32, #tpu.memory_space<vmem>>, vector<1x16x16xf32>
    %1284 = vector.shape_cast %1283 : vector<1x16x16xf32> to vector<16x16xf32>
    %1285 = vector.broadcast %1282 : f32 to vector<16x16xf32>
    %1286 = arith.mulf %1285, %1284 : vector<16x16xf32>
    %1287 = arith.addf %1281, %1286 : vector<16x16xf32>
    %c68_772 = arith.constant 68 : index
    %1288 = memref.load %arg3[%c68_772] : memref<144xf32, #tpu.memory_space<smem>>
    %c3_773 = arith.constant 3 : index
    %c1_774 = arith.constant 1 : index
    %c2_775 = arith.constant 2 : index
    %1289 = vector.load %arg11[%c3_773, %c1_774, %c2_775] : memref<4x18x18xf32, #tpu.memory_space<vmem>>, vector<1x16x16xf32>
    %1290 = vector.shape_cast %1289 : vector<1x16x16xf32> to vector<16x16xf32>
    %1291 = vector.broadcast %1288 : f32 to vector<16x16xf32>
    %1292 = arith.mulf %1291, %1290 : vector<16x16xf32>
    %1293 = arith.addf %1287, %1292 : vector<16x16xf32>
    %c69_776 = arith.constant 69 : index
    %1294 = memref.load %arg3[%c69_776] : memref<144xf32, #tpu.memory_space<smem>>
    %c3_777 = arith.constant 3 : index
    %c2_778 = arith.constant 2 : index
    %c0_779 = arith.constant 0 : index
    %1295 = vector.load %arg11[%c3_777, %c2_778, %c0_779] : memref<4x18x18xf32, #tpu.memory_space<vmem>>, vector<1x16x16xf32>
    %1296 = vector.shape_cast %1295 : vector<1x16x16xf32> to vector<16x16xf32>
    %1297 = vector.broadcast %1294 : f32 to vector<16x16xf32>
    %1298 = arith.mulf %1297, %1296 : vector<16x16xf32>
    %1299 = arith.addf %1293, %1298 : vector<16x16xf32>
    %c70_780 = arith.constant 70 : index
    %1300 = memref.load %arg3[%c70_780] : memref<144xf32, #tpu.memory_space<smem>>
    %c3_781 = arith.constant 3 : index
    %c2_782 = arith.constant 2 : index
    %c1_783 = arith.constant 1 : index
    %1301 = vector.load %arg11[%c3_781, %c2_782, %c1_783] : memref<4x18x18xf32, #tpu.memory_space<vmem>>, vector<1x16x16xf32>
    %1302 = vector.shape_cast %1301 : vector<1x16x16xf32> to vector<16x16xf32>
    %1303 = vector.broadcast %1300 : f32 to vector<16x16xf32>
    %1304 = arith.mulf %1303, %1302 : vector<16x16xf32>
    %1305 = arith.addf %1299, %1304 : vector<16x16xf32>
    %c71_784 = arith.constant 71 : index
    %1306 = memref.load %arg3[%c71_784] : memref<144xf32, #tpu.memory_space<smem>>
    %c3_785 = arith.constant 3 : index
    %c2_786 = arith.constant 2 : index
    %c2_787 = arith.constant 2 : index
    %1307 = vector.load %arg11[%c3_785, %c2_786, %c2_787] : memref<4x18x18xf32, #tpu.memory_space<vmem>>, vector<1x16x16xf32>
    %1308 = vector.shape_cast %1307 : vector<1x16x16xf32> to vector<16x16xf32>
    %1309 = vector.broadcast %1306 : f32 to vector<16x16xf32>
    %1310 = arith.mulf %1309, %1308 : vector<16x16xf32>
    %1311 = arith.addf %1305, %1310 : vector<16x16xf32>
    %cst_788 = arith.constant 0.000000e+00 : f32
    %1312 = vector.broadcast %cst_788 : f32 to vector<16x16xf32>
    %c1_789 = arith.constant 1 : index
    %1313 = memref.load %arg8[%c1_789] : memref<4xf32, #tpu.memory_space<smem>>
    %1314 = vector.broadcast %1313 : f32 to vector<16x16xf32>
    %1315 = arith.addf %1312, %1314 : vector<16x16xf32>
    %c27_790 = arith.constant 27 : index
    %1316 = memref.load %arg7[%c27_790] : memref<108xf32, #tpu.memory_space<smem>>
    %c0_791 = arith.constant 0 : index
    %c0_792 = arith.constant 0 : index
    %c0_793 = arith.constant 0 : index
    %1317 = vector.load %arg12[%c0_791, %c0_792, %c0_793] : memref<3x18x18xf32, #tpu.memory_space<vmem>>, vector<1x16x16xf32>
    %1318 = vector.shape_cast %1317 : vector<1x16x16xf32> to vector<16x16xf32>
    %1319 = vector.broadcast %1316 : f32 to vector<16x16xf32>
    %1320 = arith.mulf %1319, %1318 : vector<16x16xf32>
    %1321 = arith.addf %1315, %1320 : vector<16x16xf32>
    %c28_794 = arith.constant 28 : index
    %1322 = memref.load %arg7[%c28_794] : memref<108xf32, #tpu.memory_space<smem>>
    %c0_795 = arith.constant 0 : index
    %c0_796 = arith.constant 0 : index
    %c1_797 = arith.constant 1 : index
    %1323 = vector.load %arg12[%c0_795, %c0_796, %c1_797] : memref<3x18x18xf32, #tpu.memory_space<vmem>>, vector<1x16x16xf32>
    %1324 = vector.shape_cast %1323 : vector<1x16x16xf32> to vector<16x16xf32>
    %1325 = vector.broadcast %1322 : f32 to vector<16x16xf32>
    %1326 = arith.mulf %1325, %1324 : vector<16x16xf32>
    %1327 = arith.addf %1321, %1326 : vector<16x16xf32>
    %c29_798 = arith.constant 29 : index
    %1328 = memref.load %arg7[%c29_798] : memref<108xf32, #tpu.memory_space<smem>>
    %c0_799 = arith.constant 0 : index
    %c0_800 = arith.constant 0 : index
    %c2_801 = arith.constant 2 : index
    %1329 = vector.load %arg12[%c0_799, %c0_800, %c2_801] : memref<3x18x18xf32, #tpu.memory_space<vmem>>, vector<1x16x16xf32>
    %1330 = vector.shape_cast %1329 : vector<1x16x16xf32> to vector<16x16xf32>
    %1331 = vector.broadcast %1328 : f32 to vector<16x16xf32>
    %1332 = arith.mulf %1331, %1330 : vector<16x16xf32>
    %1333 = arith.addf %1327, %1332 : vector<16x16xf32>
    %c30_802 = arith.constant 30 : index
    %1334 = memref.load %arg7[%c30_802] : memref<108xf32, #tpu.memory_space<smem>>
    %c0_803 = arith.constant 0 : index
    %c1_804 = arith.constant 1 : index
    %c0_805 = arith.constant 0 : index
    %1335 = vector.load %arg12[%c0_803, %c1_804, %c0_805] : memref<3x18x18xf32, #tpu.memory_space<vmem>>, vector<1x16x16xf32>
    %1336 = vector.shape_cast %1335 : vector<1x16x16xf32> to vector<16x16xf32>
    %1337 = vector.broadcast %1334 : f32 to vector<16x16xf32>
    %1338 = arith.mulf %1337, %1336 : vector<16x16xf32>
    %1339 = arith.addf %1333, %1338 : vector<16x16xf32>
    %c31_806 = arith.constant 31 : index
    %1340 = memref.load %arg7[%c31_806] : memref<108xf32, #tpu.memory_space<smem>>
    %c0_807 = arith.constant 0 : index
    %c1_808 = arith.constant 1 : index
    %c1_809 = arith.constant 1 : index
    %1341 = vector.load %arg12[%c0_807, %c1_808, %c1_809] : memref<3x18x18xf32, #tpu.memory_space<vmem>>, vector<1x16x16xf32>
    %1342 = vector.shape_cast %1341 : vector<1x16x16xf32> to vector<16x16xf32>
    %1343 = vector.broadcast %1340 : f32 to vector<16x16xf32>
    %1344 = arith.mulf %1343, %1342 : vector<16x16xf32>
    %1345 = arith.addf %1339, %1344 : vector<16x16xf32>
    %c32_810 = arith.constant 32 : index
    %1346 = memref.load %arg7[%c32_810] : memref<108xf32, #tpu.memory_space<smem>>
    %c0_811 = arith.constant 0 : index
    %c1_812 = arith.constant 1 : index
    %c2_813 = arith.constant 2 : index
    %1347 = vector.load %arg12[%c0_811, %c1_812, %c2_813] : memref<3x18x18xf32, #tpu.memory_space<vmem>>, vector<1x16x16xf32>
    %1348 = vector.shape_cast %1347 : vector<1x16x16xf32> to vector<16x16xf32>
    %1349 = vector.broadcast %1346 : f32 to vector<16x16xf32>
    %1350 = arith.mulf %1349, %1348 : vector<16x16xf32>
    %1351 = arith.addf %1345, %1350 : vector<16x16xf32>
    %c33_814 = arith.constant 33 : index
    %1352 = memref.load %arg7[%c33_814] : memref<108xf32, #tpu.memory_space<smem>>
    %c0_815 = arith.constant 0 : index
    %c2_816 = arith.constant 2 : index
    %c0_817 = arith.constant 0 : index
    %1353 = vector.load %arg12[%c0_815, %c2_816, %c0_817] : memref<3x18x18xf32, #tpu.memory_space<vmem>>, vector<1x16x16xf32>
    %1354 = vector.shape_cast %1353 : vector<1x16x16xf32> to vector<16x16xf32>
    %1355 = vector.broadcast %1352 : f32 to vector<16x16xf32>
    %1356 = arith.mulf %1355, %1354 : vector<16x16xf32>
    %1357 = arith.addf %1351, %1356 : vector<16x16xf32>
    %c34_818 = arith.constant 34 : index
    %1358 = memref.load %arg7[%c34_818] : memref<108xf32, #tpu.memory_space<smem>>
    %c0_819 = arith.constant 0 : index
    %c2_820 = arith.constant 2 : index
    %c1_821 = arith.constant 1 : index
    %1359 = vector.load %arg12[%c0_819, %c2_820, %c1_821] : memref<3x18x18xf32, #tpu.memory_space<vmem>>, vector<1x16x16xf32>
    %1360 = vector.shape_cast %1359 : vector<1x16x16xf32> to vector<16x16xf32>
    %1361 = vector.broadcast %1358 : f32 to vector<16x16xf32>
    %1362 = arith.mulf %1361, %1360 : vector<16x16xf32>
    %1363 = arith.addf %1357, %1362 : vector<16x16xf32>
    %c35_822 = arith.constant 35 : index
    %1364 = memref.load %arg7[%c35_822] : memref<108xf32, #tpu.memory_space<smem>>
    %c0_823 = arith.constant 0 : index
    %c2_824 = arith.constant 2 : index
    %c2_825 = arith.constant 2 : index
    %1365 = vector.load %arg12[%c0_823, %c2_824, %c2_825] : memref<3x18x18xf32, #tpu.memory_space<vmem>>, vector<1x16x16xf32>
    %1366 = vector.shape_cast %1365 : vector<1x16x16xf32> to vector<16x16xf32>
    %1367 = vector.broadcast %1364 : f32 to vector<16x16xf32>
    %1368 = arith.mulf %1367, %1366 : vector<16x16xf32>
    %1369 = arith.addf %1363, %1368 : vector<16x16xf32>
    %c36_826 = arith.constant 36 : index
    %1370 = memref.load %arg7[%c36_826] : memref<108xf32, #tpu.memory_space<smem>>
    %c1_827 = arith.constant 1 : index
    %c0_828 = arith.constant 0 : index
    %c0_829 = arith.constant 0 : index
    %1371 = vector.load %arg12[%c1_827, %c0_828, %c0_829] : memref<3x18x18xf32, #tpu.memory_space<vmem>>, vector<1x16x16xf32>
    %1372 = vector.shape_cast %1371 : vector<1x16x16xf32> to vector<16x16xf32>
    %1373 = vector.broadcast %1370 : f32 to vector<16x16xf32>
    %1374 = arith.mulf %1373, %1372 : vector<16x16xf32>
    %1375 = arith.addf %1369, %1374 : vector<16x16xf32>
    %c37_830 = arith.constant 37 : index
    %1376 = memref.load %arg7[%c37_830] : memref<108xf32, #tpu.memory_space<smem>>
    %c1_831 = arith.constant 1 : index
    %c0_832 = arith.constant 0 : index
    %c1_833 = arith.constant 1 : index
    %1377 = vector.load %arg12[%c1_831, %c0_832, %c1_833] : memref<3x18x18xf32, #tpu.memory_space<vmem>>, vector<1x16x16xf32>
    %1378 = vector.shape_cast %1377 : vector<1x16x16xf32> to vector<16x16xf32>
    %1379 = vector.broadcast %1376 : f32 to vector<16x16xf32>
    %1380 = arith.mulf %1379, %1378 : vector<16x16xf32>
    %1381 = arith.addf %1375, %1380 : vector<16x16xf32>
    %c38_834 = arith.constant 38 : index
    %1382 = memref.load %arg7[%c38_834] : memref<108xf32, #tpu.memory_space<smem>>
    %c1_835 = arith.constant 1 : index
    %c0_836 = arith.constant 0 : index
    %c2_837 = arith.constant 2 : index
    %1383 = vector.load %arg12[%c1_835, %c0_836, %c2_837] : memref<3x18x18xf32, #tpu.memory_space<vmem>>, vector<1x16x16xf32>
    %1384 = vector.shape_cast %1383 : vector<1x16x16xf32> to vector<16x16xf32>
    %1385 = vector.broadcast %1382 : f32 to vector<16x16xf32>
    %1386 = arith.mulf %1385, %1384 : vector<16x16xf32>
    %1387 = arith.addf %1381, %1386 : vector<16x16xf32>
    %c39_838 = arith.constant 39 : index
    %1388 = memref.load %arg7[%c39_838] : memref<108xf32, #tpu.memory_space<smem>>
    %c1_839 = arith.constant 1 : index
    %c1_840 = arith.constant 1 : index
    %c0_841 = arith.constant 0 : index
    %1389 = vector.load %arg12[%c1_839, %c1_840, %c0_841] : memref<3x18x18xf32, #tpu.memory_space<vmem>>, vector<1x16x16xf32>
    %1390 = vector.shape_cast %1389 : vector<1x16x16xf32> to vector<16x16xf32>
    %1391 = vector.broadcast %1388 : f32 to vector<16x16xf32>
    %1392 = arith.mulf %1391, %1390 : vector<16x16xf32>
    %1393 = arith.addf %1387, %1392 : vector<16x16xf32>
    %c40_842 = arith.constant 40 : index
    %1394 = memref.load %arg7[%c40_842] : memref<108xf32, #tpu.memory_space<smem>>
    %c1_843 = arith.constant 1 : index
    %c1_844 = arith.constant 1 : index
    %c1_845 = arith.constant 1 : index
    %1395 = vector.load %arg12[%c1_843, %c1_844, %c1_845] : memref<3x18x18xf32, #tpu.memory_space<vmem>>, vector<1x16x16xf32>
    %1396 = vector.shape_cast %1395 : vector<1x16x16xf32> to vector<16x16xf32>
    %1397 = vector.broadcast %1394 : f32 to vector<16x16xf32>
    %1398 = arith.mulf %1397, %1396 : vector<16x16xf32>
    %1399 = arith.addf %1393, %1398 : vector<16x16xf32>
    %c41_846 = arith.constant 41 : index
    %1400 = memref.load %arg7[%c41_846] : memref<108xf32, #tpu.memory_space<smem>>
    %c1_847 = arith.constant 1 : index
    %c1_848 = arith.constant 1 : index
    %c2_849 = arith.constant 2 : index
    %1401 = vector.load %arg12[%c1_847, %c1_848, %c2_849] : memref<3x18x18xf32, #tpu.memory_space<vmem>>, vector<1x16x16xf32>
    %1402 = vector.shape_cast %1401 : vector<1x16x16xf32> to vector<16x16xf32>
    %1403 = vector.broadcast %1400 : f32 to vector<16x16xf32>
    %1404 = arith.mulf %1403, %1402 : vector<16x16xf32>
    %1405 = arith.addf %1399, %1404 : vector<16x16xf32>
    %c42_850 = arith.constant 42 : index
    %1406 = memref.load %arg7[%c42_850] : memref<108xf32, #tpu.memory_space<smem>>
    %c1_851 = arith.constant 1 : index
    %c2_852 = arith.constant 2 : index
    %c0_853 = arith.constant 0 : index
    %1407 = vector.load %arg12[%c1_851, %c2_852, %c0_853] : memref<3x18x18xf32, #tpu.memory_space<vmem>>, vector<1x16x16xf32>
    %1408 = vector.shape_cast %1407 : vector<1x16x16xf32> to vector<16x16xf32>
    %1409 = vector.broadcast %1406 : f32 to vector<16x16xf32>
    %1410 = arith.mulf %1409, %1408 : vector<16x16xf32>
    %1411 = arith.addf %1405, %1410 : vector<16x16xf32>
    %c43_854 = arith.constant 43 : index
    %1412 = memref.load %arg7[%c43_854] : memref<108xf32, #tpu.memory_space<smem>>
    %c1_855 = arith.constant 1 : index
    %c2_856 = arith.constant 2 : index
    %c1_857 = arith.constant 1 : index
    %1413 = vector.load %arg12[%c1_855, %c2_856, %c1_857] : memref<3x18x18xf32, #tpu.memory_space<vmem>>, vector<1x16x16xf32>
    %1414 = vector.shape_cast %1413 : vector<1x16x16xf32> to vector<16x16xf32>
    %1415 = vector.broadcast %1412 : f32 to vector<16x16xf32>
    %1416 = arith.mulf %1415, %1414 : vector<16x16xf32>
    %1417 = arith.addf %1411, %1416 : vector<16x16xf32>
    %c44_858 = arith.constant 44 : index
    %1418 = memref.load %arg7[%c44_858] : memref<108xf32, #tpu.memory_space<smem>>
    %c1_859 = arith.constant 1 : index
    %c2_860 = arith.constant 2 : index
    %c2_861 = arith.constant 2 : index
    %1419 = vector.load %arg12[%c1_859, %c2_860, %c2_861] : memref<3x18x18xf32, #tpu.memory_space<vmem>>, vector<1x16x16xf32>
    %1420 = vector.shape_cast %1419 : vector<1x16x16xf32> to vector<16x16xf32>
    %1421 = vector.broadcast %1418 : f32 to vector<16x16xf32>
    %1422 = arith.mulf %1421, %1420 : vector<16x16xf32>
    %1423 = arith.addf %1417, %1422 : vector<16x16xf32>
    %c45_862 = arith.constant 45 : index
    %1424 = memref.load %arg7[%c45_862] : memref<108xf32, #tpu.memory_space<smem>>
    %c2_863 = arith.constant 2 : index
    %c0_864 = arith.constant 0 : index
    %c0_865 = arith.constant 0 : index
    %1425 = vector.load %arg12[%c2_863, %c0_864, %c0_865] : memref<3x18x18xf32, #tpu.memory_space<vmem>>, vector<1x16x16xf32>
    %1426 = vector.shape_cast %1425 : vector<1x16x16xf32> to vector<16x16xf32>
    %1427 = vector.broadcast %1424 : f32 to vector<16x16xf32>
    %1428 = arith.mulf %1427, %1426 : vector<16x16xf32>
    %1429 = arith.addf %1423, %1428 : vector<16x16xf32>
    %c46_866 = arith.constant 46 : index
    %1430 = memref.load %arg7[%c46_866] : memref<108xf32, #tpu.memory_space<smem>>
    %c2_867 = arith.constant 2 : index
    %c0_868 = arith.constant 0 : index
    %c1_869 = arith.constant 1 : index
    %1431 = vector.load %arg12[%c2_867, %c0_868, %c1_869] : memref<3x18x18xf32, #tpu.memory_space<vmem>>, vector<1x16x16xf32>
    %1432 = vector.shape_cast %1431 : vector<1x16x16xf32> to vector<16x16xf32>
    %1433 = vector.broadcast %1430 : f32 to vector<16x16xf32>
    %1434 = arith.mulf %1433, %1432 : vector<16x16xf32>
    %1435 = arith.addf %1429, %1434 : vector<16x16xf32>
    %c47_870 = arith.constant 47 : index
    %1436 = memref.load %arg7[%c47_870] : memref<108xf32, #tpu.memory_space<smem>>
    %c2_871 = arith.constant 2 : index
    %c0_872 = arith.constant 0 : index
    %c2_873 = arith.constant 2 : index
    %1437 = vector.load %arg12[%c2_871, %c0_872, %c2_873] : memref<3x18x18xf32, #tpu.memory_space<vmem>>, vector<1x16x16xf32>
    %1438 = vector.shape_cast %1437 : vector<1x16x16xf32> to vector<16x16xf32>
    %1439 = vector.broadcast %1436 : f32 to vector<16x16xf32>
    %1440 = arith.mulf %1439, %1438 : vector<16x16xf32>
    %1441 = arith.addf %1435, %1440 : vector<16x16xf32>
    %c48_874 = arith.constant 48 : index
    %1442 = memref.load %arg7[%c48_874] : memref<108xf32, #tpu.memory_space<smem>>
    %c2_875 = arith.constant 2 : index
    %c1_876 = arith.constant 1 : index
    %c0_877 = arith.constant 0 : index
    %1443 = vector.load %arg12[%c2_875, %c1_876, %c0_877] : memref<3x18x18xf32, #tpu.memory_space<vmem>>, vector<1x16x16xf32>
    %1444 = vector.shape_cast %1443 : vector<1x16x16xf32> to vector<16x16xf32>
    %1445 = vector.broadcast %1442 : f32 to vector<16x16xf32>
    %1446 = arith.mulf %1445, %1444 : vector<16x16xf32>
    %1447 = arith.addf %1441, %1446 : vector<16x16xf32>
    %c49_878 = arith.constant 49 : index
    %1448 = memref.load %arg7[%c49_878] : memref<108xf32, #tpu.memory_space<smem>>
    %c2_879 = arith.constant 2 : index
    %c1_880 = arith.constant 1 : index
    %c1_881 = arith.constant 1 : index
    %1449 = vector.load %arg12[%c2_879, %c1_880, %c1_881] : memref<3x18x18xf32, #tpu.memory_space<vmem>>, vector<1x16x16xf32>
    %1450 = vector.shape_cast %1449 : vector<1x16x16xf32> to vector<16x16xf32>
    %1451 = vector.broadcast %1448 : f32 to vector<16x16xf32>
    %1452 = arith.mulf %1451, %1450 : vector<16x16xf32>
    %1453 = arith.addf %1447, %1452 : vector<16x16xf32>
    %c50_882 = arith.constant 50 : index
    %1454 = memref.load %arg7[%c50_882] : memref<108xf32, #tpu.memory_space<smem>>
    %c2_883 = arith.constant 2 : index
    %c1_884 = arith.constant 1 : index
    %c2_885 = arith.constant 2 : index
    %1455 = vector.load %arg12[%c2_883, %c1_884, %c2_885] : memref<3x18x18xf32, #tpu.memory_space<vmem>>, vector<1x16x16xf32>
    %1456 = vector.shape_cast %1455 : vector<1x16x16xf32> to vector<16x16xf32>
    %1457 = vector.broadcast %1454 : f32 to vector<16x16xf32>
    %1458 = arith.mulf %1457, %1456 : vector<16x16xf32>
    %1459 = arith.addf %1453, %1458 : vector<16x16xf32>
    %c51_886 = arith.constant 51 : index
    %1460 = memref.load %arg7[%c51_886] : memref<108xf32, #tpu.memory_space<smem>>
    %c2_887 = arith.constant 2 : index
    %c2_888 = arith.constant 2 : index
    %c0_889 = arith.constant 0 : index
    %1461 = vector.load %arg12[%c2_887, %c2_888, %c0_889] : memref<3x18x18xf32, #tpu.memory_space<vmem>>, vector<1x16x16xf32>
    %1462 = vector.shape_cast %1461 : vector<1x16x16xf32> to vector<16x16xf32>
    %1463 = vector.broadcast %1460 : f32 to vector<16x16xf32>
    %1464 = arith.mulf %1463, %1462 : vector<16x16xf32>
    %1465 = arith.addf %1459, %1464 : vector<16x16xf32>
    %c52_890 = arith.constant 52 : index
    %1466 = memref.load %arg7[%c52_890] : memref<108xf32, #tpu.memory_space<smem>>
    %c2_891 = arith.constant 2 : index
    %c2_892 = arith.constant 2 : index
    %c1_893 = arith.constant 1 : index
    %1467 = vector.load %arg12[%c2_891, %c2_892, %c1_893] : memref<3x18x18xf32, #tpu.memory_space<vmem>>, vector<1x16x16xf32>
    %1468 = vector.shape_cast %1467 : vector<1x16x16xf32> to vector<16x16xf32>
    %1469 = vector.broadcast %1466 : f32 to vector<16x16xf32>
    %1470 = arith.mulf %1469, %1468 : vector<16x16xf32>
    %1471 = arith.addf %1465, %1470 : vector<16x16xf32>
    %c53_894 = arith.constant 53 : index
    %1472 = memref.load %arg7[%c53_894] : memref<108xf32, #tpu.memory_space<smem>>
    %c2_895 = arith.constant 2 : index
    %c2_896 = arith.constant 2 : index
    %c2_897 = arith.constant 2 : index
    %1473 = vector.load %arg12[%c2_895, %c2_896, %c2_897] : memref<3x18x18xf32, #tpu.memory_space<vmem>>, vector<1x16x16xf32>
    %1474 = vector.shape_cast %1473 : vector<1x16x16xf32> to vector<16x16xf32>
    %1475 = vector.broadcast %1472 : f32 to vector<16x16xf32>
    %1476 = arith.mulf %1475, %1474 : vector<16x16xf32>
    %1477 = arith.addf %1471, %1476 : vector<16x16xf32>
    %1478 = arith.negf %1477 : vector<16x16xf32>
    %1479 = math.exp %1478 : vector<16x16xf32>
    %cst_898 = arith.constant 1.000000e+00 : f32
    %1480 = vector.broadcast %cst_898 : f32 to vector<16x16xf32>
    %1481 = arith.addf %1480, %1479 : vector<16x16xf32>
    %1482 = arith.divf %1480, %1481 : vector<16x16xf32>
    %1483 = arith.mulf %1311, %1482 : vector<16x16xf32>
    %c0_899 = arith.constant 0 : index
    %c1_900 = arith.constant 1 : index
    %c0_901 = arith.constant 0 : index
    %c0_902 = arith.constant 0 : index
    %1484 = vector.load %arg1[%c0_899, %c1_900, %c0_901, %c0_902] : memref<1x4x16x16xf32, #tpu.memory_space<vmem>>, vector<1x1x16x16xf32>
    %1485 = vector.shape_cast %1484 : vector<1x1x16x16xf32> to vector<16x16xf32>
    %1486 = arith.addf %1483, %1485 : vector<16x16xf32>
    %c0_903 = arith.constant 0 : index
    %c1_904 = arith.constant 1 : index
    %c0_905 = arith.constant 0 : index
    %c0_906 = arith.constant 0 : index
    %1487 = vector.load %arg9[%c0_903, %c1_904, %c0_905, %c0_906] : memref<1x4x16x16xf32, #tpu.memory_space<vmem>>, vector<1x1x16x16xf32>
    %1488 = vector.shape_cast %1487 : vector<1x1x16x16xf32> to vector<16x16xf32>
    %1489 = vector.shape_cast %1486 : vector<16x16xf32> to vector<1x1x16x16xf32>
    tpu.vector_store %arg9[%c0_903, %c1_904, %c0_905, %c0_906], %1489 {strides = array<i32>} : memref<1x4x16x16xf32, #tpu.memory_space<vmem>>, vector<1x1x16x16xf32>,
    %cst_907 = arith.constant 0.000000e+00 : f32
    %1490 = vector.broadcast %cst_907 : f32 to vector<16x16xf32>
    %c2_908 = arith.constant 2 : index
    %1491 = memref.load %arg4[%c2_908] : memref<4xf32, #tpu.memory_space<smem>>
    %1492 = vector.broadcast %1491 : f32 to vector<16x16xf32>
    %1493 = arith.addf %1490, %1492 : vector<16x16xf32>
    %c72_909 = arith.constant 72 : index
    %1494 = memref.load %arg3[%c72_909] : memref<144xf32, #tpu.memory_space<smem>>
    %c0_910 = arith.constant 0 : index
    %c0_911 = arith.constant 0 : index
    %c0_912 = arith.constant 0 : index
    %1495 = vector.load %arg11[%c0_910, %c0_911, %c0_912] : memref<4x18x18xf32, #tpu.memory_space<vmem>>, vector<1x16x16xf32>
    %1496 = vector.shape_cast %1495 : vector<1x16x16xf32> to vector<16x16xf32>
    %1497 = vector.broadcast %1494 : f32 to vector<16x16xf32>
    %1498 = arith.mulf %1497, %1496 : vector<16x16xf32>
    %1499 = arith.addf %1493, %1498 : vector<16x16xf32>
    %c73_913 = arith.constant 73 : index
    %1500 = memref.load %arg3[%c73_913] : memref<144xf32, #tpu.memory_space<smem>>
    %c0_914 = arith.constant 0 : index
    %c0_915 = arith.constant 0 : index
    %c1_916 = arith.constant 1 : index
    %1501 = vector.load %arg11[%c0_914, %c0_915, %c1_916] : memref<4x18x18xf32, #tpu.memory_space<vmem>>, vector<1x16x16xf32>
    %1502 = vector.shape_cast %1501 : vector<1x16x16xf32> to vector<16x16xf32>
    %1503 = vector.broadcast %1500 : f32 to vector<16x16xf32>
    %1504 = arith.mulf %1503, %1502 : vector<16x16xf32>
    %1505 = arith.addf %1499, %1504 : vector<16x16xf32>
    %c74_917 = arith.constant 74 : index
    %1506 = memref.load %arg3[%c74_917] : memref<144xf32, #tpu.memory_space<smem>>
    %c0_918 = arith.constant 0 : index
    %c0_919 = arith.constant 0 : index
    %c2_920 = arith.constant 2 : index
    %1507 = vector.load %arg11[%c0_918, %c0_919, %c2_920] : memref<4x18x18xf32, #tpu.memory_space<vmem>>, vector<1x16x16xf32>
    %1508 = vector.shape_cast %1507 : vector<1x16x16xf32> to vector<16x16xf32>
    %1509 = vector.broadcast %1506 : f32 to vector<16x16xf32>
    %1510 = arith.mulf %1509, %1508 : vector<16x16xf32>
    %1511 = arith.addf %1505, %1510 : vector<16x16xf32>
    %c75_921 = arith.constant 75 : index
    %1512 = memref.load %arg3[%c75_921] : memref<144xf32, #tpu.memory_space<smem>>
    %c0_922 = arith.constant 0 : index
    %c1_923 = arith.constant 1 : index
    %c0_924 = arith.constant 0 : index
    %1513 = vector.load %arg11[%c0_922, %c1_923, %c0_924] : memref<4x18x18xf32, #tpu.memory_space<vmem>>, vector<1x16x16xf32>
    %1514 = vector.shape_cast %1513 : vector<1x16x16xf32> to vector<16x16xf32>
    %1515 = vector.broadcast %1512 : f32 to vector<16x16xf32>
    %1516 = arith.mulf %1515, %1514 : vector<16x16xf32>
    %1517 = arith.addf %1511, %1516 : vector<16x16xf32>
    %c76_925 = arith.constant 76 : index
    %1518 = memref.load %arg3[%c76_925] : memref<144xf32, #tpu.memory_space<smem>>
    %c0_926 = arith.constant 0 : index
    %c1_927 = arith.constant 1 : index
    %c1_928 = arith.constant 1 : index
    %1519 = vector.load %arg11[%c0_926, %c1_927, %c1_928] : memref<4x18x18xf32, #tpu.memory_space<vmem>>, vector<1x16x16xf32>
    %1520 = vector.shape_cast %1519 : vector<1x16x16xf32> to vector<16x16xf32>
    %1521 = vector.broadcast %1518 : f32 to vector<16x16xf32>
    %1522 = arith.mulf %1521, %1520 : vector<16x16xf32>
    %1523 = arith.addf %1517, %1522 : vector<16x16xf32>
    %c77_929 = arith.constant 77 : index
    %1524 = memref.load %arg3[%c77_929] : memref<144xf32, #tpu.memory_space<smem>>
    %c0_930 = arith.constant 0 : index
    %c1_931 = arith.constant 1 : index
    %c2_932 = arith.constant 2 : index
    %1525 = vector.load %arg11[%c0_930, %c1_931, %c2_932] : memref<4x18x18xf32, #tpu.memory_space<vmem>>, vector<1x16x16xf32>
    %1526 = vector.shape_cast %1525 : vector<1x16x16xf32> to vector<16x16xf32>
    %1527 = vector.broadcast %1524 : f32 to vector<16x16xf32>
    %1528 = arith.mulf %1527, %1526 : vector<16x16xf32>
    %1529 = arith.addf %1523, %1528 : vector<16x16xf32>
    %c78_933 = arith.constant 78 : index
    %1530 = memref.load %arg3[%c78_933] : memref<144xf32, #tpu.memory_space<smem>>
    %c0_934 = arith.constant 0 : index
    %c2_935 = arith.constant 2 : index
    %c0_936 = arith.constant 0 : index
    %1531 = vector.load %arg11[%c0_934, %c2_935, %c0_936] : memref<4x18x18xf32, #tpu.memory_space<vmem>>, vector<1x16x16xf32>
    %1532 = vector.shape_cast %1531 : vector<1x16x16xf32> to vector<16x16xf32>
    %1533 = vector.broadcast %1530 : f32 to vector<16x16xf32>
    %1534 = arith.mulf %1533, %1532 : vector<16x16xf32>
    %1535 = arith.addf %1529, %1534 : vector<16x16xf32>
    %c79_937 = arith.constant 79 : index
    %1536 = memref.load %arg3[%c79_937] : memref<144xf32, #tpu.memory_space<smem>>
    %c0_938 = arith.constant 0 : index
    %c2_939 = arith.constant 2 : index
    %c1_940 = arith.constant 1 : index
    %1537 = vector.load %arg11[%c0_938, %c2_939, %c1_940] : memref<4x18x18xf32, #tpu.memory_space<vmem>>, vector<1x16x16xf32>
    %1538 = vector.shape_cast %1537 : vector<1x16x16xf32> to vector<16x16xf32>
    %1539 = vector.broadcast %1536 : f32 to vector<16x16xf32>
    %1540 = arith.mulf %1539, %1538 : vector<16x16xf32>
    %1541 = arith.addf %1535, %1540 : vector<16x16xf32>
    %c80_941 = arith.constant 80 : index
    %1542 = memref.load %arg3[%c80_941] : memref<144xf32, #tpu.memory_space<smem>>
    %c0_942 = arith.constant 0 : index
    %c2_943 = arith.constant 2 : index
    %c2_944 = arith.constant 2 : index
    %1543 = vector.load %arg11[%c0_942, %c2_943, %c2_944] : memref<4x18x18xf32, #tpu.memory_space<vmem>>, vector<1x16x16xf32>
    %1544 = vector.shape_cast %1543 : vector<1x16x16xf32> to vector<16x16xf32>
    %1545 = vector.broadcast %1542 : f32 to vector<16x16xf32>
    %1546 = arith.mulf %1545, %1544 : vector<16x16xf32>
    %1547 = arith.addf %1541, %1546 : vector<16x16xf32>
    %c81_945 = arith.constant 81 : index
    %1548 = memref.load %arg3[%c81_945] : memref<144xf32, #tpu.memory_space<smem>>
    %c1_946 = arith.constant 1 : index
    %c0_947 = arith.constant 0 : index
    %c0_948 = arith.constant 0 : index
    %1549 = vector.load %arg11[%c1_946, %c0_947, %c0_948] : memref<4x18x18xf32, #tpu.memory_space<vmem>>, vector<1x16x16xf32>
    %1550 = vector.shape_cast %1549 : vector<1x16x16xf32> to vector<16x16xf32>
    %1551 = vector.broadcast %1548 : f32 to vector<16x16xf32>
    %1552 = arith.mulf %1551, %1550 : vector<16x16xf32>
    %1553 = arith.addf %1547, %1552 : vector<16x16xf32>
    %c82_949 = arith.constant 82 : index
    %1554 = memref.load %arg3[%c82_949] : memref<144xf32, #tpu.memory_space<smem>>
    %c1_950 = arith.constant 1 : index
    %c0_951 = arith.constant 0 : index
    %c1_952 = arith.constant 1 : index
    %1555 = vector.load %arg11[%c1_950, %c0_951, %c1_952] : memref<4x18x18xf32, #tpu.memory_space<vmem>>, vector<1x16x16xf32>
    %1556 = vector.shape_cast %1555 : vector<1x16x16xf32> to vector<16x16xf32>
    %1557 = vector.broadcast %1554 : f32 to vector<16x16xf32>
    %1558 = arith.mulf %1557, %1556 : vector<16x16xf32>
    %1559 = arith.addf %1553, %1558 : vector<16x16xf32>
    %c83_953 = arith.constant 83 : index
    %1560 = memref.load %arg3[%c83_953] : memref<144xf32, #tpu.memory_space<smem>>
    %c1_954 = arith.constant 1 : index
    %c0_955 = arith.constant 0 : index
    %c2_956 = arith.constant 2 : index
    %1561 = vector.load %arg11[%c1_954, %c0_955, %c2_956] : memref<4x18x18xf32, #tpu.memory_space<vmem>>, vector<1x16x16xf32>
    %1562 = vector.shape_cast %1561 : vector<1x16x16xf32> to vector<16x16xf32>
    %1563 = vector.broadcast %1560 : f32 to vector<16x16xf32>
    %1564 = arith.mulf %1563, %1562 : vector<16x16xf32>
    %1565 = arith.addf %1559, %1564 : vector<16x16xf32>
    %c84_957 = arith.constant 84 : index
    %1566 = memref.load %arg3[%c84_957] : memref<144xf32, #tpu.memory_space<smem>>
    %c1_958 = arith.constant 1 : index
    %c1_959 = arith.constant 1 : index
    %c0_960 = arith.constant 0 : index
    %1567 = vector.load %arg11[%c1_958, %c1_959, %c0_960] : memref<4x18x18xf32, #tpu.memory_space<vmem>>, vector<1x16x16xf32>
    %1568 = vector.shape_cast %1567 : vector<1x16x16xf32> to vector<16x16xf32>
    %1569 = vector.broadcast %1566 : f32 to vector<16x16xf32>
    %1570 = arith.mulf %1569, %1568 : vector<16x16xf32>
    %1571 = arith.addf %1565, %1570 : vector<16x16xf32>
    %c85_961 = arith.constant 85 : index
    %1572 = memref.load %arg3[%c85_961] : memref<144xf32, #tpu.memory_space<smem>>
    %c1_962 = arith.constant 1 : index
    %c1_963 = arith.constant 1 : index
    %c1_964 = arith.constant 1 : index
    %1573 = vector.load %arg11[%c1_962, %c1_963, %c1_964] : memref<4x18x18xf32, #tpu.memory_space<vmem>>, vector<1x16x16xf32>
    %1574 = vector.shape_cast %1573 : vector<1x16x16xf32> to vector<16x16xf32>
    %1575 = vector.broadcast %1572 : f32 to vector<16x16xf32>
    %1576 = arith.mulf %1575, %1574 : vector<16x16xf32>
    %1577 = arith.addf %1571, %1576 : vector<16x16xf32>
    %c86_965 = arith.constant 86 : index
    %1578 = memref.load %arg3[%c86_965] : memref<144xf32, #tpu.memory_space<smem>>
    %c1_966 = arith.constant 1 : index
    %c1_967 = arith.constant 1 : index
    %c2_968 = arith.constant 2 : index
    %1579 = vector.load %arg11[%c1_966, %c1_967, %c2_968] : memref<4x18x18xf32, #tpu.memory_space<vmem>>, vector<1x16x16xf32>
    %1580 = vector.shape_cast %1579 : vector<1x16x16xf32> to vector<16x16xf32>
    %1581 = vector.broadcast %1578 : f32 to vector<16x16xf32>
    %1582 = arith.mulf %1581, %1580 : vector<16x16xf32>
    %1583 = arith.addf %1577, %1582 : vector<16x16xf32>
    %c87_969 = arith.constant 87 : index
    %1584 = memref.load %arg3[%c87_969] : memref<144xf32, #tpu.memory_space<smem>>
    %c1_970 = arith.constant 1 : index
    %c2_971 = arith.constant 2 : index
    %c0_972 = arith.constant 0 : index
    %1585 = vector.load %arg11[%c1_970, %c2_971, %c0_972] : memref<4x18x18xf32, #tpu.memory_space<vmem>>, vector<1x16x16xf32>
    %1586 = vector.shape_cast %1585 : vector<1x16x16xf32> to vector<16x16xf32>
    %1587 = vector.broadcast %1584 : f32 to vector<16x16xf32>
    %1588 = arith.mulf %1587, %1586 : vector<16x16xf32>
    %1589 = arith.addf %1583, %1588 : vector<16x16xf32>
    %c88_973 = arith.constant 88 : index
    %1590 = memref.load %arg3[%c88_973] : memref<144xf32, #tpu.memory_space<smem>>
    %c1_974 = arith.constant 1 : index
    %c2_975 = arith.constant 2 : index
    %c1_976 = arith.constant 1 : index
    %1591 = vector.load %arg11[%c1_974, %c2_975, %c1_976] : memref<4x18x18xf32, #tpu.memory_space<vmem>>, vector<1x16x16xf32>
    %1592 = vector.shape_cast %1591 : vector<1x16x16xf32> to vector<16x16xf32>
    %1593 = vector.broadcast %1590 : f32 to vector<16x16xf32>
    %1594 = arith.mulf %1593, %1592 : vector<16x16xf32>
    %1595 = arith.addf %1589, %1594 : vector<16x16xf32>
    %c89_977 = arith.constant 89 : index
    %1596 = memref.load %arg3[%c89_977] : memref<144xf32, #tpu.memory_space<smem>>
    %c1_978 = arith.constant 1 : index
    %c2_979 = arith.constant 2 : index
    %c2_980 = arith.constant 2 : index
    %1597 = vector.load %arg11[%c1_978, %c2_979, %c2_980] : memref<4x18x18xf32, #tpu.memory_space<vmem>>, vector<1x16x16xf32>
    %1598 = vector.shape_cast %1597 : vector<1x16x16xf32> to vector<16x16xf32>
    %1599 = vector.broadcast %1596 : f32 to vector<16x16xf32>
    %1600 = arith.mulf %1599, %1598 : vector<16x16xf32>
    %1601 = arith.addf %1595, %1600 : vector<16x16xf32>
    %c90_981 = arith.constant 90 : index
    %1602 = memref.load %arg3[%c90_981] : memref<144xf32, #tpu.memory_space<smem>>
    %c2_982 = arith.constant 2 : index
    %c0_983 = arith.constant 0 : index
    %c0_984 = arith.constant 0 : index
    %1603 = vector.load %arg11[%c2_982, %c0_983, %c0_984] : memref<4x18x18xf32, #tpu.memory_space<vmem>>, vector<1x16x16xf32>
    %1604 = vector.shape_cast %1603 : vector<1x16x16xf32> to vector<16x16xf32>
    %1605 = vector.broadcast %1602 : f32 to vector<16x16xf32>
    %1606 = arith.mulf %1605, %1604 : vector<16x16xf32>
    %1607 = arith.addf %1601, %1606 : vector<16x16xf32>
    %c91_985 = arith.constant 91 : index
    %1608 = memref.load %arg3[%c91_985] : memref<144xf32, #tpu.memory_space<smem>>
    %c2_986 = arith.constant 2 : index
    %c0_987 = arith.constant 0 : index
    %c1_988 = arith.constant 1 : index
    %1609 = vector.load %arg11[%c2_986, %c0_987, %c1_988] : memref<4x18x18xf32, #tpu.memory_space<vmem>>, vector<1x16x16xf32>
    %1610 = vector.shape_cast %1609 : vector<1x16x16xf32> to vector<16x16xf32>
    %1611 = vector.broadcast %1608 : f32 to vector<16x16xf32>
    %1612 = arith.mulf %1611, %1610 : vector<16x16xf32>
    %1613 = arith.addf %1607, %1612 : vector<16x16xf32>
    %c92_989 = arith.constant 92 : index
    %1614 = memref.load %arg3[%c92_989] : memref<144xf32, #tpu.memory_space<smem>>
    %c2_990 = arith.constant 2 : index
    %c0_991 = arith.constant 0 : index
    %c2_992 = arith.constant 2 : index
    %1615 = vector.load %arg11[%c2_990, %c0_991, %c2_992] : memref<4x18x18xf32, #tpu.memory_space<vmem>>, vector<1x16x16xf32>
    %1616 = vector.shape_cast %1615 : vector<1x16x16xf32> to vector<16x16xf32>
    %1617 = vector.broadcast %1614 : f32 to vector<16x16xf32>
    %1618 = arith.mulf %1617, %1616 : vector<16x16xf32>
    %1619 = arith.addf %1613, %1618 : vector<16x16xf32>
    %c93_993 = arith.constant 93 : index
    %1620 = memref.load %arg3[%c93_993] : memref<144xf32, #tpu.memory_space<smem>>
    %c2_994 = arith.constant 2 : index
    %c1_995 = arith.constant 1 : index
    %c0_996 = arith.constant 0 : index
    %1621 = vector.load %arg11[%c2_994, %c1_995, %c0_996] : memref<4x18x18xf32, #tpu.memory_space<vmem>>, vector<1x16x16xf32>
    %1622 = vector.shape_cast %1621 : vector<1x16x16xf32> to vector<16x16xf32>
    %1623 = vector.broadcast %1620 : f32 to vector<16x16xf32>
    %1624 = arith.mulf %1623, %1622 : vector<16x16xf32>
    %1625 = arith.addf %1619, %1624 : vector<16x16xf32>
    %c94_997 = arith.constant 94 : index
    %1626 = memref.load %arg3[%c94_997] : memref<144xf32, #tpu.memory_space<smem>>
    %c2_998 = arith.constant 2 : index
    %c1_999 = arith.constant 1 : index
    %c1_1000 = arith.constant 1 : index
    %1627 = vector.load %arg11[%c2_998, %c1_999, %c1_1000] : memref<4x18x18xf32, #tpu.memory_space<vmem>>, vector<1x16x16xf32>
    %1628 = vector.shape_cast %1627 : vector<1x16x16xf32> to vector<16x16xf32>
    %1629 = vector.broadcast %1626 : f32 to vector<16x16xf32>
    %1630 = arith.mulf %1629, %1628 : vector<16x16xf32>
    %1631 = arith.addf %1625, %1630 : vector<16x16xf32>
    %c95_1001 = arith.constant 95 : index
    %1632 = memref.load %arg3[%c95_1001] : memref<144xf32, #tpu.memory_space<smem>>
    %c2_1002 = arith.constant 2 : index
    %c1_1003 = arith.constant 1 : index
    %c2_1004 = arith.constant 2 : index
    %1633 = vector.load %arg11[%c2_1002, %c1_1003, %c2_1004] : memref<4x18x18xf32, #tpu.memory_space<vmem>>, vector<1x16x16xf32>
    %1634 = vector.shape_cast %1633 : vector<1x16x16xf32> to vector<16x16xf32>
    %1635 = vector.broadcast %1632 : f32 to vector<16x16xf32>
    %1636 = arith.mulf %1635, %1634 : vector<16x16xf32>
    %1637 = arith.addf %1631, %1636 : vector<16x16xf32>
    %c96_1005 = arith.constant 96 : index
    %1638 = memref.load %arg3[%c96_1005] : memref<144xf32, #tpu.memory_space<smem>>
    %c2_1006 = arith.constant 2 : index
    %c2_1007 = arith.constant 2 : index
    %c0_1008 = arith.constant 0 : index
    %1639 = vector.load %arg11[%c2_1006, %c2_1007, %c0_1008] : memref<4x18x18xf32, #tpu.memory_space<vmem>>, vector<1x16x16xf32>
    %1640 = vector.shape_cast %1639 : vector<1x16x16xf32> to vector<16x16xf32>
    %1641 = vector.broadcast %1638 : f32 to vector<16x16xf32>
    %1642 = arith.mulf %1641, %1640 : vector<16x16xf32>
    %1643 = arith.addf %1637, %1642 : vector<16x16xf32>
    %c97_1009 = arith.constant 97 : index
    %1644 = memref.load %arg3[%c97_1009] : memref<144xf32, #tpu.memory_space<smem>>
    %c2_1010 = arith.constant 2 : index
    %c2_1011 = arith.constant 2 : index
    %c1_1012 = arith.constant 1 : index
    %1645 = vector.load %arg11[%c2_1010, %c2_1011, %c1_1012] : memref<4x18x18xf32, #tpu.memory_space<vmem>>, vector<1x16x16xf32>
    %1646 = vector.shape_cast %1645 : vector<1x16x16xf32> to vector<16x16xf32>
    %1647 = vector.broadcast %1644 : f32 to vector<16x16xf32>
    %1648 = arith.mulf %1647, %1646 : vector<16x16xf32>
    %1649 = arith.addf %1643, %1648 : vector<16x16xf32>
    %c98_1013 = arith.constant 98 : index
    %1650 = memref.load %arg3[%c98_1013] : memref<144xf32, #tpu.memory_space<smem>>
    %c2_1014 = arith.constant 2 : index
    %c2_1015 = arith.constant 2 : index
    %c2_1016 = arith.constant 2 : index
    %1651 = vector.load %arg11[%c2_1014, %c2_1015, %c2_1016] : memref<4x18x18xf32, #tpu.memory_space<vmem>>, vector<1x16x16xf32>
    %1652 = vector.shape_cast %1651 : vector<1x16x16xf32> to vector<16x16xf32>
    %1653 = vector.broadcast %1650 : f32 to vector<16x16xf32>
    %1654 = arith.mulf %1653, %1652 : vector<16x16xf32>
    %1655 = arith.addf %1649, %1654 : vector<16x16xf32>
    %c99_1017 = arith.constant 99 : index
    %1656 = memref.load %arg3[%c99_1017] : memref<144xf32, #tpu.memory_space<smem>>
    %c3_1018 = arith.constant 3 : index
    %c0_1019 = arith.constant 0 : index
    %c0_1020 = arith.constant 0 : index
    %1657 = vector.load %arg11[%c3_1018, %c0_1019, %c0_1020] : memref<4x18x18xf32, #tpu.memory_space<vmem>>, vector<1x16x16xf32>
    %1658 = vector.shape_cast %1657 : vector<1x16x16xf32> to vector<16x16xf32>
    %1659 = vector.broadcast %1656 : f32 to vector<16x16xf32>
    %1660 = arith.mulf %1659, %1658 : vector<16x16xf32>
    %1661 = arith.addf %1655, %1660 : vector<16x16xf32>
    %c100_1021 = arith.constant 100 : index
    %1662 = memref.load %arg3[%c100_1021] : memref<144xf32, #tpu.memory_space<smem>>
    %c3_1022 = arith.constant 3 : index
    %c0_1023 = arith.constant 0 : index
    %c1_1024 = arith.constant 1 : index
    %1663 = vector.load %arg11[%c3_1022, %c0_1023, %c1_1024] : memref<4x18x18xf32, #tpu.memory_space<vmem>>, vector<1x16x16xf32>
    %1664 = vector.shape_cast %1663 : vector<1x16x16xf32> to vector<16x16xf32>
    %1665 = vector.broadcast %1662 : f32 to vector<16x16xf32>
    %1666 = arith.mulf %1665, %1664 : vector<16x16xf32>
    %1667 = arith.addf %1661, %1666 : vector<16x16xf32>
    %c101_1025 = arith.constant 101 : index
    %1668 = memref.load %arg3[%c101_1025] : memref<144xf32, #tpu.memory_space<smem>>
    %c3_1026 = arith.constant 3 : index
    %c0_1027 = arith.constant 0 : index
    %c2_1028 = arith.constant 2 : index
    %1669 = vector.load %arg11[%c3_1026, %c0_1027, %c2_1028] : memref<4x18x18xf32, #tpu.memory_space<vmem>>, vector<1x16x16xf32>
    %1670 = vector.shape_cast %1669 : vector<1x16x16xf32> to vector<16x16xf32>
    %1671 = vector.broadcast %1668 : f32 to vector<16x16xf32>
    %1672 = arith.mulf %1671, %1670 : vector<16x16xf32>
    %1673 = arith.addf %1667, %1672 : vector<16x16xf32>
    %c102_1029 = arith.constant 102 : index
    %1674 = memref.load %arg3[%c102_1029] : memref<144xf32, #tpu.memory_space<smem>>
    %c3_1030 = arith.constant 3 : index
    %c1_1031 = arith.constant 1 : index
    %c0_1032 = arith.constant 0 : index
    %1675 = vector.load %arg11[%c3_1030, %c1_1031, %c0_1032] : memref<4x18x18xf32, #tpu.memory_space<vmem>>, vector<1x16x16xf32>
    %1676 = vector.shape_cast %1675 : vector<1x16x16xf32> to vector<16x16xf32>
    %1677 = vector.broadcast %1674 : f32 to vector<16x16xf32>
    %1678 = arith.mulf %1677, %1676 : vector<16x16xf32>
    %1679 = arith.addf %1673, %1678 : vector<16x16xf32>
    %c103_1033 = arith.constant 103 : index
    %1680 = memref.load %arg3[%c103_1033] : memref<144xf32, #tpu.memory_space<smem>>
    %c3_1034 = arith.constant 3 : index
    %c1_1035 = arith.constant 1 : index
    %c1_1036 = arith.constant 1 : index
    %1681 = vector.load %arg11[%c3_1034, %c1_1035, %c1_1036] : memref<4x18x18xf32, #tpu.memory_space<vmem>>, vector<1x16x16xf32>
    %1682 = vector.shape_cast %1681 : vector<1x16x16xf32> to vector<16x16xf32>
    %1683 = vector.broadcast %1680 : f32 to vector<16x16xf32>
    %1684 = arith.mulf %1683, %1682 : vector<16x16xf32>
    %1685 = arith.addf %1679, %1684 : vector<16x16xf32>
    %c104_1037 = arith.constant 104 : index
    %1686 = memref.load %arg3[%c104_1037] : memref<144xf32, #tpu.memory_space<smem>>
    %c3_1038 = arith.constant 3 : index
    %c1_1039 = arith.constant 1 : index
    %c2_1040 = arith.constant 2 : index
    %1687 = vector.load %arg11[%c3_1038, %c1_1039, %c2_1040] : memref<4x18x18xf32, #tpu.memory_space<vmem>>, vector<1x16x16xf32>
    %1688 = vector.shape_cast %1687 : vector<1x16x16xf32> to vector<16x16xf32>
    %1689 = vector.broadcast %1686 : f32 to vector<16x16xf32>
    %1690 = arith.mulf %1689, %1688 : vector<16x16xf32>
    %1691 = arith.addf %1685, %1690 : vector<16x16xf32>
    %c105_1041 = arith.constant 105 : index
    %1692 = memref.load %arg3[%c105_1041] : memref<144xf32, #tpu.memory_space<smem>>
    %c3_1042 = arith.constant 3 : index
    %c2_1043 = arith.constant 2 : index
    %c0_1044 = arith.constant 0 : index
    %1693 = vector.load %arg11[%c3_1042, %c2_1043, %c0_1044] : memref<4x18x18xf32, #tpu.memory_space<vmem>>, vector<1x16x16xf32>
    %1694 = vector.shape_cast %1693 : vector<1x16x16xf32> to vector<16x16xf32>
    %1695 = vector.broadcast %1692 : f32 to vector<16x16xf32>
    %1696 = arith.mulf %1695, %1694 : vector<16x16xf32>
    %1697 = arith.addf %1691, %1696 : vector<16x16xf32>
    %c106_1045 = arith.constant 106 : index
    %1698 = memref.load %arg3[%c106_1045] : memref<144xf32, #tpu.memory_space<smem>>
    %c3_1046 = arith.constant 3 : index
    %c2_1047 = arith.constant 2 : index
    %c1_1048 = arith.constant 1 : index
    %1699 = vector.load %arg11[%c3_1046, %c2_1047, %c1_1048] : memref<4x18x18xf32, #tpu.memory_space<vmem>>, vector<1x16x16xf32>
    %1700 = vector.shape_cast %1699 : vector<1x16x16xf32> to vector<16x16xf32>
    %1701 = vector.broadcast %1698 : f32 to vector<16x16xf32>
    %1702 = arith.mulf %1701, %1700 : vector<16x16xf32>
    %1703 = arith.addf %1697, %1702 : vector<16x16xf32>
    %c107_1049 = arith.constant 107 : index
    %1704 = memref.load %arg3[%c107_1049] : memref<144xf32, #tpu.memory_space<smem>>
    %c3_1050 = arith.constant 3 : index
    %c2_1051 = arith.constant 2 : index
    %c2_1052 = arith.constant 2 : index
    %1705 = vector.load %arg11[%c3_1050, %c2_1051, %c2_1052] : memref<4x18x18xf32, #tpu.memory_space<vmem>>, vector<1x16x16xf32>
    %1706 = vector.shape_cast %1705 : vector<1x16x16xf32> to vector<16x16xf32>
    %1707 = vector.broadcast %1704 : f32 to vector<16x16xf32>
    %1708 = arith.mulf %1707, %1706 : vector<16x16xf32>
    %1709 = arith.addf %1703, %1708 : vector<16x16xf32>
    %cst_1053 = arith.constant 0.000000e+00 : f32
    %1710 = vector.broadcast %cst_1053 : f32 to vector<16x16xf32>
    %c2_1054 = arith.constant 2 : index
    %1711 = memref.load %arg8[%c2_1054] : memref<4xf32, #tpu.memory_space<smem>>
    %1712 = vector.broadcast %1711 : f32 to vector<16x16xf32>
    %1713 = arith.addf %1710, %1712 : vector<16x16xf32>
    %c54_1055 = arith.constant 54 : index
    %1714 = memref.load %arg7[%c54_1055] : memref<108xf32, #tpu.memory_space<smem>>
    %c0_1056 = arith.constant 0 : index
    %c0_1057 = arith.constant 0 : index
    %c0_1058 = arith.constant 0 : index
    %1715 = vector.load %arg12[%c0_1056, %c0_1057, %c0_1058] : memref<3x18x18xf32, #tpu.memory_space<vmem>>, vector<1x16x16xf32>
    %1716 = vector.shape_cast %1715 : vector<1x16x16xf32> to vector<16x16xf32>
    %1717 = vector.broadcast %1714 : f32 to vector<16x16xf32>
    %1718 = arith.mulf %1717, %1716 : vector<16x16xf32>
    %1719 = arith.addf %1713, %1718 : vector<16x16xf32>
    %c55_1059 = arith.constant 55 : index
    %1720 = memref.load %arg7[%c55_1059] : memref<108xf32, #tpu.memory_space<smem>>
    %c0_1060 = arith.constant 0 : index
    %c0_1061 = arith.constant 0 : index
    %c1_1062 = arith.constant 1 : index
    %1721 = vector.load %arg12[%c0_1060, %c0_1061, %c1_1062] : memref<3x18x18xf32, #tpu.memory_space<vmem>>, vector<1x16x16xf32>
    %1722 = vector.shape_cast %1721 : vector<1x16x16xf32> to vector<16x16xf32>
    %1723 = vector.broadcast %1720 : f32 to vector<16x16xf32>
    %1724 = arith.mulf %1723, %1722 : vector<16x16xf32>
    %1725 = arith.addf %1719, %1724 : vector<16x16xf32>
    %c56_1063 = arith.constant 56 : index
    %1726 = memref.load %arg7[%c56_1063] : memref<108xf32, #tpu.memory_space<smem>>
    %c0_1064 = arith.constant 0 : index
    %c0_1065 = arith.constant 0 : index
    %c2_1066 = arith.constant 2 : index
    %1727 = vector.load %arg12[%c0_1064, %c0_1065, %c2_1066] : memref<3x18x18xf32, #tpu.memory_space<vmem>>, vector<1x16x16xf32>
    %1728 = vector.shape_cast %1727 : vector<1x16x16xf32> to vector<16x16xf32>
    %1729 = vector.broadcast %1726 : f32 to vector<16x16xf32>
    %1730 = arith.mulf %1729, %1728 : vector<16x16xf32>
    %1731 = arith.addf %1725, %1730 : vector<16x16xf32>
    %c57_1067 = arith.constant 57 : index
    %1732 = memref.load %arg7[%c57_1067] : memref<108xf32, #tpu.memory_space<smem>>
    %c0_1068 = arith.constant 0 : index
    %c1_1069 = arith.constant 1 : index
    %c0_1070 = arith.constant 0 : index
    %1733 = vector.load %arg12[%c0_1068, %c1_1069, %c0_1070] : memref<3x18x18xf32, #tpu.memory_space<vmem>>, vector<1x16x16xf32>
    %1734 = vector.shape_cast %1733 : vector<1x16x16xf32> to vector<16x16xf32>
    %1735 = vector.broadcast %1732 : f32 to vector<16x16xf32>
    %1736 = arith.mulf %1735, %1734 : vector<16x16xf32>
    %1737 = arith.addf %1731, %1736 : vector<16x16xf32>
    %c58_1071 = arith.constant 58 : index
    %1738 = memref.load %arg7[%c58_1071] : memref<108xf32, #tpu.memory_space<smem>>
    %c0_1072 = arith.constant 0 : index
    %c1_1073 = arith.constant 1 : index
    %c1_1074 = arith.constant 1 : index
    %1739 = vector.load %arg12[%c0_1072, %c1_1073, %c1_1074] : memref<3x18x18xf32, #tpu.memory_space<vmem>>, vector<1x16x16xf32>
    %1740 = vector.shape_cast %1739 : vector<1x16x16xf32> to vector<16x16xf32>
    %1741 = vector.broadcast %1738 : f32 to vector<16x16xf32>
    %1742 = arith.mulf %1741, %1740 : vector<16x16xf32>
    %1743 = arith.addf %1737, %1742 : vector<16x16xf32>
    %c59_1075 = arith.constant 59 : index
    %1744 = memref.load %arg7[%c59_1075] : memref<108xf32, #tpu.memory_space<smem>>
    %c0_1076 = arith.constant 0 : index
    %c1_1077 = arith.constant 1 : index
    %c2_1078 = arith.constant 2 : index
    %1745 = vector.load %arg12[%c0_1076, %c1_1077, %c2_1078] : memref<3x18x18xf32, #tpu.memory_space<vmem>>, vector<1x16x16xf32>
    %1746 = vector.shape_cast %1745 : vector<1x16x16xf32> to vector<16x16xf32>
    %1747 = vector.broadcast %1744 : f32 to vector<16x16xf32>
    %1748 = arith.mulf %1747, %1746 : vector<16x16xf32>
    %1749 = arith.addf %1743, %1748 : vector<16x16xf32>
    %c60_1079 = arith.constant 60 : index
    %1750 = memref.load %arg7[%c60_1079] : memref<108xf32, #tpu.memory_space<smem>>
    %c0_1080 = arith.constant 0 : index
    %c2_1081 = arith.constant 2 : index
    %c0_1082 = arith.constant 0 : index
    %1751 = vector.load %arg12[%c0_1080, %c2_1081, %c0_1082] : memref<3x18x18xf32, #tpu.memory_space<vmem>>, vector<1x16x16xf32>
    %1752 = vector.shape_cast %1751 : vector<1x16x16xf32> to vector<16x16xf32>
    %1753 = vector.broadcast %1750 : f32 to vector<16x16xf32>
    %1754 = arith.mulf %1753, %1752 : vector<16x16xf32>
    %1755 = arith.addf %1749, %1754 : vector<16x16xf32>
    %c61_1083 = arith.constant 61 : index
    %1756 = memref.load %arg7[%c61_1083] : memref<108xf32, #tpu.memory_space<smem>>
    %c0_1084 = arith.constant 0 : index
    %c2_1085 = arith.constant 2 : index
    %c1_1086 = arith.constant 1 : index
    %1757 = vector.load %arg12[%c0_1084, %c2_1085, %c1_1086] : memref<3x18x18xf32, #tpu.memory_space<vmem>>, vector<1x16x16xf32>
    %1758 = vector.shape_cast %1757 : vector<1x16x16xf32> to vector<16x16xf32>
    %1759 = vector.broadcast %1756 : f32 to vector<16x16xf32>
    %1760 = arith.mulf %1759, %1758 : vector<16x16xf32>
    %1761 = arith.addf %1755, %1760 : vector<16x16xf32>
    %c62_1087 = arith.constant 62 : index
    %1762 = memref.load %arg7[%c62_1087] : memref<108xf32, #tpu.memory_space<smem>>
    %c0_1088 = arith.constant 0 : index
    %c2_1089 = arith.constant 2 : index
    %c2_1090 = arith.constant 2 : index
    %1763 = vector.load %arg12[%c0_1088, %c2_1089, %c2_1090] : memref<3x18x18xf32, #tpu.memory_space<vmem>>, vector<1x16x16xf32>
    %1764 = vector.shape_cast %1763 : vector<1x16x16xf32> to vector<16x16xf32>
    %1765 = vector.broadcast %1762 : f32 to vector<16x16xf32>
    %1766 = arith.mulf %1765, %1764 : vector<16x16xf32>
    %1767 = arith.addf %1761, %1766 : vector<16x16xf32>
    %c63_1091 = arith.constant 63 : index
    %1768 = memref.load %arg7[%c63_1091] : memref<108xf32, #tpu.memory_space<smem>>
    %c1_1092 = arith.constant 1 : index
    %c0_1093 = arith.constant 0 : index
    %c0_1094 = arith.constant 0 : index
    %1769 = vector.load %arg12[%c1_1092, %c0_1093, %c0_1094] : memref<3x18x18xf32, #tpu.memory_space<vmem>>, vector<1x16x16xf32>
    %1770 = vector.shape_cast %1769 : vector<1x16x16xf32> to vector<16x16xf32>
    %1771 = vector.broadcast %1768 : f32 to vector<16x16xf32>
    %1772 = arith.mulf %1771, %1770 : vector<16x16xf32>
    %1773 = arith.addf %1767, %1772 : vector<16x16xf32>
    %c64_1095 = arith.constant 64 : index
    %1774 = memref.load %arg7[%c64_1095] : memref<108xf32, #tpu.memory_space<smem>>
    %c1_1096 = arith.constant 1 : index
    %c0_1097 = arith.constant 0 : index
    %c1_1098 = arith.constant 1 : index
    %1775 = vector.load %arg12[%c1_1096, %c0_1097, %c1_1098] : memref<3x18x18xf32, #tpu.memory_space<vmem>>, vector<1x16x16xf32>
    %1776 = vector.shape_cast %1775 : vector<1x16x16xf32> to vector<16x16xf32>
    %1777 = vector.broadcast %1774 : f32 to vector<16x16xf32>
    %1778 = arith.mulf %1777, %1776 : vector<16x16xf32>
    %1779 = arith.addf %1773, %1778 : vector<16x16xf32>
    %c65_1099 = arith.constant 65 : index
    %1780 = memref.load %arg7[%c65_1099] : memref<108xf32, #tpu.memory_space<smem>>
    %c1_1100 = arith.constant 1 : index
    %c0_1101 = arith.constant 0 : index
    %c2_1102 = arith.constant 2 : index
    %1781 = vector.load %arg12[%c1_1100, %c0_1101, %c2_1102] : memref<3x18x18xf32, #tpu.memory_space<vmem>>, vector<1x16x16xf32>
    %1782 = vector.shape_cast %1781 : vector<1x16x16xf32> to vector<16x16xf32>
    %1783 = vector.broadcast %1780 : f32 to vector<16x16xf32>
    %1784 = arith.mulf %1783, %1782 : vector<16x16xf32>
    %1785 = arith.addf %1779, %1784 : vector<16x16xf32>
    %c66_1103 = arith.constant 66 : index
    %1786 = memref.load %arg7[%c66_1103] : memref<108xf32, #tpu.memory_space<smem>>
    %c1_1104 = arith.constant 1 : index
    %c1_1105 = arith.constant 1 : index
    %c0_1106 = arith.constant 0 : index
    %1787 = vector.load %arg12[%c1_1104, %c1_1105, %c0_1106] : memref<3x18x18xf32, #tpu.memory_space<vmem>>, vector<1x16x16xf32>
    %1788 = vector.shape_cast %1787 : vector<1x16x16xf32> to vector<16x16xf32>
    %1789 = vector.broadcast %1786 : f32 to vector<16x16xf32>
    %1790 = arith.mulf %1789, %1788 : vector<16x16xf32>
    %1791 = arith.addf %1785, %1790 : vector<16x16xf32>
    %c67_1107 = arith.constant 67 : index
    %1792 = memref.load %arg7[%c67_1107] : memref<108xf32, #tpu.memory_space<smem>>
    %c1_1108 = arith.constant 1 : index
    %c1_1109 = arith.constant 1 : index
    %c1_1110 = arith.constant 1 : index
    %1793 = vector.load %arg12[%c1_1108, %c1_1109, %c1_1110] : memref<3x18x18xf32, #tpu.memory_space<vmem>>, vector<1x16x16xf32>
    %1794 = vector.shape_cast %1793 : vector<1x16x16xf32> to vector<16x16xf32>
    %1795 = vector.broadcast %1792 : f32 to vector<16x16xf32>
    %1796 = arith.mulf %1795, %1794 : vector<16x16xf32>
    %1797 = arith.addf %1791, %1796 : vector<16x16xf32>
    %c68_1111 = arith.constant 68 : index
    %1798 = memref.load %arg7[%c68_1111] : memref<108xf32, #tpu.memory_space<smem>>
    %c1_1112 = arith.constant 1 : index
    %c1_1113 = arith.constant 1 : index
    %c2_1114 = arith.constant 2 : index
    %1799 = vector.load %arg12[%c1_1112, %c1_1113, %c2_1114] : memref<3x18x18xf32, #tpu.memory_space<vmem>>, vector<1x16x16xf32>
    %1800 = vector.shape_cast %1799 : vector<1x16x16xf32> to vector<16x16xf32>
    %1801 = vector.broadcast %1798 : f32 to vector<16x16xf32>
    %1802 = arith.mulf %1801, %1800 : vector<16x16xf32>
    %1803 = arith.addf %1797, %1802 : vector<16x16xf32>
    %c69_1115 = arith.constant 69 : index
    %1804 = memref.load %arg7[%c69_1115] : memref<108xf32, #tpu.memory_space<smem>>
    %c1_1116 = arith.constant 1 : index
    %c2_1117 = arith.constant 2 : index
    %c0_1118 = arith.constant 0 : index
    %1805 = vector.load %arg12[%c1_1116, %c2_1117, %c0_1118] : memref<3x18x18xf32, #tpu.memory_space<vmem>>, vector<1x16x16xf32>
    %1806 = vector.shape_cast %1805 : vector<1x16x16xf32> to vector<16x16xf32>
    %1807 = vector.broadcast %1804 : f32 to vector<16x16xf32>
    %1808 = arith.mulf %1807, %1806 : vector<16x16xf32>
    %1809 = arith.addf %1803, %1808 : vector<16x16xf32>
    %c70_1119 = arith.constant 70 : index
    %1810 = memref.load %arg7[%c70_1119] : memref<108xf32, #tpu.memory_space<smem>>
    %c1_1120 = arith.constant 1 : index
    %c2_1121 = arith.constant 2 : index
    %c1_1122 = arith.constant 1 : index
    %1811 = vector.load %arg12[%c1_1120, %c2_1121, %c1_1122] : memref<3x18x18xf32, #tpu.memory_space<vmem>>, vector<1x16x16xf32>
    %1812 = vector.shape_cast %1811 : vector<1x16x16xf32> to vector<16x16xf32>
    %1813 = vector.broadcast %1810 : f32 to vector<16x16xf32>
    %1814 = arith.mulf %1813, %1812 : vector<16x16xf32>
    %1815 = arith.addf %1809, %1814 : vector<16x16xf32>
    %c71_1123 = arith.constant 71 : index
    %1816 = memref.load %arg7[%c71_1123] : memref<108xf32, #tpu.memory_space<smem>>
    %c1_1124 = arith.constant 1 : index
    %c2_1125 = arith.constant 2 : index
    %c2_1126 = arith.constant 2 : index
    %1817 = vector.load %arg12[%c1_1124, %c2_1125, %c2_1126] : memref<3x18x18xf32, #tpu.memory_space<vmem>>, vector<1x16x16xf32>
    %1818 = vector.shape_cast %1817 : vector<1x16x16xf32> to vector<16x16xf32>
    %1819 = vector.broadcast %1816 : f32 to vector<16x16xf32>
    %1820 = arith.mulf %1819, %1818 : vector<16x16xf32>
    %1821 = arith.addf %1815, %1820 : vector<16x16xf32>
    %c72_1127 = arith.constant 72 : index
    %1822 = memref.load %arg7[%c72_1127] : memref<108xf32, #tpu.memory_space<smem>>
    %c2_1128 = arith.constant 2 : index
    %c0_1129 = arith.constant 0 : index
    %c0_1130 = arith.constant 0 : index
    %1823 = vector.load %arg12[%c2_1128, %c0_1129, %c0_1130] : memref<3x18x18xf32, #tpu.memory_space<vmem>>, vector<1x16x16xf32>
    %1824 = vector.shape_cast %1823 : vector<1x16x16xf32> to vector<16x16xf32>
    %1825 = vector.broadcast %1822 : f32 to vector<16x16xf32>
    %1826 = arith.mulf %1825, %1824 : vector<16x16xf32>
    %1827 = arith.addf %1821, %1826 : vector<16x16xf32>
    %c73_1131 = arith.constant 73 : index
    %1828 = memref.load %arg7[%c73_1131] : memref<108xf32, #tpu.memory_space<smem>>
    %c2_1132 = arith.constant 2 : index
    %c0_1133 = arith.constant 0 : index
    %c1_1134 = arith.constant 1 : index
    %1829 = vector.load %arg12[%c2_1132, %c0_1133, %c1_1134] : memref<3x18x18xf32, #tpu.memory_space<vmem>>, vector<1x16x16xf32>
    %1830 = vector.shape_cast %1829 : vector<1x16x16xf32> to vector<16x16xf32>
    %1831 = vector.broadcast %1828 : f32 to vector<16x16xf32>
    %1832 = arith.mulf %1831, %1830 : vector<16x16xf32>
    %1833 = arith.addf %1827, %1832 : vector<16x16xf32>
    %c74_1135 = arith.constant 74 : index
    %1834 = memref.load %arg7[%c74_1135] : memref<108xf32, #tpu.memory_space<smem>>
    %c2_1136 = arith.constant 2 : index
    %c0_1137 = arith.constant 0 : index
    %c2_1138 = arith.constant 2 : index
    %1835 = vector.load %arg12[%c2_1136, %c0_1137, %c2_1138] : memref<3x18x18xf32, #tpu.memory_space<vmem>>, vector<1x16x16xf32>
    %1836 = vector.shape_cast %1835 : vector<1x16x16xf32> to vector<16x16xf32>
    %1837 = vector.broadcast %1834 : f32 to vector<16x16xf32>
    %1838 = arith.mulf %1837, %1836 : vector<16x16xf32>
    %1839 = arith.addf %1833, %1838 : vector<16x16xf32>
    %c75_1139 = arith.constant 75 : index
    %1840 = memref.load %arg7[%c75_1139] : memref<108xf32, #tpu.memory_space<smem>>
    %c2_1140 = arith.constant 2 : index
    %c1_1141 = arith.constant 1 : index
    %c0_1142 = arith.constant 0 : index
    %1841 = vector.load %arg12[%c2_1140, %c1_1141, %c0_1142] : memref<3x18x18xf32, #tpu.memory_space<vmem>>, vector<1x16x16xf32>
    %1842 = vector.shape_cast %1841 : vector<1x16x16xf32> to vector<16x16xf32>
    %1843 = vector.broadcast %1840 : f32 to vector<16x16xf32>
    %1844 = arith.mulf %1843, %1842 : vector<16x16xf32>
    %1845 = arith.addf %1839, %1844 : vector<16x16xf32>
    %c76_1143 = arith.constant 76 : index
    %1846 = memref.load %arg7[%c76_1143] : memref<108xf32, #tpu.memory_space<smem>>
    %c2_1144 = arith.constant 2 : index
    %c1_1145 = arith.constant 1 : index
    %c1_1146 = arith.constant 1 : index
    %1847 = vector.load %arg12[%c2_1144, %c1_1145, %c1_1146] : memref<3x18x18xf32, #tpu.memory_space<vmem>>, vector<1x16x16xf32>
    %1848 = vector.shape_cast %1847 : vector<1x16x16xf32> to vector<16x16xf32>
    %1849 = vector.broadcast %1846 : f32 to vector<16x16xf32>
    %1850 = arith.mulf %1849, %1848 : vector<16x16xf32>
    %1851 = arith.addf %1845, %1850 : vector<16x16xf32>
    %c77_1147 = arith.constant 77 : index
    %1852 = memref.load %arg7[%c77_1147] : memref<108xf32, #tpu.memory_space<smem>>
    %c2_1148 = arith.constant 2 : index
    %c1_1149 = arith.constant 1 : index
    %c2_1150 = arith.constant 2 : index
    %1853 = vector.load %arg12[%c2_1148, %c1_1149, %c2_1150] : memref<3x18x18xf32, #tpu.memory_space<vmem>>, vector<1x16x16xf32>
    %1854 = vector.shape_cast %1853 : vector<1x16x16xf32> to vector<16x16xf32>
    %1855 = vector.broadcast %1852 : f32 to vector<16x16xf32>
    %1856 = arith.mulf %1855, %1854 : vector<16x16xf32>
    %1857 = arith.addf %1851, %1856 : vector<16x16xf32>
    %c78_1151 = arith.constant 78 : index
    %1858 = memref.load %arg7[%c78_1151] : memref<108xf32, #tpu.memory_space<smem>>
    %c2_1152 = arith.constant 2 : index
    %c2_1153 = arith.constant 2 : index
    %c0_1154 = arith.constant 0 : index
    %1859 = vector.load %arg12[%c2_1152, %c2_1153, %c0_1154] : memref<3x18x18xf32, #tpu.memory_space<vmem>>, vector<1x16x16xf32>
    %1860 = vector.shape_cast %1859 : vector<1x16x16xf32> to vector<16x16xf32>
    %1861 = vector.broadcast %1858 : f32 to vector<16x16xf32>
    %1862 = arith.mulf %1861, %1860 : vector<16x16xf32>
    %1863 = arith.addf %1857, %1862 : vector<16x16xf32>
    %c79_1155 = arith.constant 79 : index
    %1864 = memref.load %arg7[%c79_1155] : memref<108xf32, #tpu.memory_space<smem>>
    %c2_1156 = arith.constant 2 : index
    %c2_1157 = arith.constant 2 : index
    %c1_1158 = arith.constant 1 : index
    %1865 = vector.load %arg12[%c2_1156, %c2_1157, %c1_1158] : memref<3x18x18xf32, #tpu.memory_space<vmem>>, vector<1x16x16xf32>
    %1866 = vector.shape_cast %1865 : vector<1x16x16xf32> to vector<16x16xf32>
    %1867 = vector.broadcast %1864 : f32 to vector<16x16xf32>
    %1868 = arith.mulf %1867, %1866 : vector<16x16xf32>
    %1869 = arith.addf %1863, %1868 : vector<16x16xf32>
    %c80_1159 = arith.constant 80 : index
    %1870 = memref.load %arg7[%c80_1159] : memref<108xf32, #tpu.memory_space<smem>>
    %c2_1160 = arith.constant 2 : index
    %c2_1161 = arith.constant 2 : index
    %c2_1162 = arith.constant 2 : index
    %1871 = vector.load %arg12[%c2_1160, %c2_1161, %c2_1162] : memref<3x18x18xf32, #tpu.memory_space<vmem>>, vector<1x16x16xf32>
    %1872 = vector.shape_cast %1871 : vector<1x16x16xf32> to vector<16x16xf32>
    %1873 = vector.broadcast %1870 : f32 to vector<16x16xf32>
    %1874 = arith.mulf %1873, %1872 : vector<16x16xf32>
    %1875 = arith.addf %1869, %1874 : vector<16x16xf32>
    %1876 = arith.negf %1875 : vector<16x16xf32>
    %1877 = math.exp %1876 : vector<16x16xf32>
    %cst_1163 = arith.constant 1.000000e+00 : f32
    %1878 = vector.broadcast %cst_1163 : f32 to vector<16x16xf32>
    %1879 = arith.addf %1878, %1877 : vector<16x16xf32>
    %1880 = arith.divf %1878, %1879 : vector<16x16xf32>
    %1881 = arith.mulf %1709, %1880 : vector<16x16xf32>
    %c0_1164 = arith.constant 0 : index
    %c2_1165 = arith.constant 2 : index
    %c0_1166 = arith.constant 0 : index
    %c0_1167 = arith.constant 0 : index
    %1882 = vector.load %arg1[%c0_1164, %c2_1165, %c0_1166, %c0_1167] : memref<1x4x16x16xf32, #tpu.memory_space<vmem>>, vector<1x1x16x16xf32>
    %1883 = vector.shape_cast %1882 : vector<1x1x16x16xf32> to vector<16x16xf32>
    %1884 = arith.addf %1881, %1883 : vector<16x16xf32>
    %c0_1168 = arith.constant 0 : index
    %c2_1169 = arith.constant 2 : index
    %c0_1170 = arith.constant 0 : index
    %c0_1171 = arith.constant 0 : index
    %1885 = vector.load %arg9[%c0_1168, %c2_1169, %c0_1170, %c0_1171] : memref<1x4x16x16xf32, #tpu.memory_space<vmem>>, vector<1x1x16x16xf32>
    %1886 = vector.shape_cast %1885 : vector<1x1x16x16xf32> to vector<16x16xf32>
    %1887 = vector.shape_cast %1884 : vector<16x16xf32> to vector<1x1x16x16xf32>
    tpu.vector_store %arg9[%c0_1168, %c2_1169, %c0_1170, %c0_1171], %1887 {strides = array<i32>} : memref<1x4x16x16xf32, #tpu.memory_space<vmem>>, vector<1x1x16x16xf32>,
    %cst_1172 = arith.constant 0.000000e+00 : f32
    %1888 = vector.broadcast %cst_1172 : f32 to vector<16x16xf32>
    %c3_1173 = arith.constant 3 : index
    %1889 = memref.load %arg4[%c3_1173] : memref<4xf32, #tpu.memory_space<smem>>
    %1890 = vector.broadcast %1889 : f32 to vector<16x16xf32>
    %1891 = arith.addf %1888, %1890 : vector<16x16xf32>
    %c108 = arith.constant 108 : index
    %1892 = memref.load %arg3[%c108] : memref<144xf32, #tpu.memory_space<smem>>
    %c0_1174 = arith.constant 0 : index
    %c0_1175 = arith.constant 0 : index
    %c0_1176 = arith.constant 0 : index
    %1893 = vector.load %arg11[%c0_1174, %c0_1175, %c0_1176] : memref<4x18x18xf32, #tpu.memory_space<vmem>>, vector<1x16x16xf32>
    %1894 = vector.shape_cast %1893 : vector<1x16x16xf32> to vector<16x16xf32>
    %1895 = vector.broadcast %1892 : f32 to vector<16x16xf32>
    %1896 = arith.mulf %1895, %1894 : vector<16x16xf32>
    %1897 = arith.addf %1891, %1896 : vector<16x16xf32>
    %c109 = arith.constant 109 : index
    %1898 = memref.load %arg3[%c109] : memref<144xf32, #tpu.memory_space<smem>>
    %c0_1177 = arith.constant 0 : index
    %c0_1178 = arith.constant 0 : index
    %c1_1179 = arith.constant 1 : index
    %1899 = vector.load %arg11[%c0_1177, %c0_1178, %c1_1179] : memref<4x18x18xf32, #tpu.memory_space<vmem>>, vector<1x16x16xf32>
    %1900 = vector.shape_cast %1899 : vector<1x16x16xf32> to vector<16x16xf32>
    %1901 = vector.broadcast %1898 : f32 to vector<16x16xf32>
    %1902 = arith.mulf %1901, %1900 : vector<16x16xf32>
    %1903 = arith.addf %1897, %1902 : vector<16x16xf32>
    %c110 = arith.constant 110 : index
    %1904 = memref.load %arg3[%c110] : memref<144xf32, #tpu.memory_space<smem>>
    %c0_1180 = arith.constant 0 : index
    %c0_1181 = arith.constant 0 : index
    %c2_1182 = arith.constant 2 : index
    %1905 = vector.load %arg11[%c0_1180, %c0_1181, %c2_1182] : memref<4x18x18xf32, #tpu.memory_space<vmem>>, vector<1x16x16xf32>
    %1906 = vector.shape_cast %1905 : vector<1x16x16xf32> to vector<16x16xf32>
    %1907 = vector.broadcast %1904 : f32 to vector<16x16xf32>
    %1908 = arith.mulf %1907, %1906 : vector<16x16xf32>
    %1909 = arith.addf %1903, %1908 : vector<16x16xf32>
    %c111 = arith.constant 111 : index
    %1910 = memref.load %arg3[%c111] : memref<144xf32, #tpu.memory_space<smem>>
    %c0_1183 = arith.constant 0 : index
    %c1_1184 = arith.constant 1 : index
    %c0_1185 = arith.constant 0 : index
    %1911 = vector.load %arg11[%c0_1183, %c1_1184, %c0_1185] : memref<4x18x18xf32, #tpu.memory_space<vmem>>, vector<1x16x16xf32>
    %1912 = vector.shape_cast %1911 : vector<1x16x16xf32> to vector<16x16xf32>
    %1913 = vector.broadcast %1910 : f32 to vector<16x16xf32>
    %1914 = arith.mulf %1913, %1912 : vector<16x16xf32>
    %1915 = arith.addf %1909, %1914 : vector<16x16xf32>
    %c112 = arith.constant 112 : index
    %1916 = memref.load %arg3[%c112] : memref<144xf32, #tpu.memory_space<smem>>
    %c0_1186 = arith.constant 0 : index
    %c1_1187 = arith.constant 1 : index
    %c1_1188 = arith.constant 1 : index
    %1917 = vector.load %arg11[%c0_1186, %c1_1187, %c1_1188] : memref<4x18x18xf32, #tpu.memory_space<vmem>>, vector<1x16x16xf32>
    %1918 = vector.shape_cast %1917 : vector<1x16x16xf32> to vector<16x16xf32>
    %1919 = vector.broadcast %1916 : f32 to vector<16x16xf32>
    %1920 = arith.mulf %1919, %1918 : vector<16x16xf32>
    %1921 = arith.addf %1915, %1920 : vector<16x16xf32>
    %c113 = arith.constant 113 : index
    %1922 = memref.load %arg3[%c113] : memref<144xf32, #tpu.memory_space<smem>>
    %c0_1189 = arith.constant 0 : index
    %c1_1190 = arith.constant 1 : index
    %c2_1191 = arith.constant 2 : index
    %1923 = vector.load %arg11[%c0_1189, %c1_1190, %c2_1191] : memref<4x18x18xf32, #tpu.memory_space<vmem>>, vector<1x16x16xf32>
    %1924 = vector.shape_cast %1923 : vector<1x16x16xf32> to vector<16x16xf32>
    %1925 = vector.broadcast %1922 : f32 to vector<16x16xf32>
    %1926 = arith.mulf %1925, %1924 : vector<16x16xf32>
    %1927 = arith.addf %1921, %1926 : vector<16x16xf32>
    %c114 = arith.constant 114 : index
    %1928 = memref.load %arg3[%c114] : memref<144xf32, #tpu.memory_space<smem>>
    %c0_1192 = arith.constant 0 : index
    %c2_1193 = arith.constant 2 : index
    %c0_1194 = arith.constant 0 : index
    %1929 = vector.load %arg11[%c0_1192, %c2_1193, %c0_1194] : memref<4x18x18xf32, #tpu.memory_space<vmem>>, vector<1x16x16xf32>
    %1930 = vector.shape_cast %1929 : vector<1x16x16xf32> to vector<16x16xf32>
    %1931 = vector.broadcast %1928 : f32 to vector<16x16xf32>
    %1932 = arith.mulf %1931, %1930 : vector<16x16xf32>
    %1933 = arith.addf %1927, %1932 : vector<16x16xf32>
    %c115 = arith.constant 115 : index
    %1934 = memref.load %arg3[%c115] : memref<144xf32, #tpu.memory_space<smem>>
    %c0_1195 = arith.constant 0 : index
    %c2_1196 = arith.constant 2 : index
    %c1_1197 = arith.constant 1 : index
    %1935 = vector.load %arg11[%c0_1195, %c2_1196, %c1_1197] : memref<4x18x18xf32, #tpu.memory_space<vmem>>, vector<1x16x16xf32>
    %1936 = vector.shape_cast %1935 : vector<1x16x16xf32> to vector<16x16xf32>
    %1937 = vector.broadcast %1934 : f32 to vector<16x16xf32>
    %1938 = arith.mulf %1937, %1936 : vector<16x16xf32>
    %1939 = arith.addf %1933, %1938 : vector<16x16xf32>
    %c116 = arith.constant 116 : index
    %1940 = memref.load %arg3[%c116] : memref<144xf32, #tpu.memory_space<smem>>
    %c0_1198 = arith.constant 0 : index
    %c2_1199 = arith.constant 2 : index
    %c2_1200 = arith.constant 2 : index
    %1941 = vector.load %arg11[%c0_1198, %c2_1199, %c2_1200] : memref<4x18x18xf32, #tpu.memory_space<vmem>>, vector<1x16x16xf32>
    %1942 = vector.shape_cast %1941 : vector<1x16x16xf32> to vector<16x16xf32>
    %1943 = vector.broadcast %1940 : f32 to vector<16x16xf32>
    %1944 = arith.mulf %1943, %1942 : vector<16x16xf32>
    %1945 = arith.addf %1939, %1944 : vector<16x16xf32>
    %c117 = arith.constant 117 : index
    %1946 = memref.load %arg3[%c117] : memref<144xf32, #tpu.memory_space<smem>>
    %c1_1201 = arith.constant 1 : index
    %c0_1202 = arith.constant 0 : index
    %c0_1203 = arith.constant 0 : index
    %1947 = vector.load %arg11[%c1_1201, %c0_1202, %c0_1203] : memref<4x18x18xf32, #tpu.memory_space<vmem>>, vector<1x16x16xf32>
    %1948 = vector.shape_cast %1947 : vector<1x16x16xf32> to vector<16x16xf32>
    %1949 = vector.broadcast %1946 : f32 to vector<16x16xf32>
    %1950 = arith.mulf %1949, %1948 : vector<16x16xf32>
    %1951 = arith.addf %1945, %1950 : vector<16x16xf32>
    %c118 = arith.constant 118 : index
    %1952 = memref.load %arg3[%c118] : memref<144xf32, #tpu.memory_space<smem>>
    %c1_1204 = arith.constant 1 : index
    %c0_1205 = arith.constant 0 : index
    %c1_1206 = arith.constant 1 : index
    %1953 = vector.load %arg11[%c1_1204, %c0_1205, %c1_1206] : memref<4x18x18xf32, #tpu.memory_space<vmem>>, vector<1x16x16xf32>
    %1954 = vector.shape_cast %1953 : vector<1x16x16xf32> to vector<16x16xf32>
    %1955 = vector.broadcast %1952 : f32 to vector<16x16xf32>
    %1956 = arith.mulf %1955, %1954 : vector<16x16xf32>
    %1957 = arith.addf %1951, %1956 : vector<16x16xf32>
    %c119 = arith.constant 119 : index
    %1958 = memref.load %arg3[%c119] : memref<144xf32, #tpu.memory_space<smem>>
    %c1_1207 = arith.constant 1 : index
    %c0_1208 = arith.constant 0 : index
    %c2_1209 = arith.constant 2 : index
    %1959 = vector.load %arg11[%c1_1207, %c0_1208, %c2_1209] : memref<4x18x18xf32, #tpu.memory_space<vmem>>, vector<1x16x16xf32>
    %1960 = vector.shape_cast %1959 : vector<1x16x16xf32> to vector<16x16xf32>
    %1961 = vector.broadcast %1958 : f32 to vector<16x16xf32>
    %1962 = arith.mulf %1961, %1960 : vector<16x16xf32>
    %1963 = arith.addf %1957, %1962 : vector<16x16xf32>
    %c120 = arith.constant 120 : index
    %1964 = memref.load %arg3[%c120] : memref<144xf32, #tpu.memory_space<smem>>
    %c1_1210 = arith.constant 1 : index
    %c1_1211 = arith.constant 1 : index
    %c0_1212 = arith.constant 0 : index
    %1965 = vector.load %arg11[%c1_1210, %c1_1211, %c0_1212] : memref<4x18x18xf32, #tpu.memory_space<vmem>>, vector<1x16x16xf32>
    %1966 = vector.shape_cast %1965 : vector<1x16x16xf32> to vector<16x16xf32>
    %1967 = vector.broadcast %1964 : f32 to vector<16x16xf32>
    %1968 = arith.mulf %1967, %1966 : vector<16x16xf32>
    %1969 = arith.addf %1963, %1968 : vector<16x16xf32>
    %c121 = arith.constant 121 : index
    %1970 = memref.load %arg3[%c121] : memref<144xf32, #tpu.memory_space<smem>>
    %c1_1213 = arith.constant 1 : index
    %c1_1214 = arith.constant 1 : index
    %c1_1215 = arith.constant 1 : index
    %1971 = vector.load %arg11[%c1_1213, %c1_1214, %c1_1215] : memref<4x18x18xf32, #tpu.memory_space<vmem>>, vector<1x16x16xf32>
    %1972 = vector.shape_cast %1971 : vector<1x16x16xf32> to vector<16x16xf32>
    %1973 = vector.broadcast %1970 : f32 to vector<16x16xf32>
    %1974 = arith.mulf %1973, %1972 : vector<16x16xf32>
    %1975 = arith.addf %1969, %1974 : vector<16x16xf32>
    %c122 = arith.constant 122 : index
    %1976 = memref.load %arg3[%c122] : memref<144xf32, #tpu.memory_space<smem>>
    %c1_1216 = arith.constant 1 : index
    %c1_1217 = arith.constant 1 : index
    %c2_1218 = arith.constant 2 : index
    %1977 = vector.load %arg11[%c1_1216, %c1_1217, %c2_1218] : memref<4x18x18xf32, #tpu.memory_space<vmem>>, vector<1x16x16xf32>
    %1978 = vector.shape_cast %1977 : vector<1x16x16xf32> to vector<16x16xf32>
    %1979 = vector.broadcast %1976 : f32 to vector<16x16xf32>
    %1980 = arith.mulf %1979, %1978 : vector<16x16xf32>
    %1981 = arith.addf %1975, %1980 : vector<16x16xf32>
    %c123 = arith.constant 123 : index
    %1982 = memref.load %arg3[%c123] : memref<144xf32, #tpu.memory_space<smem>>
    %c1_1219 = arith.constant 1 : index
    %c2_1220 = arith.constant 2 : index
    %c0_1221 = arith.constant 0 : index
    %1983 = vector.load %arg11[%c1_1219, %c2_1220, %c0_1221] : memref<4x18x18xf32, #tpu.memory_space<vmem>>, vector<1x16x16xf32>
    %1984 = vector.shape_cast %1983 : vector<1x16x16xf32> to vector<16x16xf32>
    %1985 = vector.broadcast %1982 : f32 to vector<16x16xf32>
    %1986 = arith.mulf %1985, %1984 : vector<16x16xf32>
    %1987 = arith.addf %1981, %1986 : vector<16x16xf32>
    %c124 = arith.constant 124 : index
    %1988 = memref.load %arg3[%c124] : memref<144xf32, #tpu.memory_space<smem>>
    %c1_1222 = arith.constant 1 : index
    %c2_1223 = arith.constant 2 : index
    %c1_1224 = arith.constant 1 : index
    %1989 = vector.load %arg11[%c1_1222, %c2_1223, %c1_1224] : memref<4x18x18xf32, #tpu.memory_space<vmem>>, vector<1x16x16xf32>
    %1990 = vector.shape_cast %1989 : vector<1x16x16xf32> to vector<16x16xf32>
    %1991 = vector.broadcast %1988 : f32 to vector<16x16xf32>
    %1992 = arith.mulf %1991, %1990 : vector<16x16xf32>
    %1993 = arith.addf %1987, %1992 : vector<16x16xf32>
    %c125 = arith.constant 125 : index
    %1994 = memref.load %arg3[%c125] : memref<144xf32, #tpu.memory_space<smem>>
    %c1_1225 = arith.constant 1 : index
    %c2_1226 = arith.constant 2 : index
    %c2_1227 = arith.constant 2 : index
    %1995 = vector.load %arg11[%c1_1225, %c2_1226, %c2_1227] : memref<4x18x18xf32, #tpu.memory_space<vmem>>, vector<1x16x16xf32>
    %1996 = vector.shape_cast %1995 : vector<1x16x16xf32> to vector<16x16xf32>
    %1997 = vector.broadcast %1994 : f32 to vector<16x16xf32>
    %1998 = arith.mulf %1997, %1996 : vector<16x16xf32>
    %1999 = arith.addf %1993, %1998 : vector<16x16xf32>
    %c126 = arith.constant 126 : index
    %2000 = memref.load %arg3[%c126] : memref<144xf32, #tpu.memory_space<smem>>
    %c2_1228 = arith.constant 2 : index
    %c0_1229 = arith.constant 0 : index
    %c0_1230 = arith.constant 0 : index
    %2001 = vector.load %arg11[%c2_1228, %c0_1229, %c0_1230] : memref<4x18x18xf32, #tpu.memory_space<vmem>>, vector<1x16x16xf32>
    %2002 = vector.shape_cast %2001 : vector<1x16x16xf32> to vector<16x16xf32>
    %2003 = vector.broadcast %2000 : f32 to vector<16x16xf32>
    %2004 = arith.mulf %2003, %2002 : vector<16x16xf32>
    %2005 = arith.addf %1999, %2004 : vector<16x16xf32>
    %c127 = arith.constant 127 : index
    %2006 = memref.load %arg3[%c127] : memref<144xf32, #tpu.memory_space<smem>>
    %c2_1231 = arith.constant 2 : index
    %c0_1232 = arith.constant 0 : index
    %c1_1233 = arith.constant 1 : index
    %2007 = vector.load %arg11[%c2_1231, %c0_1232, %c1_1233] : memref<4x18x18xf32, #tpu.memory_space<vmem>>, vector<1x16x16xf32>
    %2008 = vector.shape_cast %2007 : vector<1x16x16xf32> to vector<16x16xf32>
    %2009 = vector.broadcast %2006 : f32 to vector<16x16xf32>
    %2010 = arith.mulf %2009, %2008 : vector<16x16xf32>
    %2011 = arith.addf %2005, %2010 : vector<16x16xf32>
    %c128 = arith.constant 128 : index
    %2012 = memref.load %arg3[%c128] : memref<144xf32, #tpu.memory_space<smem>>
    %c2_1234 = arith.constant 2 : index
    %c0_1235 = arith.constant 0 : index
    %c2_1236 = arith.constant 2 : index
    %2013 = vector.load %arg11[%c2_1234, %c0_1235, %c2_1236] : memref<4x18x18xf32, #tpu.memory_space<vmem>>, vector<1x16x16xf32>
    %2014 = vector.shape_cast %2013 : vector<1x16x16xf32> to vector<16x16xf32>
    %2015 = vector.broadcast %2012 : f32 to vector<16x16xf32>
    %2016 = arith.mulf %2015, %2014 : vector<16x16xf32>
    %2017 = arith.addf %2011, %2016 : vector<16x16xf32>
    %c129 = arith.constant 129 : index
    %2018 = memref.load %arg3[%c129] : memref<144xf32, #tpu.memory_space<smem>>
    %c2_1237 = arith.constant 2 : index
    %c1_1238 = arith.constant 1 : index
    %c0_1239 = arith.constant 0 : index
    %2019 = vector.load %arg11[%c2_1237, %c1_1238, %c0_1239] : memref<4x18x18xf32, #tpu.memory_space<vmem>>, vector<1x16x16xf32>
    %2020 = vector.shape_cast %2019 : vector<1x16x16xf32> to vector<16x16xf32>
    %2021 = vector.broadcast %2018 : f32 to vector<16x16xf32>
    %2022 = arith.mulf %2021, %2020 : vector<16x16xf32>
    %2023 = arith.addf %2017, %2022 : vector<16x16xf32>
    %c130 = arith.constant 130 : index
    %2024 = memref.load %arg3[%c130] : memref<144xf32, #tpu.memory_space<smem>>
    %c2_1240 = arith.constant 2 : index
    %c1_1241 = arith.constant 1 : index
    %c1_1242 = arith.constant 1 : index
    %2025 = vector.load %arg11[%c2_1240, %c1_1241, %c1_1242] : memref<4x18x18xf32, #tpu.memory_space<vmem>>, vector<1x16x16xf32>
    %2026 = vector.shape_cast %2025 : vector<1x16x16xf32> to vector<16x16xf32>
    %2027 = vector.broadcast %2024 : f32 to vector<16x16xf32>
    %2028 = arith.mulf %2027, %2026 : vector<16x16xf32>
    %2029 = arith.addf %2023, %2028 : vector<16x16xf32>
    %c131 = arith.constant 131 : index
    %2030 = memref.load %arg3[%c131] : memref<144xf32, #tpu.memory_space<smem>>
    %c2_1243 = arith.constant 2 : index
    %c1_1244 = arith.constant 1 : index
    %c2_1245 = arith.constant 2 : index
    %2031 = vector.load %arg11[%c2_1243, %c1_1244, %c2_1245] : memref<4x18x18xf32, #tpu.memory_space<vmem>>, vector<1x16x16xf32>
    %2032 = vector.shape_cast %2031 : vector<1x16x16xf32> to vector<16x16xf32>
    %2033 = vector.broadcast %2030 : f32 to vector<16x16xf32>
    %2034 = arith.mulf %2033, %2032 : vector<16x16xf32>
    %2035 = arith.addf %2029, %2034 : vector<16x16xf32>
    %c132 = arith.constant 132 : index
    %2036 = memref.load %arg3[%c132] : memref<144xf32, #tpu.memory_space<smem>>
    %c2_1246 = arith.constant 2 : index
    %c2_1247 = arith.constant 2 : index
    %c0_1248 = arith.constant 0 : index
    %2037 = vector.load %arg11[%c2_1246, %c2_1247, %c0_1248] : memref<4x18x18xf32, #tpu.memory_space<vmem>>, vector<1x16x16xf32>
    %2038 = vector.shape_cast %2037 : vector<1x16x16xf32> to vector<16x16xf32>
    %2039 = vector.broadcast %2036 : f32 to vector<16x16xf32>
    %2040 = arith.mulf %2039, %2038 : vector<16x16xf32>
    %2041 = arith.addf %2035, %2040 : vector<16x16xf32>
    %c133 = arith.constant 133 : index
    %2042 = memref.load %arg3[%c133] : memref<144xf32, #tpu.memory_space<smem>>
    %c2_1249 = arith.constant 2 : index
    %c2_1250 = arith.constant 2 : index
    %c1_1251 = arith.constant 1 : index
    %2043 = vector.load %arg11[%c2_1249, %c2_1250, %c1_1251] : memref<4x18x18xf32, #tpu.memory_space<vmem>>, vector<1x16x16xf32>
    %2044 = vector.shape_cast %2043 : vector<1x16x16xf32> to vector<16x16xf32>
    %2045 = vector.broadcast %2042 : f32 to vector<16x16xf32>
    %2046 = arith.mulf %2045, %2044 : vector<16x16xf32>
    %2047 = arith.addf %2041, %2046 : vector<16x16xf32>
    %c134 = arith.constant 134 : index
    %2048 = memref.load %arg3[%c134] : memref<144xf32, #tpu.memory_space<smem>>
    %c2_1252 = arith.constant 2 : index
    %c2_1253 = arith.constant 2 : index
    %c2_1254 = arith.constant 2 : index
    %2049 = vector.load %arg11[%c2_1252, %c2_1253, %c2_1254] : memref<4x18x18xf32, #tpu.memory_space<vmem>>, vector<1x16x16xf32>
    %2050 = vector.shape_cast %2049 : vector<1x16x16xf32> to vector<16x16xf32>
    %2051 = vector.broadcast %2048 : f32 to vector<16x16xf32>
    %2052 = arith.mulf %2051, %2050 : vector<16x16xf32>
    %2053 = arith.addf %2047, %2052 : vector<16x16xf32>
    %c135 = arith.constant 135 : index
    %2054 = memref.load %arg3[%c135] : memref<144xf32, #tpu.memory_space<smem>>
    %c3_1255 = arith.constant 3 : index
    %c0_1256 = arith.constant 0 : index
    %c0_1257 = arith.constant 0 : index
    %2055 = vector.load %arg11[%c3_1255, %c0_1256, %c0_1257] : memref<4x18x18xf32, #tpu.memory_space<vmem>>, vector<1x16x16xf32>
    %2056 = vector.shape_cast %2055 : vector<1x16x16xf32> to vector<16x16xf32>
    %2057 = vector.broadcast %2054 : f32 to vector<16x16xf32>
    %2058 = arith.mulf %2057, %2056 : vector<16x16xf32>
    %2059 = arith.addf %2053, %2058 : vector<16x16xf32>
    %c136 = arith.constant 136 : index
    %2060 = memref.load %arg3[%c136] : memref<144xf32, #tpu.memory_space<smem>>
    %c3_1258 = arith.constant 3 : index
    %c0_1259 = arith.constant 0 : index
    %c1_1260 = arith.constant 1 : index
    %2061 = vector.load %arg11[%c3_1258, %c0_1259, %c1_1260] : memref<4x18x18xf32, #tpu.memory_space<vmem>>, vector<1x16x16xf32>
    %2062 = vector.shape_cast %2061 : vector<1x16x16xf32> to vector<16x16xf32>
    %2063 = vector.broadcast %2060 : f32 to vector<16x16xf32>
    %2064 = arith.mulf %2063, %2062 : vector<16x16xf32>
    %2065 = arith.addf %2059, %2064 : vector<16x16xf32>
    %c137 = arith.constant 137 : index
    %2066 = memref.load %arg3[%c137] : memref<144xf32, #tpu.memory_space<smem>>
    %c3_1261 = arith.constant 3 : index
    %c0_1262 = arith.constant 0 : index
    %c2_1263 = arith.constant 2 : index
    %2067 = vector.load %arg11[%c3_1261, %c0_1262, %c2_1263] : memref<4x18x18xf32, #tpu.memory_space<vmem>>, vector<1x16x16xf32>
    %2068 = vector.shape_cast %2067 : vector<1x16x16xf32> to vector<16x16xf32>
    %2069 = vector.broadcast %2066 : f32 to vector<16x16xf32>
    %2070 = arith.mulf %2069, %2068 : vector<16x16xf32>
    %2071 = arith.addf %2065, %2070 : vector<16x16xf32>
    %c138 = arith.constant 138 : index
    %2072 = memref.load %arg3[%c138] : memref<144xf32, #tpu.memory_space<smem>>
    %c3_1264 = arith.constant 3 : index
    %c1_1265 = arith.constant 1 : index
    %c0_1266 = arith.constant 0 : index
    %2073 = vector.load %arg11[%c3_1264, %c1_1265, %c0_1266] : memref<4x18x18xf32, #tpu.memory_space<vmem>>, vector<1x16x16xf32>
    %2074 = vector.shape_cast %2073 : vector<1x16x16xf32> to vector<16x16xf32>
    %2075 = vector.broadcast %2072 : f32 to vector<16x16xf32>
    %2076 = arith.mulf %2075, %2074 : vector<16x16xf32>
    %2077 = arith.addf %2071, %2076 : vector<16x16xf32>
    %c139 = arith.constant 139 : index
    %2078 = memref.load %arg3[%c139] : memref<144xf32, #tpu.memory_space<smem>>
    %c3_1267 = arith.constant 3 : index
    %c1_1268 = arith.constant 1 : index
    %c1_1269 = arith.constant 1 : index
    %2079 = vector.load %arg11[%c3_1267, %c1_1268, %c1_1269] : memref<4x18x18xf32, #tpu.memory_space<vmem>>, vector<1x16x16xf32>
    %2080 = vector.shape_cast %2079 : vector<1x16x16xf32> to vector<16x16xf32>
    %2081 = vector.broadcast %2078 : f32 to vector<16x16xf32>
    %2082 = arith.mulf %2081, %2080 : vector<16x16xf32>
    %2083 = arith.addf %2077, %2082 : vector<16x16xf32>
    %c140 = arith.constant 140 : index
    %2084 = memref.load %arg3[%c140] : memref<144xf32, #tpu.memory_space<smem>>
    %c3_1270 = arith.constant 3 : index
    %c1_1271 = arith.constant 1 : index
    %c2_1272 = arith.constant 2 : index
    %2085 = vector.load %arg11[%c3_1270, %c1_1271, %c2_1272] : memref<4x18x18xf32, #tpu.memory_space<vmem>>, vector<1x16x16xf32>
    %2086 = vector.shape_cast %2085 : vector<1x16x16xf32> to vector<16x16xf32>
    %2087 = vector.broadcast %2084 : f32 to vector<16x16xf32>
    %2088 = arith.mulf %2087, %2086 : vector<16x16xf32>
    %2089 = arith.addf %2083, %2088 : vector<16x16xf32>
    %c141 = arith.constant 141 : index
    %2090 = memref.load %arg3[%c141] : memref<144xf32, #tpu.memory_space<smem>>
    %c3_1273 = arith.constant 3 : index
    %c2_1274 = arith.constant 2 : index
    %c0_1275 = arith.constant 0 : index
    %2091 = vector.load %arg11[%c3_1273, %c2_1274, %c0_1275] : memref<4x18x18xf32, #tpu.memory_space<vmem>>, vector<1x16x16xf32>
    %2092 = vector.shape_cast %2091 : vector<1x16x16xf32> to vector<16x16xf32>
    %2093 = vector.broadcast %2090 : f32 to vector<16x16xf32>
    %2094 = arith.mulf %2093, %2092 : vector<16x16xf32>
    %2095 = arith.addf %2089, %2094 : vector<16x16xf32>
    %c142 = arith.constant 142 : index
    %2096 = memref.load %arg3[%c142] : memref<144xf32, #tpu.memory_space<smem>>
    %c3_1276 = arith.constant 3 : index
    %c2_1277 = arith.constant 2 : index
    %c1_1278 = arith.constant 1 : index
    %2097 = vector.load %arg11[%c3_1276, %c2_1277, %c1_1278] : memref<4x18x18xf32, #tpu.memory_space<vmem>>, vector<1x16x16xf32>
    %2098 = vector.shape_cast %2097 : vector<1x16x16xf32> to vector<16x16xf32>
    %2099 = vector.broadcast %2096 : f32 to vector<16x16xf32>
    %2100 = arith.mulf %2099, %2098 : vector<16x16xf32>
    %2101 = arith.addf %2095, %2100 : vector<16x16xf32>
    %c143 = arith.constant 143 : index
    %2102 = memref.load %arg3[%c143] : memref<144xf32, #tpu.memory_space<smem>>
    %c3_1279 = arith.constant 3 : index
    %c2_1280 = arith.constant 2 : index
    %c2_1281 = arith.constant 2 : index
    %2103 = vector.load %arg11[%c3_1279, %c2_1280, %c2_1281] : memref<4x18x18xf32, #tpu.memory_space<vmem>>, vector<1x16x16xf32>
    %2104 = vector.shape_cast %2103 : vector<1x16x16xf32> to vector<16x16xf32>
    %2105 = vector.broadcast %2102 : f32 to vector<16x16xf32>
    %2106 = arith.mulf %2105, %2104 : vector<16x16xf32>
    %2107 = arith.addf %2101, %2106 : vector<16x16xf32>
    %cst_1282 = arith.constant 0.000000e+00 : f32
    %2108 = vector.broadcast %cst_1282 : f32 to vector<16x16xf32>
    %c3_1283 = arith.constant 3 : index
    %2109 = memref.load %arg8[%c3_1283] : memref<4xf32, #tpu.memory_space<smem>>
    %2110 = vector.broadcast %2109 : f32 to vector<16x16xf32>
    %2111 = arith.addf %2108, %2110 : vector<16x16xf32>
    %c81_1284 = arith.constant 81 : index
    %2112 = memref.load %arg7[%c81_1284] : memref<108xf32, #tpu.memory_space<smem>>
    %c0_1285 = arith.constant 0 : index
    %c0_1286 = arith.constant 0 : index
    %c0_1287 = arith.constant 0 : index
    %2113 = vector.load %arg12[%c0_1285, %c0_1286, %c0_1287] : memref<3x18x18xf32, #tpu.memory_space<vmem>>, vector<1x16x16xf32>
    %2114 = vector.shape_cast %2113 : vector<1x16x16xf32> to vector<16x16xf32>
    %2115 = vector.broadcast %2112 : f32 to vector<16x16xf32>
    %2116 = arith.mulf %2115, %2114 : vector<16x16xf32>
    %2117 = arith.addf %2111, %2116 : vector<16x16xf32>
    %c82_1288 = arith.constant 82 : index
    %2118 = memref.load %arg7[%c82_1288] : memref<108xf32, #tpu.memory_space<smem>>
    %c0_1289 = arith.constant 0 : index
    %c0_1290 = arith.constant 0 : index
    %c1_1291 = arith.constant 1 : index
    %2119 = vector.load %arg12[%c0_1289, %c0_1290, %c1_1291] : memref<3x18x18xf32, #tpu.memory_space<vmem>>, vector<1x16x16xf32>
    %2120 = vector.shape_cast %2119 : vector<1x16x16xf32> to vector<16x16xf32>
    %2121 = vector.broadcast %2118 : f32 to vector<16x16xf32>
    %2122 = arith.mulf %2121, %2120 : vector<16x16xf32>
    %2123 = arith.addf %2117, %2122 : vector<16x16xf32>
    %c83_1292 = arith.constant 83 : index
    %2124 = memref.load %arg7[%c83_1292] : memref<108xf32, #tpu.memory_space<smem>>
    %c0_1293 = arith.constant 0 : index
    %c0_1294 = arith.constant 0 : index
    %c2_1295 = arith.constant 2 : index
    %2125 = vector.load %arg12[%c0_1293, %c0_1294, %c2_1295] : memref<3x18x18xf32, #tpu.memory_space<vmem>>, vector<1x16x16xf32>
    %2126 = vector.shape_cast %2125 : vector<1x16x16xf32> to vector<16x16xf32>
    %2127 = vector.broadcast %2124 : f32 to vector<16x16xf32>
    %2128 = arith.mulf %2127, %2126 : vector<16x16xf32>
    %2129 = arith.addf %2123, %2128 : vector<16x16xf32>
    %c84_1296 = arith.constant 84 : index
    %2130 = memref.load %arg7[%c84_1296] : memref<108xf32, #tpu.memory_space<smem>>
    %c0_1297 = arith.constant 0 : index
    %c1_1298 = arith.constant 1 : index
    %c0_1299 = arith.constant 0 : index
    %2131 = vector.load %arg12[%c0_1297, %c1_1298, %c0_1299] : memref<3x18x18xf32, #tpu.memory_space<vmem>>, vector<1x16x16xf32>
    %2132 = vector.shape_cast %2131 : vector<1x16x16xf32> to vector<16x16xf32>
    %2133 = vector.broadcast %2130 : f32 to vector<16x16xf32>
    %2134 = arith.mulf %2133, %2132 : vector<16x16xf32>
    %2135 = arith.addf %2129, %2134 : vector<16x16xf32>
    %c85_1300 = arith.constant 85 : index
    %2136 = memref.load %arg7[%c85_1300] : memref<108xf32, #tpu.memory_space<smem>>
    %c0_1301 = arith.constant 0 : index
    %c1_1302 = arith.constant 1 : index
    %c1_1303 = arith.constant 1 : index
    %2137 = vector.load %arg12[%c0_1301, %c1_1302, %c1_1303] : memref<3x18x18xf32, #tpu.memory_space<vmem>>, vector<1x16x16xf32>
    %2138 = vector.shape_cast %2137 : vector<1x16x16xf32> to vector<16x16xf32>
    %2139 = vector.broadcast %2136 : f32 to vector<16x16xf32>
    %2140 = arith.mulf %2139, %2138 : vector<16x16xf32>
    %2141 = arith.addf %2135, %2140 : vector<16x16xf32>
    %c86_1304 = arith.constant 86 : index
    %2142 = memref.load %arg7[%c86_1304] : memref<108xf32, #tpu.memory_space<smem>>
    %c0_1305 = arith.constant 0 : index
    %c1_1306 = arith.constant 1 : index
    %c2_1307 = arith.constant 2 : index
    %2143 = vector.load %arg12[%c0_1305, %c1_1306, %c2_1307] : memref<3x18x18xf32, #tpu.memory_space<vmem>>, vector<1x16x16xf32>
    %2144 = vector.shape_cast %2143 : vector<1x16x16xf32> to vector<16x16xf32>
    %2145 = vector.broadcast %2142 : f32 to vector<16x16xf32>
    %2146 = arith.mulf %2145, %2144 : vector<16x16xf32>
    %2147 = arith.addf %2141, %2146 : vector<16x16xf32>
    %c87_1308 = arith.constant 87 : index
    %2148 = memref.load %arg7[%c87_1308] : memref<108xf32, #tpu.memory_space<smem>>
    %c0_1309 = arith.constant 0 : index
    %c2_1310 = arith.constant 2 : index
    %c0_1311 = arith.constant 0 : index
    %2149 = vector.load %arg12[%c0_1309, %c2_1310, %c0_1311] : memref<3x18x18xf32, #tpu.memory_space<vmem>>, vector<1x16x16xf32>
    %2150 = vector.shape_cast %2149 : vector<1x16x16xf32> to vector<16x16xf32>
    %2151 = vector.broadcast %2148 : f32 to vector<16x16xf32>
    %2152 = arith.mulf %2151, %2150 : vector<16x16xf32>
    %2153 = arith.addf %2147, %2152 : vector<16x16xf32>
    %c88_1312 = arith.constant 88 : index
    %2154 = memref.load %arg7[%c88_1312] : memref<108xf32, #tpu.memory_space<smem>>
    %c0_1313 = arith.constant 0 : index
    %c2_1314 = arith.constant 2 : index
    %c1_1315 = arith.constant 1 : index
    %2155 = vector.load %arg12[%c0_1313, %c2_1314, %c1_1315] : memref<3x18x18xf32, #tpu.memory_space<vmem>>, vector<1x16x16xf32>
    %2156 = vector.shape_cast %2155 : vector<1x16x16xf32> to vector<16x16xf32>
    %2157 = vector.broadcast %2154 : f32 to vector<16x16xf32>
    %2158 = arith.mulf %2157, %2156 : vector<16x16xf32>
    %2159 = arith.addf %2153, %2158 : vector<16x16xf32>
    %c89_1316 = arith.constant 89 : index
    %2160 = memref.load %arg7[%c89_1316] : memref<108xf32, #tpu.memory_space<smem>>
    %c0_1317 = arith.constant 0 : index
    %c2_1318 = arith.constant 2 : index
    %c2_1319 = arith.constant 2 : index
    %2161 = vector.load %arg12[%c0_1317, %c2_1318, %c2_1319] : memref<3x18x18xf32, #tpu.memory_space<vmem>>, vector<1x16x16xf32>
    %2162 = vector.shape_cast %2161 : vector<1x16x16xf32> to vector<16x16xf32>
    %2163 = vector.broadcast %2160 : f32 to vector<16x16xf32>
    %2164 = arith.mulf %2163, %2162 : vector<16x16xf32>
    %2165 = arith.addf %2159, %2164 : vector<16x16xf32>
    %c90_1320 = arith.constant 90 : index
    %2166 = memref.load %arg7[%c90_1320] : memref<108xf32, #tpu.memory_space<smem>>
    %c1_1321 = arith.constant 1 : index
    %c0_1322 = arith.constant 0 : index
    %c0_1323 = arith.constant 0 : index
    %2167 = vector.load %arg12[%c1_1321, %c0_1322, %c0_1323] : memref<3x18x18xf32, #tpu.memory_space<vmem>>, vector<1x16x16xf32>
    %2168 = vector.shape_cast %2167 : vector<1x16x16xf32> to vector<16x16xf32>
    %2169 = vector.broadcast %2166 : f32 to vector<16x16xf32>
    %2170 = arith.mulf %2169, %2168 : vector<16x16xf32>
    %2171 = arith.addf %2165, %2170 : vector<16x16xf32>
    %c91_1324 = arith.constant 91 : index
    %2172 = memref.load %arg7[%c91_1324] : memref<108xf32, #tpu.memory_space<smem>>
    %c1_1325 = arith.constant 1 : index
    %c0_1326 = arith.constant 0 : index
    %c1_1327 = arith.constant 1 : index
    %2173 = vector.load %arg12[%c1_1325, %c0_1326, %c1_1327] : memref<3x18x18xf32, #tpu.memory_space<vmem>>, vector<1x16x16xf32>
    %2174 = vector.shape_cast %2173 : vector<1x16x16xf32> to vector<16x16xf32>
    %2175 = vector.broadcast %2172 : f32 to vector<16x16xf32>
    %2176 = arith.mulf %2175, %2174 : vector<16x16xf32>
    %2177 = arith.addf %2171, %2176 : vector<16x16xf32>
    %c92_1328 = arith.constant 92 : index
    %2178 = memref.load %arg7[%c92_1328] : memref<108xf32, #tpu.memory_space<smem>>
    %c1_1329 = arith.constant 1 : index
    %c0_1330 = arith.constant 0 : index
    %c2_1331 = arith.constant 2 : index
    %2179 = vector.load %arg12[%c1_1329, %c0_1330, %c2_1331] : memref<3x18x18xf32, #tpu.memory_space<vmem>>, vector<1x16x16xf32>
    %2180 = vector.shape_cast %2179 : vector<1x16x16xf32> to vector<16x16xf32>
    %2181 = vector.broadcast %2178 : f32 to vector<16x16xf32>
    %2182 = arith.mulf %2181, %2180 : vector<16x16xf32>
    %2183 = arith.addf %2177, %2182 : vector<16x16xf32>
    %c93_1332 = arith.constant 93 : index
    %2184 = memref.load %arg7[%c93_1332] : memref<108xf32, #tpu.memory_space<smem>>
    %c1_1333 = arith.constant 1 : index
    %c1_1334 = arith.constant 1 : index
    %c0_1335 = arith.constant 0 : index
    %2185 = vector.load %arg12[%c1_1333, %c1_1334, %c0_1335] : memref<3x18x18xf32, #tpu.memory_space<vmem>>, vector<1x16x16xf32>
    %2186 = vector.shape_cast %2185 : vector<1x16x16xf32> to vector<16x16xf32>
    %2187 = vector.broadcast %2184 : f32 to vector<16x16xf32>
    %2188 = arith.mulf %2187, %2186 : vector<16x16xf32>
    %2189 = arith.addf %2183, %2188 : vector<16x16xf32>
    %c94_1336 = arith.constant 94 : index
    %2190 = memref.load %arg7[%c94_1336] : memref<108xf32, #tpu.memory_space<smem>>
    %c1_1337 = arith.constant 1 : index
    %c1_1338 = arith.constant 1 : index
    %c1_1339 = arith.constant 1 : index
    %2191 = vector.load %arg12[%c1_1337, %c1_1338, %c1_1339] : memref<3x18x18xf32, #tpu.memory_space<vmem>>, vector<1x16x16xf32>
    %2192 = vector.shape_cast %2191 : vector<1x16x16xf32> to vector<16x16xf32>
    %2193 = vector.broadcast %2190 : f32 to vector<16x16xf32>
    %2194 = arith.mulf %2193, %2192 : vector<16x16xf32>
    %2195 = arith.addf %2189, %2194 : vector<16x16xf32>
    %c95_1340 = arith.constant 95 : index
    %2196 = memref.load %arg7[%c95_1340] : memref<108xf32, #tpu.memory_space<smem>>
    %c1_1341 = arith.constant 1 : index
    %c1_1342 = arith.constant 1 : index
    %c2_1343 = arith.constant 2 : index
    %2197 = vector.load %arg12[%c1_1341, %c1_1342, %c2_1343] : memref<3x18x18xf32, #tpu.memory_space<vmem>>, vector<1x16x16xf32>
    %2198 = vector.shape_cast %2197 : vector<1x16x16xf32> to vector<16x16xf32>
    %2199 = vector.broadcast %2196 : f32 to vector<16x16xf32>
    %2200 = arith.mulf %2199, %2198 : vector<16x16xf32>
    %2201 = arith.addf %2195, %2200 : vector<16x16xf32>
    %c96_1344 = arith.constant 96 : index
    %2202 = memref.load %arg7[%c96_1344] : memref<108xf32, #tpu.memory_space<smem>>
    %c1_1345 = arith.constant 1 : index
    %c2_1346 = arith.constant 2 : index
    %c0_1347 = arith.constant 0 : index
    %2203 = vector.load %arg12[%c1_1345, %c2_1346, %c0_1347] : memref<3x18x18xf32, #tpu.memory_space<vmem>>, vector<1x16x16xf32>
    %2204 = vector.shape_cast %2203 : vector<1x16x16xf32> to vector<16x16xf32>
    %2205 = vector.broadcast %2202 : f32 to vector<16x16xf32>
    %2206 = arith.mulf %2205, %2204 : vector<16x16xf32>
    %2207 = arith.addf %2201, %2206 : vector<16x16xf32>
    %c97_1348 = arith.constant 97 : index
    %2208 = memref.load %arg7[%c97_1348] : memref<108xf32, #tpu.memory_space<smem>>
    %c1_1349 = arith.constant 1 : index
    %c2_1350 = arith.constant 2 : index
    %c1_1351 = arith.constant 1 : index
    %2209 = vector.load %arg12[%c1_1349, %c2_1350, %c1_1351] : memref<3x18x18xf32, #tpu.memory_space<vmem>>, vector<1x16x16xf32>
    %2210 = vector.shape_cast %2209 : vector<1x16x16xf32> to vector<16x16xf32>
    %2211 = vector.broadcast %2208 : f32 to vector<16x16xf32>
    %2212 = arith.mulf %2211, %2210 : vector<16x16xf32>
    %2213 = arith.addf %2207, %2212 : vector<16x16xf32>
    %c98_1352 = arith.constant 98 : index
    %2214 = memref.load %arg7[%c98_1352] : memref<108xf32, #tpu.memory_space<smem>>
    %c1_1353 = arith.constant 1 : index
    %c2_1354 = arith.constant 2 : index
    %c2_1355 = arith.constant 2 : index
    %2215 = vector.load %arg12[%c1_1353, %c2_1354, %c2_1355] : memref<3x18x18xf32, #tpu.memory_space<vmem>>, vector<1x16x16xf32>
    %2216 = vector.shape_cast %2215 : vector<1x16x16xf32> to vector<16x16xf32>
    %2217 = vector.broadcast %2214 : f32 to vector<16x16xf32>
    %2218 = arith.mulf %2217, %2216 : vector<16x16xf32>
    %2219 = arith.addf %2213, %2218 : vector<16x16xf32>
    %c99_1356 = arith.constant 99 : index
    %2220 = memref.load %arg7[%c99_1356] : memref<108xf32, #tpu.memory_space<smem>>
    %c2_1357 = arith.constant 2 : index
    %c0_1358 = arith.constant 0 : index
    %c0_1359 = arith.constant 0 : index
    %2221 = vector.load %arg12[%c2_1357, %c0_1358, %c0_1359] : memref<3x18x18xf32, #tpu.memory_space<vmem>>, vector<1x16x16xf32>
    %2222 = vector.shape_cast %2221 : vector<1x16x16xf32> to vector<16x16xf32>
    %2223 = vector.broadcast %2220 : f32 to vector<16x16xf32>
    %2224 = arith.mulf %2223, %2222 : vector<16x16xf32>
    %2225 = arith.addf %2219, %2224 : vector<16x16xf32>
    %c100_1360 = arith.constant 100 : index
    %2226 = memref.load %arg7[%c100_1360] : memref<108xf32, #tpu.memory_space<smem>>
    %c2_1361 = arith.constant 2 : index
    %c0_1362 = arith.constant 0 : index
    %c1_1363 = arith.constant 1 : index
    %2227 = vector.load %arg12[%c2_1361, %c0_1362, %c1_1363] : memref<3x18x18xf32, #tpu.memory_space<vmem>>, vector<1x16x16xf32>
    %2228 = vector.shape_cast %2227 : vector<1x16x16xf32> to vector<16x16xf32>
    %2229 = vector.broadcast %2226 : f32 to vector<16x16xf32>
    %2230 = arith.mulf %2229, %2228 : vector<16x16xf32>
    %2231 = arith.addf %2225, %2230 : vector<16x16xf32>
    %c101_1364 = arith.constant 101 : index
    %2232 = memref.load %arg7[%c101_1364] : memref<108xf32, #tpu.memory_space<smem>>
    %c2_1365 = arith.constant 2 : index
    %c0_1366 = arith.constant 0 : index
    %c2_1367 = arith.constant 2 : index
    %2233 = vector.load %arg12[%c2_1365, %c0_1366, %c2_1367] : memref<3x18x18xf32, #tpu.memory_space<vmem>>, vector<1x16x16xf32>
    %2234 = vector.shape_cast %2233 : vector<1x16x16xf32> to vector<16x16xf32>
    %2235 = vector.broadcast %2232 : f32 to vector<16x16xf32>
    %2236 = arith.mulf %2235, %2234 : vector<16x16xf32>
    %2237 = arith.addf %2231, %2236 : vector<16x16xf32>
    %c102_1368 = arith.constant 102 : index
    %2238 = memref.load %arg7[%c102_1368] : memref<108xf32, #tpu.memory_space<smem>>
    %c2_1369 = arith.constant 2 : index
    %c1_1370 = arith.constant 1 : index
    %c0_1371 = arith.constant 0 : index
    %2239 = vector.load %arg12[%c2_1369, %c1_1370, %c0_1371] : memref<3x18x18xf32, #tpu.memory_space<vmem>>, vector<1x16x16xf32>
    %2240 = vector.shape_cast %2239 : vector<1x16x16xf32> to vector<16x16xf32>
    %2241 = vector.broadcast %2238 : f32 to vector<16x16xf32>
    %2242 = arith.mulf %2241, %2240 : vector<16x16xf32>
    %2243 = arith.addf %2237, %2242 : vector<16x16xf32>
    %c103_1372 = arith.constant 103 : index
    %2244 = memref.load %arg7[%c103_1372] : memref<108xf32, #tpu.memory_space<smem>>
    %c2_1373 = arith.constant 2 : index
    %c1_1374 = arith.constant 1 : index
    %c1_1375 = arith.constant 1 : index
    %2245 = vector.load %arg12[%c2_1373, %c1_1374, %c1_1375] : memref<3x18x18xf32, #tpu.memory_space<vmem>>, vector<1x16x16xf32>
    %2246 = vector.shape_cast %2245 : vector<1x16x16xf32> to vector<16x16xf32>
    %2247 = vector.broadcast %2244 : f32 to vector<16x16xf32>
    %2248 = arith.mulf %2247, %2246 : vector<16x16xf32>
    %2249 = arith.addf %2243, %2248 : vector<16x16xf32>
    %c104_1376 = arith.constant 104 : index
    %2250 = memref.load %arg7[%c104_1376] : memref<108xf32, #tpu.memory_space<smem>>
    %c2_1377 = arith.constant 2 : index
    %c1_1378 = arith.constant 1 : index
    %c2_1379 = arith.constant 2 : index
    %2251 = vector.load %arg12[%c2_1377, %c1_1378, %c2_1379] : memref<3x18x18xf32, #tpu.memory_space<vmem>>, vector<1x16x16xf32>
    %2252 = vector.shape_cast %2251 : vector<1x16x16xf32> to vector<16x16xf32>
    %2253 = vector.broadcast %2250 : f32 to vector<16x16xf32>
    %2254 = arith.mulf %2253, %2252 : vector<16x16xf32>
    %2255 = arith.addf %2249, %2254 : vector<16x16xf32>
    %c105_1380 = arith.constant 105 : index
    %2256 = memref.load %arg7[%c105_1380] : memref<108xf32, #tpu.memory_space<smem>>
    %c2_1381 = arith.constant 2 : index
    %c2_1382 = arith.constant 2 : index
    %c0_1383 = arith.constant 0 : index
    %2257 = vector.load %arg12[%c2_1381, %c2_1382, %c0_1383] : memref<3x18x18xf32, #tpu.memory_space<vmem>>, vector<1x16x16xf32>
    %2258 = vector.shape_cast %2257 : vector<1x16x16xf32> to vector<16x16xf32>
    %2259 = vector.broadcast %2256 : f32 to vector<16x16xf32>
    %2260 = arith.mulf %2259, %2258 : vector<16x16xf32>
    %2261 = arith.addf %2255, %2260 : vector<16x16xf32>
    %c106_1384 = arith.constant 106 : index
    %2262 = memref.load %arg7[%c106_1384] : memref<108xf32, #tpu.memory_space<smem>>
    %c2_1385 = arith.constant 2 : index
    %c2_1386 = arith.constant 2 : index
    %c1_1387 = arith.constant 1 : index
    %2263 = vector.load %arg12[%c2_1385, %c2_1386, %c1_1387] : memref<3x18x18xf32, #tpu.memory_space<vmem>>, vector<1x16x16xf32>
    %2264 = vector.shape_cast %2263 : vector<1x16x16xf32> to vector<16x16xf32>
    %2265 = vector.broadcast %2262 : f32 to vector<16x16xf32>
    %2266 = arith.mulf %2265, %2264 : vector<16x16xf32>
    %2267 = arith.addf %2261, %2266 : vector<16x16xf32>
    %c107_1388 = arith.constant 107 : index
    %2268 = memref.load %arg7[%c107_1388] : memref<108xf32, #tpu.memory_space<smem>>
    %c2_1389 = arith.constant 2 : index
    %c2_1390 = arith.constant 2 : index
    %c2_1391 = arith.constant 2 : index
    %2269 = vector.load %arg12[%c2_1389, %c2_1390, %c2_1391] : memref<3x18x18xf32, #tpu.memory_space<vmem>>, vector<1x16x16xf32>
    %2270 = vector.shape_cast %2269 : vector<1x16x16xf32> to vector<16x16xf32>
    %2271 = vector.broadcast %2268 : f32 to vector<16x16xf32>
    %2272 = arith.mulf %2271, %2270 : vector<16x16xf32>
    %2273 = arith.addf %2267, %2272 : vector<16x16xf32>
    %2274 = arith.negf %2273 : vector<16x16xf32>
    %2275 = math.exp %2274 : vector<16x16xf32>
    %cst_1392 = arith.constant 1.000000e+00 : f32
    %2276 = vector.broadcast %cst_1392 : f32 to vector<16x16xf32>
    %2277 = arith.addf %2276, %2275 : vector<16x16xf32>
    %2278 = arith.divf %2276, %2277 : vector<16x16xf32>
    %2279 = arith.mulf %2107, %2278 : vector<16x16xf32>
    %c0_1393 = arith.constant 0 : index
    %c3_1394 = arith.constant 3 : index
    %c0_1395 = arith.constant 0 : index
    %c0_1396 = arith.constant 0 : index
    %2280 = vector.load %arg1[%c0_1393, %c3_1394, %c0_1395, %c0_1396] : memref<1x4x16x16xf32, #tpu.memory_space<vmem>>, vector<1x1x16x16xf32>
    %2281 = vector.shape_cast %2280 : vector<1x1x16x16xf32> to vector<16x16xf32>
    %2282 = arith.addf %2279, %2281 : vector<16x16xf32>
    %c0_1397 = arith.constant 0 : index
    %c3_1398 = arith.constant 3 : index
    %c0_1399 = arith.constant 0 : index
    %c0_1400 = arith.constant 0 : index
    %2283 = vector.load %arg9[%c0_1397, %c3_1398, %c0_1399, %c0_1400] : memref<1x4x16x16xf32, #tpu.memory_space<vmem>>, vector<1x1x16x16xf32>
    %2284 = vector.shape_cast %2283 : vector<1x1x16x16xf32> to vector<16x16xf32>
    %2285 = vector.shape_cast %2282 : vector<16x16xf32> to vector<1x1x16x16xf32>
    tpu.vector_store %arg9[%c0_1397, %c3_1398, %c0_1399, %c0_1400], %2285 {strides = array<i32>} : memref<1x4x16x16xf32, #tpu.memory_space<vmem>>, vector<1x1x16x16xf32>,
    return
  }
  func.func @transform_0(%arg0: i32) -> (i32, i32, i32, i32) {
    %c0_i32 = arith.constant 0 : i32
    %c0_i32_0 = arith.constant 0 : i32
    %c0_i32_1 = arith.constant 0 : i32
    %c0_i32_2 = arith.constant 0 : i32
    return %arg0, %c0_i32, %c0_i32_0, %c0_i32_1 : i32, i32, i32, i32
  }
  func.func @transform_1(%arg0: i32) -> (i32, i32, i32, i32) {
    %c0_i32 = arith.constant 0 : i32
    %c0_i32_0 = arith.constant 0 : i32
    %c0_i32_1 = arith.constant 0 : i32
    %c0_i32_2 = arith.constant 0 : i32
    return %arg0, %c0_i32, %c0_i32_0, %c0_i32_1 : i32, i32, i32, i32
  }
  func.func @transform_2(%arg0: i32) -> i32 {
    %c0_i32 = arith.constant 0 : i32
    %c0_i32_0 = arith.constant 0 : i32
    return %c0_i32 : i32
  }
  func.func @transform_3(%arg0: i32) -> i32 {
    %c0_i32 = arith.constant 0 : i32
    %c0_i32_0 = arith.constant 0 : i32
    return %c0_i32 : i32
  }
  func.func @transform_4(%arg0: i32) -> i32 {
    %c0_i32 = arith.constant 0 : i32
    %c0_i32_0 = arith.constant 0 : i32
    return %c0_i32 : i32
  }
  func.func @transform_5(%arg0: i32) -> i32 {
    %c0_i32 = arith.constant 0 : i32
    %c0_i32_0 = arith.constant 0 : i32
    return %c0_i32 : i32
  }
  func.func @transform_6(%arg0: i32) -> i32 {
    %c0_i32 = arith.constant 0 : i32
    %c0_i32_0 = arith.constant 0 : i32
    return %c0_i32 : i32
  }
  func.func @transform_7(%arg0: i32) -> i32 {
    %c0_i32 = arith.constant 0 : i32
    %c0_i32_0 = arith.constant 0 : i32
    return %c0_i32 : i32
  }
  func.func @transform_8(%arg0: i32) -> (i32, i32, i32, i32) {
    %c0_i32 = arith.constant 0 : i32
    %c0_i32_0 = arith.constant 0 : i32
    %c0_i32_1 = arith.constant 0 : i32
    %c0_i32_2 = arith.constant 0 : i32
    return %arg0, %c0_i32, %c0_i32_0, %c0_i32_1 : i32, i32, i32, i32
  }
  func.func @transform_9(%arg0: i32) -> (i32, i32, i32, i32) {
    %c0_i32 = arith.constant 0 : i32
    %c0_i32_0 = arith.constant 0 : i32
    %c0_i32_1 = arith.constant 0 : i32
    %c0_i32_2 = arith.constant 0 : i32
    return %arg0, %c0_i32, %c0_i32_0, %c0_i32_1 : i32, i32, i32, i32
  }
}

</mosaic_0001>

<llo_original>
// kernel: tpu_custom_call.1
$region0: #{tpu_custom_call.1}
  #allocation0 [shape = 'u32[]', space=smem, size = 0x4, offset = 0x4, fixed_abs, tag = 'smem constant byte address 0x4 - core index']
  #allocation1 [shape = 'u32[144,128]{1,0:T(1,128)}', space=vmem, size = 0x12000, scoped, tag = 'internal scratch']
  #allocation2 [shape = 'f32[4,18,18]{2,1,0:T(8,128)}', space=vmem, size = 0xc000, scoped, tag = 'scratch operand']
  #allocation3 [shape = 'f32[3,18,18]{2,1,0:T(8,128)}', space=vmem, size = 0x9000, scoped, tag = 'scratch operand']
  %s0 = inlined_call_operand.hbm [shape: f32[2,4,16,16], index: 0, kind: input, shape index: {}]
  %s1 = inlined_call_operand.hbm [shape: f32[2,3,16,16], index: 1, kind: input, shape index: {}]
  %s2 = inlined_call_operand.vmem [shape: f32[144], index: 2, kind: input, shape index: {}]
  %s3 = inlined_call_operand.vmem [shape: f32[4], index: 3, kind: input, shape index: {}]
  %s4 = inlined_call_operand.vmem [shape: f32[108], index: 4, kind: input, shape index: {}]
  %s5 = inlined_call_operand.vmem [shape: f32[3], index: 5, kind: input, shape index: {}]
  %s6 = inlined_call_operand.vmem [shape: f32[108], index: 6, kind: input, shape index: {}]
  %s7 = inlined_call_operand.vmem [shape: f32[4], index: 7, kind: input, shape index: {}]
  %s8 = inlined_call_operand.hbm [shape: f32[2,4,16,16], index: 8, kind: output, shape index: {0}]
  %s9 = inlined_call_operand.hbm [shape: f32[2,3,16,16], index: 9, kind: output, shape index: {1}]
  %10 = xla_tuple %s8, %s9
  %s11 = sld [smem:[#allocation0]]
  $region105: #{tpu_custom_call.1} parent=0
    _
  %s13 = ssub.s32 1, %s11
  %s14 = scalar_select 0, %s13, %s11
  $region1: #{tpu_custom_call.1} parent=0
    #allocation4 [shape = 'u8[65536]{0}', space=vmem, size = 0x10000, scoped, tag = 'input window, operand 0']
    #allocation5 [shape = 's32[2]{0}', space=sflag, size = 0x8, scoped, tag = 'scoped memory for tpu_custom_call.1']
    #allocation6 [shape = 's32[2]{0}', space=sflag, size = 0x8, scoped, tag = 'scoped memory for tpu_custom_call.1']
    #allocation7 [shape = 's32[2]{0}', space=sflag, size = 0x8, scoped, tag = 'scoped memory for tpu_custom_call.1']
    #allocation8 [shape = 'u8[49152]{0}', space=vmem, size = 0xc000, scoped, tag = 'input window, operand 1']
    #allocation9 [shape = 's32[2]{0}', space=sflag, size = 0x8, scoped, tag = 'scoped memory for tpu_custom_call.1']
    #allocation10 [shape = 'u8[1024]{0}', space=smem, size = 0x400, scoped, tag = 'input window, operand 2, single buffered']
    #allocation11 [shape = 'u8[512]{0}', space=smem, size = 0x200, scoped, tag = 'input window, operand 3, single buffered']
    #allocation12 [shape = 's32[1]{0}', space=sflag, size = 0x4, scoped, tag = 'scoped memory for tpu_custom_call.1']
    #allocation13 [shape = 'u8[512]{0}', space=smem, size = 0x200, scoped, tag = 'input window, operand 4, single buffered']
    #allocation14 [shape = 'u8[512]{0}', space=smem, size = 0x200, scoped, tag = 'input window, operand 5, single buffered']
    #allocation15 [shape = 's32[1]{0}', space=sflag, size = 0x4, scoped, tag = 'scoped memory for tpu_custom_call.1']
    #allocation16 [shape = 'u8[512]{0}', space=smem, size = 0x200, scoped, tag = 'input window, operand 6, single buffered']
    #allocation17 [shape = 'u8[512]{0}', space=smem, size = 0x200, scoped, tag = 'input window, operand 7, single buffered']
    #allocation18 [shape = 's32[1]{0}', space=sflag, size = 0x4, scoped, tag = 'scoped memory for tpu_custom_call.1']
    #allocation19 [shape = 'u8[65536]{0}', space=vmem, size = 0x10000, scoped, tag = 'output window, operand 0']
    #allocation20 [shape = 'u8[49152]{0}', space=vmem, size = 0xc000, scoped, tag = 'output window, operand 1']
    #allocation21 [shape = 's32[2]{0}', space=sflag, size = 0x8, scoped, tag = 'scoped memory for tpu_custom_call.1']
    %15 = vsyncpa [#allocation5], 0
    %s16 = scalar_lea.sflag [#allocation5], 1
    %17 = vsyncpa %s16, 0
    %18 = vsyncpa [#allocation9], 0
    %s19 = scalar_lea.sflag [#allocation9], 1
    %20 = vsyncpa %s19, 0
    %21 = vsyncpa [#allocation7], 0
    %22 = vsyncpa [#allocation12], 0
    %23 = vsyncpa [#allocation15], 0
    %24 = vsyncpa [#allocation18], 0
    %25 = vsyncpa [#allocation6], 0
    %s26 = scalar_lea.sflag [#allocation6], 1
    %27 = vsyncpa %s26, 0
    %28 = vsyncpa [#allocation21], 0
    %s29 = scalar_lea.sflag [#allocation21], 1
    %30 = vsyncpa %s29, 0
    loop: start=0, step=1, limit=4
    $region2: #{tpu_custom_call.1} parent=1 // loop_pre_header
      _
    $region3: #{tpu_custom_call.1} parent=1 // loop_header
      %s32 = sphi 0, %s36
      %p33 = scmp.ge.s32.totalorder %s32, 4
      %s42 = sphi 0, %s44
      %s45 = sphi 0, %s42
      %s46 = sphi 0, %s45
      %s62 = sphi 0, %s46
      %s68 = sphi 0, %s70
      %s71 = sphi 0, %s68
      %s72 = sphi 0, %s71
      %s88 = sphi 0, %s72
      %s92 = sphi 0, %s92
      %s94 = sphi 0, %s92
      %s95 = sphi 0, %s94
      %s109 = sphi 0, %s95
      %s113 = sphi 0, %s113
      %s115 = sphi 0, %s113
      %s116 = sphi 0, %s115
      %s130 = sphi 0, %s116
      %s134 = sphi 0, %s134
      %s136 = sphi 0, %s134
      %s137 = sphi 0, %s136
      %s151 = sphi 0, %s137
      %s155 = sphi 0, %s155
      %s157 = sphi 0, %s155
      %s158 = sphi 0, %s157
      %s172 = sphi 0, %s158
      %s176 = sphi 0, %s176
      %s178 = sphi 0, %s176
      %s179 = sphi 0, %s178
      %s193 = sphi 0, %s179
      %s197 = sphi 0, %s197
      %s199 = sphi 0, %s197
      %s200 = sphi 0, %s199
      %s214 = sphi 0, %s200
      %s220 = sphi 0, %s222
      %s223 = sphi 0, %s220
      %s224 = sphi 0, %s223
      %s240 = sphi 0, %s224
      %s246 = sphi 0, %s248
      %s249 = sphi 0, %s246
      %s250 = sphi 0, %s249
      %s266 = sphi 0, %s250
    $region4: #{tpu_custom_call.1} parent=1 // loop_header_branch
      %35 = sbr.rel (%p33) target = $region8
    $region5: #{tpu_custom_call.1} parent=1 // loop_body
      %s37 = ssub.s32 %s32, 1
      %s38 = ssub.s32 %s32, 2
      %s39 = sadd.s32 %s32, 1
      %s40 = ssub.s32 %s32, %s39
      %p41 = scmp.eq.s32.totalorder %s40, 0
      %s43 = sadd.s32 %s42, 1
      %s44 = scalar_select %p41, %s42, %s43
      %p47 = pneg %p41
      %p48 = scmp.eq.s32.totalorder %s32, 1
      %p49 = por %p47, %p48
      %p50 = scmp.ne.s32.totalorder %s42, %s45
      %p51 = scmp.eq.s32.totalorder %s32, 0
      %p52 = por %p50, %p51
      %p53 = scmp.ne.s32.totalorder %s42, %s45
      %p54 = scmp.eq.s32.totalorder %s37, 1
      %p55 = por %p53, %p54
      %p56 = scmp.ne.s32.totalorder %s45, %s46
      %p57 = scmp.eq.s32.totalorder %s37, 0
      %p58 = por %p56, %p57
      %p59 = scmp.ne.s32.totalorder %s45, %s46
      %p60 = scmp.eq.s32.totalorder %s38, 1
      %p61 = por %p59, %p60
      %p63 = scmp.ne.s32.totalorder %s46, %s62
      %p64 = scmp.eq.s32.totalorder %s38, 0
      %p65 = por %p63, %p64
      %s66 = ssub.s32 %s32, %s39
      %p67 = scmp.eq.s32.totalorder %s66, 0
      %s69 = sadd.s32 %s68, 1
      %s70 = scalar_select %p67, %s68, %s69
      %p73 = pneg %p67
      %p74 = scmp.eq.s32.totalorder %s32, 1
      %p75 = por %p73, %p74
      %p76 = scmp.ne.s32.totalorder %s68, %s71
      %p77 = scmp.eq.s32.totalorder %s32, 0
      %p78 = por %p76, %p77
      %p79 = scmp.ne.s32.totalorder %s68, %s71
      %p80 = scmp.eq.s32.totalorder %s37, 1
      %p81 = por %p79, %p80
      %p82 = scmp.ne.s32.totalorder %s71, %s72
      %p83 = scmp.eq.s32.totalorder %s37, 0
      %p84 = por %p82, %p83
      %p85 = scmp.ne.s32.totalorder %s71, %s72
      %p86 = scmp.eq.s32.totalorder %s38, 1
      %p87 = por %p85, %p86
      %p89 = scmp.ne.s32.totalorder %s72, %s88
      %p90 = scmp.eq.s32.totalorder %s38, 0
      %p91 = por %p89, %p90
      %s93 = sadd.s32 %s92, 1
      %p96 = scmp.eq.s32.totalorder %s32, 1
      %p97 = scmp.ne.s32.totalorder %s92, %s94
      %p98 = scmp.eq.s32.totalorder %s32, 0
      %p99 = por %p97, %p98
      %p100 = scmp.ne.s32.totalorder %s92, %s94
      %p101 = scmp.eq.s32.totalorder %s37, 1
      %p102 = por %p100, %p101
      %p103 = scmp.ne.s32.totalorder %s94, %s95
      %p104 = scmp.eq.s32.totalorder %s37, 0
      %p105 = por %p103, %p104
      %p106 = scmp.ne.s32.totalorder %s94, %s95
      %p107 = scmp.eq.s32.totalorder %s38, 1
      %p108 = por %p106, %p107
      %p110 = scmp.ne.s32.totalorder %s95, %s109
      %p111 = scmp.eq.s32.totalorder %s38, 0
      %p112 = por %p110, %p111
      %s114 = sadd.s32 %s113, 1
      %p117 = scmp.eq.s32.totalorder %s32, 1
      %p118 = scmp.ne.s32.totalorder %s113, %s115
      %p119 = scmp.eq.s32.totalorder %s32, 0
      %p120 = por %p118, %p119
      %p121 = scmp.ne.s32.totalorder %s113, %s115
      %p122 = scmp.eq.s32.totalorder %s37, 1
      %p123 = por %p121, %p122
      %p124 = scmp.ne.s32.totalorder %s115, %s116
      %p125 = scmp.eq.s32.totalorder %s37, 0
      %p126 = por %p124, %p125
      %p127 = scmp.ne.s32.totalorder %s115, %s116
      %p128 = scmp.eq.s32.totalorder %s38, 1
      %p129 = por %p127, %p128
      %p131 = scmp.ne.s32.totalorder %s116, %s130
      %p132 = scmp.eq.s32.totalorder %s38, 0
      %p133 = por %p131, %p132
      %s135 = sadd.s32 %s134, 1
      %p138 = scmp.eq.s32.totalorder %s32, 1
      %p139 = scmp.ne.s32.totalorder %s134, %s136
      %p140 = scmp.eq.s32.totalorder %s32, 0
      %p141 = por %p139, %p140
      %p142 = scmp.ne.s32.totalorder %s134, %s136
      %p143 = scmp.eq.s32.totalorder %s37, 1
      %p144 = por %p142, %p143
      %p145 = scmp.ne.s32.totalorder %s136, %s137
      %p146 = scmp.eq.s32.totalorder %s37, 0
      %p147 = por %p145, %p146
      %p148 = scmp.ne.s32.totalorder %s136, %s137
      %p149 = scmp.eq.s32.totalorder %s38, 1
      %p150 = por %p148, %p149
      %p152 = scmp.ne.s32.totalorder %s137, %s151
      %p153 = scmp.eq.s32.totalorder %s38, 0
      %p154 = por %p152, %p153
      %s156 = sadd.s32 %s155, 1
      %p159 = scmp.eq.s32.totalorder %s32, 1
      %p160 = scmp.ne.s32.totalorder %s155, %s157
      %p161 = scmp.eq.s32.totalorder %s32, 0
      %p162 = por %p160, %p161
      %p163 = scmp.ne.s32.totalorder %s155, %s157
      %p164 = scmp.eq.s32.totalorder %s37, 1
      %p165 = por %p163, %p164
      %p166 = scmp.ne.s32.totalorder %s157, %s158
      %p167 = scmp.eq.s32.totalorder %s37, 0
      %p168 = por %p166, %p167
      %p169 = scmp.ne.s32.totalorder %s157, %s158
      %p170 = scmp.eq.s32.totalorder %s38, 1
      %p171 = por %p169, %p170
      %p173 = scmp.ne.s32.totalorder %s158, %s172
      %p174 = scmp.eq.s32.totalorder %s38, 0
      %p175 = por %p173, %p174
      %s177 = sadd.s32 %s176, 1
      %p180 = scmp.eq.s32.totalorder %s32, 1
      %p181 = scmp.ne.s32.totalorder %s176, %s178
      %p182 = scmp.eq.s32.totalorder %s32, 0
      %p183 = por %p181, %p182
      %p184 = scmp.ne.s32.totalorder %s176, %s178
      %p185 = scmp.eq.s32.totalorder %s37, 1
      %p186 = por %p184, %p185
      %p187 = scmp.ne.s32.totalorder %s178, %s179
      %p188 = scmp.eq.s32.totalorder %s37, 0
      %p189 = por %p187, %p188
      %p190 = scmp.ne.s32.totalorder %s178, %s179
      %p191 = scmp.eq.s32.totalorder %s38, 1
      %p192 = por %p190, %p191
      %p194 = scmp.ne.s32.totalorder %s179, %s193
      %p195 = scmp.eq.s32.totalorder %s38, 0
      %p196 = por %p194, %p195
      %s198 = sadd.s32 %s197, 1
      %p201 = scmp.eq.s32.totalorder %s32, 1
      %p202 = scmp.ne.s32.totalorder %s197, %s199
      %p203 = scmp.eq.s32.totalorder %s32, 0
      %p204 = por %p202, %p203
      %p205 = scmp.ne.s32.totalorder %s197, %s199
      %p206 = scmp.eq.s32.totalorder %s37, 1
      %p207 = por %p205, %p206
      %p208 = scmp.ne.s32.totalorder %s199, %s200
      %p209 = scmp.eq.s32.totalorder %s37, 0
      %p210 = por %p208, %p209
      %p211 = scmp.ne.s32.totalorder %s199, %s200
      %p212 = scmp.eq.s32.totalorder %s38, 1
      %p213 = por %p211, %p212
      %p215 = scmp.ne.s32.totalorder %s200, %s214
      %p216 = scmp.eq.s32.totalorder %s38, 0
      %p217 = por %p215, %p216
      %s218 = ssub.s32 %s32, %s39
      %p219 = scmp.eq.s32.totalorder %s218, 0
      %s221 = sadd.s32 %s220, 1
      %s222 = scalar_select %p219, %s220, %s221
      %p225 = pneg %p219
      %p226 = scmp.eq.s32.totalorder %s32, 1
      %p227 = por %p225, %p226
      %p228 = scmp.ne.s32.totalorder %s220, %s223
      %p229 = scmp.eq.s32.totalorder %s32, 0
      %p230 = por %p228, %p229
      %p231 = scmp.ne.s32.totalorder %s220, %s223
      %p232 = scmp.eq.s32.totalorder %s37, 1
      %p233 = por %p231, %p232
      %p234 = scmp.ne.s32.totalorder %s223, %s224
      %p235 = scmp.eq.s32.totalorder %s37, 0
      %p236 = por %p234, %p235
      %p237 = scmp.ne.s32.totalorder %s223, %s224
      %p238 = scmp.eq.s32.totalorder %s38, 1
      %p239 = por %p237, %p238
      %p241 = scmp.ne.s32.totalorder %s224, %s240
      %p242 = scmp.eq.s32.totalorder %s38, 0
      %p243 = por %p241, %p242
      %s244 = ssub.s32 %s32, %s39
      %p245 = scmp.eq.s32.totalorder %s244, 0
      %s247 = sadd.s32 %s246, 1
      %s248 = scalar_select %p245, %s246, %s247
      %p251 = pneg %p245
      %p252 = scmp.eq.s32.totalorder %s32, 1
      %p253 = por %p251, %p252
      %p254 = scmp.ne.s32.totalorder %s246, %s249
      %p255 = scmp.eq.s32.totalorder %s32, 0
      %p256 = por %p254, %p255
      %p257 = scmp.ne.s32.totalorder %s246, %s249
      %p258 = scmp.eq.s32.totalorder %s37, 1
      %p259 = por %p257, %p258
      %p260 = scmp.ne.s32.totalorder %s249, %s250
      %p261 = scmp.eq.s32.totalorder %s37, 0
      %p262 = por %p260, %p261
      %p263 = scmp.ne.s32.totalorder %s249, %s250
      %p264 = scmp.eq.s32.totalorder %s38, 1
      %p265 = por %p263, %p264
      %p267 = scmp.ne.s32.totalorder %s250, %s266
      %p268 = scmp.eq.s32.totalorder %s38, 0
      %p269 = por %p267, %p268
      %p270 = scmp.le.s32.totalorder 1, %s32
      %p271 = scmp.lt.s32.totalorder %s32, 3
      %p272 = pnand %p270, %p271
      %p273 = pneg %p272
      // Predicated region
      $region9: #{tpu_custom_call.1} parent=5 // pred_check
        _
      $region10: #{tpu_custom_call.1} parent=5 // pred_check_branch
        %275 = sbr.rel (%p272) target = $region12
      $region11: #{tpu_custom_call.1} parent=5 // pred_region
        %s276 = ssub.s32 %s32, 1
        // Predicated region
        $region13: #{tpu_custom_call.1} parent=11 // pred_check
          %p277 = pneg %p105
        $region14: #{tpu_custom_call.1} parent=11 // pred_check_branch
          %279 = sbr.rel (%p277) target = $region16
        $region15: #{tpu_custom_call.1} parent=11 // pred_region
          %s281 = ssub.s32 32, 32
          %282 = vsyncadd [#allocation7], %s281
          %s284 = sshll.u32 %s2, 4
          %s285 = int_to_ptr.vmem [resolvable:$true] %s284
          %287 = dma.vmem_to_smem %s285, 32, [#allocation10], [#allocation7]
        $region16: #{tpu_custom_call.1} parent=11 // pred_fallthru
          _
        // Predicated region
        $region17: #{tpu_custom_call.1} parent=11 // pred_check
          %p288 = pneg %p126
        $region18: #{tpu_custom_call.1} parent=11 // pred_check_branch
          %290 = sbr.rel (%p288) target = $region20
        $region19: #{tpu_custom_call.1} parent=11 // pred_region
          %s292 = ssub.s32 16, 16
          %293 = vsyncadd [#allocation12], %s292
          %s295 = sshll.u32 %s3, 4
          %s296 = int_to_ptr.vmem [resolvable:$true] %s295
          %298 = dma.vmem_to_smem %s296, 16, [#allocation11], [#allocation12]
        $region20: #{tpu_custom_call.1} parent=11 // pred_fallthru
          _
        // Predicated region
        $region21: #{tpu_custom_call.1} parent=11 // pred_check
          %p299 = pneg %p147
        $region22: #{tpu_custom_call.1} parent=11 // pred_check_branch
          %301 = sbr.rel (%p299) target = $region24
        $region23: #{tpu_custom_call.1} parent=11 // pred_region
          %s303 = ssub.s32 16, 16
          %304 = vsyncadd [#allocation12], %s303
          %s306 = sshll.u32 %s4, 4
          %s307 = int_to_ptr.vmem [resolvable:$true] %s306
          %309 = dma.vmem_to_smem %s307, 16, [#allocation13], [#allocation12]
        $region24: #{tpu_custom_call.1} parent=11 // pred_fallthru
          _
        // Predicated region
        $region25: #{tpu_custom_call.1} parent=11 // pred_check
          %p310 = pneg %p168
        $region26: #{tpu_custom_call.1} parent=11 // pred_check_branch
          %312 = sbr.rel (%p310) target = $region28
        $region27: #{tpu_custom_call.1} parent=11 // pred_region
          %s314 = ssub.s32 16, 16
          %315 = vsyncadd [#allocation15], %s314
          %s317 = sshll.u32 %s5, 4
          %s318 = int_to_ptr.vmem [resolvable:$true] %s317
          %320 = dma.vmem_to_smem %s318, 16, [#allocation14], [#allocation15]
        $region28: #{tpu_custom_call.1} parent=11 // pred_fallthru
          _
        // Predicated region
        $region29: #{tpu_custom_call.1} parent=11 // pred_check
          %p321 = pneg %p189
        $region30: #{tpu_custom_call.1} parent=11 // pred_check_branch
          %323 = sbr.rel (%p321) target = $region32
        $region31: #{tpu_custom_call.1} parent=11 // pred_region
          %s325 = ssub.s32 16, 16
          %326 = vsyncadd [#allocation15], %s325
          %s328 = sshll.u32 %s6, 4
          %s329 = int_to_ptr.vmem [resolvable:$true] %s328
          %331 = dma.vmem_to_smem %s329, 16, [#allocation16], [#allocation15]
        $region32: #{tpu_custom_call.1} parent=11 // pred_fallthru
          _
        // Predicated region
        $region33: #{tpu_custom_call.1} parent=11 // pred_check
          %p332 = pneg %p210
        $region34: #{tpu_custom_call.1} parent=11 // pred_check_branch
          %334 = sbr.rel (%p332) target = $region36
        $region35: #{tpu_custom_call.1} parent=11 // pred_region
          %s336 = ssub.s32 16, 16
          %337 = vsyncadd [#allocation18], %s336
          %s339 = sshll.u32 %s7, 4
          %s340 = int_to_ptr.vmem [resolvable:$true] %s339
          %342 = dma.vmem_to_smem %s340, 16, [#allocation17], [#allocation18]
        $region36: #{tpu_custom_call.1} parent=11 // pred_fallthru
          _
      $region12: #{tpu_custom_call.1} parent=5 // pred_fallthru
        _
      %p343 = scmp.lt.s32.totalorder %s32, 2
      // Predicated region
      $region37: #{tpu_custom_call.1} parent=5 // pred_check
        %p344 = pneg %p343
      $region38: #{tpu_custom_call.1} parent=5 // pred_check_branch
        %346 = sbr.rel (%p344) target = $region40
      $region39: #{tpu_custom_call.1} parent=5 // pred_region
        // Predicated region
        $region41: #{tpu_custom_call.1} parent=39 // pred_check
          %p347 = pneg %p52
        $region42: #{tpu_custom_call.1} parent=39 // pred_check_branch
          %349 = sbr.rel (%p347) target = $region44
        $region43: #{tpu_custom_call.1} parent=39 // pred_region
          %s350 = sand.u32 %s42, 1
          %s351 = scalar_lea.sflag [#allocation5], %s350
          %s352 = sand.u32 %s42, 1
          %s353 = smul.addr %s352, 64
          %s354 = scalar_lea.vmem [#allocation4], %s353
          %s356 = ssub.s32 1024, 1024
          %357 = vsyncadd %s351, %s356
          %s358 = smul.addr %s32, 8
          %s359 = smul.addr %s358, 128
          %s360 = scalar_lea.hbm %s0, %s359
          %s361 = sshll.u32 %s354, 4
          %s362 = int_to_ptr.vmem [resolvable:$true] %s361
          %367 = dma.hbm_to_vmem [thread:$0]  %s360, 1024, %s362, %s351, 128, 128, 8
        $region44: #{tpu_custom_call.1} parent=39 // pred_fallthru
          _
        // Predicated region
        $region45: #{tpu_custom_call.1} parent=39 // pred_check
          %p368 = pneg %p78
        $region46: #{tpu_custom_call.1} parent=39 // pred_check_branch
          %370 = sbr.rel (%p368) target = $region48
        $region47: #{tpu_custom_call.1} parent=39 // pred_region
          %s371 = sand.u32 %s68, 1
          %s372 = scalar_lea.sflag [#allocation9], %s371
          %s373 = sand.u32 %s68, 1
          %s374 = smul.addr %s373, 48
          %s375 = scalar_lea.vmem [#allocation8], %s374
          %s377 = ssub.s32 768, 768
          %378 = vsyncadd %s372, %s377
          %s379 = smul.addr %s32, 6
          %s380 = smul.addr %s379, 128
          %s381 = scalar_lea.hbm %s1, %s380
          %s382 = sshll.u32 %s375, 4
          %s383 = int_to_ptr.vmem [resolvable:$true] %s382
          %388 = dma.hbm_to_vmem [thread:$0]  %s381, 768, %s383, %s372, 128, 128, 8
        $region48: #{tpu_custom_call.1} parent=39 // pred_fallthru
          _
      $region40: #{tpu_custom_call.1} parent=5 // pred_fallthru
        _
      %p389 = scmp.le.s32.totalorder 1, %s32
      %p390 = scmp.lt.s32.totalorder %s32, 3
      %p391 = pnand %p389, %p390
      %p392 = pneg %p391
      // Predicated region
      $region49: #{tpu_custom_call.1} parent=5 // pred_check
        _
      $region50: #{tpu_custom_call.1} parent=5 // pred_check_branch
        %394 = sbr.rel (%p391) target = $region52
      $region51: #{tpu_custom_call.1} parent=5 // pred_region
        %s395 = ssub.s32 %s32, 1
        %s396 = sand.u32 %s45, 1
        %s397 = scalar_lea.sflag [#allocation5], %s396
        %s398 = sand.u32 %s45, 1
        %s399 = smul.addr %s398, 64
        %s400 = scalar_lea.vmem [#allocation4], %s399
        // Predicated region
        $region53: #{tpu_custom_call.1} parent=51 // pred_check
          %p401 = pneg %p58
        $region54: #{tpu_custom_call.1} parent=51 // pred_check_branch
          %403 = sbr.rel (%p401) target = $region56
        $region55: #{tpu_custom_call.1} parent=51 // pred_region
          %404 = dma.done %s397, 1024
        $region56: #{tpu_custom_call.1} parent=51 // pred_fallthru
          _
        %s405 = sand.u32 %s71, 1
        %s406 = scalar_lea.sflag [#allocation9], %s405
        %s407 = sand.u32 %s71, 1
        %s408 = smul.addr %s407, 48
        %s409 = scalar_lea.vmem [#allocation8], %s408
        // Predicated region
        $region57: #{tpu_custom_call.1} parent=51 // pred_check
          %p410 = pneg %p84
        $region58: #{tpu_custom_call.1} parent=51 // pred_check_branch
          %412 = sbr.rel (%p410) target = $region60
        $region59: #{tpu_custom_call.1} parent=51 // pred_region
          %413 = dma.done %s406, 768
        $region60: #{tpu_custom_call.1} parent=51 // pred_fallthru
          _
        // Predicated region
        $region61: #{tpu_custom_call.1} parent=51 // pred_check
          %p414 = pneg %p105
        $region62: #{tpu_custom_call.1} parent=51 // pred_check_branch
          %416 = sbr.rel (%p414) target = $region64
        $region63: #{tpu_custom_call.1} parent=51 // pred_region
          %417 = dma.done [#allocation7], 32
        $region64: #{tpu_custom_call.1} parent=51 // pred_fallthru
          _
        // Predicated region
        $region65: #{tpu_custom_call.1} parent=51 // pred_check
          %p418 = pneg %p126
        $region66: #{tpu_custom_call.1} parent=51 // pred_check_branch
          %420 = sbr.rel (%p418) target = $region68
        $region67: #{tpu_custom_call.1} parent=51 // pred_region
          %421 = dma.done [#allocation12], 16
        $region68: #{tpu_custom_call.1} parent=51 // pred_fallthru
          _
        // Predicated region
        $region69: #{tpu_custom_call.1} parent=51 // pred_check
          %p422 = pneg %p147
        $region70: #{tpu_custom_call.1} parent=51 // pred_check_branch
          %424 = sbr.rel (%p422) target = $region72
        $region71: #{tpu_custom_call.1} parent=51 // pred_region
          %425 = dma.done [#allocation12], 16
        $region72: #{tpu_custom_call.1} parent=51 // pred_fallthru
          _
        // Predicated region
        $region73: #{tpu_custom_call.1} parent=51 // pred_check
          %p426 = pneg %p168
        $region74: #{tpu_custom_call.1} parent=51 // pred_check_branch
          %428 = sbr.rel (%p426) target = $region76
        $region75: #{tpu_custom_call.1} parent=51 // pred_region
          %429 = dma.done [#allocation15], 16
        $region76: #{tpu_custom_call.1} parent=51 // pred_fallthru
          _
        // Predicated region
        $region77: #{tpu_custom_call.1} parent=51 // pred_check
          %p430 = pneg %p189
        $region78: #{tpu_custom_call.1} parent=51 // pred_check_branch
          %432 = sbr.rel (%p430) target = $region80
        $region79: #{tpu_custom_call.1} parent=51 // pred_region
          %433 = dma.done [#allocation15], 16
        $region80: #{tpu_custom_call.1} parent=51 // pred_fallthru
          _
        // Predicated region
        $region81: #{tpu_custom_call.1} parent=51 // pred_check
          %p434 = pneg %p210
        $region82: #{tpu_custom_call.1} parent=51 // pred_check_branch
          %436 = sbr.rel (%p434) target = $region84
        $region83: #{tpu_custom_call.1} parent=51 // pred_region
          %437 = dma.done [#allocation18], 16
        $region84: #{tpu_custom_call.1} parent=51 // pred_fallthru
          _
        %438 = sfence
        %s439 = sand.u32 %s45, 1
        %s440 = scalar_lea.sflag [#allocation5], %s439
        %s441 = sand.u32 %s45, 1
        %s442 = smul.addr %s441, 64
        %s443 = scalar_lea.vmem [#allocation4], %s442
        %p444 = pneg %p58
        %p445 = pneg %p55
        %s446 = sand.u32 %s71, 1
        %s447 = scalar_lea.sflag [#allocation9], %s446
        %s448 = sand.u32 %s71, 1
        %s449 = smul.addr %s448, 48
        %s450 = scalar_lea.vmem [#allocation8], %s449
        %p451 = pneg %p84
        %p452 = pneg %p81
        %p453 = pneg %p105
        %p454 = pneg %p102
        %p455 = pneg %p126
        %p456 = pneg %p123
        %p457 = pneg %p147
        %p458 = pneg %p144
        %p459 = pneg %p168
        %p460 = pneg %p165
        %p461 = pneg %p189
        %p462 = pneg %p186
        %p463 = pneg %p210
        %p464 = pneg %p207
        %p465 = pneg %p236
        %p466 = pneg %p233
        %s467 = sand.u32 %s223, 1
        %s468 = scalar_lea.sflag [#allocation6], %s467
        %s469 = sand.u32 %s223, 1
        %s470 = smul.addr %s469, 64
        %s471 = scalar_lea.vmem [#allocation19], %s470
        %p472 = pneg %p262
        %p473 = pneg %p259
        %s474 = sand.u32 %s249, 1
        %s475 = scalar_lea.sflag [#allocation21], %s474
        %s476 = sand.u32 %s249, 1
        %s477 = smul.addr %s476, 48
        %s478 = scalar_lea.vmem [#allocation20], %s477
        %vm479 = vcmask 146432
        %480 = vst.msk [vmem:[#allocation2] sm:$0xff] %vm479, 0.0
        %481 = vst.msk [vmem:[#allocation2 + $0x8] sm:$0xff] %vm479, 0.0
        %vm482 = vcmask 140288
        %483 = vst.msk [vmem:[#allocation2 + $0x10] sm:$0x3] %vm482, 0.0
        %484 = vst.msk [vmem:[#allocation2 + $0x18] sm:$0xff] %vm479, 0.0
        %485 = vst.msk [vmem:[#allocation2 + $0x20] sm:$0xff] %vm479, 0.0
        %486 = vst.msk [vmem:[#allocation2 + $0x28] sm:$0x3] %vm482, 0.0
        %487 = vst.msk [vmem:[#allocation2 + $0x30] sm:$0xff] %vm479, 0.0
        %488 = vst.msk [vmem:[#allocation2 + $0x38] sm:$0xff] %vm479, 0.0
        %489 = vst.msk [vmem:[#allocation2 + $0x40] sm:$0x3] %vm482, 0.0
        %490 = vst.msk [vmem:[#allocation2 + $0x48] sm:$0xff] %vm479, 0.0
        %491 = vst.msk [vmem:[#allocation2 + $0x50] sm:$0xff] %vm479, 0.0
        %492 = vst.msk [vmem:[#allocation2 + $0x58] sm:$0x3] %vm482, 0.0
        %v493 = vld [vmem:[%s400] sm:$0xff]
        %v494 = vld [vmem:[%s400 + $0x8] sm:$0xff]
        %v495 = vld [vmem:[%s400 + $0x10] sm:$0xff]
        %v496 = vld [vmem:[%s400 + $0x18] sm:$0xff]
        %v497 = vld [vmem:[%s400 + $0x20] sm:$0xff]
        %v498 = vld [vmem:[%s400 + $0x28] sm:$0xff]
        %v499 = vld [vmem:[%s400 + $0x30] sm:$0xff]
        %v500 = vld [vmem:[%s400 + $0x38] sm:$0xff]
        %509 = vrot.lane.b32.xlu0 %v493, 1
        %v510 = vpop.permute.xlu0 %509
        %511 = vrot.lane.b32.xlu0 %v494, 1
        %v512 = vpop.permute.xlu0 %511
        %513 = vrot.lane.b32.xlu0 %v495, 1
        %v514 = vpop.permute.xlu0 %513
        %515 = vrot.lane.b32.xlu0 %v496, 1
        %v516 = vpop.permute.xlu0 %515
        %517 = vrot.lane.b32.xlu0 %v497, 1
        %v518 = vpop.permute.xlu0 %517
        %519 = vrot.lane.b32.xlu0 %v498, 1
        %v520 = vpop.permute.xlu0 %519
        %521 = vrot.lane.b32.xlu0 %v499, 1
        %v522 = vpop.permute.xlu0 %521
        %523 = vrot.lane.b32.xlu0 %v500, 1
        %v524 = vpop.permute.xlu0 %523
        %vm533 = vcmask 138248
        %534 = vst.msk [vmem:[#allocation2 + $0x1] sm:$0xff] %vm533, %v510
        %535 = vst.msk [vmem:[#allocation2 + $0x9] sm:$0xff] %vm533, %v512
        %536 = vst.msk [vmem:[#allocation2 + $0x19] sm:$0xff] %vm533, %v514
        %537 = vst.msk [vmem:[#allocation2 + $0x21] sm:$0xff] %vm533, %v516
        %538 = vst.msk [vmem:[#allocation2 + $0x31] sm:$0xff] %vm533, %v518
        %539 = vst.msk [vmem:[#allocation2 + $0x39] sm:$0xff] %vm533, %v520
        %540 = vst.msk [vmem:[#allocation2 + $0x49] sm:$0xff] %vm533, %v522
        %541 = vst.msk [vmem:[#allocation2 + $0x51] sm:$0xff] %vm533, %v524
        %542 = vst.msk [vmem:[#allocation3] sm:$0xff] %vm479, 0.0
        %543 = vst.msk [vmem:[#allocation3 + $0x8] sm:$0xff] %vm479, 0.0
        %544 = vst.msk [vmem:[#allocation3 + $0x10] sm:$0x3] %vm482, 0.0
        %545 = vst.msk [vmem:[#allocation3 + $0x18] sm:$0xff] %vm479, 0.0
        %546 = vst.msk [vmem:[#allocation3 + $0x20] sm:$0xff] %vm479, 0.0
        %547 = vst.msk [vmem:[#allocation3 + $0x28] sm:$0x3] %vm482, 0.0
        %548 = vst.msk [vmem:[#allocation3 + $0x30] sm:$0xff] %vm479, 0.0
        %549 = vst.msk [vmem:[#allocation3 + $0x38] sm:$0xff] %vm479, 0.0
        %550 = vst.msk [vmem:[#allocation3 + $0x40] sm:$0x3] %vm482, 0.0
        %s551 = sld [smem:[#allocation14]]
        %v552 = vstv %s551
        %v553 = vadd.f32 %v552, 0.0
        %s554 = sld [smem:[#allocation13]]
        %v555 = vld [vmem:[#allocation2] sm:$0xff]
        %v556 = vld [vmem:[#allocation2 + $0x8] sm:$0xff]
        %v557 = vstv %s554
        %v558 = vmul.f32 %v557, %v555
        %v559 = vmul.f32 %v557, %v556
        %v560 = vadd.f32 %v553, %v558
        %v561 = vadd.f32 %v553, %v559
        %s562 = sld [smem:[#allocation13 + $0x1]]
        %v563 = vstv %s562
        %v564 = vmul.f32 %v563, %v555
        %v565 = vmul.f32 %v563, %v556
        %568 = vrot.lane.b32.xlu0 %v564, 127
        %v569 = vpop.permute.xlu0 %568
        %570 = vrot.lane.b32.xlu0 %v565, 127
        %v571 = vpop.permute.xlu0 %570
        %v574 = vadd.f32 %v560, %v569
        %v575 = vadd.f32 %v561, %v571
        %s576 = sld [smem:[#allocation13 + $0x2]]
        %v577 = vstv %s576
        %v578 = vmul.f32 %v577, %v555
        %v579 = vmul.f32 %v577, %v556
        %582 = vrot.lane.b32.xlu0 %v578, 126
        %v583 = vpop.permute.xlu0 %582
        %584 = vrot.lane.b32.xlu0 %v579, 126
        %v585 = vpop.permute.xlu0 %584
        %v588 = vadd.f32 %v574, %v583
        %v589 = vadd.f32 %v575, %v585
        %s590 = sld [smem:[#allocation13 + $0x3]]
        %v591 = vld [vmem:[#allocation2 + $0x1] sm:$0xff]
        %v592 = vld [vmem:[#allocation2 + $0x9] sm:$0xff]
        %v593 = vstv %s590
        %v594 = vmul.f32 %v593, %v591
        %v595 = vmul.f32 %v593, %v592
        %v596 = vadd.f32 %v588, %v594
        %v597 = vadd.f32 %v589, %v595
        %s598 = sld [smem:[#allocation13 + $0x4]]
        %v599 = vstv %s598
        %v600 = vmul.f32 %v599, %v591
        %v601 = vmul.f32 %v599, %v592
        %604 = vrot.lane.b32.xlu0 %v600, 127
        %v605 = vpop.permute.xlu0 %604
        %606 = vrot.lane.b32.xlu0 %v601, 127
        %v607 = vpop.permute.xlu0 %606
        %v610 = vadd.f32 %v596, %v605
        %v611 = vadd.f32 %v597, %v607
        %s612 = sld [smem:[#allocation13 + $0x5]]
        %v613 = vstv %s612
        %v614 = vmul.f32 %v613, %v591
        %v615 = vmul.f32 %v613, %v592
        %618 = vrot.lane.b32.xlu0 %v614, 126
        %v619 = vpop.permute.xlu0 %618
        %620 = vrot.lane.b32.xlu0 %v615, 126
        %v621 = vpop.permute.xlu0 %620
        %v624 = vadd.f32 %v610, %v619
        %v625 = vadd.f32 %v611, %v621
        %s626 = sld [smem:[#allocation13 + $0x6]]
        %v627 = vld [vmem:[#allocation2 + $0x2] sm:$0xff]
        %v628 = vld [vmem:[#allocation2 + $0xa] sm:$0xff]
        %v629 = vstv %s626
        %v630 = vmul.f32 %v629, %v627
        %v631 = vmul.f32 %v629, %v628
        %v632 = vadd.f32 %v624, %v630
        %v633 = vadd.f32 %v625, %v631
        %s634 = sld [smem:[#allocation13 + $0x7]]
        %v635 = vstv %s634
        %v636 = vmul.f32 %v635, %v627
        %v637 = vmul.f32 %v635, %v628
        %640 = vrot.lane.b32.xlu0 %v636, 127
        %v641 = vpop.permute.xlu0 %640
        %642 = vrot.lane.b32.xlu0 %v637, 127
        %v643 = vpop.permute.xlu0 %642
        %v646 = vadd.f32 %v632, %v641
        %v647 = vadd.f32 %v633, %v643
        %s648 = sld [smem:[#allocation13 + $0x8]]
        %v649 = vstv %s648
        %v650 = vmul.f32 %v649, %v627
        %v651 = vmul.f32 %v649, %v628
        %654 = vrot.lane.b32.xlu0 %v650, 126
        %v655 = vpop.permute.xlu0 %654
        %656 = vrot.lane.b32.xlu0 %v651, 126
        %v657 = vpop.permute.xlu0 %656
        %v660 = vadd.f32 %v646, %v655
        %v661 = vadd.f32 %v647, %v657
        %s662 = sld [smem:[#allocation13 + $0x9]]
        %s663 = scalar_lea.vmem [#allocation2], 24
        %v664 = vld [vmem:[%s663] sm:$0xff]
        %v665 = vld [vmem:[%s663 + $0x8] sm:$0xff]
        %v666 = vstv %s662
        %v667 = vmul.f32 %v666, %v664
        %v668 = vmul.f32 %v666, %v665
        %v669 = vadd.f32 %v660, %v667
        %v670 = vadd.f32 %v661, %v668
        %s671 = sld [smem:[#allocation13 + $0xa]]
        %v672 = vstv %s671
        %v673 = vmul.f32 %v672, %v664
        %v674 = vmul.f32 %v672, %v665
        %677 = vrot.lane.b32.xlu0 %v673, 127
        %v678 = vpop.permute.xlu0 %677
        %679 = vrot.lane.b32.xlu0 %v674, 127
        %v680 = vpop.permute.xlu0 %679
        %v683 = vadd.f32 %v669, %v678
        %v684 = vadd.f32 %v670, %v680
        %s685 = sld [smem:[#allocation13 + $0xb]]
        %v686 = vstv %s685
        %v687 = vmul.f32 %v686, %v664
        %v688 = vmul.f32 %v686, %v665
        %691 = vrot.lane.b32.xlu0 %v687, 126
        %v692 = vpop.permute.xlu0 %691
        %693 = vrot.lane.b32.xlu0 %v688, 126
        %v694 = vpop.permute.xlu0 %693
        %v697 = vadd.f32 %v683, %v692
        %v698 = vadd.f32 %v684, %v694
        %s699 = sld [smem:[#allocation13 + $0xc]]
        %v700 = vld [vmem:[%s663 + $0x1] sm:$0xff]
        %v701 = vld [vmem:[%s663 + $0x9] sm:$0xff]
        %v702 = vstv %s699
        %v703 = vmul.f32 %v702, %v700
        %v704 = vmul.f32 %v702, %v701
        %v705 = vadd.f32 %v697, %v703
        %v706 = vadd.f32 %v698, %v704
        %s707 = sld [smem:[#allocation13 + $0xd]]
        %v708 = vstv %s707
        %v709 = vmul.f32 %v708, %v700
        %v710 = vmul.f32 %v708, %v701
        %713 = vrot.lane.b32.xlu0 %v709, 127
        %v714 = vpop.permute.xlu0 %713
        %715 = vrot.lane.b32.xlu0 %v710, 127
        %v716 = vpop.permute.xlu0 %715
        %v719 = vadd.f32 %v705, %v714
        %v720 = vadd.f32 %v706, %v716
        %s721 = sld [smem:[#allocation13 + $0xe]]
        %v722 = vstv %s721
        %v723 = vmul.f32 %v722, %v700
        %v724 = vmul.f32 %v722, %v701
        %727 = vrot.lane.b32.xlu0 %v723, 126
        %v728 = vpop.permute.xlu0 %727
        %729 = vrot.lane.b32.xlu0 %v724, 126
        %v730 = vpop.permute.xlu0 %729
        %v733 = vadd.f32 %v719, %v728
        %v734 = vadd.f32 %v720, %v730
        %s735 = sld [smem:[#allocation13 + $0xf]]
        %v736 = vld [vmem:[%s663 + $0x2] sm:$0xff]
        %v737 = vld [vmem:[%s663 + $0xa] sm:$0xff]
        %v738 = vstv %s735
        %v739 = vmul.f32 %v738, %v736
        %v740 = vmul.f32 %v738, %v737
        %v741 = vadd.f32 %v733, %v739
        %v742 = vadd.f32 %v734, %v740
        %s743 = sld [smem:[#allocation13 + $0x10]]
        %v744 = vstv %s743
        %v745 = vmul.f32 %v744, %v736
        %v746 = vmul.f32 %v744, %v737
        %749 = vrot.lane.b32.xlu0 %v745, 127
        %v750 = vpop.permute.xlu0 %749
        %751 = vrot.lane.b32.xlu0 %v746, 127
        %v752 = vpop.permute.xlu0 %751
        %v755 = vadd.f32 %v741, %v750
        %v756 = vadd.f32 %v742, %v752
        %s757 = sld [smem:[#allocation13 + $0x11]]
        %v758 = vstv %s757
        %v759 = vmul.f32 %v758, %v736
        %v760 = vmul.f32 %v758, %v737
        %763 = vrot.lane.b32.xlu0 %v759, 126
        %v764 = vpop.permute.xlu0 %763
        %765 = vrot.lane.b32.xlu0 %v760, 126
        %v766 = vpop.permute.xlu0 %765
        %v769 = vadd.f32 %v755, %v764
        %v770 = vadd.f32 %v756, %v766
        %s771 = sld [smem:[#allocation13 + $0x12]]
        %s772 = scalar_lea.vmem [#allocation2], 48
        %v773 = vld [vmem:[%s772] sm:$0xff]
        %v774 = vld [vmem:[%s772 + $0x8] sm:$0xff]
        %v775 = vstv %s771
        %v776 = vmul.f32 %v775, %v773
        %v777 = vmul.f32 %v775, %v774
        %v778 = vadd.f32 %v769, %v776
        %v779 = vadd.f32 %v770, %v777
        %s780 = sld [smem:[#allocation13 + $0x13]]
        %v781 = vstv %s780
        %v782 = vmul.f32 %v781, %v773
        %v783 = vmul.f32 %v781, %v774
        %786 = vrot.lane.b32.xlu0 %v782, 127
        %v787 = vpop.permute.xlu0 %786
        %788 = vrot.lane.b32.xlu0 %v783, 127
        %v789 = vpop.permute.xlu0 %788
        %v792 = vadd.f32 %v778, %v787
        %v793 = vadd.f32 %v779, %v789
        %s794 = sld [smem:[#allocation13 + $0x14]]
        %v795 = vstv %s794
        %v796 = vmul.f32 %v795, %v773
        %v797 = vmul.f32 %v795, %v774
        %800 = vrot.lane.b32.xlu0 %v796, 126
        %v801 = vpop.permute.xlu0 %800
        %802 = vrot.lane.b32.xlu0 %v797, 126
        %v803 = vpop.permute.xlu0 %802
        %v806 = vadd.f32 %v792, %v801
        %v807 = vadd.f32 %v793, %v803
        %s808 = sld [smem:[#allocation13 + $0x15]]
        %v809 = vld [vmem:[%s772 + $0x1] sm:$0xff]
        %v810 = vld [vmem:[%s772 + $0x9] sm:$0xff]
        %v811 = vstv %s808
        %v812 = vmul.f32 %v811, %v809
        %v813 = vmul.f32 %v811, %v810
        %v814 = vadd.f32 %v806, %v812
        %v815 = vadd.f32 %v807, %v813
        %s816 = sld [smem:[#allocation13 + $0x16]]
        %v817 = vstv %s816
        %v818 = vmul.f32 %v817, %v809
        %v819 = vmul.f32 %v817, %v810
        %822 = vrot.lane.b32.xlu0 %v818, 127
        %v823 = vpop.permute.xlu0 %822
        %824 = vrot.lane.b32.xlu0 %v819, 127
        %v825 = vpop.permute.xlu0 %824
        %v828 = vadd.f32 %v814, %v823
        %v829 = vadd.f32 %v815, %v825
        %s830 = sld [smem:[#allocation13 + $0x17]]
        %v831 = vstv %s830
        %v832 = vmul.f32 %v831, %v809
        %v833 = vmul.f32 %v831, %v810
        %836 = vrot.lane.b32.xlu0 %v832, 126
        %v837 = vpop.permute.xlu0 %836
        %838 = vrot.lane.b32.xlu0 %v833, 126
        %v839 = vpop.permute.xlu0 %838
        %v842 = vadd.f32 %v828, %v837
        %v843 = vadd.f32 %v829, %v839
        %s844 = sld [smem:[#allocation13 + $0x18]]
        %v845 = vld [vmem:[%s772 + $0x2] sm:$0xff]
        %v846 = vld [vmem:[%s772 + $0xa] sm:$0xff]
        %v847 = vstv %s844
        %v848 = vmul.f32 %v847, %v845
        %v849 = vmul.f32 %v847, %v846
        %v850 = vadd.f32 %v842, %v848
        %v851 = vadd.f32 %v843, %v849
        %s852 = sld [smem:[#allocation13 + $0x19]]
        %v853 = vstv %s852
        %v854 = vmul.f32 %v853, %v845
        %v855 = vmul.f32 %v853, %v846
        %858 = vrot.lane.b32.xlu0 %v854, 127
        %v859 = vpop.permute.xlu0 %858
        %860 = vrot.lane.b32.xlu0 %v855, 127
        %v861 = vpop.permute.xlu0 %860
        %v864 = vadd.f32 %v850, %v859
        %v865 = vadd.f32 %v851, %v861
        %s866 = sld [smem:[#allocation13 + $0x1a]]
        %v867 = vstv %s866
        %v868 = vmul.f32 %v867, %v845
        %v869 = vmul.f32 %v867, %v846
        %872 = vrot.lane.b32.xlu0 %v868, 126
        %v873 = vpop.permute.xlu0 %872
        %874 = vrot.lane.b32.xlu0 %v869, 126
        %v875 = vpop.permute.xlu0 %874
        %v878 = vadd.f32 %v864, %v873
        %v879 = vadd.f32 %v865, %v875
        %s880 = sld [smem:[#allocation13 + $0x1b]]
        %s881 = scalar_lea.vmem [#allocation2], 72
        %v882 = vld [vmem:[%s881] sm:$0xff]
        %v883 = vld [vmem:[%s881 + $0x8] sm:$0xff]
        %v884 = vstv %s880
        %v885 = vmul.f32 %v884, %v882
        %v886 = vmul.f32 %v884, %v883
        %v887 = vadd.f32 %v878, %v885
        %v888 = vadd.f32 %v879, %v886
        %s889 = sld [smem:[#allocation13 + $0x1c]]
        %v890 = vstv %s889
        %v891 = vmul.f32 %v890, %v882
        %v892 = vmul.f32 %v890, %v883
        %895 = vrot.lane.b32.xlu0 %v891, 127
        %v896 = vpop.permute.xlu0 %895
        %897 = vrot.lane.b32.xlu0 %v892, 127
        %v898 = vpop.permute.xlu0 %897
        %v901 = vadd.f32 %v887, %v896
        %v902 = vadd.f32 %v888, %v898
        %s903 = sld [smem:[#allocation13 + $0x1d]]
        %v904 = vstv %s903
        %v905 = vmul.f32 %v904, %v882
        %v906 = vmul.f32 %v904, %v883
        %909 = vrot.lane.b32.xlu0 %v905, 126
        %v910 = vpop.permute.xlu0 %909
        %911 = vrot.lane.b32.xlu0 %v906, 126
        %v912 = vpop.permute.xlu0 %911
        %v915 = vadd.f32 %v901, %v910
        %v916 = vadd.f32 %v902, %v912
        %s917 = sld [smem:[#allocation13 + $0x1e]]
        %v918 = vld [vmem:[%s881 + $0x1] sm:$0xff]
        %v919 = vld [vmem:[%s881 + $0x9] sm:$0xff]
        %v920 = vstv %s917
        %v921 = vmul.f32 %v920, %v918
        %v922 = vmul.f32 %v920, %v919
        %v923 = vadd.f32 %v915, %v921
        %v924 = vadd.f32 %v916, %v922
        %s925 = sld [smem:[#allocation13 + $0x1f]]
        %v926 = vstv %s925
        %v927 = vmul.f32 %v926, %v918
        %v928 = vmul.f32 %v926, %v919
        %931 = vrot.lane.b32.xlu0 %v927, 127
        %v932 = vpop.permute.xlu0 %931
        %933 = vrot.lane.b32.xlu0 %v928, 127
        %v934 = vpop.permute.xlu0 %933
        %v937 = vadd.f32 %v923, %v932
        %v938 = vadd.f32 %v924, %v934
        %s939 = sld [smem:[#allocation13 + $0x20]]
        %v940 = vstv %s939
        %v941 = vmul.f32 %v940, %v918
        %v942 = vmul.f32 %v940, %v919
        %945 = vrot.lane.b32.xlu0 %v941, 126
        %v946 = vpop.permute.xlu0 %945
        %947 = vrot.lane.b32.xlu0 %v942, 126
        %v948 = vpop.permute.xlu0 %947
        %v951 = vadd.f32 %v937, %v946
        %v952 = vadd.f32 %v938, %v948
        %s953 = sld [smem:[#allocation13 + $0x21]]
        %v954 = vld [vmem:[%s881 + $0x2] sm:$0xff]
        %v955 = vld [vmem:[%s881 + $0xa] sm:$0xff]
        %v956 = vstv %s953
        %v957 = vmul.f32 %v956, %v954
        %v958 = vmul.f32 %v956, %v955
        %v959 = vadd.f32 %v951, %v957
        %v960 = vadd.f32 %v952, %v958
        %s961 = sld [smem:[#allocation13 + $0x22]]
        %v962 = vstv %s961
        %v963 = vmul.f32 %v962, %v954
        %v964 = vmul.f32 %v962, %v955
        %967 = vrot.lane.b32.xlu0 %v963, 127
        %v968 = vpop.permute.xlu0 %967
        %969 = vrot.lane.b32.xlu0 %v964, 127
        %v970 = vpop.permute.xlu0 %969
        %v973 = vadd.f32 %v959, %v968
        %v974 = vadd.f32 %v960, %v970
        %s975 = sld [smem:[#allocation13 + $0x23]]
        %v976 = vstv %s975
        %v977 = vmul.f32 %v976, %v954
        %v978 = vmul.f32 %v976, %v955
        %981 = vrot.lane.b32.xlu0 %v977, 126
        %v982 = vpop.permute.xlu0 %981
        %983 = vrot.lane.b32.xlu0 %v978, 126
        %v984 = vpop.permute.xlu0 %983
        %v987 = vadd.f32 %v973, %v982
        %v988 = vadd.f32 %v974, %v984
        %v989 = vld [vmem:[%s409] sm:$0xff]
        %v990 = vld [vmem:[%s409 + $0x8] sm:$0xff]
        %v991 = vadd.f32 %v987, %v989
        %v992 = vadd.f32 %v988, %v990
        %vm993 = vcmask 130048
        %994 = vst.msk [vmem:[%s478] sm:$0xff] %vm993, %v991
        %995 = vst.msk [vmem:[%s478 + $0x8] sm:$0xff] %vm993, %v992
        %998 = vrot.lane.b32.xlu0 %v991, 1
        %v999 = vpop.permute.xlu0 %998
        %1000 = vrot.lane.b32.xlu0 %v992, 1
        %v1001 = vpop.permute.xlu0 %1000
        %1004 = vst.msk [vmem:[#allocation3 + $0x1] sm:$0xff] %vm533, %v999
        %1005 = vst.msk [vmem:[#allocation3 + $0x9] sm:$0xff] %vm533, %v1001
        %s1006 = sld [smem:[#allocation14 + $0x1]]
        %v1007 = vstv %s1006
        %v1008 = vadd.f32 %v1007, 0.0
        %s1009 = sld [smem:[#allocation13 + $0x24]]
        %v1010 = vld [vmem:[#allocation2] sm:$0xff]
        %v1011 = vld [vmem:[#allocation2 + $0x8] sm:$0xff]
        %v1012 = vstv %s1009
        %v1013 = vmul.f32 %v1012, %v1010
        %v1014 = vmul.f32 %v1012, %v1011
        %v1015 = vadd.f32 %v1008, %v1013
        %v1016 = vadd.f32 %v1008, %v1014
        %s1017 = sld [smem:[#allocation13 + $0x25]]
        %v1018 = vstv %s1017
        %v1019 = vmul.f32 %v1018, %v1010
        %v1020 = vmul.f32 %v1018, %v1011
        %1023 = vrot.lane.b32.xlu0 %v1019, 127
        %v1024 = vpop.permute.xlu0 %1023
        %1025 = vrot.lane.b32.xlu0 %v1020, 127
        %v1026 = vpop.permute.xlu0 %1025
        %v1029 = vadd.f32 %v1015, %v1024
        %v1030 = vadd.f32 %v1016, %v1026
        %s1031 = sld [smem:[#allocation13 + $0x26]]
        %v1032 = vstv %s1031
        %v1033 = vmul.f32 %v1032, %v1010
        %v1034 = vmul.f32 %v1032, %v1011
        %1037 = vrot.lane.b32.xlu0 %v1033, 126
        %v1038 = vpop.permute.xlu0 %1037
        %1039 = vrot.lane.b32.xlu0 %v1034, 126
        %v1040 = vpop.permute.xlu0 %1039
        %v1043 = vadd.f32 %v1029, %v1038
        %v1044 = vadd.f32 %v1030, %v1040
        %s1045 = sld [smem:[#allocation13 + $0x27]]
        %v1046 = vld [vmem:[#allocation2 + $0x1] sm:$0xff]
        %v1047 = vld [vmem:[#allocation2 + $0x9] sm:$0xff]
        %v1048 = vstv %s1045
        %v1049 = vmul.f32 %v1048, %v1046
        %v1050 = vmul.f32 %v1048, %v1047
        %v1051 = vadd.f32 %v1043, %v1049
        %v1052 = vadd.f32 %v1044, %v1050
        %s1053 = sld [smem:[#allocation13 + $0x28]]
        %v1054 = vstv %s1053
        %v1055 = vmul.f32 %v1054, %v1046
        %v1056 = vmul.f32 %v1054, %v1047
        %1059 = vrot.lane.b32.xlu0 %v1055, 127
        %v1060 = vpop.permute.xlu0 %1059
        %1061 = vrot.lane.b32.xlu0 %v1056, 127
        %v1062 = vpop.permute.xlu0 %1061
        %v1065 = vadd.f32 %v1051, %v1060
        %v1066 = vadd.f32 %v1052, %v1062
        %s1067 = sld [smem:[#allocation13 + $0x29]]
        %v1068 = vstv %s1067
        %v1069 = vmul.f32 %v1068, %v1046
        %v1070 = vmul.f32 %v1068, %v1047
        %1073 = vrot.lane.b32.xlu0 %v1069, 126
        %v1074 = vpop.permute.xlu0 %1073
        %1075 = vrot.lane.b32.xlu0 %v1070, 126
        %v1076 = vpop.permute.xlu0 %1075
        %v1079 = vadd.f32 %v1065, %v1074
        %v1080 = vadd.f32 %v1066, %v1076
        %s1081 = sld [smem:[#allocation13 + $0x2a]]
        %v1082 = vld [vmem:[#allocation2 + $0x2] sm:$0xff]
        %v1083 = vld [vmem:[#allocation2 + $0xa] sm:$0xff]
        %v1084 = vstv %s1081
        %v1085 = vmul.f32 %v1084, %v1082
        %v1086 = vmul.f32 %v1084, %v1083
        %v1087 = vadd.f32 %v1079, %v1085
        %v1088 = vadd.f32 %v1080, %v1086
        %s1089 = sld [smem:[#allocation13 + $0x2b]]
        %v1090 = vstv %s1089
        %v1091 = vmul.f32 %v1090, %v1082
        %v1092 = vmul.f32 %v1090, %v1083
        %1095 = vrot.lane.b32.xlu0 %v1091, 127
        %v1096 = vpop.permute.xlu0 %1095
        %1097 = vrot.lane.b32.xlu0 %v1092, 127
        %v1098 = vpop.permute.xlu0 %1097
        %v1101 = vadd.f32 %v1087, %v1096
        %v1102 = vadd.f32 %v1088, %v1098
        %s1103 = sld [smem:[#allocation13 + $0x2c]]
        %v1104 = vstv %s1103
        %v1105 = vmul.f32 %v1104, %v1082
        %v1106 = vmul.f32 %v1104, %v1083
        %1109 = vrot.lane.b32.xlu0 %v1105, 126
        %v1110 = vpop.permute.xlu0 %1109
        %1111 = vrot.lane.b32.xlu0 %v1106, 126
        %v1112 = vpop.permute.xlu0 %1111
        %v1115 = vadd.f32 %v1101, %v1110
        %v1116 = vadd.f32 %v1102, %v1112
        %s1117 = sld [smem:[#allocation13 + $0x2d]]
        %v1118 = vld [vmem:[%s663] sm:$0xff]
        %v1119 = vld [vmem:[%s663 + $0x8] sm:$0xff]
        %v1120 = vstv %s1117
        %v1121 = vmul.f32 %v1120, %v1118
        %v1122 = vmul.f32 %v1120, %v1119
        %v1123 = vadd.f32 %v1115, %v1121
        %v1124 = vadd.f32 %v1116, %v1122
        %s1125 = sld [smem:[#allocation13 + $0x2e]]
        %v1126 = vstv %s1125
        %v1127 = vmul.f32 %v1126, %v1118
        %v1128 = vmul.f32 %v1126, %v1119
        %1131 = vrot.lane.b32.xlu0 %v1127, 127
        %v1132 = vpop.permute.xlu0 %1131
        %1133 = vrot.lane.b32.xlu0 %v1128, 127
        %v1134 = vpop.permute.xlu0 %1133
        %v1137 = vadd.f32 %v1123, %v1132
        %v1138 = vadd.f32 %v1124, %v1134
        %s1139 = sld [smem:[#allocation13 + $0x2f]]
        %v1140 = vstv %s1139
        %v1141 = vmul.f32 %v1140, %v1118
        %v1142 = vmul.f32 %v1140, %v1119
        %1145 = vrot.lane.b32.xlu0 %v1141, 126
        %v1146 = vpop.permute.xlu0 %1145
        %1147 = vrot.lane.b32.xlu0 %v1142, 126
        %v1148 = vpop.permute.xlu0 %1147
        %v1151 = vadd.f32 %v1137, %v1146
        %v1152 = vadd.f32 %v1138, %v1148
        %s1153 = sld [smem:[#allocation13 + $0x30]]
        %v1154 = vld [vmem:[%s663 + $0x1] sm:$0xff]
        %v1155 = vld [vmem:[%s663 + $0x9] sm:$0xff]
        %v1156 = vstv %s1153
        %v1157 = vmul.f32 %v1156, %v1154
        %v1158 = vmul.f32 %v1156, %v1155
        %v1159 = vadd.f32 %v1151, %v1157
        %v1160 = vadd.f32 %v1152, %v1158
        %s1161 = sld [smem:[#allocation13 + $0x31]]
        %v1162 = vstv %s1161
        %v1163 = vmul.f32 %v1162, %v1154
        %v1164 = vmul.f32 %v1162, %v1155
        %1167 = vrot.lane.b32.xlu0 %v1163, 127
        %v1168 = vpop.permute.xlu0 %1167
        %1169 = vrot.lane.b32.xlu0 %v1164, 127
        %v1170 = vpop.permute.xlu0 %1169
        %v1173 = vadd.f32 %v1159, %v1168
        %v1174 = vadd.f32 %v1160, %v1170
        %s1175 = sld [smem:[#allocation13 + $0x32]]
        %v1176 = vstv %s1175
        %v1177 = vmul.f32 %v1176, %v1154
        %v1178 = vmul.f32 %v1176, %v1155
        %1181 = vrot.lane.b32.xlu0 %v1177, 126
        %v1182 = vpop.permute.xlu0 %1181
        %1183 = vrot.lane.b32.xlu0 %v1178, 126
        %v1184 = vpop.permute.xlu0 %1183
        %v1187 = vadd.f32 %v1173, %v1182
        %v1188 = vadd.f32 %v1174, %v1184
        %s1189 = sld [smem:[#allocation13 + $0x33]]
        %v1190 = vld [vmem:[%s663 + $0x2] sm:$0xff]
        %v1191 = vld [vmem:[%s663 + $0xa] sm:$0xff]
        %v1192 = vstv %s1189
        %v1193 = vmul.f32 %v1192, %v1190
        %v1194 = vmul.f32 %v1192, %v1191
        %v1195 = vadd.f32 %v1187, %v1193
        %v1196 = vadd.f32 %v1188, %v1194
        %s1197 = sld [smem:[#allocation13 + $0x34]]
        %v1198 = vstv %s1197
        %v1199 = vmul.f32 %v1198, %v1190
        %v1200 = vmul.f32 %v1198, %v1191
        %1203 = vrot.lane.b32.xlu0 %v1199, 127
        %v1204 = vpop.permute.xlu0 %1203
        %1205 = vrot.lane.b32.xlu0 %v1200, 127
        %v1206 = vpop.permute.xlu0 %1205
        %v1209 = vadd.f32 %v1195, %v1204
        %v1210 = vadd.f32 %v1196, %v1206
        %s1211 = sld [smem:[#allocation13 + $0x35]]
        %v1212 = vstv %s1211
        %v1213 = vmul.f32 %v1212, %v1190
        %v1214 = vmul.f32 %v1212, %v1191
        %1217 = vrot.lane.b32.xlu0 %v1213, 126
        %v1218 = vpop.permute.xlu0 %1217
        %1219 = vrot.lane.b32.xlu0 %v1214, 126
        %v1220 = vpop.permute.xlu0 %1219
        %v1223 = vadd.f32 %v1209, %v1218
        %v1224 = vadd.f32 %v1210, %v1220
        %s1225 = sld [smem:[#allocation13 + $0x36]]
        %v1226 = vld [vmem:[%s772] sm:$0xff]
        %v1227 = vld [vmem:[%s772 + $0x8] sm:$0xff]
        %v1228 = vstv %s1225
        %v1229 = vmul.f32 %v1228, %v1226
        %v1230 = vmul.f32 %v1228, %v1227
        %v1231 = vadd.f32 %v1223, %v1229
        %v1232 = vadd.f32 %v1224, %v1230
        %s1233 = sld [smem:[#allocation13 + $0x37]]
        %v1234 = vstv %s1233
        %v1235 = vmul.f32 %v1234, %v1226
        %v1236 = vmul.f32 %v1234, %v1227
        %1239 = vrot.lane.b32.xlu0 %v1235, 127
        %v1240 = vpop.permute.xlu0 %1239
        %1241 = vrot.lane.b32.xlu0 %v1236, 127
        %v1242 = vpop.permute.xlu0 %1241
        %v1245 = vadd.f32 %v1231, %v1240
        %v1246 = vadd.f32 %v1232, %v1242
        %s1247 = sld [smem:[#allocation13 + $0x38]]
        %v1248 = vstv %s1247
        %v1249 = vmul.f32 %v1248, %v1226
        %v1250 = vmul.f32 %v1248, %v1227
        %1253 = vrot.lane.b32.xlu0 %v1249, 126
        %v1254 = vpop.permute.xlu0 %1253
        %1255 = vrot.lane.b32.xlu0 %v1250, 126
        %v1256 = vpop.permute.xlu0 %1255
        %v1259 = vadd.f32 %v1245, %v1254
        %v1260 = vadd.f32 %v1246, %v1256
        %s1261 = sld [smem:[#allocation13 + $0x39]]
        %v1262 = vld [vmem:[%s772 + $0x1] sm:$0xff]
        %v1263 = vld [vmem:[%s772 + $0x9] sm:$0xff]
        %v1264 = vstv %s1261
        %v1265 = vmul.f32 %v1264, %v1262
        %v1266 = vmul.f32 %v1264, %v1263
        %v1267 = vadd.f32 %v1259, %v1265
        %v1268 = vadd.f32 %v1260, %v1266
        %s1269 = sld [smem:[#allocation13 + $0x3a]]
        %v1270 = vstv %s1269
        %v1271 = vmul.f32 %v1270, %v1262
        %v1272 = vmul.f32 %v1270, %v1263
        %1275 = vrot.lane.b32.xlu0 %v1271, 127
        %v1276 = vpop.permute.xlu0 %1275
        %1277 = vrot.lane.b32.xlu0 %v1272, 127
        %v1278 = vpop.permute.xlu0 %1277
        %v1281 = vadd.f32 %v1267, %v1276
        %v1282 = vadd.f32 %v1268, %v1278
        %s1283 = sld [smem:[#allocation13 + $0x3b]]
        %v1284 = vstv %s1283
        %v1285 = vmul.f32 %v1284, %v1262
        %v1286 = vmul.f32 %v1284, %v1263
        %1289 = vrot.lane.b32.xlu0 %v1285, 126
        %v1290 = vpop.permute.xlu0 %1289
        %1291 = vrot.lane.b32.xlu0 %v1286, 126
        %v1292 = vpop.permute.xlu0 %1291
        %v1295 = vadd.f32 %v1281, %v1290
        %v1296 = vadd.f32 %v1282, %v1292
        %s1297 = sld [smem:[#allocation13 + $0x3c]]
        %v1298 = vld [vmem:[%s772 + $0x2] sm:$0xff]
        %v1299 = vld [vmem:[%s772 + $0xa] sm:$0xff]
        %v1300 = vstv %s1297
        %v1301 = vmul.f32 %v1300, %v1298
        %v1302 = vmul.f32 %v1300, %v1299
        %v1303 = vadd.f32 %v1295, %v1301
        %v1304 = vadd.f32 %v1296, %v1302
        %s1305 = sld [smem:[#allocation13 + $0x3d]]
        %v1306 = vstv %s1305
        %v1307 = vmul.f32 %v1306, %v1298
        %v1308 = vmul.f32 %v1306, %v1299
        %1311 = vrot.lane.b32.xlu0 %v1307, 127
        %v1312 = vpop.permute.xlu0 %1311
        %1313 = vrot.lane.b32.xlu0 %v1308, 127
        %v1314 = vpop.permute.xlu0 %1313
        %v1317 = vadd.f32 %v1303, %v1312
        %v1318 = vadd.f32 %v1304, %v1314
        %s1319 = sld [smem:[#allocation13 + $0x3e]]
        %v1320 = vstv %s1319
        %v1321 = vmul.f32 %v1320, %v1298
        %v1322 = vmul.f32 %v1320, %v1299
        %1325 = vrot.lane.b32.xlu0 %v1321, 126
        %v1326 = vpop.permute.xlu0 %1325
        %1327 = vrot.lane.b32.xlu0 %v1322, 126
        %v1328 = vpop.permute.xlu0 %1327
        %v1331 = vadd.f32 %v1317, %v1326
        %v1332 = vadd.f32 %v1318, %v1328
        %s1333 = sld [smem:[#allocation13 + $0x3f]]
        %v1334 = vld [vmem:[%s881] sm:$0xff]
        %v1335 = vld [vmem:[%s881 + $0x8] sm:$0xff]
        %v1336 = vstv %s1333
        %v1337 = vmul.f32 %v1336, %v1334
        %v1338 = vmul.f32 %v1336, %v1335
        %v1339 = vadd.f32 %v1331, %v1337
        %v1340 = vadd.f32 %v1332, %v1338
        %s1341 = sld [smem:[#allocation13 + $0x40]]
        %v1342 = vstv %s1341
        %v1343 = vmul.f32 %v1342, %v1334
        %v1344 = vmul.f32 %v1342, %v1335
        %1347 = vrot.lane.b32.xlu0 %v1343, 127
        %v1348 = vpop.permute.xlu0 %1347
        %1349 = vrot.lane.b32.xlu0 %v1344, 127
        %v1350 = vpop.permute.xlu0 %1349
        %v1353 = vadd.f32 %v1339, %v1348
        %v1354 = vadd.f32 %v1340, %v1350
        %s1355 = sld [smem:[#allocation13 + $0x41]]
        %v1356 = vstv %s1355
        %v1357 = vmul.f32 %v1356, %v1334
        %v1358 = vmul.f32 %v1356, %v1335
        %1361 = vrot.lane.b32.xlu0 %v1357, 126
        %v1362 = vpop.permute.xlu0 %1361
        %1363 = vrot.lane.b32.xlu0 %v1358, 126
        %v1364 = vpop.permute.xlu0 %1363
        %v1367 = vadd.f32 %v1353, %v1362
        %v1368 = vadd.f32 %v1354, %v1364
        %s1369 = sld [smem:[#allocation13 + $0x42]]
        %v1370 = vld [vmem:[%s881 + $0x1] sm:$0xff]
        %v1371 = vld [vmem:[%s881 + $0x9] sm:$0xff]
        %v1372 = vstv %s1369
        %v1373 = vmul.f32 %v1372, %v1370
        %v1374 = vmul.f32 %v1372, %v1371
        %v1375 = vadd.f32 %v1367, %v1373
        %v1376 = vadd.f32 %v1368, %v1374
        %s1377 = sld [smem:[#allocation13 + $0x43]]
        %v1378 = vstv %s1377
        %v1379 = vmul.f32 %v1378, %v1370
        %v1380 = vmul.f32 %v1378, %v1371
        %1383 = vrot.lane.b32.xlu0 %v1379, 127
        %v1384 = vpop.permute.xlu0 %1383
        %1385 = vrot.lane.b32.xlu0 %v1380, 127
        %v1386 = vpop.permute.xlu0 %1385
        %v1389 = vadd.f32 %v1375, %v1384
        %v1390 = vadd.f32 %v1376, %v1386
        %s1391 = sld [smem:[#allocation13 + $0x44]]
        %v1392 = vstv %s1391
        %v1393 = vmul.f32 %v1392, %v1370
        %v1394 = vmul.f32 %v1392, %v1371
        %1397 = vrot.lane.b32.xlu0 %v1393, 126
        %v1398 = vpop.permute.xlu0 %1397
        %1399 = vrot.lane.b32.xlu0 %v1394, 126
        %v1400 = vpop.permute.xlu0 %1399
        %v1403 = vadd.f32 %v1389, %v1398
        %v1404 = vadd.f32 %v1390, %v1400
        %s1405 = sld [smem:[#allocation13 + $0x45]]
        %v1406 = vld [vmem:[%s881 + $0x2] sm:$0xff]
        %v1407 = vld [vmem:[%s881 + $0xa] sm:$0xff]
        %v1408 = vstv %s1405
        %v1409 = vmul.f32 %v1408, %v1406
        %v1410 = vmul.f32 %v1408, %v1407
        %v1411 = vadd.f32 %v1403, %v1409
        %v1412 = vadd.f32 %v1404, %v1410
        %s1413 = sld [smem:[#allocation13 + $0x46]]
        %v1414 = vstv %s1413
        %v1415 = vmul.f32 %v1414, %v1406
        %v1416 = vmul.f32 %v1414, %v1407
        %1419 = vrot.lane.b32.xlu0 %v1415, 127
        %v1420 = vpop.permute.xlu0 %1419
        %1421 = vrot.lane.b32.xlu0 %v1416, 127
        %v1422 = vpop.permute.xlu0 %1421
        %v1425 = vadd.f32 %v1411, %v1420
        %v1426 = vadd.f32 %v1412, %v1422
        %s1427 = sld [smem:[#allocation13 + $0x47]]
        %v1428 = vstv %s1427
        %v1429 = vmul.f32 %v1428, %v1406
        %v1430 = vmul.f32 %v1428, %v1407
        %1433 = vrot.lane.b32.xlu0 %v1429, 126
        %v1434 = vpop.permute.xlu0 %1433
        %1435 = vrot.lane.b32.xlu0 %v1430, 126
        %v1436 = vpop.permute.xlu0 %1435
        %v1439 = vadd.f32 %v1425, %v1434
        %v1440 = vadd.f32 %v1426, %v1436
        %s1441 = scalar_lea.vmem %s409, 16 [#allocation8]
        %v1442 = vld [vmem:[%s1441] sm:$0xff]
        %v1443 = vld [vmem:[%s1441 + $0x8] sm:$0xff]
        %v1444 = vadd.f32 %v1439, %v1442
        %v1445 = vadd.f32 %v1440, %v1443
        %s1446 = scalar_lea.vmem %s478, 16 [#allocation20]
        %1447 = vst.msk [vmem:[%s1446] sm:$0xff] %vm993, %v1444
        %1448 = vst.msk [vmem:[%s1446 + $0x8] sm:$0xff] %vm993, %v1445
        %1451 = vrot.lane.b32.xlu0 %v1444, 1
        %v1452 = vpop.permute.xlu0 %1451
        %1453 = vrot.lane.b32.xlu0 %v1445, 1
        %v1454 = vpop.permute.xlu0 %1453
        %s1457 = scalar_lea.vmem [#allocation3], 24
        %1458 = vst.msk [vmem:[%s1457 + $0x1] sm:$0xff] %vm533, %v1452
        %1459 = vst.msk [vmem:[%s1457 + $0x9] sm:$0xff] %vm533, %v1454
        %s1460 = sld [smem:[#allocation14 + $0x2]]
        %v1461 = vstv %s1460
        %v1462 = vadd.f32 %v1461, 0.0
        %s1463 = sld [smem:[#allocation13 + $0x48]]
        %v1464 = vld [vmem:[#allocation2] sm:$0xff]
        %v1465 = vld [vmem:[#allocation2 + $0x8] sm:$0xff]
        %v1466 = vstv %s1463
        %v1467 = vmul.f32 %v1466, %v1464
        %v1468 = vmul.f32 %v1466, %v1465
        %v1469 = vadd.f32 %v1462, %v1467
        %v1470 = vadd.f32 %v1462, %v1468
        %s1471 = sld [smem:[#allocation13 + $0x49]]
        %v1472 = vstv %s1471
        %v1473 = vmul.f32 %v1472, %v1464
        %v1474 = vmul.f32 %v1472, %v1465
        %1477 = vrot.lane.b32.xlu0 %v1473, 127
        %v1478 = vpop.permute.xlu0 %1477
        %1479 = vrot.lane.b32.xlu0 %v1474, 127
        %v1480 = vpop.permute.xlu0 %1479
        %v1483 = vadd.f32 %v1469, %v1478
        %v1484 = vadd.f32 %v1470, %v1480
        %s1485 = sld [smem:[#allocation13 + $0x4a]]
        %v1486 = vstv %s1485
        %v1487 = vmul.f32 %v1486, %v1464
        %v1488 = vmul.f32 %v1486, %v1465
        %1491 = vrot.lane.b32.xlu0 %v1487, 126
        %v1492 = vpop.permute.xlu0 %1491
        %1493 = vrot.lane.b32.xlu0 %v1488, 126
        %v1494 = vpop.permute.xlu0 %1493
        %v1497 = vadd.f32 %v1483, %v1492
        %v1498 = vadd.f32 %v1484, %v1494
        %s1499 = sld [smem:[#allocation13 + $0x4b]]
        %v1500 = vld [vmem:[#allocation2 + $0x1] sm:$0xff]
        %v1501 = vld [vmem:[#allocation2 + $0x9] sm:$0xff]
        %v1502 = vstv %s1499
        %v1503 = vmul.f32 %v1502, %v1500
        %v1504 = vmul.f32 %v1502, %v1501
        %v1505 = vadd.f32 %v1497, %v1503
        %v1506 = vadd.f32 %v1498, %v1504
        %s1507 = sld [smem:[#allocation13 + $0x4c]]
        %v1508 = vstv %s1507
        %v1509 = vmul.f32 %v1508, %v1500
        %v1510 = vmul.f32 %v1508, %v1501
        %1513 = vrot.lane.b32.xlu0 %v1509, 127
        %v1514 = vpop.permute.xlu0 %1513
        %1515 = vrot.lane.b32.xlu0 %v1510, 127
        %v1516 = vpop.permute.xlu0 %1515
        %v1519 = vadd.f32 %v1505, %v1514
        %v1520 = vadd.f32 %v1506, %v1516
        %s1521 = sld [smem:[#allocation13 + $0x4d]]
        %v1522 = vstv %s1521
        %v1523 = vmul.f32 %v1522, %v1500
        %v1524 = vmul.f32 %v1522, %v1501
        %1527 = vrot.lane.b32.xlu0 %v1523, 126
        %v1528 = vpop.permute.xlu0 %1527
        %1529 = vrot.lane.b32.xlu0 %v1524, 126
        %v1530 = vpop.permute.xlu0 %1529
        %v1533 = vadd.f32 %v1519, %v1528
        %v1534 = vadd.f32 %v1520, %v1530
        %s1535 = sld [smem:[#allocation13 + $0x4e]]
        %v1536 = vld [vmem:[#allocation2 + $0x2] sm:$0xff]
        %v1537 = vld [vmem:[#allocation2 + $0xa] sm:$0xff]
        %v1538 = vstv %s1535
        %v1539 = vmul.f32 %v1538, %v1536
        %v1540 = vmul.f32 %v1538, %v1537
        %v1541 = vadd.f32 %v1533, %v1539
        %v1542 = vadd.f32 %v1534, %v1540
        %s1543 = sld [smem:[#allocation13 + $0x4f]]
        %v1544 = vstv %s1543
        %v1545 = vmul.f32 %v1544, %v1536
        %v1546 = vmul.f32 %v1544, %v1537
        %1549 = vrot.lane.b32.xlu0 %v1545, 127
        %v1550 = vpop.permute.xlu0 %1549
        %1551 = vrot.lane.b32.xlu0 %v1546, 127
        %v1552 = vpop.permute.xlu0 %1551
        %v1555 = vadd.f32 %v1541, %v1550
        %v1556 = vadd.f32 %v1542, %v1552
        %s1557 = sld [smem:[#allocation13 + $0x50]]
        %v1558 = vstv %s1557
        %v1559 = vmul.f32 %v1558, %v1536
        %v1560 = vmul.f32 %v1558, %v1537
        %1563 = vrot.lane.b32.xlu0 %v1559, 126
        %v1564 = vpop.permute.xlu0 %1563
        %1565 = vrot.lane.b32.xlu0 %v1560, 126
        %v1566 = vpop.permute.xlu0 %1565
        %v1569 = vadd.f32 %v1555, %v1564
        %v1570 = vadd.f32 %v1556, %v1566
        %s1571 = sld [smem:[#allocation13 + $0x51]]
        %v1572 = vld [vmem:[%s663] sm:$0xff]
        %v1573 = vld [vmem:[%s663 + $0x8] sm:$0xff]
        %v1574 = vstv %s1571
        %v1575 = vmul.f32 %v1574, %v1572
        %v1576 = vmul.f32 %v1574, %v1573
        %v1577 = vadd.f32 %v1569, %v1575
        %v1578 = vadd.f32 %v1570, %v1576
        %s1579 = sld [smem:[#allocation13 + $0x52]]
        %v1580 = vstv %s1579
        %v1581 = vmul.f32 %v1580, %v1572
        %v1582 = vmul.f32 %v1580, %v1573
        %1585 = vrot.lane.b32.xlu0 %v1581, 127
        %v1586 = vpop.permute.xlu0 %1585
        %1587 = vrot.lane.b32.xlu0 %v1582, 127
        %v1588 = vpop.permute.xlu0 %1587
        %v1591 = vadd.f32 %v1577, %v1586
        %v1592 = vadd.f32 %v1578, %v1588
        %s1593 = sld [smem:[#allocation13 + $0x53]]
        %v1594 = vstv %s1593
        %v1595 = vmul.f32 %v1594, %v1572
        %v1596 = vmul.f32 %v1594, %v1573
        %1599 = vrot.lane.b32.xlu0 %v1595, 126
        %v1600 = vpop.permute.xlu0 %1599
        %1601 = vrot.lane.b32.xlu0 %v1596, 126
        %v1602 = vpop.permute.xlu0 %1601
        %v1605 = vadd.f32 %v1591, %v1600
        %v1606 = vadd.f32 %v1592, %v1602
        %s1607 = sld [smem:[#allocation13 + $0x54]]
        %v1608 = vld [vmem:[%s663 + $0x1] sm:$0xff]
        %v1609 = vld [vmem:[%s663 + $0x9] sm:$0xff]
        %v1610 = vstv %s1607
        %v1611 = vmul.f32 %v1610, %v1608
        %v1612 = vmul.f32 %v1610, %v1609
        %v1613 = vadd.f32 %v1605, %v1611
        %v1614 = vadd.f32 %v1606, %v1612
        %s1615 = sld [smem:[#allocation13 + $0x55]]
        %v1616 = vstv %s1615
        %v1617 = vmul.f32 %v1616, %v1608
        %v1618 = vmul.f32 %v1616, %v1609
        %1621 = vrot.lane.b32.xlu0 %v1617, 127
        %v1622 = vpop.permute.xlu0 %1621
        %1623 = vrot.lane.b32.xlu0 %v1618, 127
        %v1624 = vpop.permute.xlu0 %1623
        %v1627 = vadd.f32 %v1613, %v1622
        %v1628 = vadd.f32 %v1614, %v1624
        %s1629 = sld [smem:[#allocation13 + $0x56]]
        %v1630 = vstv %s1629
        %v1631 = vmul.f32 %v1630, %v1608
        %v1632 = vmul.f32 %v1630, %v1609
        %1635 = vrot.lane.b32.xlu0 %v1631, 126
        %v1636 = vpop.permute.xlu0 %1635
        %1637 = vrot.lane.b32.xlu0 %v1632, 126
        %v1638 = vpop.permute.xlu0 %1637
        %v1641 = vadd.f32 %v1627, %v1636
        %v1642 = vadd.f32 %v1628, %v1638
        %s1643 = sld [smem:[#allocation13 + $0x57]]
        %v1644 = vld [vmem:[%s663 + $0x2] sm:$0xff]
        %v1645 = vld [vmem:[%s663 + $0xa] sm:$0xff]
        %v1646 = vstv %s1643
        %v1647 = vmul.f32 %v1646, %v1644
        %v1648 = vmul.f32 %v1646, %v1645
        %v1649 = vadd.f32 %v1641, %v1647
        %v1650 = vadd.f32 %v1642, %v1648
        %s1651 = sld [smem:[#allocation13 + $0x58]]
        %v1652 = vstv %s1651
        %v1653 = vmul.f32 %v1652, %v1644
        %v1654 = vmul.f32 %v1652, %v1645
        %1657 = vrot.lane.b32.xlu0 %v1653, 127
        %v1658 = vpop.permute.xlu0 %1657
        %1659 = vrot.lane.b32.xlu0 %v1654, 127
        %v1660 = vpop.permute.xlu0 %1659
        %v1663 = vadd.f32 %v1649, %v1658
        %v1664 = vadd.f32 %v1650, %v1660
        %s1665 = sld [smem:[#allocation13 + $0x59]]
        %v1666 = vstv %s1665
        %v1667 = vmul.f32 %v1666, %v1644
        %v1668 = vmul.f32 %v1666, %v1645
        %1671 = vrot.lane.b32.xlu0 %v1667, 126
        %v1672 = vpop.permute.xlu0 %1671
        %1673 = vrot.lane.b32.xlu0 %v1668, 126
        %v1674 = vpop.permute.xlu0 %1673
        %v1677 = vadd.f32 %v1663, %v1672
        %v1678 = vadd.f32 %v1664, %v1674
        %s1679 = sld [smem:[#allocation13 + $0x5a]]
        %v1680 = vld [vmem:[%s772] sm:$0xff]
        %v1681 = vld [vmem:[%s772 + $0x8] sm:$0xff]
        %v1682 = vstv %s1679
        %v1683 = vmul.f32 %v1682, %v1680
        %v1684 = vmul.f32 %v1682, %v1681
        %v1685 = vadd.f32 %v1677, %v1683
        %v1686 = vadd.f32 %v1678, %v1684
        %s1687 = sld [smem:[#allocation13 + $0x5b]]
        %v1688 = vstv %s1687
        %v1689 = vmul.f32 %v1688, %v1680
        %v1690 = vmul.f32 %v1688, %v1681
        %1693 = vrot.lane.b32.xlu0 %v1689, 127
        %v1694 = vpop.permute.xlu0 %1693
        %1695 = vrot.lane.b32.xlu0 %v1690, 127
        %v1696 = vpop.permute.xlu0 %1695
        %v1699 = vadd.f32 %v1685, %v1694
        %v1700 = vadd.f32 %v1686, %v1696
        %s1701 = sld [smem:[#allocation13 + $0x5c]]
        %v1702 = vstv %s1701
        %v1703 = vmul.f32 %v1702, %v1680
        %v1704 = vmul.f32 %v1702, %v1681
        %1707 = vrot.lane.b32.xlu0 %v1703, 126
        %v1708 = vpop.permute.xlu0 %1707
        %1709 = vrot.lane.b32.xlu0 %v1704, 126
        %v1710 = vpop.permute.xlu0 %1709
        %v1713 = vadd.f32 %v1699, %v1708
        %v1714 = vadd.f32 %v1700, %v1710
        %s1715 = sld [smem:[#allocation13 + $0x5d]]
        %v1716 = vld [vmem:[%s772 + $0x1] sm:$0xff]
        %v1717 = vld [vmem:[%s772 + $0x9] sm:$0xff]
        %v1718 = vstv %s1715
        %v1719 = vmul.f32 %v1718, %v1716
        %v1720 = vmul.f32 %v1718, %v1717
        %v1721 = vadd.f32 %v1713, %v1719
        %v1722 = vadd.f32 %v1714, %v1720
        %s1723 = sld [smem:[#allocation13 + $0x5e]]
        %v1724 = vstv %s1723
        %v1725 = vmul.f32 %v1724, %v1716
        %v1726 = vmul.f32 %v1724, %v1717
        %1729 = vrot.lane.b32.xlu0 %v1725, 127
        %v1730 = vpop.permute.xlu0 %1729
        %1731 = vrot.lane.b32.xlu0 %v1726, 127
        %v1732 = vpop.permute.xlu0 %1731
        %v1735 = vadd.f32 %v1721, %v1730
        %v1736 = vadd.f32 %v1722, %v1732
        %s1737 = sld [smem:[#allocation13 + $0x5f]]
        %v1738 = vstv %s1737
        %v1739 = vmul.f32 %v1738, %v1716
        %v1740 = vmul.f32 %v1738, %v1717
        %1743 = vrot.lane.b32.xlu0 %v1739, 126
        %v1744 = vpop.permute.xlu0 %1743
        %1745 = vrot.lane.b32.xlu0 %v1740, 126
        %v1746 = vpop.permute.xlu0 %1745
        %v1749 = vadd.f32 %v1735, %v1744
        %v1750 = vadd.f32 %v1736, %v1746
        %s1751 = sld [smem:[#allocation13 + $0x60]]
        %v1752 = vld [vmem:[%s772 + $0x2] sm:$0xff]
        %v1753 = vld [vmem:[%s772 + $0xa] sm:$0xff]
        %v1754 = vstv %s1751
        %v1755 = vmul.f32 %v1754, %v1752
        %v1756 = vmul.f32 %v1754, %v1753
        %v1757 = vadd.f32 %v1749, %v1755
        %v1758 = vadd.f32 %v1750, %v1756
        %s1759 = sld [smem:[#allocation13 + $0x61]]
        %v1760 = vstv %s1759
        %v1761 = vmul.f32 %v1760, %v1752
        %v1762 = vmul.f32 %v1760, %v1753
        %1765 = vrot.lane.b32.xlu0 %v1761, 127
        %v1766 = vpop.permute.xlu0 %1765
        %1767 = vrot.lane.b32.xlu0 %v1762, 127
        %v1768 = vpop.permute.xlu0 %1767
        %v1771 = vadd.f32 %v1757, %v1766
        %v1772 = vadd.f32 %v1758, %v1768
        %s1773 = sld [smem:[#allocation13 + $0x62]]
        %v1774 = vstv %s1773
        %v1775 = vmul.f32 %v1774, %v1752
        %v1776 = vmul.f32 %v1774, %v1753
        %1779 = vrot.lane.b32.xlu0 %v1775, 126
        %v1780 = vpop.permute.xlu0 %1779
        %1781 = vrot.lane.b32.xlu0 %v1776, 126
        %v1782 = vpop.permute.xlu0 %1781
        %v1785 = vadd.f32 %v1771, %v1780
        %v1786 = vadd.f32 %v1772, %v1782
        %s1787 = sld [smem:[#allocation13 + $0x63]]
        %v1788 = vld [vmem:[%s881] sm:$0xff]
        %v1789 = vld [vmem:[%s881 + $0x8] sm:$0xff]
        %v1790 = vstv %s1787
        %v1791 = vmul.f32 %v1790, %v1788
        %v1792 = vmul.f32 %v1790, %v1789
        %v1793 = vadd.f32 %v1785, %v1791
        %v1794 = vadd.f32 %v1786, %v1792
        %s1795 = sld [smem:[#allocation13 + $0x64]]
        %v1796 = vstv %s1795
        %v1797 = vmul.f32 %v1796, %v1788
        %v1798 = vmul.f32 %v1796, %v1789
        %1801 = vrot.lane.b32.xlu0 %v1797, 127
        %v1802 = vpop.permute.xlu0 %1801
        %1803 = vrot.lane.b32.xlu0 %v1798, 127
        %v1804 = vpop.permute.xlu0 %1803
        %v1807 = vadd.f32 %v1793, %v1802
        %v1808 = vadd.f32 %v1794, %v1804
        %s1809 = sld [smem:[#allocation13 + $0x65]]
        %v1810 = vstv %s1809
        %v1811 = vmul.f32 %v1810, %v1788
        %v1812 = vmul.f32 %v1810, %v1789
        %1815 = vrot.lane.b32.xlu0 %v1811, 126
        %v1816 = vpop.permute.xlu0 %1815
        %1817 = vrot.lane.b32.xlu0 %v1812, 126
        %v1818 = vpop.permute.xlu0 %1817
        %v1821 = vadd.f32 %v1807, %v1816
        %v1822 = vadd.f32 %v1808, %v1818
        %s1823 = sld [smem:[#allocation13 + $0x66]]
        %v1824 = vld [vmem:[%s881 + $0x1] sm:$0xff]
        %v1825 = vld [vmem:[%s881 + $0x9] sm:$0xff]
        %v1826 = vstv %s1823
        %v1827 = vmul.f32 %v1826, %v1824
        %v1828 = vmul.f32 %v1826, %v1825
        %v1829 = vadd.f32 %v1821, %v1827
        %v1830 = vadd.f32 %v1822, %v1828
        %s1831 = sld [smem:[#allocation13 + $0x67]]
        %v1832 = vstv %s1831
        %v1833 = vmul.f32 %v1832, %v1824
        %v1834 = vmul.f32 %v1832, %v1825
        %1837 = vrot.lane.b32.xlu0 %v1833, 127
        %v1838 = vpop.permute.xlu0 %1837
        %1839 = vrot.lane.b32.xlu0 %v1834, 127
        %v1840 = vpop.permute.xlu0 %1839
        %v1843 = vadd.f32 %v1829, %v1838
        %v1844 = vadd.f32 %v1830, %v1840
        %s1845 = sld [smem:[#allocation13 + $0x68]]
        %v1846 = vstv %s1845
        %v1847 = vmul.f32 %v1846, %v1824
        %v1848 = vmul.f32 %v1846, %v1825
        %1851 = vrot.lane.b32.xlu0 %v1847, 126
        %v1852 = vpop.permute.xlu0 %1851
        %1853 = vrot.lane.b32.xlu0 %v1848, 126
        %v1854 = vpop.permute.xlu0 %1853
        %v1857 = vadd.f32 %v1843, %v1852
        %v1858 = vadd.f32 %v1844, %v1854
        %s1859 = sld [smem:[#allocation13 + $0x69]]
        %v1860 = vld [vmem:[%s881 + $0x2] sm:$0xff]
        %v1861 = vld [vmem:[%s881 + $0xa] sm:$0xff]
        %v1862 = vstv %s1859
        %v1863 = vmul.f32 %v1862, %v1860
        %v1864 = vmul.f32 %v1862, %v1861
        %v1865 = vadd.f32 %v1857, %v1863
        %v1866 = vadd.f32 %v1858, %v1864
        %s1867 = sld [smem:[#allocation13 + $0x6a]]
        %v1868 = vstv %s1867
        %v1869 = vmul.f32 %v1868, %v1860
        %v1870 = vmul.f32 %v1868, %v1861
        %1873 = vrot.lane.b32.xlu0 %v1869, 127
        %v1874 = vpop.permute.xlu0 %1873
        %1875 = vrot.lane.b32.xlu0 %v1870, 127
        %v1876 = vpop.permute.xlu0 %1875
        %v1879 = vadd.f32 %v1865, %v1874
        %v1880 = vadd.f32 %v1866, %v1876
        %s1881 = sld [smem:[#allocation13 + $0x6b]]
        %v1882 = vstv %s1881
        %v1883 = vmul.f32 %v1882, %v1860
        %v1884 = vmul.f32 %v1882, %v1861
        %1887 = vrot.lane.b32.xlu0 %v1883, 126
        %v1888 = vpop.permute.xlu0 %1887
        %1889 = vrot.lane.b32.xlu0 %v1884, 126
        %v1890 = vpop.permute.xlu0 %1889
        %v1893 = vadd.f32 %v1879, %v1888
        %v1894 = vadd.f32 %v1880, %v1890
        %s1895 = scalar_lea.vmem %s409, 32 [#allocation8]
        %v1896 = vld [vmem:[%s1895] sm:$0xff]
        %v1897 = vld [vmem:[%s1895 + $0x8] sm:$0xff]
        %v1898 = vadd.f32 %v1893, %v1896
        %v1899 = vadd.f32 %v1894, %v1897
        %s1900 = scalar_lea.vmem %s478, 32 [#allocation20]
        %1901 = vst.msk [vmem:[%s1900] sm:$0xff] %vm993, %v1898
        %1902 = vst.msk [vmem:[%s1900 + $0x8] sm:$0xff] %vm993, %v1899
        %1905 = vrot.lane.b32.xlu0 %v1898, 1
        %v1906 = vpop.permute.xlu0 %1905
        %1907 = vrot.lane.b32.xlu0 %v1899, 1
        %v1908 = vpop.permute.xlu0 %1907
        %s1911 = scalar_lea.vmem [#allocation3], 48
        %1912 = vst.msk [vmem:[%s1911 + $0x1] sm:$0xff] %vm533, %v1906
        %1913 = vst.msk [vmem:[%s1911 + $0x9] sm:$0xff] %vm533, %v1908
        %s1914 = sld [smem:[#allocation11]]
        %v1915 = vstv %s1914
        %v1916 = vadd.f32 %v1915, 0.0
        %s1917 = sld [smem:[#allocation10]]
        %v1918 = vld [vmem:[#allocation2] sm:$0xff]
        %v1919 = vld [vmem:[#allocation2 + $0x8] sm:$0xff]
        %v1920 = vstv %s1917
        %v1921 = vmul.f32 %v1920, %v1918
        %v1922 = vmul.f32 %v1920, %v1919
        %v1923 = vadd.f32 %v1916, %v1921
        %v1924 = vadd.f32 %v1916, %v1922
        %s1925 = sld [smem:[#allocation10 + $0x1]]
        %v1926 = vstv %s1925
        %v1927 = vmul.f32 %v1926, %v1918
        %v1928 = vmul.f32 %v1926, %v1919
        %1931 = vrot.lane.b32.xlu0 %v1927, 127
        %v1932 = vpop.permute.xlu0 %1931
        %1933 = vrot.lane.b32.xlu0 %v1928, 127
        %v1934 = vpop.permute.xlu0 %1933
        %v1937 = vadd.f32 %v1923, %v1932
        %v1938 = vadd.f32 %v1924, %v1934
        %s1939 = sld [smem:[#allocation10 + $0x2]]
        %v1940 = vstv %s1939
        %v1941 = vmul.f32 %v1940, %v1918
        %v1942 = vmul.f32 %v1940, %v1919
        %1945 = vrot.lane.b32.xlu0 %v1941, 126
        %v1946 = vpop.permute.xlu0 %1945
        %1947 = vrot.lane.b32.xlu0 %v1942, 126
        %v1948 = vpop.permute.xlu0 %1947
        %v1951 = vadd.f32 %v1937, %v1946
        %v1952 = vadd.f32 %v1938, %v1948
        %s1953 = sld [smem:[#allocation10 + $0x3]]
        %v1954 = vld [vmem:[#allocation2 + $0x1] sm:$0xff]
        %v1955 = vld [vmem:[#allocation2 + $0x9] sm:$0xff]
        %v1956 = vstv %s1953
        %v1957 = vmul.f32 %v1956, %v1954
        %v1958 = vmul.f32 %v1956, %v1955
        %v1959 = vadd.f32 %v1951, %v1957
        %v1960 = vadd.f32 %v1952, %v1958
        %s1961 = sld [smem:[#allocation10 + $0x4]]
        %v1962 = vstv %s1961
        %v1963 = vmul.f32 %v1962, %v1954
        %v1964 = vmul.f32 %v1962, %v1955
        %1967 = vrot.lane.b32.xlu0 %v1963, 127
        %v1968 = vpop.permute.xlu0 %1967
        %1969 = vrot.lane.b32.xlu0 %v1964, 127
        %v1970 = vpop.permute.xlu0 %1969
        %v1973 = vadd.f32 %v1959, %v1968
        %v1974 = vadd.f32 %v1960, %v1970
        %s1975 = sld [smem:[#allocation10 + $0x5]]
        %v1976 = vstv %s1975
        %v1977 = vmul.f32 %v1976, %v1954
        %v1978 = vmul.f32 %v1976, %v1955
        %1981 = vrot.lane.b32.xlu0 %v1977, 126
        %v1982 = vpop.permute.xlu0 %1981
        %1983 = vrot.lane.b32.xlu0 %v1978, 126
        %v1984 = vpop.permute.xlu0 %1983
        %v1987 = vadd.f32 %v1973, %v1982
        %v1988 = vadd.f32 %v1974, %v1984
        %s1989 = sld [smem:[#allocation10 + $0x6]]
        %v1990 = vld [vmem:[#allocation2 + $0x2] sm:$0xff]
        %v1991 = vld [vmem:[#allocation2 + $0xa] sm:$0xff]
        %v1992 = vstv %s1989
        %v1993 = vmul.f32 %v1992, %v1990
        %v1994 = vmul.f32 %v1992, %v1991
        %v1995 = vadd.f32 %v1987, %v1993
        %v1996 = vadd.f32 %v1988, %v1994
        %s1997 = sld [smem:[#allocation10 + $0x7]]
        %v1998 = vstv %s1997
        %v1999 = vmul.f32 %v1998, %v1990
        %v2000 = vmul.f32 %v1998, %v1991
        %2003 = vrot.lane.b32.xlu0 %v1999, 127
        %v2004 = vpop.permute.xlu0 %2003
        %2005 = vrot.lane.b32.xlu0 %v2000, 127
        %v2006 = vpop.permute.xlu0 %2005
        %v2009 = vadd.f32 %v1995, %v2004
        %v2010 = vadd.f32 %v1996, %v2006
        %s2011 = sld [smem:[#allocation10 + $0x8]]
        %v2012 = vstv %s2011
        %v2013 = vmul.f32 %v2012, %v1990
        %v2014 = vmul.f32 %v2012, %v1991
        %2017 = vrot.lane.b32.xlu0 %v2013, 126
        %v2018 = vpop.permute.xlu0 %2017
        %2019 = vrot.lane.b32.xlu0 %v2014, 126
        %v2020 = vpop.permute.xlu0 %2019
        %v2023 = vadd.f32 %v2009, %v2018
        %v2024 = vadd.f32 %v2010, %v2020
        %s2025 = sld [smem:[#allocation10 + $0x9]]
        %v2026 = vld [vmem:[%s663] sm:$0xff]
        %v2027 = vld [vmem:[%s663 + $0x8] sm:$0xff]
        %v2028 = vstv %s2025
        %v2029 = vmul.f32 %v2028, %v2026
        %v2030 = vmul.f32 %v2028, %v2027
        %v2031 = vadd.f32 %v2023, %v2029
        %v2032 = vadd.f32 %v2024, %v2030
        %s2033 = sld [smem:[#allocation10 + $0xa]]
        %v2034 = vstv %s2033
        %v2035 = vmul.f32 %v2034, %v2026
        %v2036 = vmul.f32 %v2034, %v2027
        %2039 = vrot.lane.b32.xlu0 %v2035, 127
        %v2040 = vpop.permute.xlu0 %2039
        %2041 = vrot.lane.b32.xlu0 %v2036, 127
        %v2042 = vpop.permute.xlu0 %2041
        %v2045 = vadd.f32 %v2031, %v2040
        %v2046 = vadd.f32 %v2032, %v2042
        %s2047 = sld [smem:[#allocation10 + $0xb]]
        %v2048 = vstv %s2047
        %v2049 = vmul.f32 %v2048, %v2026
        %v2050 = vmul.f32 %v2048, %v2027
        %2053 = vrot.lane.b32.xlu0 %v2049, 126
        %v2054 = vpop.permute.xlu0 %2053
        %2055 = vrot.lane.b32.xlu0 %v2050, 126
        %v2056 = vpop.permute.xlu0 %2055
        %v2059 = vadd.f32 %v2045, %v2054
        %v2060 = vadd.f32 %v2046, %v2056
        %s2061 = sld [smem:[#allocation10 + $0xc]]
        %v2062 = vld [vmem:[%s663 + $0x1] sm:$0xff]
        %v2063 = vld [vmem:[%s663 + $0x9] sm:$0xff]
        %v2064 = vstv %s2061
        %v2065 = vmul.f32 %v2064, %v2062
        %v2066 = vmul.f32 %v2064, %v2063
        %v2067 = vadd.f32 %v2059, %v2065
        %v2068 = vadd.f32 %v2060, %v2066
        %s2069 = sld [smem:[#allocation10 + $0xd]]
        %v2070 = vstv %s2069
        %v2071 = vmul.f32 %v2070, %v2062
        %v2072 = vmul.f32 %v2070, %v2063
        %2075 = vrot.lane.b32.xlu0 %v2071, 127
        %v2076 = vpop.permute.xlu0 %2075
        %2077 = vrot.lane.b32.xlu0 %v2072, 127
        %v2078 = vpop.permute.xlu0 %2077
        %v2081 = vadd.f32 %v2067, %v2076
        %v2082 = vadd.f32 %v2068, %v2078
        %s2083 = sld [smem:[#allocation10 + $0xe]]
        %v2084 = vstv %s2083
        %v2085 = vmul.f32 %v2084, %v2062
        %v2086 = vmul.f32 %v2084, %v2063
        %2089 = vrot.lane.b32.xlu0 %v2085, 126
        %v2090 = vpop.permute.xlu0 %2089
        %2091 = vrot.lane.b32.xlu0 %v2086, 126
        %v2092 = vpop.permute.xlu0 %2091
        %v2095 = vadd.f32 %v2081, %v2090
        %v2096 = vadd.f32 %v2082, %v2092
        %s2097 = sld [smem:[#allocation10 + $0xf]]
        %v2098 = vld [vmem:[%s663 + $0x2] sm:$0xff]
        %v2099 = vld [vmem:[%s663 + $0xa] sm:$0xff]
        %v2100 = vstv %s2097
        %v2101 = vmul.f32 %v2100, %v2098
        %v2102 = vmul.f32 %v2100, %v2099
        %v2103 = vadd.f32 %v2095, %v2101
        %v2104 = vadd.f32 %v2096, %v2102
        %s2105 = sld [smem:[#allocation10 + $0x10]]
        %v2106 = vstv %s2105
        %v2107 = vmul.f32 %v2106, %v2098
        %v2108 = vmul.f32 %v2106, %v2099
        %2111 = vrot.lane.b32.xlu0 %v2107, 127
        %v2112 = vpop.permute.xlu0 %2111
        %2113 = vrot.lane.b32.xlu0 %v2108, 127
        %v2114 = vpop.permute.xlu0 %2113
        %v2117 = vadd.f32 %v2103, %v2112
        %v2118 = vadd.f32 %v2104, %v2114
        %s2119 = sld [smem:[#allocation10 + $0x11]]
        %v2120 = vstv %s2119
        %v2121 = vmul.f32 %v2120, %v2098
        %v2122 = vmul.f32 %v2120, %v2099
        %2125 = vrot.lane.b32.xlu0 %v2121, 126
        %v2126 = vpop.permute.xlu0 %2125
        %2127 = vrot.lane.b32.xlu0 %v2122, 126
        %v2128 = vpop.permute.xlu0 %2127
        %v2131 = vadd.f32 %v2117, %v2126
        %v2132 = vadd.f32 %v2118, %v2128
        %s2133 = sld [smem:[#allocation10 + $0x12]]
        %v2134 = vld [vmem:[%s772] sm:$0xff]
        %v2135 = vld [vmem:[%s772 + $0x8] sm:$0xff]
        %v2136 = vstv %s2133
        %v2137 = vmul.f32 %v2136, %v2134
        %v2138 = vmul.f32 %v2136, %v2135
        %v2139 = vadd.f32 %v2131, %v2137
        %v2140 = vadd.f32 %v2132, %v2138
        %s2141 = sld [smem:[#allocation10 + $0x13]]
        %v2142 = vstv %s2141
        %v2143 = vmul.f32 %v2142, %v2134
        %v2144 = vmul.f32 %v2142, %v2135
        %2147 = vrot.lane.b32.xlu0 %v2143, 127
        %v2148 = vpop.permute.xlu0 %2147
        %2149 = vrot.lane.b32.xlu0 %v2144, 127
        %v2150 = vpop.permute.xlu0 %2149
        %v2153 = vadd.f32 %v2139, %v2148
        %v2154 = vadd.f32 %v2140, %v2150
        %s2155 = sld [smem:[#allocation10 + $0x14]]
        %v2156 = vstv %s2155
        %v2157 = vmul.f32 %v2156, %v2134
        %v2158 = vmul.f32 %v2156, %v2135
        %2161 = vrot.lane.b32.xlu0 %v2157, 126
        %v2162 = vpop.permute.xlu0 %2161
        %2163 = vrot.lane.b32.xlu0 %v2158, 126
        %v2164 = vpop.permute.xlu0 %2163
        %v2167 = vadd.f32 %v2153, %v2162
        %v2168 = vadd.f32 %v2154, %v2164
        %s2169 = sld [smem:[#allocation10 + $0x15]]
        %v2170 = vld [vmem:[%s772 + $0x1] sm:$0xff]
        %v2171 = vld [vmem:[%s772 + $0x9] sm:$0xff]
        %v2172 = vstv %s2169
        %v2173 = vmul.f32 %v2172, %v2170
        %v2174 = vmul.f32 %v2172, %v2171
        %v2175 = vadd.f32 %v2167, %v2173
        %v2176 = vadd.f32 %v2168, %v2174
        %s2177 = sld [smem:[#allocation10 + $0x16]]
        %v2178 = vstv %s2177
        %v2179 = vmul.f32 %v2178, %v2170
        %v2180 = vmul.f32 %v2178, %v2171
        %2183 = vrot.lane.b32.xlu0 %v2179, 127
        %v2184 = vpop.permute.xlu0 %2183
        %2185 = vrot.lane.b32.xlu0 %v2180, 127
        %v2186 = vpop.permute.xlu0 %2185
        %v2189 = vadd.f32 %v2175, %v2184
        %v2190 = vadd.f32 %v2176, %v2186
        %s2191 = sld [smem:[#allocation10 + $0x17]]
        %v2192 = vstv %s2191
        %v2193 = vmul.f32 %v2192, %v2170
        %v2194 = vmul.f32 %v2192, %v2171
        %2197 = vrot.lane.b32.xlu0 %v2193, 126
        %v2198 = vpop.permute.xlu0 %2197
        %2199 = vrot.lane.b32.xlu0 %v2194, 126
        %v2200 = vpop.permute.xlu0 %2199
        %v2203 = vadd.f32 %v2189, %v2198
        %v2204 = vadd.f32 %v2190, %v2200
        %s2205 = sld [smem:[#allocation10 + $0x18]]
        %v2206 = vld [vmem:[%s772 + $0x2] sm:$0xff]
        %v2207 = vld [vmem:[%s772 + $0xa] sm:$0xff]
        %v2208 = vstv %s2205
        %v2209 = vmul.f32 %v2208, %v2206
        %v2210 = vmul.f32 %v2208, %v2207
        %v2211 = vadd.f32 %v2203, %v2209
        %v2212 = vadd.f32 %v2204, %v2210
        %s2213 = sld [smem:[#allocation10 + $0x19]]
        %v2214 = vstv %s2213
        %v2215 = vmul.f32 %v2214, %v2206
        %v2216 = vmul.f32 %v2214, %v2207
        %2219 = vrot.lane.b32.xlu0 %v2215, 127
        %v2220 = vpop.permute.xlu0 %2219
        %2221 = vrot.lane.b32.xlu0 %v2216, 127
        %v2222 = vpop.permute.xlu0 %2221
        %v2225 = vadd.f32 %v2211, %v2220
        %v2226 = vadd.f32 %v2212, %v2222
        %s2227 = sld [smem:[#allocation10 + $0x1a]]
        %v2228 = vstv %s2227
        %v2229 = vmul.f32 %v2228, %v2206
        %v2230 = vmul.f32 %v2228, %v2207
        %2233 = vrot.lane.b32.xlu0 %v2229, 126
        %v2234 = vpop.permute.xlu0 %2233
        %2235 = vrot.lane.b32.xlu0 %v2230, 126
        %v2236 = vpop.permute.xlu0 %2235
        %v2239 = vadd.f32 %v2225, %v2234
        %v2240 = vadd.f32 %v2226, %v2236
        %s2241 = sld [smem:[#allocation10 + $0x1b]]
        %v2242 = vld [vmem:[%s881] sm:$0xff]
        %v2243 = vld [vmem:[%s881 + $0x8] sm:$0xff]
        %v2244 = vstv %s2241
        %v2245 = vmul.f32 %v2244, %v2242
        %v2246 = vmul.f32 %v2244, %v2243
        %v2247 = vadd.f32 %v2239, %v2245
        %v2248 = vadd.f32 %v2240, %v2246
        %s2249 = sld [smem:[#allocation10 + $0x1c]]
        %v2250 = vstv %s2249
        %v2251 = vmul.f32 %v2250, %v2242
        %v2252 = vmul.f32 %v2250, %v2243
        %2255 = vrot.lane.b32.xlu0 %v2251, 127
        %v2256 = vpop.permute.xlu0 %2255
        %2257 = vrot.lane.b32.xlu0 %v2252, 127
        %v2258 = vpop.permute.xlu0 %2257
        %v2261 = vadd.f32 %v2247, %v2256
        %v2262 = vadd.f32 %v2248, %v2258
        %s2263 = sld [smem:[#allocation10 + $0x1d]]
        %v2264 = vstv %s2263
        %v2265 = vmul.f32 %v2264, %v2242
        %v2266 = vmul.f32 %v2264, %v2243
        %2269 = vrot.lane.b32.xlu0 %v2265, 126
        %v2270 = vpop.permute.xlu0 %2269
        %2271 = vrot.lane.b32.xlu0 %v2266, 126
        %v2272 = vpop.permute.xlu0 %2271
        %v2275 = vadd.f32 %v2261, %v2270
        %v2276 = vadd.f32 %v2262, %v2272
        %s2277 = sld [smem:[#allocation10 + $0x1e]]
        %v2278 = vld [vmem:[%s881 + $0x1] sm:$0xff]
        %v2279 = vld [vmem:[%s881 + $0x9] sm:$0xff]
        %v2280 = vstv %s2277
        %v2281 = vmul.f32 %v2280, %v2278
        %v2282 = vmul.f32 %v2280, %v2279
        %v2283 = vadd.f32 %v2275, %v2281
        %v2284 = vadd.f32 %v2276, %v2282
        %s2285 = sld [smem:[#allocation10 + $0x1f]]
        %v2286 = vstv %s2285
        %v2287 = vmul.f32 %v2286, %v2278
        %v2288 = vmul.f32 %v2286, %v2279
        %2291 = vrot.lane.b32.xlu0 %v2287, 127
        %v2292 = vpop.permute.xlu0 %2291
        %2293 = vrot.lane.b32.xlu0 %v2288, 127
        %v2294 = vpop.permute.xlu0 %2293
        %v2297 = vadd.f32 %v2283, %v2292
        %v2298 = vadd.f32 %v2284, %v2294
        %s2299 = sld [smem:[#allocation10 + $0x20]]
        %v2300 = vstv %s2299
        %v2301 = vmul.f32 %v2300, %v2278
        %v2302 = vmul.f32 %v2300, %v2279
        %2305 = vrot.lane.b32.xlu0 %v2301, 126
        %v2306 = vpop.permute.xlu0 %2305
        %2307 = vrot.lane.b32.xlu0 %v2302, 126
        %v2308 = vpop.permute.xlu0 %2307
        %v2311 = vadd.f32 %v2297, %v2306
        %v2312 = vadd.f32 %v2298, %v2308
        %s2313 = sld [smem:[#allocation10 + $0x21]]
        %v2314 = vld [vmem:[%s881 + $0x2] sm:$0xff]
        %v2315 = vld [vmem:[%s881 + $0xa] sm:$0xff]
        %v2316 = vstv %s2313
        %v2317 = vmul.f32 %v2316, %v2314
        %v2318 = vmul.f32 %v2316, %v2315
        %v2319 = vadd.f32 %v2311, %v2317
        %v2320 = vadd.f32 %v2312, %v2318
        %s2321 = sld [smem:[#allocation10 + $0x22]]
        %v2322 = vstv %s2321
        %v2323 = vmul.f32 %v2322, %v2314
        %v2324 = vmul.f32 %v2322, %v2315
        %2327 = vrot.lane.b32.xlu0 %v2323, 127
        %v2328 = vpop.permute.xlu0 %2327
        %2329 = vrot.lane.b32.xlu0 %v2324, 127
        %v2330 = vpop.permute.xlu0 %2329
        %v2333 = vadd.f32 %v2319, %v2328
        %v2334 = vadd.f32 %v2320, %v2330
        %s2335 = sld [smem:[#allocation10 + $0x23]]
        %v2336 = vstv %s2335
        %v2337 = vmul.f32 %v2336, %v2314
        %v2338 = vmul.f32 %v2336, %v2315
        %2341 = vrot.lane.b32.xlu0 %v2337, 126
        %v2342 = vpop.permute.xlu0 %2341
        %2343 = vrot.lane.b32.xlu0 %v2338, 126
        %v2344 = vpop.permute.xlu0 %2343
        %v2347 = vadd.f32 %v2333, %v2342
        %v2348 = vadd.f32 %v2334, %v2344
        %s2349 = sld [smem:[#allocation17]]
        %v2350 = vstv %s2349
        %v2351 = vadd.f32 %v2350, 0.0
        %s2352 = sld [smem:[#allocation16]]
        %v2353 = vld [vmem:[#allocation3] sm:$0xff]
        %v2354 = vld [vmem:[#allocation3 + $0x8] sm:$0xff]
        %v2355 = vstv %s2352
        %v2356 = vmul.f32 %v2355, %v2353
        %v2357 = vmul.f32 %v2355, %v2354
        %v2358 = vadd.f32 %v2351, %v2356
        %v2359 = vadd.f32 %v2351, %v2357
        %s2360 = sld [smem:[#allocation16 + $0x1]]
        %v2361 = vstv %s2360
        %v2362 = vmul.f32 %v2361, %v2353
        %v2363 = vmul.f32 %v2361, %v2354
        %2366 = vrot.lane.b32.xlu0 %v2362, 127
        %v2367 = vpop.permute.xlu0 %2366
        %2368 = vrot.lane.b32.xlu0 %v2363, 127
        %v2369 = vpop.permute.xlu0 %2368
        %v2372 = vadd.f32 %v2358, %v2367
        %v2373 = vadd.f32 %v2359, %v2369
        %s2374 = sld [smem:[#allocation16 + $0x2]]
        %v2375 = vstv %s2374
        %v2376 = vmul.f32 %v2375, %v2353
        %v2377 = vmul.f32 %v2375, %v2354
        %2380 = vrot.lane.b32.xlu0 %v2376, 126
        %v2381 = vpop.permute.xlu0 %2380
        %2382 = vrot.lane.b32.xlu0 %v2377, 126
        %v2383 = vpop.permute.xlu0 %2382
        %v2386 = vadd.f32 %v2372, %v2381
        %v2387 = vadd.f32 %v2373, %v2383
        %s2388 = sld [smem:[#allocation16 + $0x3]]
        %v2389 = vld [vmem:[#allocation3 + $0x1] sm:$0xff]
        %v2390 = vld [vmem:[#allocation3 + $0x9] sm:$0xff]
        %v2391 = vstv %s2388
        %v2392 = vmul.f32 %v2391, %v2389
        %v2393 = vmul.f32 %v2391, %v2390
        %v2394 = vadd.f32 %v2386, %v2392
        %v2395 = vadd.f32 %v2387, %v2393
        %s2396 = sld [smem:[#allocation16 + $0x4]]
        %v2397 = vstv %s2396
        %v2398 = vmul.f32 %v2397, %v2389
        %v2399 = vmul.f32 %v2397, %v2390
        %2402 = vrot.lane.b32.xlu0 %v2398, 127
        %v2403 = vpop.permute.xlu0 %2402
        %2404 = vrot.lane.b32.xlu0 %v2399, 127
        %v2405 = vpop.permute.xlu0 %2404
        %v2408 = vadd.f32 %v2394, %v2403
        %v2409 = vadd.f32 %v2395, %v2405
        %s2410 = sld [smem:[#allocation16 + $0x5]]
        %v2411 = vstv %s2410
        %v2412 = vmul.f32 %v2411, %v2389
        %v2413 = vmul.f32 %v2411, %v2390
        %2416 = vrot.lane.b32.xlu0 %v2412, 126
        %v2417 = vpop.permute.xlu0 %2416
        %2418 = vrot.lane.b32.xlu0 %v2413, 126
        %v2419 = vpop.permute.xlu0 %2418
        %v2422 = vadd.f32 %v2408, %v2417
        %v2423 = vadd.f32 %v2409, %v2419
        %s2424 = sld [smem:[#allocation16 + $0x6]]
        %v2425 = vld [vmem:[#allocation3 + $0x2] sm:$0xff]
        %v2426 = vld [vmem:[#allocation3 + $0xa] sm:$0xff]
        %v2427 = vstv %s2424
        %v2428 = vmul.f32 %v2427, %v2425
        %v2429 = vmul.f32 %v2427, %v2426
        %v2430 = vadd.f32 %v2422, %v2428
        %v2431 = vadd.f32 %v2423, %v2429
        %s2432 = sld [smem:[#allocation16 + $0x7]]
        %v2433 = vstv %s2432
        %v2434 = vmul.f32 %v2433, %v2425
        %v2435 = vmul.f32 %v2433, %v2426
        %2438 = vrot.lane.b32.xlu0 %v2434, 127
        %v2439 = vpop.permute.xlu0 %2438
        %2440 = vrot.lane.b32.xlu0 %v2435, 127
        %v2441 = vpop.permute.xlu0 %2440
        %v2444 = vadd.f32 %v2430, %v2439
        %v2445 = vadd.f32 %v2431, %v2441
        %s2446 = sld [smem:[#allocation16 + $0x8]]
        %v2447 = vstv %s2446
        %v2448 = vmul.f32 %v2447, %v2425
        %v2449 = vmul.f32 %v2447, %v2426
        %2452 = vrot.lane.b32.xlu0 %v2448, 126
        %v2453 = vpop.permute.xlu0 %2452
        %2454 = vrot.lane.b32.xlu0 %v2449, 126
        %v2455 = vpop.permute.xlu0 %2454
        %v2458 = vadd.f32 %v2444, %v2453
        %v2459 = vadd.f32 %v2445, %v2455
        %s2460 = sld [smem:[#allocation16 + $0x9]]
        %v2461 = vld [vmem:[%s1457] sm:$0xff]
        %v2462 = vld [vmem:[%s1457 + $0x8] sm:$0xff]
        %v2463 = vstv %s2460
        %v2464 = vmul.f32 %v2463, %v2461
        %v2465 = vmul.f32 %v2463, %v2462
        %v2466 = vadd.f32 %v2458, %v2464
        %v2467 = vadd.f32 %v2459, %v2465
        %s2468 = sld [smem:[#allocation16 + $0xa]]
        %v2469 = vstv %s2468
        %v2470 = vmul.f32 %v2469, %v2461
        %v2471 = vmul.f32 %v2469, %v2462
        %2474 = vrot.lane.b32.xlu0 %v2470, 127
        %v2475 = vpop.permute.xlu0 %2474
        %2476 = vrot.lane.b32.xlu0 %v2471, 127
        %v2477 = vpop.permute.xlu0 %2476
        %v2480 = vadd.f32 %v2466, %v2475
        %v2481 = vadd.f32 %v2467, %v2477
        %s2482 = sld [smem:[#allocation16 + $0xb]]
        %v2483 = vstv %s2482
        %v2484 = vmul.f32 %v2483, %v2461
        %v2485 = vmul.f32 %v2483, %v2462
        %2488 = vrot.lane.b32.xlu0 %v2484, 126
        %v2489 = vpop.permute.xlu0 %2488
        %2490 = vrot.lane.b32.xlu0 %v2485, 126
        %v2491 = vpop.permute.xlu0 %2490
        %v2494 = vadd.f32 %v2480, %v2489
        %v2495 = vadd.f32 %v2481, %v2491
        %s2496 = sld [smem:[#allocation16 + $0xc]]
        %v2497 = vld [vmem:[%s1457 + $0x1] sm:$0xff]
        %v2498 = vld [vmem:[%s1457 + $0x9] sm:$0xff]
        %v2499 = vstv %s2496
        %v2500 = vmul.f32 %v2499, %v2497
        %v2501 = vmul.f32 %v2499, %v2498
        %v2502 = vadd.f32 %v2494, %v2500
        %v2503 = vadd.f32 %v2495, %v2501
        %s2504 = sld [smem:[#allocation16 + $0xd]]
        %v2505 = vstv %s2504
        %v2506 = vmul.f32 %v2505, %v2497
        %v2507 = vmul.f32 %v2505, %v2498
        %2510 = vrot.lane.b32.xlu0 %v2506, 127
        %v2511 = vpop.permute.xlu0 %2510
        %2512 = vrot.lane.b32.xlu0 %v2507, 127
        %v2513 = vpop.permute.xlu0 %2512
        %v2516 = vadd.f32 %v2502, %v2511
        %v2517 = vadd.f32 %v2503, %v2513
        %s2518 = sld [smem:[#allocation16 + $0xe]]
        %v2519 = vstv %s2518
        %v2520 = vmul.f32 %v2519, %v2497
        %v2521 = vmul.f32 %v2519, %v2498
        %2524 = vrot.lane.b32.xlu0 %v2520, 126
        %v2525 = vpop.permute.xlu0 %2524
        %2526 = vrot.lane.b32.xlu0 %v2521, 126
        %v2527 = vpop.permute.xlu0 %2526
        %v2530 = vadd.f32 %v2516, %v2525
        %v2531 = vadd.f32 %v2517, %v2527
        %s2532 = sld [smem:[#allocation16 + $0xf]]
        %v2533 = vld [vmem:[%s1457 + $0x2] sm:$0xff]
        %v2534 = vld [vmem:[%s1457 + $0xa] sm:$0xff]
        %v2535 = vstv %s2532
        %v2536 = vmul.f32 %v2535, %v2533
        %v2537 = vmul.f32 %v2535, %v2534
        %v2538 = vadd.f32 %v2530, %v2536
        %v2539 = vadd.f32 %v2531, %v2537
        %s2540 = sld [smem:[#allocation16 + $0x10]]
        %v2541 = vstv %s2540
        %v2542 = vmul.f32 %v2541, %v2533
        %v2543 = vmul.f32 %v2541, %v2534
        %2546 = vrot.lane.b32.xlu0 %v2542, 127
        %v2547 = vpop.permute.xlu0 %2546
        %2548 = vrot.lane.b32.xlu0 %v2543, 127
        %v2549 = vpop.permute.xlu0 %2548
        %v2552 = vadd.f32 %v2538, %v2547
        %v2553 = vadd.f32 %v2539, %v2549
        %s2554 = sld [smem:[#allocation16 + $0x11]]
        %v2555 = vstv %s2554
        %v2556 = vmul.f32 %v2555, %v2533
        %v2557 = vmul.f32 %v2555, %v2534
        %2560 = vrot.lane.b32.xlu0 %v2556, 126
        %v2561 = vpop.permute.xlu0 %2560
        %2562 = vrot.lane.b32.xlu0 %v2557, 126
        %v2563 = vpop.permute.xlu0 %2562
        %v2566 = vadd.f32 %v2552, %v2561
        %v2567 = vadd.f32 %v2553, %v2563
        %s2568 = sld [smem:[#allocation16 + $0x12]]
        %v2569 = vld [vmem:[%s1911] sm:$0xff]
        %v2570 = vld [vmem:[%s1911 + $0x8] sm:$0xff]
        %v2571 = vstv %s2568
        %v2572 = vmul.f32 %v2571, %v2569
        %v2573 = vmul.f32 %v2571, %v2570
        %v2574 = vadd.f32 %v2566, %v2572
        %v2575 = vadd.f32 %v2567, %v2573
        %s2576 = sld [smem:[#allocation16 + $0x13]]
        %v2577 = vstv %s2576
        %v2578 = vmul.f32 %v2577, %v2569
        %v2579 = vmul.f32 %v2577, %v2570
        %2582 = vrot.lane.b32.xlu0 %v2578, 127
        %v2583 = vpop.permute.xlu0 %2582
        %2584 = vrot.lane.b32.xlu0 %v2579, 127
        %v2585 = vpop.permute.xlu0 %2584
        %v2588 = vadd.f32 %v2574, %v2583
        %v2589 = vadd.f32 %v2575, %v2585
        %s2590 = sld [smem:[#allocation16 + $0x14]]
        %v2591 = vstv %s2590
        %v2592 = vmul.f32 %v2591, %v2569
        %v2593 = vmul.f32 %v2591, %v2570
        %2596 = vrot.lane.b32.xlu0 %v2592, 126
        %v2597 = vpop.permute.xlu0 %2596
        %2598 = vrot.lane.b32.xlu0 %v2593, 126
        %v2599 = vpop.permute.xlu0 %2598
        %v2602 = vadd.f32 %v2588, %v2597
        %v2603 = vadd.f32 %v2589, %v2599
        %s2604 = sld [smem:[#allocation16 + $0x15]]
        %v2605 = vld [vmem:[%s1911 + $0x1] sm:$0xff]
        %v2606 = vld [vmem:[%s1911 + $0x9] sm:$0xff]
        %v2607 = vstv %s2604
        %v2608 = vmul.f32 %v2607, %v2605
        %v2609 = vmul.f32 %v2607, %v2606
        %v2610 = vadd.f32 %v2602, %v2608
        %v2611 = vadd.f32 %v2603, %v2609
        %s2612 = sld [smem:[#allocation16 + $0x16]]
        %v2613 = vstv %s2612
        %v2614 = vmul.f32 %v2613, %v2605
        %v2615 = vmul.f32 %v2613, %v2606
        %2618 = vrot.lane.b32.xlu0 %v2614, 127
        %v2619 = vpop.permute.xlu0 %2618
        %2620 = vrot.lane.b32.xlu0 %v2615, 127
        %v2621 = vpop.permute.xlu0 %2620
        %v2624 = vadd.f32 %v2610, %v2619
        %v2625 = vadd.f32 %v2611, %v2621
        %s2626 = sld [smem:[#allocation16 + $0x17]]
        %v2627 = vstv %s2626
        %v2628 = vmul.f32 %v2627, %v2605
        %v2629 = vmul.f32 %v2627, %v2606
        %2632 = vrot.lane.b32.xlu0 %v2628, 126
        %v2633 = vpop.permute.xlu0 %2632
        %2634 = vrot.lane.b32.xlu0 %v2629, 126
        %v2635 = vpop.permute.xlu0 %2634
        %v2638 = vadd.f32 %v2624, %v2633
        %v2639 = vadd.f32 %v2625, %v2635
        %s2640 = sld [smem:[#allocation16 + $0x18]]
        %v2641 = vld [vmem:[%s1911 + $0x2] sm:$0xff]
        %v2642 = vld [vmem:[%s1911 + $0xa] sm:$0xff]
        %v2643 = vstv %s2640
        %v2644 = vmul.f32 %v2643, %v2641
        %v2645 = vmul.f32 %v2643, %v2642
        %v2646 = vadd.f32 %v2638, %v2644
        %v2647 = vadd.f32 %v2639, %v2645
        %s2648 = sld [smem:[#allocation16 + $0x19]]
        %v2649 = vstv %s2648
        %v2650 = vmul.f32 %v2649, %v2641
        %v2651 = vmul.f32 %v2649, %v2642
        %2654 = vrot.lane.b32.xlu0 %v2650, 127
        %v2655 = vpop.permute.xlu0 %2654
        %2656 = vrot.lane.b32.xlu0 %v2651, 127
        %v2657 = vpop.permute.xlu0 %2656
        %v2660 = vadd.f32 %v2646, %v2655
        %v2661 = vadd.f32 %v2647, %v2657
        %s2662 = sld [smem:[#allocation16 + $0x1a]]
        %v2663 = vstv %s2662
        %v2664 = vmul.f32 %v2663, %v2641
        %v2665 = vmul.f32 %v2663, %v2642
        %2668 = vrot.lane.b32.xlu0 %v2664, 126
        %v2669 = vpop.permute.xlu0 %2668
        %2670 = vrot.lane.b32.xlu0 %v2665, 126
        %v2671 = vpop.permute.xlu0 %2670
        %v2674 = vadd.f32 %v2660, %v2669
        %v2675 = vadd.f32 %v2661, %v2671
        %v2676 = vxor.u32 %v2674, 2147483648
        %v2677 = vxor.u32 %v2675, 2147483648
        %v2678 = vmul.f32 %v2676, 1.442695
        %v2679 = vpow.pop %v2678
        %v2680 = vmul.f32 %v2677, 1.442695
        %v2681 = vpow.pop %v2680
        %v2682 = vadd.f32 %v2679, 1.0
        %v2683 = vadd.f32 %v2681, 1.0
        %v2684 = vrcp.pop %v2682
        %v2685 = vmul.f32 1.0, %v2684
        %v2686 = vrcp.pop %v2683
        %v2687 = vmul.f32 1.0, %v2686
        %v2688 = vmul.f32 %v2347, %v2685
        %v2689 = vmul.f32 %v2348, %v2687
        %v2690 = vld [vmem:[%s400] sm:$0xff]
        %v2691 = vld [vmem:[%s400 + $0x8] sm:$0xff]
        %v2692 = vadd.f32 %v2688, %v2690
        %v2693 = vadd.f32 %v2689, %v2691
        %2694 = vst.msk [vmem:[%s471] sm:$0xff] %vm993, %v2692
        %2695 = vst.msk [vmem:[%s471 + $0x8] sm:$0xff] %vm993, %v2693
        %s2696 = sld [smem:[#allocation11 + $0x1]]
        %v2697 = vstv %s2696
        %v2698 = vadd.f32 %v2697, 0.0
        %s2699 = sld [smem:[#allocation10 + $0x24]]
        %v2700 = vld [vmem:[#allocation2] sm:$0xff]
        %v2701 = vld [vmem:[#allocation2 + $0x8] sm:$0xff]
        %v2702 = vstv %s2699
        %v2703 = vmul.f32 %v2702, %v2700
        %v2704 = vmul.f32 %v2702, %v2701
        %v2705 = vadd.f32 %v2698, %v2703
        %v2706 = vadd.f32 %v2698, %v2704
        %s2707 = sld [smem:[#allocation10 + $0x25]]
        %v2708 = vstv %s2707
        %v2709 = vmul.f32 %v2708, %v2700
        %v2710 = vmul.f32 %v2708, %v2701
        %2713 = vrot.lane.b32.xlu0 %v2709, 127
        %v2714 = vpop.permute.xlu0 %2713
        %2715 = vrot.lane.b32.xlu0 %v2710, 127
        %v2716 = vpop.permute.xlu0 %2715
        %v2719 = vadd.f32 %v2705, %v2714
        %v2720 = vadd.f32 %v2706, %v2716
        %s2721 = sld [smem:[#allocation10 + $0x26]]
        %v2722 = vstv %s2721
        %v2723 = vmul.f32 %v2722, %v2700
        %v2724 = vmul.f32 %v2722, %v2701
        %2727 = vrot.lane.b32.xlu0 %v2723, 126
        %v2728 = vpop.permute.xlu0 %2727
        %2729 = vrot.lane.b32.xlu0 %v2724, 126
        %v2730 = vpop.permute.xlu0 %2729
        %v2733 = vadd.f32 %v2719, %v2728
        %v2734 = vadd.f32 %v2720, %v2730
        %s2735 = sld [smem:[#allocation10 + $0x27]]
        %v2736 = vld [vmem:[#allocation2 + $0x1] sm:$0xff]
        %v2737 = vld [vmem:[#allocation2 + $0x9] sm:$0xff]
        %v2738 = vstv %s2735
        %v2739 = vmul.f32 %v2738, %v2736
        %v2740 = vmul.f32 %v2738, %v2737
        %v2741 = vadd.f32 %v2733, %v2739
        %v2742 = vadd.f32 %v2734, %v2740
        %s2743 = sld [smem:[#allocation10 + $0x28]]
        %v2744 = vstv %s2743
        %v2745 = vmul.f32 %v2744, %v2736
        %v2746 = vmul.f32 %v2744, %v2737
        %2749 = vrot.lane.b32.xlu0 %v2745, 127
        %v2750 = vpop.permute.xlu0 %2749
        %2751 = vrot.lane.b32.xlu0 %v2746, 127
        %v2752 = vpop.permute.xlu0 %2751
        %v2755 = vadd.f32 %v2741, %v2750
        %v2756 = vadd.f32 %v2742, %v2752
        %s2757 = sld [smem:[#allocation10 + $0x29]]
        %v2758 = vstv %s2757
        %v2759 = vmul.f32 %v2758, %v2736
        %v2760 = vmul.f32 %v2758, %v2737
        %2763 = vrot.lane.b32.xlu0 %v2759, 126
        %v2764 = vpop.permute.xlu0 %2763
        %2765 = vrot.lane.b32.xlu0 %v2760, 126
        %v2766 = vpop.permute.xlu0 %2765
        %v2769 = vadd.f32 %v2755, %v2764
        %v2770 = vadd.f32 %v2756, %v2766
        %s2771 = sld [smem:[#allocation10 + $0x2a]]
        %v2772 = vld [vmem:[#allocation2 + $0x2] sm:$0xff]
        %v2773 = vld [vmem:[#allocation2 + $0xa] sm:$0xff]
        %v2774 = vstv %s2771
        %v2775 = vmul.f32 %v2774, %v2772
        %v2776 = vmul.f32 %v2774, %v2773
        %v2777 = vadd.f32 %v2769, %v2775
        %v2778 = vadd.f32 %v2770, %v2776
        %s2779 = sld [smem:[#allocation10 + $0x2b]]
        %v2780 = vstv %s2779
        %v2781 = vmul.f32 %v2780, %v2772
        %v2782 = vmul.f32 %v2780, %v2773
        %2785 = vrot.lane.b32.xlu0 %v2781, 127
        %v2786 = vpop.permute.xlu0 %2785
        %2787 = vrot.lane.b32.xlu0 %v2782, 127
        %v2788 = vpop.permute.xlu0 %2787
        %v2791 = vadd.f32 %v2777, %v2786
        %v2792 = vadd.f32 %v2778, %v2788
        %s2793 = sld [smem:[#allocation10 + $0x2c]]
        %v2794 = vstv %s2793
        %v2795 = vmul.f32 %v2794, %v2772
        %v2796 = vmul.f32 %v2794, %v2773
        %2799 = vrot.lane.b32.xlu0 %v2795, 126
        %v2800 = vpop.permute.xlu0 %2799
        %2801 = vrot.lane.b32.xlu0 %v2796, 126
        %v2802 = vpop.permute.xlu0 %2801
        %v2805 = vadd.f32 %v2791, %v2800
        %v2806 = vadd.f32 %v2792, %v2802
        %s2807 = sld [smem:[#allocation10 + $0x2d]]
        %v2808 = vld [vmem:[%s663] sm:$0xff]
        %v2809 = vld [vmem:[%s663 + $0x8] sm:$0xff]
        %v2810 = vstv %s2807
        %v2811 = vmul.f32 %v2810, %v2808
        %v2812 = vmul.f32 %v2810, %v2809
        %v2813 = vadd.f32 %v2805, %v2811
        %v2814 = vadd.f32 %v2806, %v2812
        %s2815 = sld [smem:[#allocation10 + $0x2e]]
        %v2816 = vstv %s2815
        %v2817 = vmul.f32 %v2816, %v2808
        %v2818 = vmul.f32 %v2816, %v2809
        %2821 = vrot.lane.b32.xlu0 %v2817, 127
        %v2822 = vpop.permute.xlu0 %2821
        %2823 = vrot.lane.b32.xlu0 %v2818, 127
        %v2824 = vpop.permute.xlu0 %2823
        %v2827 = vadd.f32 %v2813, %v2822
        %v2828 = vadd.f32 %v2814, %v2824
        %s2829 = sld [smem:[#allocation10 + $0x2f]]
        %v2830 = vstv %s2829
        %v2831 = vmul.f32 %v2830, %v2808
        %v2832 = vmul.f32 %v2830, %v2809
        %2835 = vrot.lane.b32.xlu0 %v2831, 126
        %v2836 = vpop.permute.xlu0 %2835
        %2837 = vrot.lane.b32.xlu0 %v2832, 126
        %v2838 = vpop.permute.xlu0 %2837
        %v2841 = vadd.f32 %v2827, %v2836
        %v2842 = vadd.f32 %v2828, %v2838
        %s2843 = sld [smem:[#allocation10 + $0x30]]
        %v2844 = vld [vmem:[%s663 + $0x1] sm:$0xff]
        %v2845 = vld [vmem:[%s663 + $0x9] sm:$0xff]
        %v2846 = vstv %s2843
        %v2847 = vmul.f32 %v2846, %v2844
        %v2848 = vmul.f32 %v2846, %v2845
        %v2849 = vadd.f32 %v2841, %v2847
        %v2850 = vadd.f32 %v2842, %v2848
        %s2851 = sld [smem:[#allocation10 + $0x31]]
        %v2852 = vstv %s2851
        %v2853 = vmul.f32 %v2852, %v2844
        %v2854 = vmul.f32 %v2852, %v2845
        %2857 = vrot.lane.b32.xlu0 %v2853, 127
        %v2858 = vpop.permute.xlu0 %2857
        %2859 = vrot.lane.b32.xlu0 %v2854, 127
        %v2860 = vpop.permute.xlu0 %2859
        %v2863 = vadd.f32 %v2849, %v2858
        %v2864 = vadd.f32 %v2850, %v2860
        %s2865 = sld [smem:[#allocation10 + $0x32]]
        %v2866 = vstv %s2865
        %v2867 = vmul.f32 %v2866, %v2844
        %v2868 = vmul.f32 %v2866, %v2845
        %2871 = vrot.lane.b32.xlu0 %v2867, 126
        %v2872 = vpop.permute.xlu0 %2871
        %2873 = vrot.lane.b32.xlu0 %v2868, 126
        %v2874 = vpop.permute.xlu0 %2873
        %v2877 = vadd.f32 %v2863, %v2872
        %v2878 = vadd.f32 %v2864, %v2874
        %s2879 = sld [smem:[#allocation10 + $0x33]]
        %v2880 = vld [vmem:[%s663 + $0x2] sm:$0xff]
        %v2881 = vld [vmem:[%s663 + $0xa] sm:$0xff]
        %v2882 = vstv %s2879
        %v2883 = vmul.f32 %v2882, %v2880
        %v2884 = vmul.f32 %v2882, %v2881
        %v2885 = vadd.f32 %v2877, %v2883
        %v2886 = vadd.f32 %v2878, %v2884
        %s2887 = sld [smem:[#allocation10 + $0x34]]
        %v2888 = vstv %s2887
        %v2889 = vmul.f32 %v2888, %v2880
        %v2890 = vmul.f32 %v2888, %v2881
        %2893 = vrot.lane.b32.xlu0 %v2889, 127
        %v2894 = vpop.permute.xlu0 %2893
        %2895 = vrot.lane.b32.xlu0 %v2890, 127
        %v2896 = vpop.permute.xlu0 %2895
        %v2899 = vadd.f32 %v2885, %v2894
        %v2900 = vadd.f32 %v2886, %v2896
        %s2901 = sld [smem:[#allocation10 + $0x35]]
        %v2902 = vstv %s2901
        %v2903 = vmul.f32 %v2902, %v2880
        %v2904 = vmul.f32 %v2902, %v2881
        %2907 = vrot.lane.b32.xlu0 %v2903, 126
        %v2908 = vpop.permute.xlu0 %2907
        %2909 = vrot.lane.b32.xlu0 %v2904, 126
        %v2910 = vpop.permute.xlu0 %2909
        %v2913 = vadd.f32 %v2899, %v2908
        %v2914 = vadd.f32 %v2900, %v2910
        %s2915 = sld [smem:[#allocation10 + $0x36]]
        %v2916 = vld [vmem:[%s772] sm:$0xff]
        %v2917 = vld [vmem:[%s772 + $0x8] sm:$0xff]
        %v2918 = vstv %s2915
        %v2919 = vmul.f32 %v2918, %v2916
        %v2920 = vmul.f32 %v2918, %v2917
        %v2921 = vadd.f32 %v2913, %v2919
        %v2922 = vadd.f32 %v2914, %v2920
        %s2923 = sld [smem:[#allocation10 + $0x37]]
        %v2924 = vstv %s2923
        %v2925 = vmul.f32 %v2924, %v2916
        %v2926 = vmul.f32 %v2924, %v2917
        %2929 = vrot.lane.b32.xlu0 %v2925, 127
        %v2930 = vpop.permute.xlu0 %2929
        %2931 = vrot.lane.b32.xlu0 %v2926, 127
        %v2932 = vpop.permute.xlu0 %2931
        %v2935 = vadd.f32 %v2921, %v2930
        %v2936 = vadd.f32 %v2922, %v2932
        %s2937 = sld [smem:[#allocation10 + $0x38]]
        %v2938 = vstv %s2937
        %v2939 = vmul.f32 %v2938, %v2916
        %v2940 = vmul.f32 %v2938, %v2917
        %2943 = vrot.lane.b32.xlu0 %v2939, 126
        %v2944 = vpop.permute.xlu0 %2943
        %2945 = vrot.lane.b32.xlu0 %v2940, 126
        %v2946 = vpop.permute.xlu0 %2945
        %v2949 = vadd.f32 %v2935, %v2944
        %v2950 = vadd.f32 %v2936, %v2946
        %s2951 = sld [smem:[#allocation10 + $0x39]]
        %v2952 = vld [vmem:[%s772 + $0x1] sm:$0xff]
        %v2953 = vld [vmem:[%s772 + $0x9] sm:$0xff]
        %v2954 = vstv %s2951
        %v2955 = vmul.f32 %v2954, %v2952
        %v2956 = vmul.f32 %v2954, %v2953
        %v2957 = vadd.f32 %v2949, %v2955
        %v2958 = vadd.f32 %v2950, %v2956
        %s2959 = sld [smem:[#allocation10 + $0x3a]]
        %v2960 = vstv %s2959
        %v2961 = vmul.f32 %v2960, %v2952
        %v2962 = vmul.f32 %v2960, %v2953
        %2965 = vrot.lane.b32.xlu0 %v2961, 127
        %v2966 = vpop.permute.xlu0 %2965
        %2967 = vrot.lane.b32.xlu0 %v2962, 127
        %v2968 = vpop.permute.xlu0 %2967
        %v2971 = vadd.f32 %v2957, %v2966
        %v2972 = vadd.f32 %v2958, %v2968
        %s2973 = sld [smem:[#allocation10 + $0x3b]]
        %v2974 = vstv %s2973
        %v2975 = vmul.f32 %v2974, %v2952
        %v2976 = vmul.f32 %v2974, %v2953
        %2979 = vrot.lane.b32.xlu0 %v2975, 126
        %v2980 = vpop.permute.xlu0 %2979
        %2981 = vrot.lane.b32.xlu0 %v2976, 126
        %v2982 = vpop.permute.xlu0 %2981
        %v2985 = vadd.f32 %v2971, %v2980
        %v2986 = vadd.f32 %v2972, %v2982
        %s2987 = sld [smem:[#allocation10 + $0x3c]]
        %v2988 = vld [vmem:[%s772 + $0x2] sm:$0xff]
        %v2989 = vld [vmem:[%s772 + $0xa] sm:$0xff]
        %v2990 = vstv %s2987
        %v2991 = vmul.f32 %v2990, %v2988
        %v2992 = vmul.f32 %v2990, %v2989
        %v2993 = vadd.f32 %v2985, %v2991
        %v2994 = vadd.f32 %v2986, %v2992
        %s2995 = sld [smem:[#allocation10 + $0x3d]]
        %v2996 = vstv %s2995
        %v2997 = vmul.f32 %v2996, %v2988
        %v2998 = vmul.f32 %v2996, %v2989
        %3001 = vrot.lane.b32.xlu0 %v2997, 127
        %v3002 = vpop.permute.xlu0 %3001
        %3003 = vrot.lane.b32.xlu0 %v2998, 127
        %v3004 = vpop.permute.xlu0 %3003
        %v3007 = vadd.f32 %v2993, %v3002
        %v3008 = vadd.f32 %v2994, %v3004
        %s3009 = sld [smem:[#allocation10 + $0x3e]]
        %v3010 = vstv %s3009
        %v3011 = vmul.f32 %v3010, %v2988
        %v3012 = vmul.f32 %v3010, %v2989
        %3015 = vrot.lane.b32.xlu0 %v3011, 126
        %v3016 = vpop.permute.xlu0 %3015
        %3017 = vrot.lane.b32.xlu0 %v3012, 126
        %v3018 = vpop.permute.xlu0 %3017
        %v3021 = vadd.f32 %v3007, %v3016
        %v3022 = vadd.f32 %v3008, %v3018
        %s3023 = sld [smem:[#allocation10 + $0x3f]]
        %v3024 = vld [vmem:[%s881] sm:$0xff]
        %v3025 = vld [vmem:[%s881 + $0x8] sm:$0xff]
        %v3026 = vstv %s3023
        %v3027 = vmul.f32 %v3026, %v3024
        %v3028 = vmul.f32 %v3026, %v3025
        %v3029 = vadd.f32 %v3021, %v3027
        %v3030 = vadd.f32 %v3022, %v3028
        %s3031 = sld [smem:[#allocation10 + $0x40]]
        %v3032 = vstv %s3031
        %v3033 = vmul.f32 %v3032, %v3024
        %v3034 = vmul.f32 %v3032, %v3025
        %3037 = vrot.lane.b32.xlu0 %v3033, 127
        %v3038 = vpop.permute.xlu0 %3037
        %3039 = vrot.lane.b32.xlu0 %v3034, 127
        %v3040 = vpop.permute.xlu0 %3039
        %v3043 = vadd.f32 %v3029, %v3038
        %v3044 = vadd.f32 %v3030, %v3040
        %s3045 = sld [smem:[#allocation10 + $0x41]]
        %v3046 = vstv %s3045
        %v3047 = vmul.f32 %v3046, %v3024
        %v3048 = vmul.f32 %v3046, %v3025
        %3051 = vrot.lane.b32.xlu0 %v3047, 126
        %v3052 = vpop.permute.xlu0 %3051
        %3053 = vrot.lane.b32.xlu0 %v3048, 126
        %v3054 = vpop.permute.xlu0 %3053
        %v3057 = vadd.f32 %v3043, %v3052
        %v3058 = vadd.f32 %v3044, %v3054
        %s3059 = sld [smem:[#allocation10 + $0x42]]
        %v3060 = vld [vmem:[%s881 + $0x1] sm:$0xff]
        %v3061 = vld [vmem:[%s881 + $0x9] sm:$0xff]
        %v3062 = vstv %s3059
        %v3063 = vmul.f32 %v3062, %v3060
        %v3064 = vmul.f32 %v3062, %v3061
        %v3065 = vadd.f32 %v3057, %v3063
        %v3066 = vadd.f32 %v3058, %v3064
        %s3067 = sld [smem:[#allocation10 + $0x43]]
        %v3068 = vstv %s3067
        %v3069 = vmul.f32 %v3068, %v3060
        %v3070 = vmul.f32 %v3068, %v3061
        %3073 = vrot.lane.b32.xlu0 %v3069, 127
        %v3074 = vpop.permute.xlu0 %3073
        %3075 = vrot.lane.b32.xlu0 %v3070, 127
        %v3076 = vpop.permute.xlu0 %3075
        %v3079 = vadd.f32 %v3065, %v3074
        %v3080 = vadd.f32 %v3066, %v3076
        %s3081 = sld [smem:[#allocation10 + $0x44]]
        %v3082 = vstv %s3081
        %v3083 = vmul.f32 %v3082, %v3060
        %v3084 = vmul.f32 %v3082, %v3061
        %3087 = vrot.lane.b32.xlu0 %v3083, 126
        %v3088 = vpop.permute.xlu0 %3087
        %3089 = vrot.lane.b32.xlu0 %v3084, 126
        %v3090 = vpop.permute.xlu0 %3089
        %v3093 = vadd.f32 %v3079, %v3088
        %v3094 = vadd.f32 %v3080, %v3090
        %s3095 = sld [smem:[#allocation10 + $0x45]]
        %v3096 = vld [vmem:[%s881 + $0x2] sm:$0xff]
        %v3097 = vld [vmem:[%s881 + $0xa] sm:$0xff]
        %v3098 = vstv %s3095
        %v3099 = vmul.f32 %v3098, %v3096
        %v3100 = vmul.f32 %v3098, %v3097
        %v3101 = vadd.f32 %v3093, %v3099
        %v3102 = vadd.f32 %v3094, %v3100
        %s3103 = sld [smem:[#allocation10 + $0x46]]
        %v3104 = vstv %s3103
        %v3105 = vmul.f32 %v3104, %v3096
        %v3106 = vmul.f32 %v3104, %v3097
        %3109 = vrot.lane.b32.xlu0 %v3105, 127
        %v3110 = vpop.permute.xlu0 %3109
        %3111 = vrot.lane.b32.xlu0 %v3106, 127
        %v3112 = vpop.permute.xlu0 %3111
        %v3115 = vadd.f32 %v3101, %v3110
        %v3116 = vadd.f32 %v3102, %v3112
        %s3117 = sld [smem:[#allocation10 + $0x47]]
        %v3118 = vstv %s3117
        %v3119 = vmul.f32 %v3118, %v3096
        %v3120 = vmul.f32 %v3118, %v3097
        %3123 = vrot.lane.b32.xlu0 %v3119, 126
        %v3124 = vpop.permute.xlu0 %3123
        %3125 = vrot.lane.b32.xlu0 %v3120, 126
        %v3126 = vpop.permute.xlu0 %3125
        %v3129 = vadd.f32 %v3115, %v3124
        %v3130 = vadd.f32 %v3116, %v3126
        %s3131 = sld [smem:[#allocation17 + $0x1]]
        %v3132 = vstv %s3131
        %v3133 = vadd.f32 %v3132, 0.0
        %s3134 = sld [smem:[#allocation16 + $0x1b]]
        %v3135 = vld [vmem:[#allocation3] sm:$0xff]
        %v3136 = vld [vmem:[#allocation3 + $0x8] sm:$0xff]
        %v3137 = vstv %s3134
        %v3138 = vmul.f32 %v3137, %v3135
        %v3139 = vmul.f32 %v3137, %v3136
        %v3140 = vadd.f32 %v3133, %v3138
        %v3141 = vadd.f32 %v3133, %v3139
        %s3142 = sld [smem:[#allocation16 + $0x1c]]
        %v3143 = vstv %s3142
        %v3144 = vmul.f32 %v3143, %v3135
        %v3145 = vmul.f32 %v3143, %v3136
        %3148 = vrot.lane.b32.xlu0 %v3144, 127
        %v3149 = vpop.permute.xlu0 %3148
        %3150 = vrot.lane.b32.xlu0 %v3145, 127
        %v3151 = vpop.permute.xlu0 %3150
        %v3154 = vadd.f32 %v3140, %v3149
        %v3155 = vadd.f32 %v3141, %v3151
        %s3156 = sld [smem:[#allocation16 + $0x1d]]
        %v3157 = vstv %s3156
        %v3158 = vmul.f32 %v3157, %v3135
        %v3159 = vmul.f32 %v3157, %v3136
        %3162 = vrot.lane.b32.xlu0 %v3158, 126
        %v3163 = vpop.permute.xlu0 %3162
        %3164 = vrot.lane.b32.xlu0 %v3159, 126
        %v3165 = vpop.permute.xlu0 %3164
        %v3168 = vadd.f32 %v3154, %v3163
        %v3169 = vadd.f32 %v3155, %v3165
        %s3170 = sld [smem:[#allocation16 + $0x1e]]
        %v3171 = vld [vmem:[#allocation3 + $0x1] sm:$0xff]
        %v3172 = vld [vmem:[#allocation3 + $0x9] sm:$0xff]
        %v3173 = vstv %s3170
        %v3174 = vmul.f32 %v3173, %v3171
        %v3175 = vmul.f32 %v3173, %v3172
        %v3176 = vadd.f32 %v3168, %v3174
        %v3177 = vadd.f32 %v3169, %v3175
        %s3178 = sld [smem:[#allocation16 + $0x1f]]
        %v3179 = vstv %s3178
        %v3180 = vmul.f32 %v3179, %v3171
        %v3181 = vmul.f32 %v3179, %v3172
        %3184 = vrot.lane.b32.xlu0 %v3180, 127
        %v3185 = vpop.permute.xlu0 %3184
        %3186 = vrot.lane.b32.xlu0 %v3181, 127
        %v3187 = vpop.permute.xlu0 %3186
        %v3190 = vadd.f32 %v3176, %v3185
        %v3191 = vadd.f32 %v3177, %v3187
        %s3192 = sld [smem:[#allocation16 + $0x20]]
        %v3193 = vstv %s3192
        %v3194 = vmul.f32 %v3193, %v3171
        %v3195 = vmul.f32 %v3193, %v3172
        %3198 = vrot.lane.b32.xlu0 %v3194, 126
        %v3199 = vpop.permute.xlu0 %3198
        %3200 = vrot.lane.b32.xlu0 %v3195, 126
        %v3201 = vpop.permute.xlu0 %3200
        %v3204 = vadd.f32 %v3190, %v3199
        %v3205 = vadd.f32 %v3191, %v3201
        %s3206 = sld [smem:[#allocation16 + $0x21]]
        %v3207 = vld [vmem:[#allocation3 + $0x2] sm:$0xff]
        %v3208 = vld [vmem:[#allocation3 + $0xa] sm:$0xff]
        %v3209 = vstv %s3206
        %v3210 = vmul.f32 %v3209, %v3207
        %v3211 = vmul.f32 %v3209, %v3208
        %v3212 = vadd.f32 %v3204, %v3210
        %v3213 = vadd.f32 %v3205, %v3211
        %s3214 = sld [smem:[#allocation16 + $0x22]]
        %v3215 = vstv %s3214
        %v3216 = vmul.f32 %v3215, %v3207
        %v3217 = vmul.f32 %v3215, %v3208
        %3220 = vrot.lane.b32.xlu0 %v3216, 127
        %v3221 = vpop.permute.xlu0 %3220
        %3222 = vrot.lane.b32.xlu0 %v3217, 127
        %v3223 = vpop.permute.xlu0 %3222
        %v3226 = vadd.f32 %v3212, %v3221
        %v3227 = vadd.f32 %v3213, %v3223
        %s3228 = sld [smem:[#allocation16 + $0x23]]
        %v3229 = vstv %s3228
        %v3230 = vmul.f32 %v3229, %v3207
        %v3231 = vmul.f32 %v3229, %v3208
        %3234 = vrot.lane.b32.xlu0 %v3230, 126
        %v3235 = vpop.permute.xlu0 %3234
        %3236 = vrot.lane.b32.xlu0 %v3231, 126
        %v3237 = vpop.permute.xlu0 %3236
        %v3240 = vadd.f32 %v3226, %v3235
        %v3241 = vadd.f32 %v3227, %v3237
        %s3242 = sld [smem:[#allocation16 + $0x24]]
        %v3243 = vld [vmem:[%s1457] sm:$0xff]
        %v3244 = vld [vmem:[%s1457 + $0x8] sm:$0xff]
        %v3245 = vstv %s3242
        %v3246 = vmul.f32 %v3245, %v3243
        %v3247 = vmul.f32 %v3245, %v3244
        %v3248 = vadd.f32 %v3240, %v3246
        %v3249 = vadd.f32 %v3241, %v3247
        %s3250 = sld [smem:[#allocation16 + $0x25]]
        %v3251 = vstv %s3250
        %v3252 = vmul.f32 %v3251, %v3243
        %v3253 = vmul.f32 %v3251, %v3244
        %3256 = vrot.lane.b32.xlu0 %v3252, 127
        %v3257 = vpop.permute.xlu0 %3256
        %3258 = vrot.lane.b32.xlu0 %v3253, 127
        %v3259 = vpop.permute.xlu0 %3258
        %v3262 = vadd.f32 %v3248, %v3257
        %v3263 = vadd.f32 %v3249, %v3259
        %s3264 = sld [smem:[#allocation16 + $0x26]]
        %v3265 = vstv %s3264
        %v3266 = vmul.f32 %v3265, %v3243
        %v3267 = vmul.f32 %v3265, %v3244
        %3270 = vrot.lane.b32.xlu0 %v3266, 126
        %v3271 = vpop.permute.xlu0 %3270
        %3272 = vrot.lane.b32.xlu0 %v3267, 126
        %v3273 = vpop.permute.xlu0 %3272
        %v3276 = vadd.f32 %v3262, %v3271
        %v3277 = vadd.f32 %v3263, %v3273
        %s3278 = sld [smem:[#allocation16 + $0x27]]
        %v3279 = vld [vmem:[%s1457 + $0x1] sm:$0xff]
        %v3280 = vld [vmem:[%s1457 + $0x9] sm:$0xff]
        %v3281 = vstv %s3278
        %v3282 = vmul.f32 %v3281, %v3279
        %v3283 = vmul.f32 %v3281, %v3280
        %v3284 = vadd.f32 %v3276, %v3282
        %v3285 = vadd.f32 %v3277, %v3283
        %s3286 = sld [smem:[#allocation16 + $0x28]]
        %v3287 = vstv %s3286
        %v3288 = vmul.f32 %v3287, %v3279
        %v3289 = vmul.f32 %v3287, %v3280
        %3292 = vrot.lane.b32.xlu0 %v3288, 127
        %v3293 = vpop.permute.xlu0 %3292
        %3294 = vrot.lane.b32.xlu0 %v3289, 127
        %v3295 = vpop.permute.xlu0 %3294
        %v3298 = vadd.f32 %v3284, %v3293
        %v3299 = vadd.f32 %v3285, %v3295
        %s3300 = sld [smem:[#allocation16 + $0x29]]
        %v3301 = vstv %s3300
        %v3302 = vmul.f32 %v3301, %v3279
        %v3303 = vmul.f32 %v3301, %v3280
        %3306 = vrot.lane.b32.xlu0 %v3302, 126
        %v3307 = vpop.permute.xlu0 %3306
        %3308 = vrot.lane.b32.xlu0 %v3303, 126
        %v3309 = vpop.permute.xlu0 %3308
        %v3312 = vadd.f32 %v3298, %v3307
        %v3313 = vadd.f32 %v3299, %v3309
        %s3314 = sld [smem:[#allocation16 + $0x2a]]
        %v3315 = vld [vmem:[%s1457 + $0x2] sm:$0xff]
        %v3316 = vld [vmem:[%s1457 + $0xa] sm:$0xff]
        %v3317 = vstv %s3314
        %v3318 = vmul.f32 %v3317, %v3315
        %v3319 = vmul.f32 %v3317, %v3316
        %v3320 = vadd.f32 %v3312, %v3318
        %v3321 = vadd.f32 %v3313, %v3319
        %s3322 = sld [smem:[#allocation16 + $0x2b]]
        %v3323 = vstv %s3322
        %v3324 = vmul.f32 %v3323, %v3315
        %v3325 = vmul.f32 %v3323, %v3316
        %3328 = vrot.lane.b32.xlu0 %v3324, 127
        %v3329 = vpop.permute.xlu0 %3328
        %3330 = vrot.lane.b32.xlu0 %v3325, 127
        %v3331 = vpop.permute.xlu0 %3330
        %v3334 = vadd.f32 %v3320, %v3329
        %v3335 = vadd.f32 %v3321, %v3331
        %s3336 = sld [smem:[#allocation16 + $0x2c]]
        %v3337 = vstv %s3336
        %v3338 = vmul.f32 %v3337, %v3315
        %v3339 = vmul.f32 %v3337, %v3316
        %3342 = vrot.lane.b32.xlu0 %v3338, 126
        %v3343 = vpop.permute.xlu0 %3342
        %3344 = vrot.lane.b32.xlu0 %v3339, 126
        %v3345 = vpop.permute.xlu0 %3344
        %v3348 = vadd.f32 %v3334, %v3343
        %v3349 = vadd.f32 %v3335, %v3345
        %s3350 = sld [smem:[#allocation16 + $0x2d]]
        %v3351 = vld [vmem:[%s1911] sm:$0xff]
        %v3352 = vld [vmem:[%s1911 + $0x8] sm:$0xff]
        %v3353 = vstv %s3350
        %v3354 = vmul.f32 %v3353, %v3351
        %v3355 = vmul.f32 %v3353, %v3352
        %v3356 = vadd.f32 %v3348, %v3354
        %v3357 = vadd.f32 %v3349, %v3355
        %s3358 = sld [smem:[#allocation16 + $0x2e]]
        %v3359 = vstv %s3358
        %v3360 = vmul.f32 %v3359, %v3351
        %v3361 = vmul.f32 %v3359, %v3352
        %3364 = vrot.lane.b32.xlu0 %v3360, 127
        %v3365 = vpop.permute.xlu0 %3364
        %3366 = vrot.lane.b32.xlu0 %v3361, 127
        %v3367 = vpop.permute.xlu0 %3366
        %v3370 = vadd.f32 %v3356, %v3365
        %v3371 = vadd.f32 %v3357, %v3367
        %s3372 = sld [smem:[#allocation16 + $0x2f]]
        %v3373 = vstv %s3372
        %v3374 = vmul.f32 %v3373, %v3351
        %v3375 = vmul.f32 %v3373, %v3352
        %3378 = vrot.lane.b32.xlu0 %v3374, 126
        %v3379 = vpop.permute.xlu0 %3378
        %3380 = vrot.lane.b32.xlu0 %v3375, 126
        %v3381 = vpop.permute.xlu0 %3380
        %v3384 = vadd.f32 %v3370, %v3379
        %v3385 = vadd.f32 %v3371, %v3381
        %s3386 = sld [smem:[#allocation16 + $0x30]]
        %v3387 = vld [vmem:[%s1911 + $0x1] sm:$0xff]
        %v3388 = vld [vmem:[%s1911 + $0x9] sm:$0xff]
        %v3389 = vstv %s3386
        %v3390 = vmul.f32 %v3389, %v3387
        %v3391 = vmul.f32 %v3389, %v3388
        %v3392 = vadd.f32 %v3384, %v3390
        %v3393 = vadd.f32 %v3385, %v3391
        %s3394 = sld [smem:[#allocation16 + $0x31]]
        %v3395 = vstv %s3394
        %v3396 = vmul.f32 %v3395, %v3387
        %v3397 = vmul.f32 %v3395, %v3388
        %3400 = vrot.lane.b32.xlu0 %v3396, 127
        %v3401 = vpop.permute.xlu0 %3400
        %3402 = vrot.lane.b32.xlu0 %v3397, 127
        %v3403 = vpop.permute.xlu0 %3402
        %v3406 = vadd.f32 %v3392, %v3401
        %v3407 = vadd.f32 %v3393, %v3403
        %s3408 = sld [smem:[#allocation16 + $0x32]]
        %v3409 = vstv %s3408
        %v3410 = vmul.f32 %v3409, %v3387
        %v3411 = vmul.f32 %v3409, %v3388
        %3414 = vrot.lane.b32.xlu0 %v3410, 126
        %v3415 = vpop.permute.xlu0 %3414
        %3416 = vrot.lane.b32.xlu0 %v3411, 126
        %v3417 = vpop.permute.xlu0 %3416
        %v3420 = vadd.f32 %v3406, %v3415
        %v3421 = vadd.f32 %v3407, %v3417
        %s3422 = sld [smem:[#allocation16 + $0x33]]
        %v3423 = vld [vmem:[%s1911 + $0x2] sm:$0xff]
        %v3424 = vld [vmem:[%s1911 + $0xa] sm:$0xff]
        %v3425 = vstv %s3422
        %v3426 = vmul.f32 %v3425, %v3423
        %v3427 = vmul.f32 %v3425, %v3424
        %v3428 = vadd.f32 %v3420, %v3426
        %v3429 = vadd.f32 %v3421, %v3427
        %s3430 = sld [smem:[#allocation16 + $0x34]]
        %v3431 = vstv %s3430
        %v3432 = vmul.f32 %v3431, %v3423
        %v3433 = vmul.f32 %v3431, %v3424
        %3436 = vrot.lane.b32.xlu0 %v3432, 127
        %v3437 = vpop.permute.xlu0 %3436
        %3438 = vrot.lane.b32.xlu0 %v3433, 127
        %v3439 = vpop.permute.xlu0 %3438
        %v3442 = vadd.f32 %v3428, %v3437
        %v3443 = vadd.f32 %v3429, %v3439
        %s3444 = sld [smem:[#allocation16 + $0x35]]
        %v3445 = vstv %s3444
        %v3446 = vmul.f32 %v3445, %v3423
        %v3447 = vmul.f32 %v3445, %v3424
        %3450 = vrot.lane.b32.xlu0 %v3446, 126
        %v3451 = vpop.permute.xlu0 %3450
        %3452 = vrot.lane.b32.xlu0 %v3447, 126
        %v3453 = vpop.permute.xlu0 %3452
        %v3456 = vadd.f32 %v3442, %v3451
        %v3457 = vadd.f32 %v3443, %v3453
        %v3458 = vxor.u32 %v3456, 2147483648
        %v3459 = vxor.u32 %v3457, 2147483648
        %v3460 = vmul.f32 %v3458, 1.442695
        %v3461 = vpow.pop %v3460
        %v3462 = vmul.f32 %v3459, 1.442695
        %v3463 = vpow.pop %v3462
        %v3464 = vadd.f32 %v3461, 1.0
        %v3465 = vadd.f32 %v3463, 1.0
        %v3466 = vrcp.pop %v3464
        %v3467 = vmul.f32 1.0, %v3466
        %v3468 = vrcp.pop %v3465
        %v3469 = vmul.f32 1.0, %v3468
        %v3470 = vmul.f32 %v3129, %v3467
        %v3471 = vmul.f32 %v3130, %v3469
        %s3472 = scalar_lea.vmem %s400, 16 [#allocation4]
        %v3473 = vld [vmem:[%s3472] sm:$0xff]
        %v3474 = vld [vmem:[%s3472 + $0x8] sm:$0xff]
        %v3475 = vadd.f32 %v3470, %v3473
        %v3476 = vadd.f32 %v3471, %v3474
        %s3477 = scalar_lea.vmem %s471, 16 [#allocation19]
        %3478 = vst.msk [vmem:[%s3477] sm:$0xff] %vm993, %v3475
        %3479 = vst.msk [vmem:[%s3477 + $0x8] sm:$0xff] %vm993, %v3476
        %s3480 = sld [smem:[#allocation11 + $0x2]]
        %v3481 = vstv %s3480
        %v3482 = vadd.f32 %v3481, 0.0
        %s3483 = sld [smem:[#allocation10 + $0x48]]
        %v3484 = vld [vmem:[#allocation2] sm:$0xff]
        %v3485 = vld [vmem:[#allocation2 + $0x8] sm:$0xff]
        %v3486 = vstv %s3483
        %v3487 = vmul.f32 %v3486, %v3484
        %v3488 = vmul.f32 %v3486, %v3485
        %v3489 = vadd.f32 %v3482, %v3487
        %v3490 = vadd.f32 %v3482, %v3488
        %s3491 = sld [smem:[#allocation10 + $0x49]]
        %v3492 = vstv %s3491
        %v3493 = vmul.f32 %v3492, %v3484
        %v3494 = vmul.f32 %v3492, %v3485
        %3497 = vrot.lane.b32.xlu0 %v3493, 127
        %v3498 = vpop.permute.xlu0 %3497
        %3499 = vrot.lane.b32.xlu0 %v3494, 127
        %v3500 = vpop.permute.xlu0 %3499
        %v3503 = vadd.f32 %v3489, %v3498
        %v3504 = vadd.f32 %v3490, %v3500
        %s3505 = sld [smem:[#allocation10 + $0x4a]]
        %v3506 = vstv %s3505
        %v3507 = vmul.f32 %v3506, %v3484
        %v3508 = vmul.f32 %v3506, %v3485
        %3511 = vrot.lane.b32.xlu0 %v3507, 126
        %v3512 = vpop.permute.xlu0 %3511
        %3513 = vrot.lane.b32.xlu0 %v3508, 126
        %v3514 = vpop.permute.xlu0 %3513
        %v3517 = vadd.f32 %v3503, %v3512
        %v3518 = vadd.f32 %v3504, %v3514
        %s3519 = sld [smem:[#allocation10 + $0x4b]]
        %v3520 = vld [vmem:[#allocation2 + $0x1] sm:$0xff]
        %v3521 = vld [vmem:[#allocation2 + $0x9] sm:$0xff]
        %v3522 = vstv %s3519
        %v3523 = vmul.f32 %v3522, %v3520
        %v3524 = vmul.f32 %v3522, %v3521
        %v3525 = vadd.f32 %v3517, %v3523
        %v3526 = vadd.f32 %v3518, %v3524
        %s3527 = sld [smem:[#allocation10 + $0x4c]]
        %v3528 = vstv %s3527
        %v3529 = vmul.f32 %v3528, %v3520
        %v3530 = vmul.f32 %v3528, %v3521
        %3533 = vrot.lane.b32.xlu0 %v3529, 127
        %v3534 = vpop.permute.xlu0 %3533
        %3535 = vrot.lane.b32.xlu0 %v3530, 127
        %v3536 = vpop.permute.xlu0 %3535
        %v3539 = vadd.f32 %v3525, %v3534
        %v3540 = vadd.f32 %v3526, %v3536
        %s3541 = sld [smem:[#allocation10 + $0x4d]]
        %v3542 = vstv %s3541
        %v3543 = vmul.f32 %v3542, %v3520
        %v3544 = vmul.f32 %v3542, %v3521
        %3547 = vrot.lane.b32.xlu0 %v3543, 126
        %v3548 = vpop.permute.xlu0 %3547
        %3549 = vrot.lane.b32.xlu0 %v3544, 126
        %v3550 = vpop.permute.xlu0 %3549
        %v3553 = vadd.f32 %v3539, %v3548
        %v3554 = vadd.f32 %v3540, %v3550
        %s3555 = sld [smem:[#allocation10 + $0x4e]]
        %v3556 = vld [vmem:[#allocation2 + $0x2] sm:$0xff]
        %v3557 = vld [vmem:[#allocation2 + $0xa] sm:$0xff]
        %v3558 = vstv %s3555
        %v3559 = vmul.f32 %v3558, %v3556
        %v3560 = vmul.f32 %v3558, %v3557
        %v3561 = vadd.f32 %v3553, %v3559
        %v3562 = vadd.f32 %v3554, %v3560
        %s3563 = sld [smem:[#allocation10 + $0x4f]]
        %v3564 = vstv %s3563
        %v3565 = vmul.f32 %v3564, %v3556
        %v3566 = vmul.f32 %v3564, %v3557
        %3569 = vrot.lane.b32.xlu0 %v3565, 127
        %v3570 = vpop.permute.xlu0 %3569
        %3571 = vrot.lane.b32.xlu0 %v3566, 127
        %v3572 = vpop.permute.xlu0 %3571
        %v3575 = vadd.f32 %v3561, %v3570
        %v3576 = vadd.f32 %v3562, %v3572
        %s3577 = sld [smem:[#allocation10 + $0x50]]
        %v3578 = vstv %s3577
        %v3579 = vmul.f32 %v3578, %v3556
        %v3580 = vmul.f32 %v3578, %v3557
        %3583 = vrot.lane.b32.xlu0 %v3579, 126
        %v3584 = vpop.permute.xlu0 %3583
        %3585 = vrot.lane.b32.xlu0 %v3580, 126
        %v3586 = vpop.permute.xlu0 %3585
        %v3589 = vadd.f32 %v3575, %v3584
        %v3590 = vadd.f32 %v3576, %v3586
        %s3591 = sld [smem:[#allocation10 + $0x51]]
        %v3592 = vld [vmem:[%s663] sm:$0xff]
        %v3593 = vld [vmem:[%s663 + $0x8] sm:$0xff]
        %v3594 = vstv %s3591
        %v3595 = vmul.f32 %v3594, %v3592
        %v3596 = vmul.f32 %v3594, %v3593
        %v3597 = vadd.f32 %v3589, %v3595
        %v3598 = vadd.f32 %v3590, %v3596
        %s3599 = sld [smem:[#allocation10 + $0x52]]
        %v3600 = vstv %s3599
        %v3601 = vmul.f32 %v3600, %v3592
        %v3602 = vmul.f32 %v3600, %v3593
        %3605 = vrot.lane.b32.xlu0 %v3601, 127
        %v3606 = vpop.permute.xlu0 %3605
        %3607 = vrot.lane.b32.xlu0 %v3602, 127
        %v3608 = vpop.permute.xlu0 %3607
        %v3611 = vadd.f32 %v3597, %v3606
        %v3612 = vadd.f32 %v3598, %v3608
        %s3613 = sld [smem:[#allocation10 + $0x53]]
        %v3614 = vstv %s3613
        %v3615 = vmul.f32 %v3614, %v3592
        %v3616 = vmul.f32 %v3614, %v3593
        %3619 = vrot.lane.b32.xlu0 %v3615, 126
        %v3620 = vpop.permute.xlu0 %3619
        %3621 = vrot.lane.b32.xlu0 %v3616, 126
        %v3622 = vpop.permute.xlu0 %3621
        %v3625 = vadd.f32 %v3611, %v3620
        %v3626 = vadd.f32 %v3612, %v3622
        %s3627 = sld [smem:[#allocation10 + $0x54]]
        %v3628 = vld [vmem:[%s663 + $0x1] sm:$0xff]
        %v3629 = vld [vmem:[%s663 + $0x9] sm:$0xff]
        %v3630 = vstv %s3627
        %v3631 = vmul.f32 %v3630, %v3628
        %v3632 = vmul.f32 %v3630, %v3629
        %v3633 = vadd.f32 %v3625, %v3631
        %v3634 = vadd.f32 %v3626, %v3632
        %s3635 = sld [smem:[#allocation10 + $0x55]]
        %v3636 = vstv %s3635
        %v3637 = vmul.f32 %v3636, %v3628
        %v3638 = vmul.f32 %v3636, %v3629
        %3641 = vrot.lane.b32.xlu0 %v3637, 127
        %v3642 = vpop.permute.xlu0 %3641
        %3643 = vrot.lane.b32.xlu0 %v3638, 127
        %v3644 = vpop.permute.xlu0 %3643
        %v3647 = vadd.f32 %v3633, %v3642
        %v3648 = vadd.f32 %v3634, %v3644
        %s3649 = sld [smem:[#allocation10 + $0x56]]
        %v3650 = vstv %s3649
        %v3651 = vmul.f32 %v3650, %v3628
        %v3652 = vmul.f32 %v3650, %v3629
        %3655 = vrot.lane.b32.xlu0 %v3651, 126
        %v3656 = vpop.permute.xlu0 %3655
        %3657 = vrot.lane.b32.xlu0 %v3652, 126
        %v3658 = vpop.permute.xlu0 %3657
        %v3661 = vadd.f32 %v3647, %v3656
        %v3662 = vadd.f32 %v3648, %v3658
        %s3663 = sld [smem:[#allocation10 + $0x57]]
        %v3664 = vld [vmem:[%s663 + $0x2] sm:$0xff]
        %v3665 = vld [vmem:[%s663 + $0xa] sm:$0xff]
        %v3666 = vstv %s3663
        %v3667 = vmul.f32 %v3666, %v3664
        %v3668 = vmul.f32 %v3666, %v3665
        %v3669 = vadd.f32 %v3661, %v3667
        %v3670 = vadd.f32 %v3662, %v3668
        %s3671 = sld [smem:[#allocation10 + $0x58]]
        %v3672 = vstv %s3671
        %v3673 = vmul.f32 %v3672, %v3664
        %v3674 = vmul.f32 %v3672, %v3665
        %3677 = vrot.lane.b32.xlu0 %v3673, 127
        %v3678 = vpop.permute.xlu0 %3677
        %3679 = vrot.lane.b32.xlu0 %v3674, 127
        %v3680 = vpop.permute.xlu0 %3679
        %v3683 = vadd.f32 %v3669, %v3678
        %v3684 = vadd.f32 %v3670, %v3680
        %s3685 = sld [smem:[#allocation10 + $0x59]]
        %v3686 = vstv %s3685
        %v3687 = vmul.f32 %v3686, %v3664
        %v3688 = vmul.f32 %v3686, %v3665
        %3691 = vrot.lane.b32.xlu0 %v3687, 126
        %v3692 = vpop.permute.xlu0 %3691
        %3693 = vrot.lane.b32.xlu0 %v3688, 126
        %v3694 = vpop.permute.xlu0 %3693
        %v3697 = vadd.f32 %v3683, %v3692
        %v3698 = vadd.f32 %v3684, %v3694
        %s3699 = sld [smem:[#allocation10 + $0x5a]]
        %v3700 = vld [vmem:[%s772] sm:$0xff]
        %v3701 = vld [vmem:[%s772 + $0x8] sm:$0xff]
        %v3702 = vstv %s3699
        %v3703 = vmul.f32 %v3702, %v3700
        %v3704 = vmul.f32 %v3702, %v3701
        %v3705 = vadd.f32 %v3697, %v3703
        %v3706 = vadd.f32 %v3698, %v3704
        %s3707 = sld [smem:[#allocation10 + $0x5b]]
        %v3708 = vstv %s3707
        %v3709 = vmul.f32 %v3708, %v3700
        %v3710 = vmul.f32 %v3708, %v3701
        %3713 = vrot.lane.b32.xlu0 %v3709, 127
        %v3714 = vpop.permute.xlu0 %3713
        %3715 = vrot.lane.b32.xlu0 %v3710, 127
        %v3716 = vpop.permute.xlu0 %3715
        %v3719 = vadd.f32 %v3705, %v3714
        %v3720 = vadd.f32 %v3706, %v3716
        %s3721 = sld [smem:[#allocation10 + $0x5c]]
        %v3722 = vstv %s3721
        %v3723 = vmul.f32 %v3722, %v3700
        %v3724 = vmul.f32 %v3722, %v3701
        %3727 = vrot.lane.b32.xlu0 %v3723, 126
        %v3728 = vpop.permute.xlu0 %3727
        %3729 = vrot.lane.b32.xlu0 %v3724, 126
        %v3730 = vpop.permute.xlu0 %3729
        %v3733 = vadd.f32 %v3719, %v3728
        %v3734 = vadd.f32 %v3720, %v3730
        %s3735 = sld [smem:[#allocation10 + $0x5d]]
        %v3736 = vld [vmem:[%s772 + $0x1] sm:$0xff]
        %v3737 = vld [vmem:[%s772 + $0x9] sm:$0xff]
        %v3738 = vstv %s3735
        %v3739 = vmul.f32 %v3738, %v3736
        %v3740 = vmul.f32 %v3738, %v3737
        %v3741 = vadd.f32 %v3733, %v3739
        %v3742 = vadd.f32 %v3734, %v3740
        %s3743 = sld [smem:[#allocation10 + $0x5e]]
        %v3744 = vstv %s3743
        %v3745 = vmul.f32 %v3744, %v3736
        %v3746 = vmul.f32 %v3744, %v3737
        %3749 = vrot.lane.b32.xlu0 %v3745, 127
        %v3750 = vpop.permute.xlu0 %3749
        %3751 = vrot.lane.b32.xlu0 %v3746, 127
        %v3752 = vpop.permute.xlu0 %3751
        %v3755 = vadd.f32 %v3741, %v3750
        %v3756 = vadd.f32 %v3742, %v3752
        %s3757 = sld [smem:[#allocation10 + $0x5f]]
        %v3758 = vstv %s3757
        %v3759 = vmul.f32 %v3758, %v3736
        %v3760 = vmul.f32 %v3758, %v3737
        %3763 = vrot.lane.b32.xlu0 %v3759, 126
        %v3764 = vpop.permute.xlu0 %3763
        %3765 = vrot.lane.b32.xlu0 %v3760, 126
        %v3766 = vpop.permute.xlu0 %3765
        %v3769 = vadd.f32 %v3755, %v3764
        %v3770 = vadd.f32 %v3756, %v3766
        %s3771 = sld [smem:[#allocation10 + $0x60]]
        %v3772 = vld [vmem:[%s772 + $0x2] sm:$0xff]
        %v3773 = vld [vmem:[%s772 + $0xa] sm:$0xff]
        %v3774 = vstv %s3771
        %v3775 = vmul.f32 %v3774, %v3772
        %v3776 = vmul.f32 %v3774, %v3773
        %v3777 = vadd.f32 %v3769, %v3775
        %v3778 = vadd.f32 %v3770, %v3776
        %s3779 = sld [smem:[#allocation10 + $0x61]]
        %v3780 = vstv %s3779
        %v3781 = vmul.f32 %v3780, %v3772
        %v3782 = vmul.f32 %v3780, %v3773
        %3785 = vrot.lane.b32.xlu0 %v3781, 127
        %v3786 = vpop.permute.xlu0 %3785
        %3787 = vrot.lane.b32.xlu0 %v3782, 127
        %v3788 = vpop.permute.xlu0 %3787
        %v3791 = vadd.f32 %v3777, %v3786
        %v3792 = vadd.f32 %v3778, %v3788
        %s3793 = sld [smem:[#allocation10 + $0x62]]
        %v3794 = vstv %s3793
        %v3795 = vmul.f32 %v3794, %v3772
        %v3796 = vmul.f32 %v3794, %v3773
        %3799 = vrot.lane.b32.xlu0 %v3795, 126
        %v3800 = vpop.permute.xlu0 %3799
        %3801 = vrot.lane.b32.xlu0 %v3796, 126
        %v3802 = vpop.permute.xlu0 %3801
        %v3805 = vadd.f32 %v3791, %v3800
        %v3806 = vadd.f32 %v3792, %v3802
        %s3807 = sld [smem:[#allocation10 + $0x63]]
        %v3808 = vld [vmem:[%s881] sm:$0xff]
        %v3809 = vld [vmem:[%s881 + $0x8] sm:$0xff]
        %v3810 = vstv %s3807
        %v3811 = vmul.f32 %v3810, %v3808
        %v3812 = vmul.f32 %v3810, %v3809
        %v3813 = vadd.f32 %v3805, %v3811
        %v3814 = vadd.f32 %v3806, %v3812
        %s3815 = sld [smem:[#allocation10 + $0x64]]
        %v3816 = vstv %s3815
        %v3817 = vmul.f32 %v3816, %v3808
        %v3818 = vmul.f32 %v3816, %v3809
        %3821 = vrot.lane.b32.xlu0 %v3817, 127
        %v3822 = vpop.permute.xlu0 %3821
        %3823 = vrot.lane.b32.xlu0 %v3818, 127
        %v3824 = vpop.permute.xlu0 %3823
        %v3827 = vadd.f32 %v3813, %v3822
        %v3828 = vadd.f32 %v3814, %v3824
        %s3829 = sld [smem:[#allocation10 + $0x65]]
        %v3830 = vstv %s3829
        %v3831 = vmul.f32 %v3830, %v3808
        %v3832 = vmul.f32 %v3830, %v3809
        %3835 = vrot.lane.b32.xlu0 %v3831, 126
        %v3836 = vpop.permute.xlu0 %3835
        %3837 = vrot.lane.b32.xlu0 %v3832, 126
        %v3838 = vpop.permute.xlu0 %3837
        %v3841 = vadd.f32 %v3827, %v3836
        %v3842 = vadd.f32 %v3828, %v3838
        %s3843 = sld [smem:[#allocation10 + $0x66]]
        %v3844 = vld [vmem:[%s881 + $0x1] sm:$0xff]
        %v3845 = vld [vmem:[%s881 + $0x9] sm:$0xff]
        %v3846 = vstv %s3843
        %v3847 = vmul.f32 %v3846, %v3844
        %v3848 = vmul.f32 %v3846, %v3845
        %v3849 = vadd.f32 %v3841, %v3847
        %v3850 = vadd.f32 %v3842, %v3848
        %s3851 = sld [smem:[#allocation10 + $0x67]]
        %v3852 = vstv %s3851
        %v3853 = vmul.f32 %v3852, %v3844
        %v3854 = vmul.f32 %v3852, %v3845
        %3857 = vrot.lane.b32.xlu0 %v3853, 127
        %v3858 = vpop.permute.xlu0 %3857
        %3859 = vrot.lane.b32.xlu0 %v3854, 127
        %v3860 = vpop.permute.xlu0 %3859
        %v3863 = vadd.f32 %v3849, %v3858
        %v3864 = vadd.f32 %v3850, %v3860
        %s3865 = sld [smem:[#allocation10 + $0x68]]
        %v3866 = vstv %s3865
        %v3867 = vmul.f32 %v3866, %v3844
        %v3868 = vmul.f32 %v3866, %v3845
        %3871 = vrot.lane.b32.xlu0 %v3867, 126
        %v3872 = vpop.permute.xlu0 %3871
        %3873 = vrot.lane.b32.xlu0 %v3868, 126
        %v3874 = vpop.permute.xlu0 %3873
        %v3877 = vadd.f32 %v3863, %v3872
        %v3878 = vadd.f32 %v3864, %v3874
        %s3879 = sld [smem:[#allocation10 + $0x69]]
        %v3880 = vld [vmem:[%s881 + $0x2] sm:$0xff]
        %v3881 = vld [vmem:[%s881 + $0xa] sm:$0xff]
        %v3882 = vstv %s3879
        %v3883 = vmul.f32 %v3882, %v3880
        %v3884 = vmul.f32 %v3882, %v3881
        %v3885 = vadd.f32 %v3877, %v3883
        %v3886 = vadd.f32 %v3878, %v3884
        %s3887 = sld [smem:[#allocation10 + $0x6a]]
        %v3888 = vstv %s3887
        %v3889 = vmul.f32 %v3888, %v3880
        %v3890 = vmul.f32 %v3888, %v3881
        %3893 = vrot.lane.b32.xlu0 %v3889, 127
        %v3894 = vpop.permute.xlu0 %3893
        %3895 = vrot.lane.b32.xlu0 %v3890, 127
        %v3896 = vpop.permute.xlu0 %3895
        %v3899 = vadd.f32 %v3885, %v3894
        %v3900 = vadd.f32 %v3886, %v3896
        %s3901 = sld [smem:[#allocation10 + $0x6b]]
        %v3902 = vstv %s3901
        %v3903 = vmul.f32 %v3902, %v3880
        %v3904 = vmul.f32 %v3902, %v3881
        %3907 = vrot.lane.b32.xlu0 %v3903, 126
        %v3908 = vpop.permute.xlu0 %3907
        %3909 = vrot.lane.b32.xlu0 %v3904, 126
        %v3910 = vpop.permute.xlu0 %3909
        %v3913 = vadd.f32 %v3899, %v3908
        %v3914 = vadd.f32 %v3900, %v3910
        %s3915 = sld [smem:[#allocation17 + $0x2]]
        %v3916 = vstv %s3915
        %v3917 = vadd.f32 %v3916, 0.0
        %s3918 = sld [smem:[#allocation16 + $0x36]]
        %v3919 = vld [vmem:[#allocation3] sm:$0xff]
        %v3920 = vld [vmem:[#allocation3 + $0x8] sm:$0xff]
        %v3921 = vstv %s3918
        %v3922 = vmul.f32 %v3921, %v3919
        %v3923 = vmul.f32 %v3921, %v3920
        %v3924 = vadd.f32 %v3917, %v3922
        %v3925 = vadd.f32 %v3917, %v3923
        %s3926 = sld [smem:[#allocation16 + $0x37]]
        %v3927 = vstv %s3926
        %v3928 = vmul.f32 %v3927, %v3919
        %v3929 = vmul.f32 %v3927, %v3920
        %3932 = vrot.lane.b32.xlu0 %v3928, 127
        %v3933 = vpop.permute.xlu0 %3932
        %3934 = vrot.lane.b32.xlu0 %v3929, 127
        %v3935 = vpop.permute.xlu0 %3934
        %v3938 = vadd.f32 %v3924, %v3933
        %v3939 = vadd.f32 %v3925, %v3935
        %s3940 = sld [smem:[#allocation16 + $0x38]]
        %v3941 = vstv %s3940
        %v3942 = vmul.f32 %v3941, %v3919
        %v3943 = vmul.f32 %v3941, %v3920
        %3946 = vrot.lane.b32.xlu0 %v3942, 126
        %v3947 = vpop.permute.xlu0 %3946
        %3948 = vrot.lane.b32.xlu0 %v3943, 126
        %v3949 = vpop.permute.xlu0 %3948
        %v3952 = vadd.f32 %v3938, %v3947
        %v3953 = vadd.f32 %v3939, %v3949
        %s3954 = sld [smem:[#allocation16 + $0x39]]
        %v3955 = vld [vmem:[#allocation3 + $0x1] sm:$0xff]
        %v3956 = vld [vmem:[#allocation3 + $0x9] sm:$0xff]
        %v3957 = vstv %s3954
        %v3958 = vmul.f32 %v3957, %v3955
        %v3959 = vmul.f32 %v3957, %v3956
        %v3960 = vadd.f32 %v3952, %v3958
        %v3961 = vadd.f32 %v3953, %v3959
        %s3962 = sld [smem:[#allocation16 + $0x3a]]
        %v3963 = vstv %s3962
        %v3964 = vmul.f32 %v3963, %v3955
        %v3965 = vmul.f32 %v3963, %v3956
        %3968 = vrot.lane.b32.xlu0 %v3964, 127
        %v3969 = vpop.permute.xlu0 %3968
        %3970 = vrot.lane.b32.xlu0 %v3965, 127
        %v3971 = vpop.permute.xlu0 %3970
        %v3974 = vadd.f32 %v3960, %v3969
        %v3975 = vadd.f32 %v3961, %v3971
        %s3976 = sld [smem:[#allocation16 + $0x3b]]
        %v3977 = vstv %s3976
        %v3978 = vmul.f32 %v3977, %v3955
        %v3979 = vmul.f32 %v3977, %v3956
        %3982 = vrot.lane.b32.xlu0 %v3978, 126
        %v3983 = vpop.permute.xlu0 %3982
        %3984 = vrot.lane.b32.xlu0 %v3979, 126
        %v3985 = vpop.permute.xlu0 %3984
        %v3988 = vadd.f32 %v3974, %v3983
        %v3989 = vadd.f32 %v3975, %v3985
        %s3990 = sld [smem:[#allocation16 + $0x3c]]
        %v3991 = vld [vmem:[#allocation3 + $0x2] sm:$0xff]
        %v3992 = vld [vmem:[#allocation3 + $0xa] sm:$0xff]
        %v3993 = vstv %s3990
        %v3994 = vmul.f32 %v3993, %v3991
        %v3995 = vmul.f32 %v3993, %v3992
        %v3996 = vadd.f32 %v3988, %v3994
        %v3997 = vadd.f32 %v3989, %v3995
        %s3998 = sld [smem:[#allocation16 + $0x3d]]
        %v3999 = vstv %s3998
        %v4000 = vmul.f32 %v3999, %v3991
        %v4001 = vmul.f32 %v3999, %v3992
        %4004 = vrot.lane.b32.xlu0 %v4000, 127
        %v4005 = vpop.permute.xlu0 %4004
        %4006 = vrot.lane.b32.xlu0 %v4001, 127
        %v4007 = vpop.permute.xlu0 %4006
        %v4010 = vadd.f32 %v3996, %v4005
        %v4011 = vadd.f32 %v3997, %v4007
        %s4012 = sld [smem:[#allocation16 + $0x3e]]
        %v4013 = vstv %s4012
        %v4014 = vmul.f32 %v4013, %v3991
        %v4015 = vmul.f32 %v4013, %v3992
        %4018 = vrot.lane.b32.xlu0 %v4014, 126
        %v4019 = vpop.permute.xlu0 %4018
        %4020 = vrot.lane.b32.xlu0 %v4015, 126
        %v4021 = vpop.permute.xlu0 %4020
        %v4024 = vadd.f32 %v4010, %v4019
        %v4025 = vadd.f32 %v4011, %v4021
        %s4026 = sld [smem:[#allocation16 + $0x3f]]
        %v4027 = vld [vmem:[%s1457] sm:$0xff]
        %v4028 = vld [vmem:[%s1457 + $0x8] sm:$0xff]
        %v4029 = vstv %s4026
        %v4030 = vmul.f32 %v4029, %v4027
        %v4031 = vmul.f32 %v4029, %v4028
        %v4032 = vadd.f32 %v4024, %v4030
        %v4033 = vadd.f32 %v4025, %v4031
        %s4034 = sld [smem:[#allocation16 + $0x40]]
        %v4035 = vstv %s4034
        %v4036 = vmul.f32 %v4035, %v4027
        %v4037 = vmul.f32 %v4035, %v4028
        %4040 = vrot.lane.b32.xlu0 %v4036, 127
        %v4041 = vpop.permute.xlu0 %4040
        %4042 = vrot.lane.b32.xlu0 %v4037, 127
        %v4043 = vpop.permute.xlu0 %4042
        %v4046 = vadd.f32 %v4032, %v4041
        %v4047 = vadd.f32 %v4033, %v4043
        %s4048 = sld [smem:[#allocation16 + $0x41]]
        %v4049 = vstv %s4048
        %v4050 = vmul.f32 %v4049, %v4027
        %v4051 = vmul.f32 %v4049, %v4028
        %4054 = vrot.lane.b32.xlu0 %v4050, 126
        %v4055 = vpop.permute.xlu0 %4054
        %4056 = vrot.lane.b32.xlu0 %v4051, 126
        %v4057 = vpop.permute.xlu0 %4056
        %v4060 = vadd.f32 %v4046, %v4055
        %v4061 = vadd.f32 %v4047, %v4057
        %s4062 = sld [smem:[#allocation16 + $0x42]]
        %v4063 = vld [vmem:[%s1457 + $0x1] sm:$0xff]
        %v4064 = vld [vmem:[%s1457 + $0x9] sm:$0xff]
        %v4065 = vstv %s4062
        %v4066 = vmul.f32 %v4065, %v4063
        %v4067 = vmul.f32 %v4065, %v4064
        %v4068 = vadd.f32 %v4060, %v4066
        %v4069 = vadd.f32 %v4061, %v4067
        %s4070 = sld [smem:[#allocation16 + $0x43]]
        %v4071 = vstv %s4070
        %v4072 = vmul.f32 %v4071, %v4063
        %v4073 = vmul.f32 %v4071, %v4064
        %4076 = vrot.lane.b32.xlu0 %v4072, 127
        %v4077 = vpop.permute.xlu0 %4076
        %4078 = vrot.lane.b32.xlu0 %v4073, 127
        %v4079 = vpop.permute.xlu0 %4078
        %v4082 = vadd.f32 %v4068, %v4077
        %v4083 = vadd.f32 %v4069, %v4079
        %s4084 = sld [smem:[#allocation16 + $0x44]]
        %v4085 = vstv %s4084
        %v4086 = vmul.f32 %v4085, %v4063
        %v4087 = vmul.f32 %v4085, %v4064
        %4090 = vrot.lane.b32.xlu0 %v4086, 126
        %v4091 = vpop.permute.xlu0 %4090
        %4092 = vrot.lane.b32.xlu0 %v4087, 126
        %v4093 = vpop.permute.xlu0 %4092
        %v4096 = vadd.f32 %v4082, %v4091
        %v4097 = vadd.f32 %v4083, %v4093
        %s4098 = sld [smem:[#allocation16 + $0x45]]
        %v4099 = vld [vmem:[%s1457 + $0x2] sm:$0xff]
        %v4100 = vld [vmem:[%s1457 + $0xa] sm:$0xff]
        %v4101 = vstv %s4098
        %v4102 = vmul.f32 %v4101, %v4099
        %v4103 = vmul.f32 %v4101, %v4100
        %v4104 = vadd.f32 %v4096, %v4102
        %v4105 = vadd.f32 %v4097, %v4103
        %s4106 = sld [smem:[#allocation16 + $0x46]]
        %v4107 = vstv %s4106
        %v4108 = vmul.f32 %v4107, %v4099
        %v4109 = vmul.f32 %v4107, %v4100
        %4112 = vrot.lane.b32.xlu0 %v4108, 127
        %v4113 = vpop.permute.xlu0 %4112
        %4114 = vrot.lane.b32.xlu0 %v4109, 127
        %v4115 = vpop.permute.xlu0 %4114
        %v4118 = vadd.f32 %v4104, %v4113
        %v4119 = vadd.f32 %v4105, %v4115
        %s4120 = sld [smem:[#allocation16 + $0x47]]
        %v4121 = vstv %s4120
        %v4122 = vmul.f32 %v4121, %v4099
        %v4123 = vmul.f32 %v4121, %v4100
        %4126 = vrot.lane.b32.xlu0 %v4122, 126
        %v4127 = vpop.permute.xlu0 %4126
        %4128 = vrot.lane.b32.xlu0 %v4123, 126
        %v4129 = vpop.permute.xlu0 %4128
        %v4132 = vadd.f32 %v4118, %v4127
        %v4133 = vadd.f32 %v4119, %v4129
        %s4134 = sld [smem:[#allocation16 + $0x48]]
        %v4135 = vld [vmem:[%s1911] sm:$0xff]
        %v4136 = vld [vmem:[%s1911 + $0x8] sm:$0xff]
        %v4137 = vstv %s4134
        %v4138 = vmul.f32 %v4137, %v4135
        %v4139 = vmul.f32 %v4137, %v4136
        %v4140 = vadd.f32 %v4132, %v4138
        %v4141 = vadd.f32 %v4133, %v4139
        %s4142 = sld [smem:[#allocation16 + $0x49]]
        %v4143 = vstv %s4142
        %v4144 = vmul.f32 %v4143, %v4135
        %v4145 = vmul.f32 %v4143, %v4136
        %4148 = vrot.lane.b32.xlu0 %v4144, 127
        %v4149 = vpop.permute.xlu0 %4148
        %4150 = vrot.lane.b32.xlu0 %v4145, 127
        %v4151 = vpop.permute.xlu0 %4150
        %v4154 = vadd.f32 %v4140, %v4149
        %v4155 = vadd.f32 %v4141, %v4151
        %s4156 = sld [smem:[#allocation16 + $0x4a]]
        %v4157 = vstv %s4156
        %v4158 = vmul.f32 %v4157, %v4135
        %v4159 = vmul.f32 %v4157, %v4136
        %4162 = vrot.lane.b32.xlu0 %v4158, 126
        %v4163 = vpop.permute.xlu0 %4162
        %4164 = vrot.lane.b32.xlu0 %v4159, 126
        %v4165 = vpop.permute.xlu0 %4164
        %v4168 = vadd.f32 %v4154, %v4163
        %v4169 = vadd.f32 %v4155, %v4165
        %s4170 = sld [smem:[#allocation16 + $0x4b]]
        %v4171 = vld [vmem:[%s1911 + $0x1] sm:$0xff]
        %v4172 = vld [vmem:[%s1911 + $0x9] sm:$0xff]
        %v4173 = vstv %s4170
        %v4174 = vmul.f32 %v4173, %v4171
        %v4175 = vmul.f32 %v4173, %v4172
        %v4176 = vadd.f32 %v4168, %v4174
        %v4177 = vadd.f32 %v4169, %v4175
        %s4178 = sld [smem:[#allocation16 + $0x4c]]
        %v4179 = vstv %s4178
        %v4180 = vmul.f32 %v4179, %v4171
        %v4181 = vmul.f32 %v4179, %v4172
        %4184 = vrot.lane.b32.xlu0 %v4180, 127
        %v4185 = vpop.permute.xlu0 %4184
        %4186 = vrot.lane.b32.xlu0 %v4181, 127
        %v4187 = vpop.permute.xlu0 %4186
        %v4190 = vadd.f32 %v4176, %v4185
        %v4191 = vadd.f32 %v4177, %v4187
        %s4192 = sld [smem:[#allocation16 + $0x4d]]
        %v4193 = vstv %s4192
        %v4194 = vmul.f32 %v4193, %v4171
        %v4195 = vmul.f32 %v4193, %v4172
        %4198 = vrot.lane.b32.xlu0 %v4194, 126
        %v4199 = vpop.permute.xlu0 %4198
        %4200 = vrot.lane.b32.xlu0 %v4195, 126
        %v4201 = vpop.permute.xlu0 %4200
        %v4204 = vadd.f32 %v4190, %v4199
        %v4205 = vadd.f32 %v4191, %v4201
        %s4206 = sld [smem:[#allocation16 + $0x4e]]
        %v4207 = vld [vmem:[%s1911 + $0x2] sm:$0xff]
        %v4208 = vld [vmem:[%s1911 + $0xa] sm:$0xff]
        %v4209 = vstv %s4206
        %v4210 = vmul.f32 %v4209, %v4207
        %v4211 = vmul.f32 %v4209, %v4208
        %v4212 = vadd.f32 %v4204, %v4210
        %v4213 = vadd.f32 %v4205, %v4211
        %s4214 = sld [smem:[#allocation16 + $0x4f]]
        %v4215 = vstv %s4214
        %v4216 = vmul.f32 %v4215, %v4207
        %v4217 = vmul.f32 %v4215, %v4208
        %4220 = vrot.lane.b32.xlu0 %v4216, 127
        %v4221 = vpop.permute.xlu0 %4220
        %4222 = vrot.lane.b32.xlu0 %v4217, 127
        %v4223 = vpop.permute.xlu0 %4222
        %v4226 = vadd.f32 %v4212, %v4221
        %v4227 = vadd.f32 %v4213, %v4223
        %s4228 = sld [smem:[#allocation16 + $0x50]]
        %v4229 = vstv %s4228
        %v4230 = vmul.f32 %v4229, %v4207
        %v4231 = vmul.f32 %v4229, %v4208
        %4234 = vrot.lane.b32.xlu0 %v4230, 126
        %v4235 = vpop.permute.xlu0 %4234
        %4236 = vrot.lane.b32.xlu0 %v4231, 126
        %v4237 = vpop.permute.xlu0 %4236
        %v4240 = vadd.f32 %v4226, %v4235
        %v4241 = vadd.f32 %v4227, %v4237
        %v4242 = vxor.u32 %v4240, 2147483648
        %v4243 = vxor.u32 %v4241, 2147483648
        %v4244 = vmul.f32 %v4242, 1.442695
        %v4245 = vpow.pop %v4244
        %v4246 = vmul.f32 %v4243, 1.442695
        %v4247 = vpow.pop %v4246
        %v4248 = vadd.f32 %v4245, 1.0
        %v4249 = vadd.f32 %v4247, 1.0
        %v4250 = vrcp.pop %v4248
        %v4251 = vmul.f32 1.0, %v4250
        %v4252 = vrcp.pop %v4249
        %v4253 = vmul.f32 1.0, %v4252
        %v4254 = vmul.f32 %v3913, %v4251
        %v4255 = vmul.f32 %v3914, %v4253
        %s4256 = scalar_lea.vmem %s400, 32 [#allocation4]
        %v4257 = vld [vmem:[%s4256] sm:$0xff]
        %v4258 = vld [vmem:[%s4256 + $0x8] sm:$0xff]
        %v4259 = vadd.f32 %v4254, %v4257
        %v4260 = vadd.f32 %v4255, %v4258
        %s4261 = scalar_lea.vmem %s471, 32 [#allocation19]
        %4262 = vst.msk [vmem:[%s4261] sm:$0xff] %vm993, %v4259
        %4263 = vst.msk [vmem:[%s4261 + $0x8] sm:$0xff] %vm993, %v4260
        %s4264 = sld [smem:[#allocation11 + $0x3]]
        %v4265 = vstv %s4264
        %v4266 = vadd.f32 %v4265, 0.0
        %s4267 = sld [smem:[#allocation10 + $0x6c]]
        %v4268 = vld [vmem:[#allocation2] sm:$0xff]
        %v4269 = vld [vmem:[#allocation2 + $0x8] sm:$0xff]
        %v4270 = vstv %s4267
        %v4271 = vmul.f32 %v4270, %v4268
        %v4272 = vmul.f32 %v4270, %v4269
        %v4273 = vadd.f32 %v4266, %v4271
        %v4274 = vadd.f32 %v4266, %v4272
        %s4275 = sld [smem:[#allocation10 + $0x6d]]
        %v4276 = vstv %s4275
        %v4277 = vmul.f32 %v4276, %v4268
        %v4278 = vmul.f32 %v4276, %v4269
        %4281 = vrot.lane.b32.xlu0 %v4277, 127
        %v4282 = vpop.permute.xlu0 %4281
        %4283 = vrot.lane.b32.xlu0 %v4278, 127
        %v4284 = vpop.permute.xlu0 %4283
        %v4287 = vadd.f32 %v4273, %v4282
        %v4288 = vadd.f32 %v4274, %v4284
        %s4289 = sld [smem:[#allocation10 + $0x6e]]
        %v4290 = vstv %s4289
        %v4291 = vmul.f32 %v4290, %v4268
        %v4292 = vmul.f32 %v4290, %v4269
        %4295 = vrot.lane.b32.xlu0 %v4291, 126
        %v4296 = vpop.permute.xlu0 %4295
        %4297 = vrot.lane.b32.xlu0 %v4292, 126
        %v4298 = vpop.permute.xlu0 %4297
        %v4301 = vadd.f32 %v4287, %v4296
        %v4302 = vadd.f32 %v4288, %v4298
        %s4303 = sld [smem:[#allocation10 + $0x6f]]
        %v4304 = vld [vmem:[#allocation2 + $0x1] sm:$0xff]
        %v4305 = vld [vmem:[#allocation2 + $0x9] sm:$0xff]
        %v4306 = vstv %s4303
        %v4307 = vmul.f32 %v4306, %v4304
        %v4308 = vmul.f32 %v4306, %v4305
        %v4309 = vadd.f32 %v4301, %v4307
        %v4310 = vadd.f32 %v4302, %v4308
        %s4311 = sld [smem:[#allocation10 + $0x70]]
        %v4312 = vstv %s4311
        %v4313 = vmul.f32 %v4312, %v4304
        %v4314 = vmul.f32 %v4312, %v4305
        %4317 = vrot.lane.b32.xlu0 %v4313, 127
        %v4318 = vpop.permute.xlu0 %4317
        %4319 = vrot.lane.b32.xlu0 %v4314, 127
        %v4320 = vpop.permute.xlu0 %4319
        %v4323 = vadd.f32 %v4309, %v4318
        %v4324 = vadd.f32 %v4310, %v4320
        %s4325 = sld [smem:[#allocation10 + $0x71]]
        %v4326 = vstv %s4325
        %v4327 = vmul.f32 %v4326, %v4304
        %v4328 = vmul.f32 %v4326, %v4305
        %4331 = vrot.lane.b32.xlu0 %v4327, 126
        %v4332 = vpop.permute.xlu0 %4331
        %4333 = vrot.lane.b32.xlu0 %v4328, 126
        %v4334 = vpop.permute.xlu0 %4333
        %v4337 = vadd.f32 %v4323, %v4332
        %v4338 = vadd.f32 %v4324, %v4334
        %s4339 = sld [smem:[#allocation10 + $0x72]]
        %v4340 = vld [vmem:[#allocation2 + $0x2] sm:$0xff]
        %v4341 = vld [vmem:[#allocation2 + $0xa] sm:$0xff]
        %v4342 = vstv %s4339
        %v4343 = vmul.f32 %v4342, %v4340
        %v4344 = vmul.f32 %v4342, %v4341
        %v4345 = vadd.f32 %v4337, %v4343
        %v4346 = vadd.f32 %v4338, %v4344
        %s4347 = sld [smem:[#allocation10 + $0x73]]
        %v4348 = vstv %s4347
        %v4349 = vmul.f32 %v4348, %v4340
        %v4350 = vmul.f32 %v4348, %v4341
        %4353 = vrot.lane.b32.xlu0 %v4349, 127
        %v4354 = vpop.permute.xlu0 %4353
        %4355 = vrot.lane.b32.xlu0 %v4350, 127
        %v4356 = vpop.permute.xlu0 %4355
        %v4359 = vadd.f32 %v4345, %v4354
        %v4360 = vadd.f32 %v4346, %v4356
        %s4361 = sld [smem:[#allocation10 + $0x74]]
        %v4362 = vstv %s4361
        %v4363 = vmul.f32 %v4362, %v4340
        %v4364 = vmul.f32 %v4362, %v4341
        %4367 = vrot.lane.b32.xlu0 %v4363, 126
        %v4368 = vpop.permute.xlu0 %4367
        %4369 = vrot.lane.b32.xlu0 %v4364, 126
        %v4370 = vpop.permute.xlu0 %4369
        %v4373 = vadd.f32 %v4359, %v4368
        %v4374 = vadd.f32 %v4360, %v4370
        %s4375 = sld [smem:[#allocation10 + $0x75]]
        %v4376 = vld [vmem:[%s663] sm:$0xff]
        %v4377 = vld [vmem:[%s663 + $0x8] sm:$0xff]
        %v4378 = vstv %s4375
        %v4379 = vmul.f32 %v4378, %v4376
        %v4380 = vmul.f32 %v4378, %v4377
        %v4381 = vadd.f32 %v4373, %v4379
        %v4382 = vadd.f32 %v4374, %v4380
        %s4383 = sld [smem:[#allocation10 + $0x76]]
        %v4384 = vstv %s4383
        %v4385 = vmul.f32 %v4384, %v4376
        %v4386 = vmul.f32 %v4384, %v4377
        %4389 = vrot.lane.b32.xlu0 %v4385, 127
        %v4390 = vpop.permute.xlu0 %4389
        %4391 = vrot.lane.b32.xlu0 %v4386, 127
        %v4392 = vpop.permute.xlu0 %4391
        %v4395 = vadd.f32 %v4381, %v4390
        %v4396 = vadd.f32 %v4382, %v4392
        %s4397 = sld [smem:[#allocation10 + $0x77]]
        %v4398 = vstv %s4397
        %v4399 = vmul.f32 %v4398, %v4376
        %v4400 = vmul.f32 %v4398, %v4377
        %4403 = vrot.lane.b32.xlu0 %v4399, 126
        %v4404 = vpop.permute.xlu0 %4403
        %4405 = vrot.lane.b32.xlu0 %v4400, 126
        %v4406 = vpop.permute.xlu0 %4405
        %v4409 = vadd.f32 %v4395, %v4404
        %v4410 = vadd.f32 %v4396, %v4406
        %s4411 = sld [smem:[#allocation10 + $0x78]]
        %v4412 = vld [vmem:[%s663 + $0x1] sm:$0xff]
        %v4413 = vld [vmem:[%s663 + $0x9] sm:$0xff]
        %v4414 = vstv %s4411
        %v4415 = vmul.f32 %v4414, %v4412
        %v4416 = vmul.f32 %v4414, %v4413
        %v4417 = vadd.f32 %v4409, %v4415
        %v4418 = vadd.f32 %v4410, %v4416
        %s4419 = sld [smem:[#allocation10 + $0x79]]
        %v4420 = vstv %s4419
        %v4421 = vmul.f32 %v4420, %v4412
        %v4422 = vmul.f32 %v4420, %v4413
        %4425 = vrot.lane.b32.xlu0 %v4421, 127
        %v4426 = vpop.permute.xlu0 %4425
        %4427 = vrot.lane.b32.xlu0 %v4422, 127
        %v4428 = vpop.permute.xlu0 %4427
        %v4431 = vadd.f32 %v4417, %v4426
        %v4432 = vadd.f32 %v4418, %v4428
        %s4433 = sld [smem:[#allocation10 + $0x7a]]
        %v4434 = vstv %s4433
        %v4435 = vmul.f32 %v4434, %v4412
        %v4436 = vmul.f32 %v4434, %v4413
        %4439 = vrot.lane.b32.xlu0 %v4435, 126
        %v4440 = vpop.permute.xlu0 %4439
        %4441 = vrot.lane.b32.xlu0 %v4436, 126
        %v4442 = vpop.permute.xlu0 %4441
        %v4445 = vadd.f32 %v4431, %v4440
        %v4446 = vadd.f32 %v4432, %v4442
        %s4447 = sld [smem:[#allocation10 + $0x7b]]
        %v4448 = vld [vmem:[%s663 + $0x2] sm:$0xff]
        %v4449 = vld [vmem:[%s663 + $0xa] sm:$0xff]
        %v4450 = vstv %s4447
        %v4451 = vmul.f32 %v4450, %v4448
        %v4452 = vmul.f32 %v4450, %v4449
        %v4453 = vadd.f32 %v4445, %v4451
        %v4454 = vadd.f32 %v4446, %v4452
        %s4455 = sld [smem:[#allocation10 + $0x7c]]
        %v4456 = vstv %s4455
        %v4457 = vmul.f32 %v4456, %v4448
        %v4458 = vmul.f32 %v4456, %v4449
        %4461 = vrot.lane.b32.xlu0 %v4457, 127
        %v4462 = vpop.permute.xlu0 %4461
        %4463 = vrot.lane.b32.xlu0 %v4458, 127
        %v4464 = vpop.permute.xlu0 %4463
        %v4467 = vadd.f32 %v4453, %v4462
        %v4468 = vadd.f32 %v4454, %v4464
        %s4469 = sld [smem:[#allocation10 + $0x7d]]
        %v4470 = vstv %s4469
        %v4471 = vmul.f32 %v4470, %v4448
        %v4472 = vmul.f32 %v4470, %v4449
        %4475 = vrot.lane.b32.xlu0 %v4471, 126
        %v4476 = vpop.permute.xlu0 %4475
        %4477 = vrot.lane.b32.xlu0 %v4472, 126
        %v4478 = vpop.permute.xlu0 %4477
        %v4481 = vadd.f32 %v4467, %v4476
        %v4482 = vadd.f32 %v4468, %v4478
        %s4483 = sld [smem:[#allocation10 + $0x7e]]
        %v4484 = vld [vmem:[%s772] sm:$0xff]
        %v4485 = vld [vmem:[%s772 + $0x8] sm:$0xff]
        %v4486 = vstv %s4483
        %v4487 = vmul.f32 %v4486, %v4484
        %v4488 = vmul.f32 %v4486, %v4485
        %v4489 = vadd.f32 %v4481, %v4487
        %v4490 = vadd.f32 %v4482, %v4488
        %s4491 = sld [smem:[#allocation10 + $0x7f]]
        %v4492 = vstv %s4491
        %v4493 = vmul.f32 %v4492, %v4484
        %v4494 = vmul.f32 %v4492, %v4485
        %4497 = vrot.lane.b32.xlu0 %v4493, 127
        %v4498 = vpop.permute.xlu0 %4497
        %4499 = vrot.lane.b32.xlu0 %v4494, 127
        %v4500 = vpop.permute.xlu0 %4499
        %v4503 = vadd.f32 %v4489, %v4498
        %v4504 = vadd.f32 %v4490, %v4500
        %s4505 = sld [smem:[#allocation10 + $0x80]]
        %v4506 = vstv %s4505
        %v4507 = vmul.f32 %v4506, %v4484
        %v4508 = vmul.f32 %v4506, %v4485
        %4511 = vrot.lane.b32.xlu0 %v4507, 126
        %v4512 = vpop.permute.xlu0 %4511
        %4513 = vrot.lane.b32.xlu0 %v4508, 126
        %v4514 = vpop.permute.xlu0 %4513
        %v4517 = vadd.f32 %v4503, %v4512
        %v4518 = vadd.f32 %v4504, %v4514
        %s4519 = sld [smem:[#allocation10 + $0x81]]
        %v4520 = vld [vmem:[%s772 + $0x1] sm:$0xff]
        %v4521 = vld [vmem:[%s772 + $0x9] sm:$0xff]
        %v4522 = vstv %s4519
        %v4523 = vmul.f32 %v4522, %v4520
        %v4524 = vmul.f32 %v4522, %v4521
        %v4525 = vadd.f32 %v4517, %v4523
        %v4526 = vadd.f32 %v4518, %v4524
        %s4527 = sld [smem:[#allocation10 + $0x82]]
        %v4528 = vstv %s4527
        %v4529 = vmul.f32 %v4528, %v4520
        %v4530 = vmul.f32 %v4528, %v4521
        %4533 = vrot.lane.b32.xlu0 %v4529, 127
        %v4534 = vpop.permute.xlu0 %4533
        %4535 = vrot.lane.b32.xlu0 %v4530, 127
        %v4536 = vpop.permute.xlu0 %4535
        %v4539 = vadd.f32 %v4525, %v4534
        %v4540 = vadd.f32 %v4526, %v4536
        %s4541 = sld [smem:[#allocation10 + $0x83]]
        %v4542 = vstv %s4541
        %v4543 = vmul.f32 %v4542, %v4520
        %v4544 = vmul.f32 %v4542, %v4521
        %4547 = vrot.lane.b32.xlu0 %v4543, 126
        %v4548 = vpop.permute.xlu0 %4547
        %4549 = vrot.lane.b32.xlu0 %v4544, 126
        %v4550 = vpop.permute.xlu0 %4549
        %v4553 = vadd.f32 %v4539, %v4548
        %v4554 = vadd.f32 %v4540, %v4550
        %s4555 = sld [smem:[#allocation10 + $0x84]]
        %v4556 = vld [vmem:[%s772 + $0x2] sm:$0xff]
        %v4557 = vld [vmem:[%s772 + $0xa] sm:$0xff]
        %v4558 = vstv %s4555
        %v4559 = vmul.f32 %v4558, %v4556
        %v4560 = vmul.f32 %v4558, %v4557
        %v4561 = vadd.f32 %v4553, %v4559
        %v4562 = vadd.f32 %v4554, %v4560
        %s4563 = sld [smem:[#allocation10 + $0x85]]
        %v4564 = vstv %s4563
        %v4565 = vmul.f32 %v4564, %v4556
        %v4566 = vmul.f32 %v4564, %v4557
        %4569 = vrot.lane.b32.xlu0 %v4565, 127
        %v4570 = vpop.permute.xlu0 %4569
        %4571 = vrot.lane.b32.xlu0 %v4566, 127
        %v4572 = vpop.permute.xlu0 %4571
        %v4575 = vadd.f32 %v4561, %v4570
        %v4576 = vadd.f32 %v4562, %v4572
        %s4577 = sld [smem:[#allocation10 + $0x86]]
        %v4578 = vstv %s4577
        %v4579 = vmul.f32 %v4578, %v4556
        %v4580 = vmul.f32 %v4578, %v4557
        %4583 = vrot.lane.b32.xlu0 %v4579, 126
        %v4584 = vpop.permute.xlu0 %4583
        %4585 = vrot.lane.b32.xlu0 %v4580, 126
        %v4586 = vpop.permute.xlu0 %4585
        %v4589 = vadd.f32 %v4575, %v4584
        %v4590 = vadd.f32 %v4576, %v4586
        %s4591 = sld [smem:[#allocation10 + $0x87]]
        %v4592 = vld [vmem:[%s881] sm:$0xff]
        %v4593 = vld [vmem:[%s881 + $0x8] sm:$0xff]
        %v4594 = vstv %s4591
        %v4595 = vmul.f32 %v4594, %v4592
        %v4596 = vmul.f32 %v4594, %v4593
        %v4597 = vadd.f32 %v4589, %v4595
        %v4598 = vadd.f32 %v4590, %v4596
        %s4599 = sld [smem:[#allocation10 + $0x88]]
        %v4600 = vstv %s4599
        %v4601 = vmul.f32 %v4600, %v4592
        %v4602 = vmul.f32 %v4600, %v4593
        %4605 = vrot.lane.b32.xlu0 %v4601, 127
        %v4606 = vpop.permute.xlu0 %4605
        %4607 = vrot.lane.b32.xlu0 %v4602, 127
        %v4608 = vpop.permute.xlu0 %4607
        %v4611 = vadd.f32 %v4597, %v4606
        %v4612 = vadd.f32 %v4598, %v4608
        %s4613 = sld [smem:[#allocation10 + $0x89]]
        %v4614 = vstv %s4613
        %v4615 = vmul.f32 %v4614, %v4592
        %v4616 = vmul.f32 %v4614, %v4593
        %4619 = vrot.lane.b32.xlu0 %v4615, 126
        %v4620 = vpop.permute.xlu0 %4619
        %4621 = vrot.lane.b32.xlu0 %v4616, 126
        %v4622 = vpop.permute.xlu0 %4621
        %v4625 = vadd.f32 %v4611, %v4620
        %v4626 = vadd.f32 %v4612, %v4622
        %s4627 = sld [smem:[#allocation10 + $0x8a]]
        %v4628 = vld [vmem:[%s881 + $0x1] sm:$0xff]
        %v4629 = vld [vmem:[%s881 + $0x9] sm:$0xff]
        %v4630 = vstv %s4627
        %v4631 = vmul.f32 %v4630, %v4628
        %v4632 = vmul.f32 %v4630, %v4629
        %v4633 = vadd.f32 %v4625, %v4631
        %v4634 = vadd.f32 %v4626, %v4632
        %s4635 = sld [smem:[#allocation10 + $0x8b]]
        %v4636 = vstv %s4635
        %v4637 = vmul.f32 %v4636, %v4628
        %v4638 = vmul.f32 %v4636, %v4629
        %4641 = vrot.lane.b32.xlu0 %v4637, 127
        %v4642 = vpop.permute.xlu0 %4641
        %4643 = vrot.lane.b32.xlu0 %v4638, 127
        %v4644 = vpop.permute.xlu0 %4643
        %v4647 = vadd.f32 %v4633, %v4642
        %v4648 = vadd.f32 %v4634, %v4644
        %s4649 = sld [smem:[#allocation10 + $0x8c]]
        %v4650 = vstv %s4649
        %v4651 = vmul.f32 %v4650, %v4628
        %v4652 = vmul.f32 %v4650, %v4629
        %4655 = vrot.lane.b32.xlu0 %v4651, 126
        %v4656 = vpop.permute.xlu0 %4655
        %4657 = vrot.lane.b32.xlu0 %v4652, 126
        %v4658 = vpop.permute.xlu0 %4657
        %v4661 = vadd.f32 %v4647, %v4656
        %v4662 = vadd.f32 %v4648, %v4658
        %s4663 = sld [smem:[#allocation10 + $0x8d]]
        %v4664 = vld [vmem:[%s881 + $0x2] sm:$0xff]
        %v4665 = vld [vmem:[%s881 + $0xa] sm:$0xff]
        %v4666 = vstv %s4663
        %v4667 = vmul.f32 %v4666, %v4664
        %v4668 = vmul.f32 %v4666, %v4665
        %v4669 = vadd.f32 %v4661, %v4667
        %v4670 = vadd.f32 %v4662, %v4668
        %s4671 = sld [smem:[#allocation10 + $0x8e]]
        %v4672 = vstv %s4671
        %v4673 = vmul.f32 %v4672, %v4664
        %v4674 = vmul.f32 %v4672, %v4665
        %4677 = vrot.lane.b32.xlu0 %v4673, 127
        %v4678 = vpop.permute.xlu0 %4677
        %4679 = vrot.lane.b32.xlu0 %v4674, 127
        %v4680 = vpop.permute.xlu0 %4679
        %v4683 = vadd.f32 %v4669, %v4678
        %v4684 = vadd.f32 %v4670, %v4680
        %s4685 = sld [smem:[#allocation10 + $0x8f]]
        %v4686 = vstv %s4685
        %v4687 = vmul.f32 %v4686, %v4664
        %v4688 = vmul.f32 %v4686, %v4665
        %4691 = vrot.lane.b32.xlu0 %v4687, 126
        %v4692 = vpop.permute.xlu0 %4691
        %4693 = vrot.lane.b32.xlu0 %v4688, 126
        %v4694 = vpop.permute.xlu0 %4693
        %v4697 = vadd.f32 %v4683, %v4692
        %v4698 = vadd.f32 %v4684, %v4694
        %s4699 = sld [smem:[#allocation17 + $0x3]]
        %v4700 = vstv %s4699
        %v4701 = vadd.f32 %v4700, 0.0
        %s4702 = sld [smem:[#allocation16 + $0x51]]
        %v4703 = vld [vmem:[#allocation3] sm:$0xff]
        %v4704 = vld [vmem:[#allocation3 + $0x8] sm:$0xff]
        %v4705 = vstv %s4702
        %v4706 = vmul.f32 %v4705, %v4703
        %v4707 = vmul.f32 %v4705, %v4704
        %v4708 = vadd.f32 %v4701, %v4706
        %v4709 = vadd.f32 %v4701, %v4707
        %s4710 = sld [smem:[#allocation16 + $0x52]]
        %v4711 = vstv %s4710
        %v4712 = vmul.f32 %v4711, %v4703
        %v4713 = vmul.f32 %v4711, %v4704
        %4716 = vrot.lane.b32.xlu0 %v4712, 127
        %v4717 = vpop.permute.xlu0 %4716
        %4718 = vrot.lane.b32.xlu0 %v4713, 127
        %v4719 = vpop.permute.xlu0 %4718
        %v4722 = vadd.f32 %v4708, %v4717
        %v4723 = vadd.f32 %v4709, %v4719
        %s4724 = sld [smem:[#allocation16 + $0x53]]
        %v4725 = vstv %s4724
        %v4726 = vmul.f32 %v4725, %v4703
        %v4727 = vmul.f32 %v4725, %v4704
        %4730 = vrot.lane.b32.xlu0 %v4726, 126
        %v4731 = vpop.permute.xlu0 %4730
        %4732 = vrot.lane.b32.xlu0 %v4727, 126
        %v4733 = vpop.permute.xlu0 %4732
        %v4736 = vadd.f32 %v4722, %v4731
        %v4737 = vadd.f32 %v4723, %v4733
        %s4738 = sld [smem:[#allocation16 + $0x54]]
        %v4739 = vld [vmem:[#allocation3 + $0x1] sm:$0xff]
        %v4740 = vld [vmem:[#allocation3 + $0x9] sm:$0xff]
        %v4741 = vstv %s4738
        %v4742 = vmul.f32 %v4741, %v4739
        %v4743 = vmul.f32 %v4741, %v4740
        %v4744 = vadd.f32 %v4736, %v4742
        %v4745 = vadd.f32 %v4737, %v4743
        %s4746 = sld [smem:[#allocation16 + $0x55]]
        %v4747 = vstv %s4746
        %v4748 = vmul.f32 %v4747, %v4739
        %v4749 = vmul.f32 %v4747, %v4740
        %4752 = vrot.lane.b32.xlu0 %v4748, 127
        %v4753 = vpop.permute.xlu0 %4752
        %4754 = vrot.lane.b32.xlu0 %v4749, 127
        %v4755 = vpop.permute.xlu0 %4754
        %v4758 = vadd.f32 %v4744, %v4753
        %v4759 = vadd.f32 %v4745, %v4755
        %s4760 = sld [smem:[#allocation16 + $0x56]]
        %v4761 = vstv %s4760
        %v4762 = vmul.f32 %v4761, %v4739
        %v4763 = vmul.f32 %v4761, %v4740
        %4766 = vrot.lane.b32.xlu0 %v4762, 126
        %v4767 = vpop.permute.xlu0 %4766
        %4768 = vrot.lane.b32.xlu0 %v4763, 126
        %v4769 = vpop.permute.xlu0 %4768
        %v4772 = vadd.f32 %v4758, %v4767
        %v4773 = vadd.f32 %v4759, %v4769
        %s4774 = sld [smem:[#allocation16 + $0x57]]
        %v4775 = vld [vmem:[#allocation3 + $0x2] sm:$0xff]
        %v4776 = vld [vmem:[#allocation3 + $0xa] sm:$0xff]
        %v4777 = vstv %s4774
        %v4778 = vmul.f32 %v4777, %v4775
        %v4779 = vmul.f32 %v4777, %v4776
        %v4780 = vadd.f32 %v4772, %v4778
        %v4781 = vadd.f32 %v4773, %v4779
        %s4782 = sld [smem:[#allocation16 + $0x58]]
        %v4783 = vstv %s4782
        %v4784 = vmul.f32 %v4783, %v4775
        %v4785 = vmul.f32 %v4783, %v4776
        %4788 = vrot.lane.b32.xlu0 %v4784, 127
        %v4789 = vpop.permute.xlu0 %4788
        %4790 = vrot.lane.b32.xlu0 %v4785, 127
        %v4791 = vpop.permute.xlu0 %4790
        %v4794 = vadd.f32 %v4780, %v4789
        %v4795 = vadd.f32 %v4781, %v4791
        %s4796 = sld [smem:[#allocation16 + $0x59]]
        %v4797 = vstv %s4796
        %v4798 = vmul.f32 %v4797, %v4775
        %v4799 = vmul.f32 %v4797, %v4776
        %4802 = vrot.lane.b32.xlu0 %v4798, 126
        %v4803 = vpop.permute.xlu0 %4802
        %4804 = vrot.lane.b32.xlu0 %v4799, 126
        %v4805 = vpop.permute.xlu0 %4804
        %v4808 = vadd.f32 %v4794, %v4803
        %v4809 = vadd.f32 %v4795, %v4805
        %s4810 = sld [smem:[#allocation16 + $0x5a]]
        %v4811 = vld [vmem:[%s1457] sm:$0xff]
        %v4812 = vld [vmem:[%s1457 + $0x8] sm:$0xff]
        %v4813 = vstv %s4810
        %v4814 = vmul.f32 %v4813, %v4811
        %v4815 = vmul.f32 %v4813, %v4812
        %v4816 = vadd.f32 %v4808, %v4814
        %v4817 = vadd.f32 %v4809, %v4815
        %s4818 = sld [smem:[#allocation16 + $0x5b]]
        %v4819 = vstv %s4818
        %v4820 = vmul.f32 %v4819, %v4811
        %v4821 = vmul.f32 %v4819, %v4812
        %4824 = vrot.lane.b32.xlu0 %v4820, 127
        %v4825 = vpop.permute.xlu0 %4824
        %4826 = vrot.lane.b32.xlu0 %v4821, 127
        %v4827 = vpop.permute.xlu0 %4826
        %v4830 = vadd.f32 %v4816, %v4825
        %v4831 = vadd.f32 %v4817, %v4827
        %s4832 = sld [smem:[#allocation16 + $0x5c]]
        %v4833 = vstv %s4832
        %v4834 = vmul.f32 %v4833, %v4811
        %v4835 = vmul.f32 %v4833, %v4812
        %4838 = vrot.lane.b32.xlu0 %v4834, 126
        %v4839 = vpop.permute.xlu0 %4838
        %4840 = vrot.lane.b32.xlu0 %v4835, 126
        %v4841 = vpop.permute.xlu0 %4840
        %v4844 = vadd.f32 %v4830, %v4839
        %v4845 = vadd.f32 %v4831, %v4841
        %s4846 = sld [smem:[#allocation16 + $0x5d]]
        %v4847 = vld [vmem:[%s1457 + $0x1] sm:$0xff]
        %v4848 = vld [vmem:[%s1457 + $0x9] sm:$0xff]
        %v4849 = vstv %s4846
        %v4850 = vmul.f32 %v4849, %v4847
        %v4851 = vmul.f32 %v4849, %v4848
        %v4852 = vadd.f32 %v4844, %v4850
        %v4853 = vadd.f32 %v4845, %v4851
        %s4854 = sld [smem:[#allocation16 + $0x5e]]
        %v4855 = vstv %s4854
        %v4856 = vmul.f32 %v4855, %v4847
        %v4857 = vmul.f32 %v4855, %v4848
        %4860 = vrot.lane.b32.xlu0 %v4856, 127
        %v4861 = vpop.permute.xlu0 %4860
        %4862 = vrot.lane.b32.xlu0 %v4857, 127
        %v4863 = vpop.permute.xlu0 %4862
        %v4866 = vadd.f32 %v4852, %v4861
        %v4867 = vadd.f32 %v4853, %v4863
        %s4868 = sld [smem:[#allocation16 + $0x5f]]
        %v4869 = vstv %s4868
        %v4870 = vmul.f32 %v4869, %v4847
        %v4871 = vmul.f32 %v4869, %v4848
        %4874 = vrot.lane.b32.xlu0 %v4870, 126
        %v4875 = vpop.permute.xlu0 %4874
        %4876 = vrot.lane.b32.xlu0 %v4871, 126
        %v4877 = vpop.permute.xlu0 %4876
        %v4880 = vadd.f32 %v4866, %v4875
        %v4881 = vadd.f32 %v4867, %v4877
        %s4882 = sld [smem:[#allocation16 + $0x60]]
        %v4883 = vld [vmem:[%s1457 + $0x2] sm:$0xff]
        %v4884 = vld [vmem:[%s1457 + $0xa] sm:$0xff]
        %v4885 = vstv %s4882
        %v4886 = vmul.f32 %v4885, %v4883
        %v4887 = vmul.f32 %v4885, %v4884
        %v4888 = vadd.f32 %v4880, %v4886
        %v4889 = vadd.f32 %v4881, %v4887
        %s4890 = sld [smem:[#allocation16 + $0x61]]
        %v4891 = vstv %s4890
        %v4892 = vmul.f32 %v4891, %v4883
        %v4893 = vmul.f32 %v4891, %v4884
        %4896 = vrot.lane.b32.xlu0 %v4892, 127
        %v4897 = vpop.permute.xlu0 %4896
        %4898 = vrot.lane.b32.xlu0 %v4893, 127
        %v4899 = vpop.permute.xlu0 %4898
        %v4902 = vadd.f32 %v4888, %v4897
        %v4903 = vadd.f32 %v4889, %v4899
        %s4904 = sld [smem:[#allocation16 + $0x62]]
        %v4905 = vstv %s4904
        %v4906 = vmul.f32 %v4905, %v4883
        %v4907 = vmul.f32 %v4905, %v4884
        %4910 = vrot.lane.b32.xlu0 %v4906, 126
        %v4911 = vpop.permute.xlu0 %4910
        %4912 = vrot.lane.b32.xlu0 %v4907, 126
        %v4913 = vpop.permute.xlu0 %4912
        %v4916 = vadd.f32 %v4902, %v4911
        %v4917 = vadd.f32 %v4903, %v4913
        %s4918 = sld [smem:[#allocation16 + $0x63]]
        %v4919 = vld [vmem:[%s1911] sm:$0xff]
        %v4920 = vld [vmem:[%s1911 + $0x8] sm:$0xff]
        %v4921 = vstv %s4918
        %v4922 = vmul.f32 %v4921, %v4919
        %v4923 = vmul.f32 %v4921, %v4920
        %v4924 = vadd.f32 %v4916, %v4922
        %v4925 = vadd.f32 %v4917, %v4923
        %s4926 = sld [smem:[#allocation16 + $0x64]]
        %v4927 = vstv %s4926
        %v4928 = vmul.f32 %v4927, %v4919
        %v4929 = vmul.f32 %v4927, %v4920
        %4932 = vrot.lane.b32.xlu0 %v4928, 127
        %v4933 = vpop.permute.xlu0 %4932
        %4934 = vrot.lane.b32.xlu0 %v4929, 127
        %v4935 = vpop.permute.xlu0 %4934
        %v4938 = vadd.f32 %v4924, %v4933
        %v4939 = vadd.f32 %v4925, %v4935
        %s4940 = sld [smem:[#allocation16 + $0x65]]
        %v4941 = vstv %s4940
        %v4942 = vmul.f32 %v4941, %v4919
        %v4943 = vmul.f32 %v4941, %v4920
        %4946 = vrot.lane.b32.xlu0 %v4942, 126
        %v4947 = vpop.permute.xlu0 %4946
        %4948 = vrot.lane.b32.xlu0 %v4943, 126
        %v4949 = vpop.permute.xlu0 %4948
        %v4952 = vadd.f32 %v4938, %v4947
        %v4953 = vadd.f32 %v4939, %v4949
        %s4954 = sld [smem:[#allocation16 + $0x66]]
        %v4955 = vld [vmem:[%s1911 + $0x1] sm:$0xff]
        %v4956 = vld [vmem:[%s1911 + $0x9] sm:$0xff]
        %v4957 = vstv %s4954
        %v4958 = vmul.f32 %v4957, %v4955
        %v4959 = vmul.f32 %v4957, %v4956
        %v4960 = vadd.f32 %v4952, %v4958
        %v4961 = vadd.f32 %v4953, %v4959
        %s4962 = sld [smem:[#allocation16 + $0x67]]
        %v4963 = vstv %s4962
        %v4964 = vmul.f32 %v4963, %v4955
        %v4965 = vmul.f32 %v4963, %v4956
        %4968 = vrot.lane.b32.xlu0 %v4964, 127
        %v4969 = vpop.permute.xlu0 %4968
        %4970 = vrot.lane.b32.xlu0 %v4965, 127
        %v4971 = vpop.permute.xlu0 %4970
        %v4974 = vadd.f32 %v4960, %v4969
        %v4975 = vadd.f32 %v4961, %v4971
        %s4976 = sld [smem:[#allocation16 + $0x68]]
        %v4977 = vstv %s4976
        %v4978 = vmul.f32 %v4977, %v4955
        %v4979 = vmul.f32 %v4977, %v4956
        %4982 = vrot.lane.b32.xlu0 %v4978, 126
        %v4983 = vpop.permute.xlu0 %4982
        %4984 = vrot.lane.b32.xlu0 %v4979, 126
        %v4985 = vpop.permute.xlu0 %4984
        %v4988 = vadd.f32 %v4974, %v4983
        %v4989 = vadd.f32 %v4975, %v4985
        %s4990 = sld [smem:[#allocation16 + $0x69]]
        %v4991 = vld [vmem:[%s1911 + $0x2] sm:$0xff]
        %v4992 = vld [vmem:[%s1911 + $0xa] sm:$0xff]
        %v4993 = vstv %s4990
        %v4994 = vmul.f32 %v4993, %v4991
        %v4995 = vmul.f32 %v4993, %v4992
        %v4996 = vadd.f32 %v4988, %v4994
        %v4997 = vadd.f32 %v4989, %v4995
        %s4998 = sld [smem:[#allocation16 + $0x6a]]
        %v4999 = vstv %s4998
        %v5000 = vmul.f32 %v4999, %v4991
        %v5001 = vmul.f32 %v4999, %v4992
        %5004 = vrot.lane.b32.xlu0 %v5000, 127
        %v5005 = vpop.permute.xlu0 %5004
        %5006 = vrot.lane.b32.xlu0 %v5001, 127
        %v5007 = vpop.permute.xlu0 %5006
        %v5010 = vadd.f32 %v4996, %v5005
        %v5011 = vadd.f32 %v4997, %v5007
        %s5012 = sld [smem:[#allocation16 + $0x6b]]
        %v5013 = vstv %s5012
        %v5014 = vmul.f32 %v5013, %v4991
        %v5015 = vmul.f32 %v5013, %v4992
        %5018 = vrot.lane.b32.xlu0 %v5014, 126
        %v5019 = vpop.permute.xlu0 %5018
        %5020 = vrot.lane.b32.xlu0 %v5015, 126
        %v5021 = vpop.permute.xlu0 %5020
        %v5024 = vadd.f32 %v5010, %v5019
        %v5025 = vadd.f32 %v5011, %v5021
        %v5026 = vxor.u32 %v5024, 2147483648
        %v5027 = vxor.u32 %v5025, 2147483648
        %v5028 = vmul.f32 %v5026, 1.442695
        %v5029 = vpow.pop %v5028
        %v5030 = vmul.f32 %v5027, 1.442695
        %v5031 = vpow.pop %v5030
        %v5032 = vadd.f32 %v5029, 1.0
        %v5033 = vadd.f32 %v5031, 1.0
        %v5034 = vrcp.pop %v5032
        %v5035 = vmul.f32 1.0, %v5034
        %v5036 = vrcp.pop %v5033
        %v5037 = vmul.f32 1.0, %v5036
        %v5038 = vmul.f32 %v4697, %v5035
        %v5039 = vmul.f32 %v4698, %v5037
        %s5040 = scalar_lea.vmem %s400, 48 [#allocation4]
        %v5041 = vld [vmem:[%s5040] sm:$0xff]
        %v5042 = vld [vmem:[%s5040 + $0x8] sm:$0xff]
        %v5043 = vadd.f32 %v5038, %v5041
        %v5044 = vadd.f32 %v5039, %v5042
        %s5045 = scalar_lea.vmem %s471, 48 [#allocation19]
        %5046 = vst.msk [vmem:[%s5045] sm:$0xff] %vm993, %v5043
        %5047 = vst.msk [vmem:[%s5045 + $0x8] sm:$0xff] %vm993, %v5044
        %s5048 = sand.u32 %s223, 1
        %s5049 = scalar_lea.sflag [#allocation6], %s5048
        %s5050 = sand.u32 %s223, 1
        %s5051 = smul.addr %s5050, 64
        %s5052 = scalar_lea.vmem [#allocation19], %s5051
        %s5053 = sand.u32 %s249, 1
        %s5054 = scalar_lea.sflag [#allocation21], %s5053
        %s5055 = sand.u32 %s249, 1
        %s5056 = smul.addr %s5055, 48
        %s5057 = scalar_lea.vmem [#allocation20], %s5056
        // Predicated region
        $region85: #{tpu_custom_call.1} parent=51 // pred_check
          %p5058 = pneg %p233
        $region86: #{tpu_custom_call.1} parent=51 // pred_check_branch
          %5060 = sbr.rel (%p5058) target = $region88
        $region87: #{tpu_custom_call.1} parent=51 // pred_region
          %s5062 = ssub.s32 1024, 1024
          %5063 = vsyncadd %s5049, %s5062
          %s5064 = smul.addr %s37, 8
          %s5065 = smul.addr %s5064, 128
          %s5066 = scalar_lea.hbm %s8, %s5065
          %s5067 = sshll.u32 %s5052, 4
          %s5068 = int_to_ptr.vmem [resolvable:$true] %s5067
          %5073 = dma.vmem_to_hbm [thread:$0]  %s5068, 1024, %s5066, %s5049, 128, 128, 8
        $region88: #{tpu_custom_call.1} parent=51 // pred_fallthru
          _
        // Predicated region
        $region89: #{tpu_custom_call.1} parent=51 // pred_check
          %p5074 = pneg %p259
        $region90: #{tpu_custom_call.1} parent=51 // pred_check_branch
          %5076 = sbr.rel (%p5074) target = $region92
        $region91: #{tpu_custom_call.1} parent=51 // pred_region
          %s5078 = ssub.s32 768, 768
          %5079 = vsyncadd %s5054, %s5078
          %s5080 = smul.addr %s37, 6
          %s5081 = smul.addr %s5080, 128
          %s5082 = scalar_lea.hbm %s9, %s5081
          %s5083 = sshll.u32 %s5057, 4
          %s5084 = int_to_ptr.vmem [resolvable:$true] %s5083
          %5089 = dma.vmem_to_hbm [thread:$0]  %s5084, 768, %s5082, %s5054, 128, 128, 8
        $region92: #{tpu_custom_call.1} parent=51 // pred_fallthru
          _
      $region52: #{tpu_custom_call.1} parent=5 // pred_fallthru
        _
      %p5090 = scmp.le.s32.totalorder 2, %s32
      // Predicated region
      $region93: #{tpu_custom_call.1} parent=5 // pred_check
        %p5091 = pneg %p5090
      $region94: #{tpu_custom_call.1} parent=5 // pred_check_branch
        %5093 = sbr.rel (%p5091) target = $region96
      $region95: #{tpu_custom_call.1} parent=5 // pred_region
        %s5094 = ssub.s32 %s32, 2
        // Predicated region
        $region97: #{tpu_custom_call.1} parent=95 // pred_check
          %p5095 = pneg %p239
        $region98: #{tpu_custom_call.1} parent=95 // pred_check_branch
          %5097 = sbr.rel (%p5095) target = $region100
        $region99: #{tpu_custom_call.1} parent=95 // pred_region
          %s5098 = sand.u32 %s224, 1
          %s5099 = scalar_lea.sflag [#allocation6], %s5098
          %s5100 = sand.u32 %s224, 1
          %s5101 = smul.addr %s5100, 64
          %s5102 = scalar_lea.vmem [#allocation19], %s5101
          %5103 = dma.done %s5099, 1024
        $region100: #{tpu_custom_call.1} parent=95 // pred_fallthru
          _
        // Predicated region
        $region101: #{tpu_custom_call.1} parent=95 // pred_check
          %p5104 = pneg %p265
        $region102: #{tpu_custom_call.1} parent=95 // pred_check_branch
          %5106 = sbr.rel (%p5104) target = $region104
        $region103: #{tpu_custom_call.1} parent=95 // pred_region
          %s5107 = sand.u32 %s250, 1
          %s5108 = scalar_lea.sflag [#allocation21], %s5107
          %s5109 = sand.u32 %s250, 1
          %s5110 = smul.addr %s5109, 48
          %s5111 = scalar_lea.vmem [#allocation20], %s5110
          %5112 = dma.done %s5108, 768
        $region104: #{tpu_custom_call.1} parent=95 // pred_fallthru
          _
      $region96: #{tpu_custom_call.1} parent=5 // pred_fallthru
        _
    $region6: #{tpu_custom_call.1} parent=1 // loop_footer
      %s36 = sadd.s32 1, %s32
    $region7: #{tpu_custom_call.1} parent=1 // loop_footer_branch
      %31 = sbr.rel target = $region3
    $region8: #{tpu_custom_call.1} parent=1 // loop_exit
      _
    %5113 = vsyncpa [#allocation5], 1
    %s5114 = scalar_lea.sflag [#allocation5], 1
    %5115 = vsyncpa %s5114, 1
    %5116 = vsyncpa [#allocation9], 1
    %s5117 = scalar_lea.sflag [#allocation9], 1
    %5118 = vsyncpa %s5117, 1
    %5119 = vsyncpa [#allocation6], 1
    %s5120 = scalar_lea.sflag [#allocation6], 1
    %5121 = vsyncpa %s5120, 1
    %5122 = vsyncpa [#allocation21], 1
    %s5123 = scalar_lea.sflag [#allocation21], 1
    %5124 = vsyncpa %s5123, 1
    %5125 = vsyncpa [#allocation7], 1
    %s5126 = scalar_lea.sflag [#allocation7], 1
    %5127 = vsyncpa %s5126, 1
    %5128 = vsyncpa [#allocation12], 1
    %5129 = vsyncpa [#allocation15], 1
    %5130 = vsyncpa [#allocation18], 1

</llo_original>
